<compile_context>
chip_gen: v6e
topology: v6e:2x2x1
jax: 0.10.0
libtpu: 0.0.40
codegen_flags: <defaults>
</compile_context>

<pallas_src>
import jax
import jax.numpy as jnp
from jax.experimental import pallas as pl
from jax.experimental.pallas import tpu as pltpu

# Logical sizes (PyTorch module) and lane-padded sizes used inside the kernel.
IN = 1080
H1, H2, H3, OUT = 480, 200, 100, 6
H1P, H2P, H3P, OUTP = 512, 256, 128, 128

TARGET_BLOCK_B = 512  # batch rows per grid step; sweep 256/512/1024 per chip


def mlp_kernel(x_ref,
               w1_ref, b1_ref,
               w2_ref, b2_ref,
               w3_ref, b3_ref,
               w4_ref, b4_ref,
               o_ref):
    # x tile arrives as f32; cast to bf16 on the VPU (saves an HBM pass vs a
    # wrapper-side astype). Weights are bf16, biases f32; every matmul
    # accumulates in f32 on the MXU.
    x = x_ref[...].astype(jnp.bfloat16)

    h = jnp.dot(x, w1_ref[...], preferred_element_type=jnp.float32) + b1_ref[...]
    h = jnp.maximum(h, 0.0).astype(jnp.bfloat16)

    h = jnp.dot(h, w2_ref[...], preferred_element_type=jnp.float32) + b2_ref[...]
    h = jnp.maximum(h, 0.0).astype(jnp.bfloat16)

    h = jnp.dot(h, w3_ref[...], preferred_element_type=jnp.float32) + b3_ref[...]
    h = jnp.maximum(h, 0.0).astype(jnp.bfloat16)

    h = jnp.dot(h, w4_ref[...], preferred_element_type=jnp.float32) + b4_ref[...]
    # exp in f32 (EUP), store bf16 lane-dense (unmasked vst except ragged tail).
    o_ref[...] = jnp.exp(h).astype(o_ref.dtype)


def _round_up(n, m):
    return ((n + m - 1) // m) * m


def _pick_block_b(B, target=TARGET_BLOCK_B):
    """Choose the batch tile.

    - multiple of 128 when possible (fills MXU rows, lane/sublane friendly)
    - keeps >=2 grid steps when the batch allows so v7x's second TensorCore
      gets work via the "parallel" grid axis
    - never (much) larger than the batch itself
    """
    bb = min(target, max(128, _round_up(pl.cdiv(B, 2), 128)))
    return min(bb, _round_up(B, 8))


def net_forward(x, params, *, target_block_b=TARGET_BLOCK_B):
    """x: (B, 1080) float32 -> (B, 6) float32."""
    (w1, b1), (w2, b2), (w3, b3), (w4, b4) = params
    B = x.shape[0]
    block_b = _pick_block_b(B, target_block_b)
    n_tiles = pl.cdiv(B, block_b)

    # Weights/biases: constant index_map -> loaded once, stay VMEM-resident.
    const = lambda i: (0, 0)
    batch_tile = lambda i: (i, 0)

    out = pl.pallas_call(
        mlp_kernel,
        out_shape=jax.ShapeDtypeStruct((B, OUTP), jnp.bfloat16),
        grid=(n_tiles,),
        in_specs=[
            pl.BlockSpec((block_b, IN), batch_tile),   # x tile (f32)
            pl.BlockSpec((IN, H1P), const),            # w1 (bf16)
            pl.BlockSpec((1, H1P), const),             # b1 (f32)
            pl.BlockSpec((H1P, H2P), const),           # w2
            pl.BlockSpec((1, H2P), const),             # b2
            pl.BlockSpec((H2P, H3P), const),           # w3
            pl.BlockSpec((1, H3P), const),             # b3
            pl.BlockSpec((H3P, OUTP), const),          # w4
            pl.BlockSpec((1, OUTP), const),            # b4
        ],
        out_specs=pl.BlockSpec((block_b, OUTP), batch_tile),
        compiler_params=pltpu.CompilerParams(
            dimension_semantics=("parallel",),          # 2-TC sharding on v7x
            vmem_limit_bytes=48 * 1024 * 1024),
    )(x, w1, b1, w2, b2, w3, b3, w4, b4)

    # Padded output columns hold exp(0)=1; slice them away and hand back f32.
    return out[:, :OUT].astype(jnp.float32)


def init_linear(key, fan_in, fan_out, fan_in_pad, fan_out_pad):
    """PyTorch-like nn.Linear init (uniform +-1/sqrt(fan_in)).

    Returns:
      w: (fan_in_pad, fan_out_pad) bf16, zero-padded outside the real block,
         stored as (in, out) so the kernel computes x @ W + b.
      b: (1, fan_out_pad) f32, zero-padded.
    """
    kw, kb = jax.random.split(key)
    bound = 1.0 / jnp.sqrt(jnp.float32(fan_in))
    w = jax.random.uniform(kw, (fan_in, fan_out), jnp.float32, -bound, bound)
    b = jax.random.uniform(kb, (1, fan_out), jnp.float32, -bound, bound)
    w_p = jnp.zeros((fan_in_pad, fan_out_pad), jnp.float32).at[:fan_in, :fan_out].set(w)
    b_p = jnp.zeros((1, fan_out_pad), jnp.float32).at[:, :fan_out].set(b)
    return w_p.astype(jnp.bfloat16), b_p


def ref_forward(x, params):
    """Plain-JAX reference following the same bf16-operand / f32-accum path."""
    (w1, b1), (w2, b2), (w3, b3), (w4, b4) = params
    h = x.astype(jnp.bfloat16)
    h = jnp.maximum(jnp.dot(h, w1, preferred_element_type=jnp.float32) + b1, 0.0)
    h = jnp.maximum(jnp.dot(h.astype(jnp.bfloat16), w2,
                            preferred_element_type=jnp.float32) + b2, 0.0)
    h = jnp.maximum(jnp.dot(h.astype(jnp.bfloat16), w3,
                            preferred_element_type=jnp.float32) + b3, 0.0)
    h = jnp.dot(h.astype(jnp.bfloat16), w4,
                preferred_element_type=jnp.float32) + b4
    return jnp.exp(h)[:, :OUT]


if __name__ == "__main__":
    key = jax.random.PRNGKey(0)
    k_x, k1, k2, k3, k4 = jax.random.split(key, 5)

    # Batch chosen to exercise: enlarged block (384 rows), an even 2-step grid
    # (v7x megacore path), and a ragged last block (no wrapper padding).
    B = 600
    x = jax.random.normal(k_x, (B, IN), jnp.float32)

    params = (
        init_linear(k1, IN, H1, IN, H1P),
        init_linear(k2, H1, H2, H1P, H2P),
        init_linear(k3, H2, H3, H2P, H3P),
        init_linear(k4, H3, OUT, H3P, OUTP),
    )

    out = net_forward(x, params)
    out = jax.block_until_ready(out)

    expected = ref_forward(x, params)
    assert out.shape == (B, OUT), out.shape
    # Same bf16-operand / f32-accum math as the kernel; tolerance covers
    # reduction-order differences plus the bf16 rounding of the final store
    # (exp amplifies small abs errors in the pre-activation).
    assert jnp.allclose(out, expected, rtol=3e-2, atol=3e-2), (
        float(jnp.max(jnp.abs(out - expected))))

    print("KERNEL_OK")
</pallas_src>

<mosaic_0001>
module attributes {stable_mosaic.version = 11 : i64} {
  func.func @mlp_kernel(%arg0: i32, %arg1: memref<384x1080xf32, #tpu.memory_space<vmem>>, %arg2: memref<1080x512xbf16, #tpu.memory_space<vmem>>, %arg3: memref<1x512xf32, #tpu.memory_space<vmem>>, %arg4: memref<512x256xbf16, #tpu.memory_space<vmem>>, %arg5: memref<1x256xf32, #tpu.memory_space<vmem>>, %arg6: memref<256x128xbf16, #tpu.memory_space<vmem>>, %arg7: memref<1x128xf32, #tpu.memory_space<vmem>>, %arg8: memref<128x128xbf16, #tpu.memory_space<vmem>>, %arg9: memref<1x128xf32, #tpu.memory_space<vmem>>, %arg10: memref<384x128xbf16, #tpu.memory_space<vmem>>) attributes {dimension_semantics = [#tpu.dimension_semantics<parallel>], iteration_bounds = array<i64: 2>, scalar_prefetch = 0 : i64, scratch_operands = 0 : i64, tpu.core_type = #tpu.core_type<tc>, window_params = [{transform_indices = @transform_0, window_bounds = array<i64: 384, 1080>}, {pipeline_mode = #tpu.pipeline_mode<synchronous>, transform_indices = @transform_1, window_bounds = array<i64: 1080, 512>}, {pipeline_mode = #tpu.pipeline_mode<synchronous>, transform_indices = @transform_2, window_bounds = array<i64: 1, 512>}, {pipeline_mode = #tpu.pipeline_mode<synchronous>, transform_indices = @transform_3, window_bounds = array<i64: 512, 256>}, {pipeline_mode = #tpu.pipeline_mode<synchronous>, transform_indices = @transform_4, window_bounds = array<i64: 1, 256>}, {pipeline_mode = #tpu.pipeline_mode<synchronous>, transform_indices = @transform_5, window_bounds = array<i64: 256, 128>}, {pipeline_mode = #tpu.pipeline_mode<synchronous>, transform_indices = @transform_6, window_bounds = array<i64: 1, 128>}, {pipeline_mode = #tpu.pipeline_mode<synchronous>, transform_indices = @transform_7, window_bounds = array<i64: 128, 128>}, {pipeline_mode = #tpu.pipeline_mode<synchronous>, transform_indices = @transform_8, window_bounds = array<i64: 1, 128>}, {transform_indices = @transform_9, window_bounds = array<i64: 384, 128>}]} {
    %c0 = arith.constant 0 : index
    %c0_0 = arith.constant 0 : index
    %0 = vector.load %arg1[%c0, %c0_0] : memref<384x1080xf32, #tpu.memory_space<vmem>>, vector<384x1080xf32>
    %1 = arith.truncf %0 : vector<384x1080xf32> to vector<384x1080xbf16>
    %c0_1 = arith.constant 0 : index
    %c0_2 = arith.constant 0 : index
    %2 = vector.load %arg2[%c0_1, %c0_2] : memref<1080x512xbf16, #tpu.memory_space<vmem>>, vector<1080x512xbf16>
    %cst = arith.constant dense<0.000000e+00> : vector<384x512xf32>
    %3 = tpu.matmul %1, %2, %cst {dimension_numbers = #tpu.dot_dimension_numbers<[1], [0], [0], [1], [0, 0, 1, 1], [], []>} : vector<384x1080xbf16>, vector<1080x512xbf16>, vector<384x512xf32> -> vector<384x512xf32>
    %c0_3 = arith.constant 0 : index
    %c0_4 = arith.constant 0 : index
    %4 = vector.load %arg3[%c0_3, %c0_4] : memref<1x512xf32, #tpu.memory_space<vmem>>, vector<1x512xf32>
    %5 = vector.broadcast %4 : vector<1x512xf32> to vector<384x512xf32>
    %6 = arith.addf %3, %5 : vector<384x512xf32>
    %cst_5 = arith.constant 0.000000e+00 : f32
    %7 = vector.broadcast %cst_5 : f32 to vector<384x512xf32>
    %8 = arith.maximumf %6, %7 : vector<384x512xf32>
    %9 = arith.truncf %8 : vector<384x512xf32> to vector<384x512xbf16>
    %c0_6 = arith.constant 0 : index
    %c0_7 = arith.constant 0 : index
    %10 = vector.load %arg4[%c0_6, %c0_7] : memref<512x256xbf16, #tpu.memory_space<vmem>>, vector<512x256xbf16>
    %cst_8 = arith.constant dense<0.000000e+00> : vector<384x256xf32>
    %11 = tpu.matmul %9, %10, %cst_8 {dimension_numbers = #tpu.dot_dimension_numbers<[1], [0], [0], [1], [0, 0, 1, 1], [], []>} : vector<384x512xbf16>, vector<512x256xbf16>, vector<384x256xf32> -> vector<384x256xf32>
    %c0_9 = arith.constant 0 : index
    %c0_10 = arith.constant 0 : index
    %12 = vector.load %arg5[%c0_9, %c0_10] : memref<1x256xf32, #tpu.memory_space<vmem>>, vector<1x256xf32>
    %13 = vector.broadcast %12 : vector<1x256xf32> to vector<384x256xf32>
    %14 = arith.addf %11, %13 : vector<384x256xf32>
    %cst_11 = arith.constant 0.000000e+00 : f32
    %15 = vector.broadcast %cst_11 : f32 to vector<384x256xf32>
    %16 = arith.maximumf %14, %15 : vector<384x256xf32>
    %17 = arith.truncf %16 : vector<384x256xf32> to vector<384x256xbf16>
    %c0_12 = arith.constant 0 : index
    %c0_13 = arith.constant 0 : index
    %18 = vector.load %arg6[%c0_12, %c0_13] : memref<256x128xbf16, #tpu.memory_space<vmem>>, vector<256x128xbf16>
    %cst_14 = arith.constant dense<0.000000e+00> : vector<384x128xf32>
    %19 = tpu.matmul %17, %18, %cst_14 {dimension_numbers = #tpu.dot_dimension_numbers<[1], [0], [0], [1], [0, 0, 1, 1], [], []>} : vector<384x256xbf16>, vector<256x128xbf16>, vector<384x128xf32> -> vector<384x128xf32>
    %c0_15 = arith.constant 0 : index
    %c0_16 = arith.constant 0 : index
    %20 = vector.load %arg7[%c0_15, %c0_16] : memref<1x128xf32, #tpu.memory_space<vmem>>, vector<1x128xf32>
    %21 = vector.broadcast %20 : vector<1x128xf32> to vector<384x128xf32>
    %22 = arith.addf %19, %21 : vector<384x128xf32>
    %cst_17 = arith.constant 0.000000e+00 : f32
    %23 = vector.broadcast %cst_17 : f32 to vector<384x128xf32>
    %24 = arith.maximumf %22, %23 : vector<384x128xf32>
    %25 = arith.truncf %24 : vector<384x128xf32> to vector<384x128xbf16>
    %c0_18 = arith.constant 0 : index
    %c0_19 = arith.constant 0 : index
    %26 = vector.load %arg8[%c0_18, %c0_19] : memref<128x128xbf16, #tpu.memory_space<vmem>>, vector<128x128xbf16>
    %cst_20 = arith.constant dense<0.000000e+00> : vector<384x128xf32>
    %27 = tpu.matmul %25, %26, %cst_20 {dimension_numbers = #tpu.dot_dimension_numbers<[1], [0], [0], [1], [0, 0, 1, 1], [], []>} : vector<384x128xbf16>, vector<128x128xbf16>, vector<384x128xf32> -> vector<384x128xf32>
    %c0_21 = arith.constant 0 : index
    %c0_22 = arith.constant 0 : index
    %28 = vector.load %arg9[%c0_21, %c0_22] : memref<1x128xf32, #tpu.memory_space<vmem>>, vector<1x128xf32>
    %29 = vector.broadcast %28 : vector<1x128xf32> to vector<384x128xf32>
    %30 = arith.addf %27, %29 : vector<384x128xf32>
    %31 = math.exp %30 : vector<384x128xf32>
    %32 = arith.truncf %31 : vector<384x128xf32> to vector<384x128xbf16>
    %c0_23 = arith.constant 0 : index
    %c0_24 = arith.constant 0 : index
    %33 = vector.load %arg10[%c0_23, %c0_24] : memref<384x128xbf16, #tpu.memory_space<vmem>>, vector<384x128xbf16>
    tpu.vector_store %arg10[%c0_23, %c0_24], %32 {strides = array<i32>} : memref<384x128xbf16, #tpu.memory_space<vmem>>, vector<384x128xbf16>,
    return
  }
  func.func @transform_0(%arg0: i32) -> (i32, i32) {
    %c0_i32 = arith.constant 0 : i32
    %c0_i32_0 = arith.constant 0 : i32
    return %arg0, %c0_i32 : i32, i32
  }
  func.func @transform_1(%arg0: i32) -> (i32, i32) {
    %c0_i32 = arith.constant 0 : i32
    %c0_i32_0 = arith.constant 0 : i32
    %c0_i32_1 = arith.constant 0 : i32
    return %c0_i32, %c0_i32_0 : i32, i32
  }
  func.func @transform_2(%arg0: i32) -> (i32, i32) {
    %c0_i32 = arith.constant 0 : i32
    %c0_i32_0 = arith.constant 0 : i32
    %c0_i32_1 = arith.constant 0 : i32
    return %c0_i32, %c0_i32_0 : i32, i32
  }
  func.func @transform_3(%arg0: i32) -> (i32, i32) {
    %c0_i32 = arith.constant 0 : i32
    %c0_i32_0 = arith.constant 0 : i32
    %c0_i32_1 = arith.constant 0 : i32
    return %c0_i32, %c0_i32_0 : i32, i32
  }
  func.func @transform_4(%arg0: i32) -> (i32, i32) {
    %c0_i32 = arith.constant 0 : i32
    %c0_i32_0 = arith.constant 0 : i32
    %c0_i32_1 = arith.constant 0 : i32
    return %c0_i32, %c0_i32_0 : i32, i32
  }
  func.func @transform_5(%arg0: i32) -> (i32, i32) {
    %c0_i32 = arith.constant 0 : i32
    %c0_i32_0 = arith.constant 0 : i32
    %c0_i32_1 = arith.constant 0 : i32
    return %c0_i32, %c0_i32_0 : i32, i32
  }
  func.func @transform_6(%arg0: i32) -> (i32, i32) {
    %c0_i32 = arith.constant 0 : i32
    %c0_i32_0 = arith.constant 0 : i32
    %c0_i32_1 = arith.constant 0 : i32
    return %c0_i32, %c0_i32_0 : i32, i32
  }
  func.func @transform_7(%arg0: i32) -> (i32, i32) {
    %c0_i32 = arith.constant 0 : i32
    %c0_i32_0 = arith.constant 0 : i32
    %c0_i32_1 = arith.constant 0 : i32
    return %c0_i32, %c0_i32_0 : i32, i32
  }
  func.func @transform_8(%arg0: i32) -> (i32, i32) {
    %c0_i32 = arith.constant 0 : i32
    %c0_i32_0 = arith.constant 0 : i32
    %c0_i32_1 = arith.constant 0 : i32
    return %c0_i32, %c0_i32_0 : i32, i32
  }
  func.func @transform_9(%arg0: i32) -> (i32, i32) {
    %c0_i32 = arith.constant 0 : i32
    %c0_i32_0 = arith.constant 0 : i32
    return %arg0, %c0_i32 : i32, i32
  }
}

</mosaic_0001>

<llo_original>
// kernel: tpu_custom_call.1
$region0: #{tpu_custom_call.1}
  #allocation0 [shape = 'u32[]', space=smem, size = 0x4, offset = 0x4, fixed_abs, tag = 'smem constant byte address 0x4 - core index']
  #allocation1 [shape = 'u32[144,128]{1,0:T(1,128)}', space=vmem, size = 0x12000, scoped, tag = 'internal scratch']
  %s0 = inlined_call_operand.hbm [shape: f32[600,1080], index: 0, kind: input, shape index: {}]
  %s1 = inlined_call_operand.hbm [shape: bf16[1080,512], index: 1, kind: input, shape index: {}]
  %s2 = inlined_call_operand.hbm [shape: f32[1,512], index: 2, kind: input, shape index: {}]
  %s3 = inlined_call_operand.hbm [shape: bf16[512,256], index: 3, kind: input, shape index: {}]
  %s4 = inlined_call_operand.hbm [shape: f32[1,256], index: 4, kind: input, shape index: {}]
  %s5 = inlined_call_operand.hbm [shape: bf16[256,128], index: 5, kind: input, shape index: {}]
  %s6 = inlined_call_operand.hbm [shape: f32[1,128], index: 6, kind: input, shape index: {}]
  %s7 = inlined_call_operand.hbm [shape: bf16[128,128], index: 7, kind: input, shape index: {}]
  %s8 = inlined_call_operand.hbm [shape: f32[1,128], index: 8, kind: input, shape index: {}]
  %s9 = inlined_call_operand.hbm [shape: bf16[600,128], index: 9, kind: output, shape index: {}]
  %s10 = sld [smem:[#allocation0]]
  $region105: #{tpu_custom_call.1} parent=0
    _
  %s12 = ssub.s32 1, %s10
  %s13 = scalar_select 0, %s12, %s10
  $region1: #{tpu_custom_call.1} parent=0
    #allocation2 [shape = 'u8[3538944]{0}', space=vmem, size = 0x360000, scoped, tag = 'input window, operand 0']
    #allocation3 [shape = 's32[2]{0}', space=sflag, size = 0x8, scoped, tag = 'scoped memory for tpu_custom_call.1']
    #allocation4 [shape = 's32[2]{0}', space=sflag, size = 0x8, scoped, tag = 'scoped memory for tpu_custom_call.1']
    #allocation5 [shape = 'u8[1105920]{0}', space=vmem, size = 0x10e000, scoped, tag = 'input window, operand 1, single buffered']
    #allocation6 [shape = 's32[1]{0}', space=sflag, size = 0x4, scoped, tag = 'scoped memory for tpu_custom_call.1']
    #allocation7 [shape = 'u8[2048]{0}', space=vmem, size = 0x800, scoped, tag = 'input window, operand 2, single buffered']
    #allocation8 [shape = 'u8[262144]{0}', space=vmem, size = 0x40000, scoped, tag = 'input window, operand 3, single buffered']
    #allocation9 [shape = 's32[1]{0}', space=sflag, size = 0x4, scoped, tag = 'scoped memory for tpu_custom_call.1']
    #allocation10 [shape = 'u8[1024]{0}', space=vmem, size = 0x400, scoped, tag = 'input window, operand 4, single buffered']
    #allocation11 [shape = 'u8[65536]{0}', space=vmem, size = 0x10000, scoped, tag = 'input window, operand 5, single buffered']
    #allocation12 [shape = 's32[1]{0}', space=sflag, size = 0x4, scoped, tag = 'scoped memory for tpu_custom_call.1']
    #allocation13 [shape = 'u8[512]{0}', space=vmem, size = 0x400, scoped, tag = 'input window, operand 6, single buffered']
    #allocation14 [shape = 'u8[32768]{0}', space=vmem, size = 0x8000, scoped, tag = 'input window, operand 7, single buffered']
    #allocation15 [shape = 's32[1]{0}', space=sflag, size = 0x4, scoped, tag = 'scoped memory for tpu_custom_call.1']
    #allocation16 [shape = 'u8[512]{0}', space=vmem, size = 0x400, scoped, tag = 'input window, operand 8, single buffered']
    #allocation17 [shape = 'u8[196608]{0}', space=vmem, size = 0x30000, scoped, tag = 'output window, operand 0']
    %14 = vsyncpa [#allocation3], 0
    %s15 = scalar_lea.sflag [#allocation3], 1
    %16 = vsyncpa %s15, 0
    %17 = vsyncpa [#allocation6], 0
    %18 = vsyncpa [#allocation9], 0
    %19 = vsyncpa [#allocation12], 0
    %20 = vsyncpa [#allocation15], 0
    %21 = vsyncpa [#allocation4], 0
    %s22 = scalar_lea.sflag [#allocation4], 1
    %23 = vsyncpa %s22, 0
    loop: start=0, step=1, limit=4
    $region2: #{tpu_custom_call.1} parent=1 // loop_pre_header
      _
    $region3: #{tpu_custom_call.1} parent=1 // loop_header
      %s25 = sphi 0, %s29
      %p26 = scmp.ge.s32.totalorder %s25, 4
      %s35 = sphi 0, %s37
      %s38 = sphi 0, %s35
      %s39 = sphi 0, %s38
      %s55 = sphi 0, %s39
      %s59 = sphi 0, %s59
      %s61 = sphi 0, %s59
      %s62 = sphi 0, %s61
      %s76 = sphi 0, %s62
      %s80 = sphi 0, %s80
      %s82 = sphi 0, %s80
      %s83 = sphi 0, %s82
      %s97 = sphi 0, %s83
      %s101 = sphi 0, %s101
      %s103 = sphi 0, %s101
      %s104 = sphi 0, %s103
      %s118 = sphi 0, %s104
      %s122 = sphi 0, %s122
      %s124 = sphi 0, %s122
      %s125 = sphi 0, %s124
      %s139 = sphi 0, %s125
      %s143 = sphi 0, %s143
      %s145 = sphi 0, %s143
      %s146 = sphi 0, %s145
      %s160 = sphi 0, %s146
      %s164 = sphi 0, %s164
      %s166 = sphi 0, %s164
      %s167 = sphi 0, %s166
      %s181 = sphi 0, %s167
      %s185 = sphi 0, %s185
      %s187 = sphi 0, %s185
      %s188 = sphi 0, %s187
      %s202 = sphi 0, %s188
      %s206 = sphi 0, %s206
      %s208 = sphi 0, %s206
      %s209 = sphi 0, %s208
      %s223 = sphi 0, %s209
      %s229 = sphi 0, %s231
      %s232 = sphi 0, %s229
      %s233 = sphi 0, %s232
      %s249 = sphi 0, %s233
    $region4: #{tpu_custom_call.1} parent=1 // loop_header_branch
      %28 = sbr.rel (%p26) target = $region8
    $region5: #{tpu_custom_call.1} parent=1 // loop_body
      %s30 = ssub.s32 %s25, 1
      %s31 = ssub.s32 %s25, 2
      %s32 = sadd.s32 %s25, 1
      %s33 = ssub.s32 %s25, %s32
      %p34 = scmp.eq.s32.totalorder %s33, 0
      %s36 = sadd.s32 %s35, 1
      %s37 = scalar_select %p34, %s35, %s36
      %p40 = pneg %p34
      %p41 = scmp.eq.s32.totalorder %s25, 1
      %p42 = por %p40, %p41
      %p43 = scmp.ne.s32.totalorder %s35, %s38
      %p44 = scmp.eq.s32.totalorder %s25, 0
      %p45 = por %p43, %p44
      %p46 = scmp.ne.s32.totalorder %s35, %s38
      %p47 = scmp.eq.s32.totalorder %s30, 1
      %p48 = por %p46, %p47
      %p49 = scmp.ne.s32.totalorder %s38, %s39
      %p50 = scmp.eq.s32.totalorder %s30, 0
      %p51 = por %p49, %p50
      %p52 = scmp.ne.s32.totalorder %s38, %s39
      %p53 = scmp.eq.s32.totalorder %s31, 1
      %p54 = por %p52, %p53
      %p56 = scmp.ne.s32.totalorder %s39, %s55
      %p57 = scmp.eq.s32.totalorder %s31, 0
      %p58 = por %p56, %p57
      %s60 = sadd.s32 %s59, 1
      %p63 = scmp.eq.s32.totalorder %s25, 1
      %p64 = scmp.ne.s32.totalorder %s59, %s61
      %p65 = scmp.eq.s32.totalorder %s25, 0
      %p66 = por %p64, %p65
      %p67 = scmp.ne.s32.totalorder %s59, %s61
      %p68 = scmp.eq.s32.totalorder %s30, 1
      %p69 = por %p67, %p68
      %p70 = scmp.ne.s32.totalorder %s61, %s62
      %p71 = scmp.eq.s32.totalorder %s30, 0
      %p72 = por %p70, %p71
      %p73 = scmp.ne.s32.totalorder %s61, %s62
      %p74 = scmp.eq.s32.totalorder %s31, 1
      %p75 = por %p73, %p74
      %p77 = scmp.ne.s32.totalorder %s62, %s76
      %p78 = scmp.eq.s32.totalorder %s31, 0
      %p79 = por %p77, %p78
      %s81 = sadd.s32 %s80, 1
      %p84 = scmp.eq.s32.totalorder %s25, 1
      %p85 = scmp.ne.s32.totalorder %s80, %s82
      %p86 = scmp.eq.s32.totalorder %s25, 0
      %p87 = por %p85, %p86
      %p88 = scmp.ne.s32.totalorder %s80, %s82
      %p89 = scmp.eq.s32.totalorder %s30, 1
      %p90 = por %p88, %p89
      %p91 = scmp.ne.s32.totalorder %s82, %s83
      %p92 = scmp.eq.s32.totalorder %s30, 0
      %p93 = por %p91, %p92
      %p94 = scmp.ne.s32.totalorder %s82, %s83
      %p95 = scmp.eq.s32.totalorder %s31, 1
      %p96 = por %p94, %p95
      %p98 = scmp.ne.s32.totalorder %s83, %s97
      %p99 = scmp.eq.s32.totalorder %s31, 0
      %p100 = por %p98, %p99
      %s102 = sadd.s32 %s101, 1
      %p105 = scmp.eq.s32.totalorder %s25, 1
      %p106 = scmp.ne.s32.totalorder %s101, %s103
      %p107 = scmp.eq.s32.totalorder %s25, 0
      %p108 = por %p106, %p107
      %p109 = scmp.ne.s32.totalorder %s101, %s103
      %p110 = scmp.eq.s32.totalorder %s30, 1
      %p111 = por %p109, %p110
      %p112 = scmp.ne.s32.totalorder %s103, %s104
      %p113 = scmp.eq.s32.totalorder %s30, 0
      %p114 = por %p112, %p113
      %p115 = scmp.ne.s32.totalorder %s103, %s104
      %p116 = scmp.eq.s32.totalorder %s31, 1
      %p117 = por %p115, %p116
      %p119 = scmp.ne.s32.totalorder %s104, %s118
      %p120 = scmp.eq.s32.totalorder %s31, 0
      %p121 = por %p119, %p120
      %s123 = sadd.s32 %s122, 1
      %p126 = scmp.eq.s32.totalorder %s25, 1
      %p127 = scmp.ne.s32.totalorder %s122, %s124
      %p128 = scmp.eq.s32.totalorder %s25, 0
      %p129 = por %p127, %p128
      %p130 = scmp.ne.s32.totalorder %s122, %s124
      %p131 = scmp.eq.s32.totalorder %s30, 1
      %p132 = por %p130, %p131
      %p133 = scmp.ne.s32.totalorder %s124, %s125
      %p134 = scmp.eq.s32.totalorder %s30, 0
      %p135 = por %p133, %p134
      %p136 = scmp.ne.s32.totalorder %s124, %s125
      %p137 = scmp.eq.s32.totalorder %s31, 1
      %p138 = por %p136, %p137
      %p140 = scmp.ne.s32.totalorder %s125, %s139
      %p141 = scmp.eq.s32.totalorder %s31, 0
      %p142 = por %p140, %p141
      %s144 = sadd.s32 %s143, 1
      %p147 = scmp.eq.s32.totalorder %s25, 1
      %p148 = scmp.ne.s32.totalorder %s143, %s145
      %p149 = scmp.eq.s32.totalorder %s25, 0
      %p150 = por %p148, %p149
      %p151 = scmp.ne.s32.totalorder %s143, %s145
      %p152 = scmp.eq.s32.totalorder %s30, 1
      %p153 = por %p151, %p152
      %p154 = scmp.ne.s32.totalorder %s145, %s146
      %p155 = scmp.eq.s32.totalorder %s30, 0
      %p156 = por %p154, %p155
      %p157 = scmp.ne.s32.totalorder %s145, %s146
      %p158 = scmp.eq.s32.totalorder %s31, 1
      %p159 = por %p157, %p158
      %p161 = scmp.ne.s32.totalorder %s146, %s160
      %p162 = scmp.eq.s32.totalorder %s31, 0
      %p163 = por %p161, %p162
      %s165 = sadd.s32 %s164, 1
      %p168 = scmp.eq.s32.totalorder %s25, 1
      %p169 = scmp.ne.s32.totalorder %s164, %s166
      %p170 = scmp.eq.s32.totalorder %s25, 0
      %p171 = por %p169, %p170
      %p172 = scmp.ne.s32.totalorder %s164, %s166
      %p173 = scmp.eq.s32.totalorder %s30, 1
      %p174 = por %p172, %p173
      %p175 = scmp.ne.s32.totalorder %s166, %s167
      %p176 = scmp.eq.s32.totalorder %s30, 0
      %p177 = por %p175, %p176
      %p178 = scmp.ne.s32.totalorder %s166, %s167
      %p179 = scmp.eq.s32.totalorder %s31, 1
      %p180 = por %p178, %p179
      %p182 = scmp.ne.s32.totalorder %s167, %s181
      %p183 = scmp.eq.s32.totalorder %s31, 0
      %p184 = por %p182, %p183
      %s186 = sadd.s32 %s185, 1
      %p189 = scmp.eq.s32.totalorder %s25, 1
      %p190 = scmp.ne.s32.totalorder %s185, %s187
      %p191 = scmp.eq.s32.totalorder %s25, 0
      %p192 = por %p190, %p191
      %p193 = scmp.ne.s32.totalorder %s185, %s187
      %p194 = scmp.eq.s32.totalorder %s30, 1
      %p195 = por %p193, %p194
      %p196 = scmp.ne.s32.totalorder %s187, %s188
      %p197 = scmp.eq.s32.totalorder %s30, 0
      %p198 = por %p196, %p197
      %p199 = scmp.ne.s32.totalorder %s187, %s188
      %p200 = scmp.eq.s32.totalorder %s31, 1
      %p201 = por %p199, %p200
      %p203 = scmp.ne.s32.totalorder %s188, %s202
      %p204 = scmp.eq.s32.totalorder %s31, 0
      %p205 = por %p203, %p204
      %s207 = sadd.s32 %s206, 1
      %p210 = scmp.eq.s32.totalorder %s25, 1
      %p211 = scmp.ne.s32.totalorder %s206, %s208
      %p212 = scmp.eq.s32.totalorder %s25, 0
      %p213 = por %p211, %p212
      %p214 = scmp.ne.s32.totalorder %s206, %s208
      %p215 = scmp.eq.s32.totalorder %s30, 1
      %p216 = por %p214, %p215
      %p217 = scmp.ne.s32.totalorder %s208, %s209
      %p218 = scmp.eq.s32.totalorder %s30, 0
      %p219 = por %p217, %p218
      %p220 = scmp.ne.s32.totalorder %s208, %s209
      %p221 = scmp.eq.s32.totalorder %s31, 1
      %p222 = por %p220, %p221
      %p224 = scmp.ne.s32.totalorder %s209, %s223
      %p225 = scmp.eq.s32.totalorder %s31, 0
      %p226 = por %p224, %p225
      %s227 = ssub.s32 %s25, %s32
      %p228 = scmp.eq.s32.totalorder %s227, 0
      %s230 = sadd.s32 %s229, 1
      %s231 = scalar_select %p228, %s229, %s230
      %p234 = pneg %p228
      %p235 = scmp.eq.s32.totalorder %s25, 1
      %p236 = por %p234, %p235
      %p237 = scmp.ne.s32.totalorder %s229, %s232
      %p238 = scmp.eq.s32.totalorder %s25, 0
      %p239 = por %p237, %p238
      %p240 = scmp.ne.s32.totalorder %s229, %s232
      %p241 = scmp.eq.s32.totalorder %s30, 1
      %p242 = por %p240, %p241
      %p243 = scmp.ne.s32.totalorder %s232, %s233
      %p244 = scmp.eq.s32.totalorder %s30, 0
      %p245 = por %p243, %p244
      %p246 = scmp.ne.s32.totalorder %s232, %s233
      %p247 = scmp.eq.s32.totalorder %s31, 1
      %p248 = por %p246, %p247
      %p250 = scmp.ne.s32.totalorder %s233, %s249
      %p251 = scmp.eq.s32.totalorder %s31, 0
      %p252 = por %p250, %p251
      %p253 = scmp.le.s32.totalorder 1, %s25
      %p254 = scmp.lt.s32.totalorder %s25, 3
      %p255 = pnand %p253, %p254
      %p256 = pneg %p255
      // Predicated region
      $region9: #{tpu_custom_call.1} parent=5 // pred_check
        _
      $region10: #{tpu_custom_call.1} parent=5 // pred_check_branch
        %258 = sbr.rel (%p255) target = $region12
      $region11: #{tpu_custom_call.1} parent=5 // pred_region
        %s259 = ssub.s32 %s25, 1
        // Predicated region
        $region13: #{tpu_custom_call.1} parent=11 // pred_check
          %p260 = pneg %p72
        $region14: #{tpu_custom_call.1} parent=11 // pred_check_branch
          %262 = sbr.rel (%p260) target = $region16
        $region15: #{tpu_custom_call.1} parent=11 // pred_region
          %s264 = ssub.s32 34560, 34560
          %265 = vsyncadd [#allocation6], %s264
          %s266 = sshll.u32 [#allocation5], 4
          %s267 = int_to_ptr.vmem [resolvable:$true] %s266
          %272 = dma.hbm_to_vmem [thread:$0]  %s1, 34560, %s267, [#allocation6], 256, 256, 16
        $region16: #{tpu_custom_call.1} parent=11 // pred_fallthru
          _
        // Predicated region
        $region17: #{tpu_custom_call.1} parent=11 // pred_check
          %p273 = pneg %p93
        $region18: #{tpu_custom_call.1} parent=11 // pred_check_branch
          %275 = sbr.rel (%p273) target = $region20
        $region19: #{tpu_custom_call.1} parent=11 // pred_region
          %s277 = ssub.s32 64, 64
          %278 = vsyncadd [#allocation6], %s277
          %s280 = sshll.u32 [#allocation7], 4
          %s281 = int_to_ptr.vmem [resolvable:$true] %s280
          %283 = dma.hbm_to_vmem [thread:$0]  %s2, 64, %s281, [#allocation6]
        $region20: #{tpu_custom_call.1} parent=11 // pred_fallthru
          _
        // Predicated region
        $region21: #{tpu_custom_call.1} parent=11 // pred_check
          %p284 = pneg %p114
        $region22: #{tpu_custom_call.1} parent=11 // pred_check_branch
          %286 = sbr.rel (%p284) target = $region24
        $region23: #{tpu_custom_call.1} parent=11 // pred_region
          %s288 = ssub.s32 8192, 8192
          %289 = vsyncadd [#allocation9], %s288
          %s290 = sshll.u32 [#allocation8], 4
          %s291 = int_to_ptr.vmem [resolvable:$true] %s290
          %296 = dma.hbm_to_vmem [thread:$0]  %s3, 8192, %s291, [#allocation9], 128, 128, 8
        $region24: #{tpu_custom_call.1} parent=11 // pred_fallthru
          _
        // Predicated region
        $region25: #{tpu_custom_call.1} parent=11 // pred_check
          %p297 = pneg %p135
        $region26: #{tpu_custom_call.1} parent=11 // pred_check_branch
          %299 = sbr.rel (%p297) target = $region28
        $region27: #{tpu_custom_call.1} parent=11 // pred_region
          %s301 = ssub.s32 32, 32
          %302 = vsyncadd [#allocation9], %s301
          %s304 = sshll.u32 [#allocation10], 4
          %s305 = int_to_ptr.vmem [resolvable:$true] %s304
          %307 = dma.hbm_to_vmem [thread:$0]  %s4, 32, %s305, [#allocation9]
        $region28: #{tpu_custom_call.1} parent=11 // pred_fallthru
          _
        // Predicated region
        $region29: #{tpu_custom_call.1} parent=11 // pred_check
          %p308 = pneg %p156
        $region30: #{tpu_custom_call.1} parent=11 // pred_check_branch
          %310 = sbr.rel (%p308) target = $region32
        $region31: #{tpu_custom_call.1} parent=11 // pred_region
          %s312 = ssub.s32 2048, 2048
          %313 = vsyncadd [#allocation12], %s312
          %s314 = sshll.u32 [#allocation11], 4
          %s315 = int_to_ptr.vmem [resolvable:$true] %s314
          %320 = dma.hbm_to_vmem [thread:$0]  %s5, 2048, %s315, [#allocation12], 64, 64, 4
        $region32: #{tpu_custom_call.1} parent=11 // pred_fallthru
          _
        // Predicated region
        $region33: #{tpu_custom_call.1} parent=11 // pred_check
          %p321 = pneg %p177
        $region34: #{tpu_custom_call.1} parent=11 // pred_check_branch
          %323 = sbr.rel (%p321) target = $region36
        $region35: #{tpu_custom_call.1} parent=11 // pred_region
          %s325 = ssub.s32 16, 16
          %326 = vsyncadd [#allocation12], %s325
          %s328 = sshll.u32 [#allocation13], 4
          %s329 = int_to_ptr.vmem [resolvable:$true] %s328
          %331 = dma.hbm_to_vmem [thread:$0]  %s6, 16, %s329, [#allocation12]
        $region36: #{tpu_custom_call.1} parent=11 // pred_fallthru
          _
        // Predicated region
        $region37: #{tpu_custom_call.1} parent=11 // pred_check
          %p332 = pneg %p198
        $region38: #{tpu_custom_call.1} parent=11 // pred_check_branch
          %334 = sbr.rel (%p332) target = $region40
        $region39: #{tpu_custom_call.1} parent=11 // pred_region
          %s336 = ssub.s32 1024, 1024
          %337 = vsyncadd [#allocation15], %s336
          %s338 = sshll.u32 [#allocation14], 4
          %s339 = int_to_ptr.vmem [resolvable:$true] %s338
          %344 = dma.hbm_to_vmem [thread:$0]  %s7, 1024, %s339, [#allocation15], 64, 64, 4
        $region40: #{tpu_custom_call.1} parent=11 // pred_fallthru
          _
        // Predicated region
        $region41: #{tpu_custom_call.1} parent=11 // pred_check
          %p345 = pneg %p219
        $region42: #{tpu_custom_call.1} parent=11 // pred_check_branch
          %347 = sbr.rel (%p345) target = $region44
        $region43: #{tpu_custom_call.1} parent=11 // pred_region
          %s349 = ssub.s32 16, 16
          %350 = vsyncadd [#allocation15], %s349
          %s352 = sshll.u32 [#allocation16], 4
          %s353 = int_to_ptr.vmem [resolvable:$true] %s352
          %355 = dma.hbm_to_vmem [thread:$0]  %s8, 16, %s353, [#allocation15]
        $region44: #{tpu_custom_call.1} parent=11 // pred_fallthru
          _
      $region12: #{tpu_custom_call.1} parent=5 // pred_fallthru
        _
      %p356 = scmp.lt.s32.totalorder %s25, 2
      // Predicated region
      $region45: #{tpu_custom_call.1} parent=5 // pred_check
        %p357 = pneg %p356
      $region46: #{tpu_custom_call.1} parent=5 // pred_check_branch
        %359 = sbr.rel (%p357) target = $region48
      $region47: #{tpu_custom_call.1} parent=5 // pred_region
        // Predicated region
        $region49: #{tpu_custom_call.1} parent=47 // pred_check
          %p360 = pneg %p45
        $region50: #{tpu_custom_call.1} parent=47 // pred_check_branch
          %362 = sbr.rel (%p360) target = $region52
        $region51: #{tpu_custom_call.1} parent=47 // pred_region
          %s363 = sand.u32 %s35, 1
          %s364 = scalar_lea.sflag [#allocation3], %s363
          %s365 = sand.u32 %s35, 1
          %s366 = smul.addr %s365, 3456
          %s367 = scalar_lea.vmem [#allocation2], %s366
          %s368 = smul.u32 48, %s25
          %s369 = ssub.s32 75, %s368
          %p370 = scmp.lt.s32.totalorder %s369, 48
          %s371 = scalar_select %p370, %s369, 48
          %s372 = smul.u32 128, %s371
          %s373 = smul.u32 %s372, 9
          %s375 = ssub.s32 55296, %s373
          %376 = vsyncadd %s364, %s375
          %p377 = scmp.ne.s32.totalorder 0, %s373
          %s378 = smul.addr %s368, 9
          %s379 = smul.addr %s378, 128
          %s380 = scalar_lea.hbm %s0, %s379
          %s381 = smul.u32 72, %s371
          %s382 = sshll.u32 %s367, 4
          %s383 = int_to_ptr.vmem [resolvable:$true] %s382
          %s384 = sshll.u32 %s381, 4
          %388 = dma.hbm_to_vmem [thread:$0]  (%p377), %s380, %s384, %s383, %s364, 1152, 1152, 72
        $region52: #{tpu_custom_call.1} parent=47 // pred_fallthru
          _
      $region48: #{tpu_custom_call.1} parent=5 // pred_fallthru
        _
      %p389 = scmp.le.s32.totalorder 1, %s25
      %p390 = scmp.lt.s32.totalorder %s25, 3
      %p391 = pnand %p389, %p390
      %p392 = pneg %p391
      // Predicated region
      $region53: #{tpu_custom_call.1} parent=5 // pred_check
        _
      $region54: #{tpu_custom_call.1} parent=5 // pred_check_branch
        %394 = sbr.rel (%p391) target = $region56
      $region55: #{tpu_custom_call.1} parent=5 // pred_region
        %s395 = ssub.s32 %s25, 1
        %s396 = sand.u32 %s38, 1
        %s397 = scalar_lea.sflag [#allocation3], %s396
        %s398 = sand.u32 %s38, 1
        %s399 = smul.addr %s398, 3456
        %s400 = scalar_lea.vmem [#allocation2], %s399
        // Predicated region
        $region57: #{tpu_custom_call.1} parent=55 // pred_check
          %p401 = pneg %p51
        $region58: #{tpu_custom_call.1} parent=55 // pred_check_branch
          %403 = sbr.rel (%p401) target = $region60
        $region59: #{tpu_custom_call.1} parent=55 // pred_region
          %404 = dma.done %s397, 55296
        $region60: #{tpu_custom_call.1} parent=55 // pred_fallthru
          _
        // Predicated region
        $region61: #{tpu_custom_call.1} parent=55 // pred_check
          %p405 = pneg %p72
        $region62: #{tpu_custom_call.1} parent=55 // pred_check_branch
          %407 = sbr.rel (%p405) target = $region64
        $region63: #{tpu_custom_call.1} parent=55 // pred_region
          %408 = dma.done [#allocation6], 34560
        $region64: #{tpu_custom_call.1} parent=55 // pred_fallthru
          _
        // Predicated region
        $region65: #{tpu_custom_call.1} parent=55 // pred_check
          %p409 = pneg %p93
        $region66: #{tpu_custom_call.1} parent=55 // pred_check_branch
          %411 = sbr.rel (%p409) target = $region68
        $region67: #{tpu_custom_call.1} parent=55 // pred_region
          %412 = dma.done [#allocation6], 64
        $region68: #{tpu_custom_call.1} parent=55 // pred_fallthru
          _
        // Predicated region
        $region69: #{tpu_custom_call.1} parent=55 // pred_check
          %p413 = pneg %p114
        $region70: #{tpu_custom_call.1} parent=55 // pred_check_branch
          %415 = sbr.rel (%p413) target = $region72
        $region71: #{tpu_custom_call.1} parent=55 // pred_region
          %416 = dma.done [#allocation9], 8192
        $region72: #{tpu_custom_call.1} parent=55 // pred_fallthru
          _
        // Predicated region
        $region73: #{tpu_custom_call.1} parent=55 // pred_check
          %p417 = pneg %p135
        $region74: #{tpu_custom_call.1} parent=55 // pred_check_branch
          %419 = sbr.rel (%p417) target = $region76
        $region75: #{tpu_custom_call.1} parent=55 // pred_region
          %420 = dma.done [#allocation9], 32
        $region76: #{tpu_custom_call.1} parent=55 // pred_fallthru
          _
        // Predicated region
        $region77: #{tpu_custom_call.1} parent=55 // pred_check
          %p421 = pneg %p156
        $region78: #{tpu_custom_call.1} parent=55 // pred_check_branch
          %423 = sbr.rel (%p421) target = $region80
        $region79: #{tpu_custom_call.1} parent=55 // pred_region
          %424 = dma.done [#allocation12], 2048
        $region80: #{tpu_custom_call.1} parent=55 // pred_fallthru
          _
        // Predicated region
        $region81: #{tpu_custom_call.1} parent=55 // pred_check
          %p425 = pneg %p177
        $region82: #{tpu_custom_call.1} parent=55 // pred_check_branch
          %427 = sbr.rel (%p425) target = $region84
        $region83: #{tpu_custom_call.1} parent=55 // pred_region
          %428 = dma.done [#allocation12], 16
        $region84: #{tpu_custom_call.1} parent=55 // pred_fallthru
          _
        // Predicated region
        $region85: #{tpu_custom_call.1} parent=55 // pred_check
          %p429 = pneg %p198
        $region86: #{tpu_custom_call.1} parent=55 // pred_check_branch
          %431 = sbr.rel (%p429) target = $region88
        $region87: #{tpu_custom_call.1} parent=55 // pred_region
          %432 = dma.done [#allocation15], 1024
        $region88: #{tpu_custom_call.1} parent=55 // pred_fallthru
          _
        // Predicated region
        $region89: #{tpu_custom_call.1} parent=55 // pred_check
          %p433 = pneg %p219
        $region90: #{tpu_custom_call.1} parent=55 // pred_check_branch
          %435 = sbr.rel (%p433) target = $region92
        $region91: #{tpu_custom_call.1} parent=55 // pred_region
          %436 = dma.done [#allocation15], 16
        $region92: #{tpu_custom_call.1} parent=55 // pred_fallthru
          _
        %s437 = sand.u32 %s38, 1
        %s438 = scalar_lea.sflag [#allocation3], %s437
        %s439 = sand.u32 %s38, 1
        %s440 = smul.addr %s439, 3456
        %s441 = scalar_lea.vmem [#allocation2], %s440
        %p442 = pneg %p51
        %p443 = pneg %p48
        %p444 = pneg %p72
        %p445 = pneg %p69
        %p446 = pneg %p93
        %p447 = pneg %p90
        %p448 = pneg %p114
        %p449 = pneg %p111
        %p450 = pneg %p135
        %p451 = pneg %p132
        %p452 = pneg %p156
        %p453 = pneg %p153
        %p454 = pneg %p177
        %p455 = pneg %p174
        %p456 = pneg %p198
        %p457 = pneg %p195
        %p458 = pneg %p219
        %p459 = pneg %p216
        %p460 = pneg %p245
        %p461 = pneg %p242
        %s462 = sand.u32 %s232, 1
        %s463 = scalar_lea.sflag [#allocation4], %s462
        %s464 = sand.u32 %s232, 1
        %s465 = smul.addr %s464, 192
        %s466 = scalar_lea.vmem [#allocation17], %s465
        %s467 = smul.u32 48, %s30
        %s468 = ssub.s32 75, %s467
        %p469 = scmp.lt.s32.totalorder %s468, 48
        %s470 = scalar_select %p469, %s468, 48
        %s471 = smul.u32 128, %s470
        %s472 = smul.u32 %s471, 9
        %s473 = smul.u32 48, %s30
        %s474 = ssub.s32 75, %s473
        %p475 = scmp.lt.s32.totalorder %s474, 48
        %s476 = scalar_select %p475, %s474, 48
        %s477 = smul.u32 64, %s476
        %v479 = vld [vmem:[%s400] sm:$0xff]
        %v480 = vld [vmem:[%s400 + $0x8] sm:$0xff]
        %v481 = vld [vmem:[%s400 + $0x10] sm:$0xff]
        %v482 = vld [vmem:[%s400 + $0x18] sm:$0xff]
        %v483 = vld [vmem:[%s400 + $0x20] sm:$0xff]
        %v484 = vld [vmem:[%s400 + $0x28] sm:$0xff]
        %v485 = vld [vmem:[%s400 + $0x30] sm:$0xff]
        %v486 = vld [vmem:[%s400 + $0x38] sm:$0xff]
        %v487 = vld [vmem:[%s400 + $0x40] sm:$0xff]
        %v488 = vld [vmem:[%s400 + $0x48] sm:$0xff]
        %v489 = vld [vmem:[%s400 + $0x50] sm:$0xff]
        %v490 = vld [vmem:[%s400 + $0x58] sm:$0xff]
        %v491 = vld [vmem:[%s400 + $0x60] sm:$0xff]
        %v492 = vld [vmem:[%s400 + $0x68] sm:$0xff]
        %v493 = vld [vmem:[%s400 + $0x70] sm:$0xff]
        %v494 = vld [vmem:[%s400 + $0x78] sm:$0xff]
        %v495 = vld [vmem:[%s400 + $0x80] sm:$0xff]
        %v496 = vld [vmem:[%s400 + $0x88] sm:$0xff]
        %v497 = vld [vmem:[%s400 + $0x90] sm:$0xff]
        %v498 = vld [vmem:[%s400 + $0x98] sm:$0xff]
        %v499 = vld [vmem:[%s400 + $0xa0] sm:$0xff]
        %v500 = vld [vmem:[%s400 + $0xa8] sm:$0xff]
        %v501 = vld [vmem:[%s400 + $0xb0] sm:$0xff]
        %v502 = vld [vmem:[%s400 + $0xb8] sm:$0xff]
        %v503 = vld [vmem:[%s400 + $0xc0] sm:$0xff]
        %v504 = vld [vmem:[%s400 + $0xc8] sm:$0xff]
        %v505 = vld [vmem:[%s400 + $0xd0] sm:$0xff]
        %v506 = vld [vmem:[%s400 + $0xd8] sm:$0xff]
        %v507 = vld [vmem:[%s400 + $0xe0] sm:$0xff]
        %v508 = vld [vmem:[%s400 + $0xe8] sm:$0xff]
        %v509 = vld [vmem:[%s400 + $0xf0] sm:$0xff]
        %v510 = vld [vmem:[%s400 + $0xf8] sm:$0xff]
        %v511 = vld [vmem:[%s400 + $0x100] sm:$0xff]
        %v512 = vld [vmem:[%s400 + $0x108] sm:$0xff]
        %v513 = vld [vmem:[%s400 + $0x110] sm:$0xff]
        %v514 = vld [vmem:[%s400 + $0x118] sm:$0xff]
        %v515 = vld [vmem:[%s400 + $0x120] sm:$0xff]
        %v516 = vld [vmem:[%s400 + $0x128] sm:$0xff]
        %v517 = vld [vmem:[%s400 + $0x130] sm:$0xff]
        %v518 = vld [vmem:[%s400 + $0x138] sm:$0xff]
        %v519 = vld [vmem:[%s400 + $0x140] sm:$0xff]
        %v520 = vld [vmem:[%s400 + $0x148] sm:$0xff]
        %v521 = vld [vmem:[%s400 + $0x150] sm:$0xff]
        %v522 = vld [vmem:[%s400 + $0x158] sm:$0xff]
        %v523 = vld [vmem:[%s400 + $0x160] sm:$0xff]
        %v524 = vld [vmem:[%s400 + $0x168] sm:$0xff]
        %v525 = vld [vmem:[%s400 + $0x170] sm:$0xff]
        %v526 = vld [vmem:[%s400 + $0x178] sm:$0xff]
        %v527 = vld [vmem:[%s400 + $0x180] sm:$0xff]
        %v528 = vld [vmem:[%s400 + $0x188] sm:$0xff]
        %v529 = vld [vmem:[%s400 + $0x190] sm:$0xff]
        %v530 = vld [vmem:[%s400 + $0x198] sm:$0xff]
        %v531 = vld [vmem:[%s400 + $0x1a0] sm:$0xff]
        %v532 = vld [vmem:[%s400 + $0x1a8] sm:$0xff]
        %v533 = vld [vmem:[%s400 + $0x1b0] sm:$0xff]
        %v534 = vld [vmem:[%s400 + $0x1b8] sm:$0xff]
        %v535 = vld [vmem:[%s400 + $0x1c0] sm:$0xff]
        %v536 = vld [vmem:[%s400 + $0x1c8] sm:$0xff]
        %v537 = vld [vmem:[%s400 + $0x1d0] sm:$0xff]
        %v538 = vld [vmem:[%s400 + $0x1d8] sm:$0xff]
        %v539 = vld [vmem:[%s400 + $0x1e0] sm:$0xff]
        %v540 = vld [vmem:[%s400 + $0x1e8] sm:$0xff]
        %v541 = vld [vmem:[%s400 + $0x1f0] sm:$0xff]
        %v542 = vld [vmem:[%s400 + $0x1f8] sm:$0xff]
        %v543 = vld [vmem:[%s400 + $0x200] sm:$0xff]
        %v544 = vld [vmem:[%s400 + $0x208] sm:$0xff]
        %v545 = vld [vmem:[%s400 + $0x210] sm:$0xff]
        %v546 = vld [vmem:[%s400 + $0x218] sm:$0xff]
        %v547 = vld [vmem:[%s400 + $0x220] sm:$0xff]
        %v548 = vld [vmem:[%s400 + $0x228] sm:$0xff]
        %v549 = vld [vmem:[%s400 + $0x230] sm:$0xff]
        %v550 = vld [vmem:[%s400 + $0x238] sm:$0xff]
        %v551 = vld [vmem:[%s400 + $0x240] sm:$0xff]
        %v552 = vld [vmem:[%s400 + $0x248] sm:$0xff]
        %v553 = vld [vmem:[%s400 + $0x250] sm:$0xff]
        %v554 = vld [vmem:[%s400 + $0x258] sm:$0xff]
        %v555 = vld [vmem:[%s400 + $0x260] sm:$0xff]
        %v556 = vld [vmem:[%s400 + $0x268] sm:$0xff]
        %v557 = vld [vmem:[%s400 + $0x270] sm:$0xff]
        %v558 = vld [vmem:[%s400 + $0x278] sm:$0xff]
        %v559 = vld [vmem:[%s400 + $0x280] sm:$0xff]
        %v560 = vld [vmem:[%s400 + $0x288] sm:$0xff]
        %v561 = vld [vmem:[%s400 + $0x290] sm:$0xff]
        %v562 = vld [vmem:[%s400 + $0x298] sm:$0xff]
        %v563 = vld [vmem:[%s400 + $0x2a0] sm:$0xff]
        %v564 = vld [vmem:[%s400 + $0x2a8] sm:$0xff]
        %v565 = vld [vmem:[%s400 + $0x2b0] sm:$0xff]
        %v566 = vld [vmem:[%s400 + $0x2b8] sm:$0xff]
        %v567 = vld [vmem:[%s400 + $0x2c0] sm:$0xff]
        %v568 = vld [vmem:[%s400 + $0x2c8] sm:$0xff]
        %v569 = vld [vmem:[%s400 + $0x2d0] sm:$0xff]
        %v570 = vld [vmem:[%s400 + $0x2d8] sm:$0xff]
        %v571 = vld [vmem:[%s400 + $0x2e0] sm:$0xff]
        %v572 = vld [vmem:[%s400 + $0x2e8] sm:$0xff]
        %v573 = vld [vmem:[%s400 + $0x2f0] sm:$0xff]
        %v574 = vld [vmem:[%s400 + $0x2f8] sm:$0xff]
        %v575 = vld [vmem:[%s400 + $0x300] sm:$0xff]
        %v576 = vld [vmem:[%s400 + $0x308] sm:$0xff]
        %v577 = vld [vmem:[%s400 + $0x310] sm:$0xff]
        %v578 = vld [vmem:[%s400 + $0x318] sm:$0xff]
        %v579 = vld [vmem:[%s400 + $0x320] sm:$0xff]
        %v580 = vld [vmem:[%s400 + $0x328] sm:$0xff]
        %v581 = vld [vmem:[%s400 + $0x330] sm:$0xff]
        %v582 = vld [vmem:[%s400 + $0x338] sm:$0xff]
        %v583 = vld [vmem:[%s400 + $0x340] sm:$0xff]
        %v584 = vld [vmem:[%s400 + $0x348] sm:$0xff]
        %v585 = vld [vmem:[%s400 + $0x350] sm:$0xff]
        %v586 = vld [vmem:[%s400 + $0x358] sm:$0xff]
        %v587 = vld [vmem:[%s400 + $0x360] sm:$0xff]
        %v588 = vld [vmem:[%s400 + $0x368] sm:$0xff]
        %v589 = vld [vmem:[%s400 + $0x370] sm:$0xff]
        %v590 = vld [vmem:[%s400 + $0x378] sm:$0xff]
        %v591 = vld [vmem:[%s400 + $0x380] sm:$0xff]
        %v592 = vld [vmem:[%s400 + $0x388] sm:$0xff]
        %v593 = vld [vmem:[%s400 + $0x390] sm:$0xff]
        %v594 = vld [vmem:[%s400 + $0x398] sm:$0xff]
        %v595 = vld [vmem:[%s400 + $0x3a0] sm:$0xff]
        %v596 = vld [vmem:[%s400 + $0x3a8] sm:$0xff]
        %v597 = vld [vmem:[%s400 + $0x3b0] sm:$0xff]
        %v598 = vld [vmem:[%s400 + $0x3b8] sm:$0xff]
        %v599 = vld [vmem:[%s400 + $0x3c0] sm:$0xff]
        %v600 = vld [vmem:[%s400 + $0x3c8] sm:$0xff]
        %v601 = vld [vmem:[%s400 + $0x3d0] sm:$0xff]
        %v602 = vld [vmem:[%s400 + $0x3d8] sm:$0xff]
        %v603 = vld [vmem:[%s400 + $0x3e0] sm:$0xff]
        %v604 = vld [vmem:[%s400 + $0x3e8] sm:$0xff]
        %v605 = vld [vmem:[%s400 + $0x3f0] sm:$0xff]
        %v606 = vld [vmem:[%s400 + $0x3f8] sm:$0xff]
        %v607 = vld [vmem:[%s400 + $0x400] sm:$0xff]
        %v608 = vld [vmem:[%s400 + $0x408] sm:$0xff]
        %v609 = vld [vmem:[%s400 + $0x410] sm:$0xff]
        %v610 = vld [vmem:[%s400 + $0x418] sm:$0xff]
        %v611 = vld [vmem:[%s400 + $0x420] sm:$0xff]
        %v612 = vld [vmem:[%s400 + $0x428] sm:$0xff]
        %v613 = vld [vmem:[%s400 + $0x430] sm:$0xff]
        %v614 = vld [vmem:[%s400 + $0x438] sm:$0xff]
        %v615 = vld [vmem:[%s400 + $0x440] sm:$0xff]
        %v616 = vld [vmem:[%s400 + $0x448] sm:$0xff]
        %v617 = vld [vmem:[%s400 + $0x450] sm:$0xff]
        %v618 = vld [vmem:[%s400 + $0x458] sm:$0xff]
        %v619 = vld [vmem:[%s400 + $0x460] sm:$0xff]
        %v620 = vld [vmem:[%s400 + $0x468] sm:$0xff]
        %v621 = vld [vmem:[%s400 + $0x470] sm:$0xff]
        %v622 = vld [vmem:[%s400 + $0x478] sm:$0xff]
        %v623 = vld [vmem:[%s400 + $0x480] sm:$0xff]
        %v624 = vld [vmem:[%s400 + $0x488] sm:$0xff]
        %v625 = vld [vmem:[%s400 + $0x490] sm:$0xff]
        %v626 = vld [vmem:[%s400 + $0x498] sm:$0xff]
        %v627 = vld [vmem:[%s400 + $0x4a0] sm:$0xff]
        %v628 = vld [vmem:[%s400 + $0x4a8] sm:$0xff]
        %v629 = vld [vmem:[%s400 + $0x4b0] sm:$0xff]
        %v630 = vld [vmem:[%s400 + $0x4b8] sm:$0xff]
        %v631 = vld [vmem:[%s400 + $0x4c0] sm:$0xff]
        %v632 = vld [vmem:[%s400 + $0x4c8] sm:$0xff]
        %v633 = vld [vmem:[%s400 + $0x4d0] sm:$0xff]
        %v634 = vld [vmem:[%s400 + $0x4d8] sm:$0xff]
        %v635 = vld [vmem:[%s400 + $0x4e0] sm:$0xff]
        %v636 = vld [vmem:[%s400 + $0x4e8] sm:$0xff]
        %v637 = vld [vmem:[%s400 + $0x4f0] sm:$0xff]
        %v638 = vld [vmem:[%s400 + $0x4f8] sm:$0xff]
        %v639 = vld [vmem:[%s400 + $0x500] sm:$0xff]
        %v640 = vld [vmem:[%s400 + $0x508] sm:$0xff]
        %v641 = vld [vmem:[%s400 + $0x510] sm:$0xff]
        %v642 = vld [vmem:[%s400 + $0x518] sm:$0xff]
        %v643 = vld [vmem:[%s400 + $0x520] sm:$0xff]
        %v644 = vld [vmem:[%s400 + $0x528] sm:$0xff]
        %v645 = vld [vmem:[%s400 + $0x530] sm:$0xff]
        %v646 = vld [vmem:[%s400 + $0x538] sm:$0xff]
        %v647 = vld [vmem:[%s400 + $0x540] sm:$0xff]
        %v648 = vld [vmem:[%s400 + $0x548] sm:$0xff]
        %v649 = vld [vmem:[%s400 + $0x550] sm:$0xff]
        %v650 = vld [vmem:[%s400 + $0x558] sm:$0xff]
        %v651 = vld [vmem:[%s400 + $0x560] sm:$0xff]
        %v652 = vld [vmem:[%s400 + $0x568] sm:$0xff]
        %v653 = vld [vmem:[%s400 + $0x570] sm:$0xff]
        %v654 = vld [vmem:[%s400 + $0x578] sm:$0xff]
        %v655 = vld [vmem:[%s400 + $0x580] sm:$0xff]
        %v656 = vld [vmem:[%s400 + $0x588] sm:$0xff]
        %v657 = vld [vmem:[%s400 + $0x590] sm:$0xff]
        %v658 = vld [vmem:[%s400 + $0x598] sm:$0xff]
        %v659 = vld [vmem:[%s400 + $0x5a0] sm:$0xff]
        %v660 = vld [vmem:[%s400 + $0x5a8] sm:$0xff]
        %v661 = vld [vmem:[%s400 + $0x5b0] sm:$0xff]
        %v662 = vld [vmem:[%s400 + $0x5b8] sm:$0xff]
        %v663 = vld [vmem:[%s400 + $0x5c0] sm:$0xff]
        %v664 = vld [vmem:[%s400 + $0x5c8] sm:$0xff]
        %v665 = vld [vmem:[%s400 + $0x5d0] sm:$0xff]
        %v666 = vld [vmem:[%s400 + $0x5d8] sm:$0xff]
        %v667 = vld [vmem:[%s400 + $0x5e0] sm:$0xff]
        %v668 = vld [vmem:[%s400 + $0x5e8] sm:$0xff]
        %v669 = vld [vmem:[%s400 + $0x5f0] sm:$0xff]
        %v670 = vld [vmem:[%s400 + $0x5f8] sm:$0xff]
        %v671 = vld [vmem:[%s400 + $0x600] sm:$0xff]
        %v672 = vld [vmem:[%s400 + $0x608] sm:$0xff]
        %v673 = vld [vmem:[%s400 + $0x610] sm:$0xff]
        %v674 = vld [vmem:[%s400 + $0x618] sm:$0xff]
        %v675 = vld [vmem:[%s400 + $0x620] sm:$0xff]
        %v676 = vld [vmem:[%s400 + $0x628] sm:$0xff]
        %v677 = vld [vmem:[%s400 + $0x630] sm:$0xff]
        %v678 = vld [vmem:[%s400 + $0x638] sm:$0xff]
        %v679 = vld [vmem:[%s400 + $0x640] sm:$0xff]
        %v680 = vld [vmem:[%s400 + $0x648] sm:$0xff]
        %v681 = vld [vmem:[%s400 + $0x650] sm:$0xff]
        %v682 = vld [vmem:[%s400 + $0x658] sm:$0xff]
        %v683 = vld [vmem:[%s400 + $0x660] sm:$0xff]
        %v684 = vld [vmem:[%s400 + $0x668] sm:$0xff]
        %v685 = vld [vmem:[%s400 + $0x670] sm:$0xff]
        %v686 = vld [vmem:[%s400 + $0x678] sm:$0xff]
        %v687 = vld [vmem:[%s400 + $0x680] sm:$0xff]
        %v688 = vld [vmem:[%s400 + $0x688] sm:$0xff]
        %v689 = vld [vmem:[%s400 + $0x690] sm:$0xff]
        %v690 = vld [vmem:[%s400 + $0x698] sm:$0xff]
        %v691 = vld [vmem:[%s400 + $0x6a0] sm:$0xff]
        %v692 = vld [vmem:[%s400 + $0x6a8] sm:$0xff]
        %v693 = vld [vmem:[%s400 + $0x6b0] sm:$0xff]
        %v694 = vld [vmem:[%s400 + $0x6b8] sm:$0xff]
        %v695 = vld [vmem:[%s400 + $0x6c0] sm:$0xff]
        %v696 = vld [vmem:[%s400 + $0x6c8] sm:$0xff]
        %v697 = vld [vmem:[%s400 + $0x6d0] sm:$0xff]
        %v698 = vld [vmem:[%s400 + $0x6d8] sm:$0xff]
        %v699 = vld [vmem:[%s400 + $0x6e0] sm:$0xff]
        %v700 = vld [vmem:[%s400 + $0x6e8] sm:$0xff]
        %v701 = vld [vmem:[%s400 + $0x6f0] sm:$0xff]
        %v702 = vld [vmem:[%s400 + $0x6f8] sm:$0xff]
        %v703 = vld [vmem:[%s400 + $0x700] sm:$0xff]
        %v704 = vld [vmem:[%s400 + $0x708] sm:$0xff]
        %v705 = vld [vmem:[%s400 + $0x710] sm:$0xff]
        %v706 = vld [vmem:[%s400 + $0x718] sm:$0xff]
        %v707 = vld [vmem:[%s400 + $0x720] sm:$0xff]
        %v708 = vld [vmem:[%s400 + $0x728] sm:$0xff]
        %v709 = vld [vmem:[%s400 + $0x730] sm:$0xff]
        %v710 = vld [vmem:[%s400 + $0x738] sm:$0xff]
        %v711 = vld [vmem:[%s400 + $0x740] sm:$0xff]
        %v712 = vld [vmem:[%s400 + $0x748] sm:$0xff]
        %v713 = vld [vmem:[%s400 + $0x750] sm:$0xff]
        %v714 = vld [vmem:[%s400 + $0x758] sm:$0xff]
        %v715 = vld [vmem:[%s400 + $0x760] sm:$0xff]
        %v716 = vld [vmem:[%s400 + $0x768] sm:$0xff]
        %v717 = vld [vmem:[%s400 + $0x770] sm:$0xff]
        %v718 = vld [vmem:[%s400 + $0x778] sm:$0xff]
        %v719 = vld [vmem:[%s400 + $0x780] sm:$0xff]
        %v720 = vld [vmem:[%s400 + $0x788] sm:$0xff]
        %v721 = vld [vmem:[%s400 + $0x790] sm:$0xff]
        %v722 = vld [vmem:[%s400 + $0x798] sm:$0xff]
        %v723 = vld [vmem:[%s400 + $0x7a0] sm:$0xff]
        %v724 = vld [vmem:[%s400 + $0x7a8] sm:$0xff]
        %v725 = vld [vmem:[%s400 + $0x7b0] sm:$0xff]
        %v726 = vld [vmem:[%s400 + $0x7b8] sm:$0xff]
        %v727 = vld [vmem:[%s400 + $0x7c0] sm:$0xff]
        %v728 = vld [vmem:[%s400 + $0x7c8] sm:$0xff]
        %v729 = vld [vmem:[%s400 + $0x7d0] sm:$0xff]
        %v730 = vld [vmem:[%s400 + $0x7d8] sm:$0xff]
        %v731 = vld [vmem:[%s400 + $0x7e0] sm:$0xff]
        %v732 = vld [vmem:[%s400 + $0x7e8] sm:$0xff]
        %v733 = vld [vmem:[%s400 + $0x7f0] sm:$0xff]
        %v734 = vld [vmem:[%s400 + $0x7f8] sm:$0xff]
        %v735 = vld [vmem:[%s400 + $0x800] sm:$0xff]
        %v736 = vld [vmem:[%s400 + $0x808] sm:$0xff]
        %v737 = vld [vmem:[%s400 + $0x810] sm:$0xff]
        %v738 = vld [vmem:[%s400 + $0x818] sm:$0xff]
        %v739 = vld [vmem:[%s400 + $0x820] sm:$0xff]
        %v740 = vld [vmem:[%s400 + $0x828] sm:$0xff]
        %v741 = vld [vmem:[%s400 + $0x830] sm:$0xff]
        %v742 = vld [vmem:[%s400 + $0x838] sm:$0xff]
        %v743 = vld [vmem:[%s400 + $0x840] sm:$0xff]
        %v744 = vld [vmem:[%s400 + $0x848] sm:$0xff]
        %v745 = vld [vmem:[%s400 + $0x850] sm:$0xff]
        %v746 = vld [vmem:[%s400 + $0x858] sm:$0xff]
        %v747 = vld [vmem:[%s400 + $0x860] sm:$0xff]
        %v748 = vld [vmem:[%s400 + $0x868] sm:$0xff]
        %v749 = vld [vmem:[%s400 + $0x870] sm:$0xff]
        %v750 = vld [vmem:[%s400 + $0x878] sm:$0xff]
        %v751 = vld [vmem:[%s400 + $0x880] sm:$0xff]
        %v752 = vld [vmem:[%s400 + $0x888] sm:$0xff]
        %v753 = vld [vmem:[%s400 + $0x890] sm:$0xff]
        %v754 = vld [vmem:[%s400 + $0x898] sm:$0xff]
        %v755 = vld [vmem:[%s400 + $0x8a0] sm:$0xff]
        %v756 = vld [vmem:[%s400 + $0x8a8] sm:$0xff]
        %v757 = vld [vmem:[%s400 + $0x8b0] sm:$0xff]
        %v758 = vld [vmem:[%s400 + $0x8b8] sm:$0xff]
        %v759 = vld [vmem:[%s400 + $0x8c0] sm:$0xff]
        %v760 = vld [vmem:[%s400 + $0x8c8] sm:$0xff]
        %v761 = vld [vmem:[%s400 + $0x8d0] sm:$0xff]
        %v762 = vld [vmem:[%s400 + $0x8d8] sm:$0xff]
        %v763 = vld [vmem:[%s400 + $0x8e0] sm:$0xff]
        %v764 = vld [vmem:[%s400 + $0x8e8] sm:$0xff]
        %v765 = vld [vmem:[%s400 + $0x8f0] sm:$0xff]
        %v766 = vld [vmem:[%s400 + $0x8f8] sm:$0xff]
        %v767 = vld [vmem:[%s400 + $0x900] sm:$0xff]
        %v768 = vld [vmem:[%s400 + $0x908] sm:$0xff]
        %v769 = vld [vmem:[%s400 + $0x910] sm:$0xff]
        %v770 = vld [vmem:[%s400 + $0x918] sm:$0xff]
        %v771 = vld [vmem:[%s400 + $0x920] sm:$0xff]
        %v772 = vld [vmem:[%s400 + $0x928] sm:$0xff]
        %v773 = vld [vmem:[%s400 + $0x930] sm:$0xff]
        %v774 = vld [vmem:[%s400 + $0x938] sm:$0xff]
        %v775 = vld [vmem:[%s400 + $0x940] sm:$0xff]
        %v776 = vld [vmem:[%s400 + $0x948] sm:$0xff]
        %v777 = vld [vmem:[%s400 + $0x950] sm:$0xff]
        %v778 = vld [vmem:[%s400 + $0x958] sm:$0xff]
        %v779 = vld [vmem:[%s400 + $0x960] sm:$0xff]
        %v780 = vld [vmem:[%s400 + $0x968] sm:$0xff]
        %v781 = vld [vmem:[%s400 + $0x970] sm:$0xff]
        %v782 = vld [vmem:[%s400 + $0x978] sm:$0xff]
        %v783 = vld [vmem:[%s400 + $0x980] sm:$0xff]
        %v784 = vld [vmem:[%s400 + $0x988] sm:$0xff]
        %v785 = vld [vmem:[%s400 + $0x990] sm:$0xff]
        %v786 = vld [vmem:[%s400 + $0x998] sm:$0xff]
        %v787 = vld [vmem:[%s400 + $0x9a0] sm:$0xff]
        %v788 = vld [vmem:[%s400 + $0x9a8] sm:$0xff]
        %v789 = vld [vmem:[%s400 + $0x9b0] sm:$0xff]
        %v790 = vld [vmem:[%s400 + $0x9b8] sm:$0xff]
        %v791 = vld [vmem:[%s400 + $0x9c0] sm:$0xff]
        %v792 = vld [vmem:[%s400 + $0x9c8] sm:$0xff]
        %v793 = vld [vmem:[%s400 + $0x9d0] sm:$0xff]
        %v794 = vld [vmem:[%s400 + $0x9d8] sm:$0xff]
        %v795 = vld [vmem:[%s400 + $0x9e0] sm:$0xff]
        %v796 = vld [vmem:[%s400 + $0x9e8] sm:$0xff]
        %v797 = vld [vmem:[%s400 + $0x9f0] sm:$0xff]
        %v798 = vld [vmem:[%s400 + $0x9f8] sm:$0xff]
        %v799 = vld [vmem:[%s400 + $0xa00] sm:$0xff]
        %v800 = vld [vmem:[%s400 + $0xa08] sm:$0xff]
        %v801 = vld [vmem:[%s400 + $0xa10] sm:$0xff]
        %v802 = vld [vmem:[%s400 + $0xa18] sm:$0xff]
        %v803 = vld [vmem:[%s400 + $0xa20] sm:$0xff]
        %v804 = vld [vmem:[%s400 + $0xa28] sm:$0xff]
        %v805 = vld [vmem:[%s400 + $0xa30] sm:$0xff]
        %v806 = vld [vmem:[%s400 + $0xa38] sm:$0xff]
        %v807 = vld [vmem:[%s400 + $0xa40] sm:$0xff]
        %v808 = vld [vmem:[%s400 + $0xa48] sm:$0xff]
        %v809 = vld [vmem:[%s400 + $0xa50] sm:$0xff]
        %v810 = vld [vmem:[%s400 + $0xa58] sm:$0xff]
        %v811 = vld [vmem:[%s400 + $0xa60] sm:$0xff]
        %v812 = vld [vmem:[%s400 + $0xa68] sm:$0xff]
        %v813 = vld [vmem:[%s400 + $0xa70] sm:$0xff]
        %v814 = vld [vmem:[%s400 + $0xa78] sm:$0xff]
        %v815 = vld [vmem:[%s400 + $0xa80] sm:$0xff]
        %v816 = vld [vmem:[%s400 + $0xa88] sm:$0xff]
        %v817 = vld [vmem:[%s400 + $0xa90] sm:$0xff]
        %v818 = vld [vmem:[%s400 + $0xa98] sm:$0xff]
        %v819 = vld [vmem:[%s400 + $0xaa0] sm:$0xff]
        %v820 = vld [vmem:[%s400 + $0xaa8] sm:$0xff]
        %v821 = vld [vmem:[%s400 + $0xab0] sm:$0xff]
        %v822 = vld [vmem:[%s400 + $0xab8] sm:$0xff]
        %v823 = vld [vmem:[%s400 + $0xac0] sm:$0xff]
        %v824 = vld [vmem:[%s400 + $0xac8] sm:$0xff]
        %v825 = vld [vmem:[%s400 + $0xad0] sm:$0xff]
        %v826 = vld [vmem:[%s400 + $0xad8] sm:$0xff]
        %v827 = vld [vmem:[%s400 + $0xae0] sm:$0xff]
        %v828 = vld [vmem:[%s400 + $0xae8] sm:$0xff]
        %v829 = vld [vmem:[%s400 + $0xaf0] sm:$0xff]
        %v830 = vld [vmem:[%s400 + $0xaf8] sm:$0xff]
        %v831 = vld [vmem:[%s400 + $0xb00] sm:$0xff]
        %v832 = vld [vmem:[%s400 + $0xb08] sm:$0xff]
        %v833 = vld [vmem:[%s400 + $0xb10] sm:$0xff]
        %v834 = vld [vmem:[%s400 + $0xb18] sm:$0xff]
        %v835 = vld [vmem:[%s400 + $0xb20] sm:$0xff]
        %v836 = vld [vmem:[%s400 + $0xb28] sm:$0xff]
        %v837 = vld [vmem:[%s400 + $0xb30] sm:$0xff]
        %v838 = vld [vmem:[%s400 + $0xb38] sm:$0xff]
        %v839 = vld [vmem:[%s400 + $0xb40] sm:$0xff]
        %v840 = vld [vmem:[%s400 + $0xb48] sm:$0xff]
        %v841 = vld [vmem:[%s400 + $0xb50] sm:$0xff]
        %v842 = vld [vmem:[%s400 + $0xb58] sm:$0xff]
        %v843 = vld [vmem:[%s400 + $0xb60] sm:$0xff]
        %v844 = vld [vmem:[%s400 + $0xb68] sm:$0xff]
        %v845 = vld [vmem:[%s400 + $0xb70] sm:$0xff]
        %v846 = vld [vmem:[%s400 + $0xb78] sm:$0xff]
        %v847 = vld [vmem:[%s400 + $0xb80] sm:$0xff]
        %v848 = vld [vmem:[%s400 + $0xb88] sm:$0xff]
        %v849 = vld [vmem:[%s400 + $0xb90] sm:$0xff]
        %v850 = vld [vmem:[%s400 + $0xb98] sm:$0xff]
        %v851 = vld [vmem:[%s400 + $0xba0] sm:$0xff]
        %v852 = vld [vmem:[%s400 + $0xba8] sm:$0xff]
        %v853 = vld [vmem:[%s400 + $0xbb0] sm:$0xff]
        %v854 = vld [vmem:[%s400 + $0xbb8] sm:$0xff]
        %v855 = vld [vmem:[%s400 + $0xbc0] sm:$0xff]
        %v856 = vld [vmem:[%s400 + $0xbc8] sm:$0xff]
        %v857 = vld [vmem:[%s400 + $0xbd0] sm:$0xff]
        %v858 = vld [vmem:[%s400 + $0xbd8] sm:$0xff]
        %v859 = vld [vmem:[%s400 + $0xbe0] sm:$0xff]
        %v860 = vld [vmem:[%s400 + $0xbe8] sm:$0xff]
        %v861 = vld [vmem:[%s400 + $0xbf0] sm:$0xff]
        %v862 = vld [vmem:[%s400 + $0xbf8] sm:$0xff]
        %v863 = vld [vmem:[%s400 + $0xc00] sm:$0xff]
        %v864 = vld [vmem:[%s400 + $0xc08] sm:$0xff]
        %v865 = vld [vmem:[%s400 + $0xc10] sm:$0xff]
        %v866 = vld [vmem:[%s400 + $0xc18] sm:$0xff]
        %v867 = vld [vmem:[%s400 + $0xc20] sm:$0xff]
        %v868 = vld [vmem:[%s400 + $0xc28] sm:$0xff]
        %v869 = vld [vmem:[%s400 + $0xc30] sm:$0xff]
        %v870 = vld [vmem:[%s400 + $0xc38] sm:$0xff]
        %v871 = vld [vmem:[%s400 + $0xc40] sm:$0xff]
        %v872 = vld [vmem:[%s400 + $0xc48] sm:$0xff]
        %v873 = vld [vmem:[%s400 + $0xc50] sm:$0xff]
        %v874 = vld [vmem:[%s400 + $0xc58] sm:$0xff]
        %v875 = vld [vmem:[%s400 + $0xc60] sm:$0xff]
        %v876 = vld [vmem:[%s400 + $0xc68] sm:$0xff]
        %v877 = vld [vmem:[%s400 + $0xc70] sm:$0xff]
        %v878 = vld [vmem:[%s400 + $0xc78] sm:$0xff]
        %v879 = vld [vmem:[%s400 + $0xc80] sm:$0xff]
        %v880 = vld [vmem:[%s400 + $0xc88] sm:$0xff]
        %v881 = vld [vmem:[%s400 + $0xc90] sm:$0xff]
        %v882 = vld [vmem:[%s400 + $0xc98] sm:$0xff]
        %v883 = vld [vmem:[%s400 + $0xca0] sm:$0xff]
        %v884 = vld [vmem:[%s400 + $0xca8] sm:$0xff]
        %v885 = vld [vmem:[%s400 + $0xcb0] sm:$0xff]
        %v886 = vld [vmem:[%s400 + $0xcb8] sm:$0xff]
        %v887 = vld [vmem:[%s400 + $0xcc0] sm:$0xff]
        %v888 = vld [vmem:[%s400 + $0xcc8] sm:$0xff]
        %v889 = vld [vmem:[%s400 + $0xcd0] sm:$0xff]
        %v890 = vld [vmem:[%s400 + $0xcd8] sm:$0xff]
        %v891 = vld [vmem:[%s400 + $0xce0] sm:$0xff]
        %v892 = vld [vmem:[%s400 + $0xce8] sm:$0xff]
        %v893 = vld [vmem:[%s400 + $0xcf0] sm:$0xff]
        %v894 = vld [vmem:[%s400 + $0xcf8] sm:$0xff]
        %v895 = vld [vmem:[%s400 + $0xd00] sm:$0xff]
        %v896 = vld [vmem:[%s400 + $0xd08] sm:$0xff]
        %v897 = vld [vmem:[%s400 + $0xd10] sm:$0xff]
        %v898 = vld [vmem:[%s400 + $0xd18] sm:$0xff]
        %v899 = vld [vmem:[%s400 + $0xd20] sm:$0xff]
        %v900 = vld [vmem:[%s400 + $0xd28] sm:$0xff]
        %v901 = vld [vmem:[%s400 + $0xd30] sm:$0xff]
        %v902 = vld [vmem:[%s400 + $0xd38] sm:$0xff]
        %v903 = vld [vmem:[%s400 + $0xd40] sm:$0xff]
        %v904 = vld [vmem:[%s400 + $0xd48] sm:$0xff]
        %v905 = vld [vmem:[%s400 + $0xd50] sm:$0xff]
        %v906 = vld [vmem:[%s400 + $0xd58] sm:$0xff]
        %v907 = vld [vmem:[%s400 + $0xd60] sm:$0xff]
        %v908 = vld [vmem:[%s400 + $0xd68] sm:$0xff]
        %v909 = vld [vmem:[%s400 + $0xd70] sm:$0xff]
        %v910 = vld [vmem:[%s400 + $0xd78] sm:$0xff]
        %v911 = vpack.c.bf16 %v488, %v479
        %v912 = vpack.c.bf16 %v489, %v480
        %v913 = vpack.c.bf16 %v490, %v481
        %v914 = vpack.c.bf16 %v491, %v482
        %v915 = vpack.c.bf16 %v492, %v483
        %v916 = vpack.c.bf16 %v493, %v484
        %v917 = vpack.c.bf16 %v494, %v485
        %v918 = vpack.c.bf16 %v495, %v486
        %v919 = vpack.c.bf16 %v496, %v487
        %v920 = vpack.c.bf16 %v506, %v497
        %v921 = vpack.c.bf16 %v507, %v498
        %v922 = vpack.c.bf16 %v508, %v499
        %v923 = vpack.c.bf16 %v509, %v500
        %v924 = vpack.c.bf16 %v510, %v501
        %v925 = vpack.c.bf16 %v511, %v502
        %v926 = vpack.c.bf16 %v512, %v503
        %v927 = vpack.c.bf16 %v513, %v504
        %v928 = vpack.c.bf16 %v514, %v505
        %v929 = vpack.c.bf16 %v524, %v515
        %v930 = vpack.c.bf16 %v525, %v516
        %v931 = vpack.c.bf16 %v526, %v517
        %v932 = vpack.c.bf16 %v527, %v518
        %v933 = vpack.c.bf16 %v528, %v519
        %v934 = vpack.c.bf16 %v529, %v520
        %v935 = vpack.c.bf16 %v530, %v521
        %v936 = vpack.c.bf16 %v531, %v522
        %v937 = vpack.c.bf16 %v532, %v523
        %v938 = vpack.c.bf16 %v542, %v533
        %v939 = vpack.c.bf16 %v543, %v534
        %v940 = vpack.c.bf16 %v544, %v535
        %v941 = vpack.c.bf16 %v545, %v536
        %v942 = vpack.c.bf16 %v546, %v537
        %v943 = vpack.c.bf16 %v547, %v538
        %v944 = vpack.c.bf16 %v548, %v539
        %v945 = vpack.c.bf16 %v549, %v540
        %v946 = vpack.c.bf16 %v550, %v541
        %v947 = vpack.c.bf16 %v560, %v551
        %v948 = vpack.c.bf16 %v561, %v552
        %v949 = vpack.c.bf16 %v562, %v553
        %v950 = vpack.c.bf16 %v563, %v554
        %v951 = vpack.c.bf16 %v564, %v555
        %v952 = vpack.c.bf16 %v565, %v556
        %v953 = vpack.c.bf16 %v566, %v557
        %v954 = vpack.c.bf16 %v567, %v558
        %v955 = vpack.c.bf16 %v568, %v559
        %v956 = vpack.c.bf16 %v578, %v569
        %v957 = vpack.c.bf16 %v579, %v570
        %v958 = vpack.c.bf16 %v580, %v571
        %v959 = vpack.c.bf16 %v581, %v572
        %v960 = vpack.c.bf16 %v582, %v573
        %v961 = vpack.c.bf16 %v583, %v574
        %v962 = vpack.c.bf16 %v584, %v575
        %v963 = vpack.c.bf16 %v585, %v576
        %v964 = vpack.c.bf16 %v586, %v577
        %v965 = vpack.c.bf16 %v596, %v587
        %v966 = vpack.c.bf16 %v597, %v588
        %v967 = vpack.c.bf16 %v598, %v589
        %v968 = vpack.c.bf16 %v599, %v590
        %v969 = vpack.c.bf16 %v600, %v591
        %v970 = vpack.c.bf16 %v601, %v592
        %v971 = vpack.c.bf16 %v602, %v593
        %v972 = vpack.c.bf16 %v603, %v594
        %v973 = vpack.c.bf16 %v604, %v595
        %v974 = vpack.c.bf16 %v614, %v605
        %v975 = vpack.c.bf16 %v615, %v606
        %v976 = vpack.c.bf16 %v616, %v607
        %v977 = vpack.c.bf16 %v617, %v608
        %v978 = vpack.c.bf16 %v618, %v609
        %v979 = vpack.c.bf16 %v619, %v610
        %v980 = vpack.c.bf16 %v620, %v611
        %v981 = vpack.c.bf16 %v621, %v612
        %v982 = vpack.c.bf16 %v622, %v613
        %v983 = vpack.c.bf16 %v632, %v623
        %v984 = vpack.c.bf16 %v633, %v624
        %v985 = vpack.c.bf16 %v634, %v625
        %v986 = vpack.c.bf16 %v635, %v626
        %v987 = vpack.c.bf16 %v636, %v627
        %v988 = vpack.c.bf16 %v637, %v628
        %v989 = vpack.c.bf16 %v638, %v629
        %v990 = vpack.c.bf16 %v639, %v630
        %v991 = vpack.c.bf16 %v640, %v631
        %v992 = vpack.c.bf16 %v650, %v641
        %v993 = vpack.c.bf16 %v651, %v642
        %v994 = vpack.c.bf16 %v652, %v643
        %v995 = vpack.c.bf16 %v653, %v644
        %v996 = vpack.c.bf16 %v654, %v645
        %v997 = vpack.c.bf16 %v655, %v646
        %v998 = vpack.c.bf16 %v656, %v647
        %v999 = vpack.c.bf16 %v657, %v648
        %v1000 = vpack.c.bf16 %v658, %v649
        %v1001 = vpack.c.bf16 %v668, %v659
        %v1002 = vpack.c.bf16 %v669, %v660
        %v1003 = vpack.c.bf16 %v670, %v661
        %v1004 = vpack.c.bf16 %v671, %v662
        %v1005 = vpack.c.bf16 %v672, %v663
        %v1006 = vpack.c.bf16 %v673, %v664
        %v1007 = vpack.c.bf16 %v674, %v665
        %v1008 = vpack.c.bf16 %v675, %v666
        %v1009 = vpack.c.bf16 %v676, %v667
        %v1010 = vpack.c.bf16 %v686, %v677
        %v1011 = vpack.c.bf16 %v687, %v678
        %v1012 = vpack.c.bf16 %v688, %v679
        %v1013 = vpack.c.bf16 %v689, %v680
        %v1014 = vpack.c.bf16 %v690, %v681
        %v1015 = vpack.c.bf16 %v691, %v682
        %v1016 = vpack.c.bf16 %v692, %v683
        %v1017 = vpack.c.bf16 %v693, %v684
        %v1018 = vpack.c.bf16 %v694, %v685
        %v1019 = vpack.c.bf16 %v704, %v695
        %v1020 = vpack.c.bf16 %v705, %v696
        %v1021 = vpack.c.bf16 %v706, %v697
        %v1022 = vpack.c.bf16 %v707, %v698
        %v1023 = vpack.c.bf16 %v708, %v699
        %v1024 = vpack.c.bf16 %v709, %v700
        %v1025 = vpack.c.bf16 %v710, %v701
        %v1026 = vpack.c.bf16 %v711, %v702
        %v1027 = vpack.c.bf16 %v712, %v703
        %v1028 = vpack.c.bf16 %v722, %v713
        %v1029 = vpack.c.bf16 %v723, %v714
        %v1030 = vpack.c.bf16 %v724, %v715
        %v1031 = vpack.c.bf16 %v725, %v716
        %v1032 = vpack.c.bf16 %v726, %v717
        %v1033 = vpack.c.bf16 %v727, %v718
        %v1034 = vpack.c.bf16 %v728, %v719
        %v1035 = vpack.c.bf16 %v729, %v720
        %v1036 = vpack.c.bf16 %v730, %v721
        %v1037 = vpack.c.bf16 %v740, %v731
        %v1038 = vpack.c.bf16 %v741, %v732
        %v1039 = vpack.c.bf16 %v742, %v733
        %v1040 = vpack.c.bf16 %v743, %v734
        %v1041 = vpack.c.bf16 %v744, %v735
        %v1042 = vpack.c.bf16 %v745, %v736
        %v1043 = vpack.c.bf16 %v746, %v737
        %v1044 = vpack.c.bf16 %v747, %v738
        %v1045 = vpack.c.bf16 %v748, %v739
        %v1046 = vpack.c.bf16 %v758, %v749
        %v1047 = vpack.c.bf16 %v759, %v750
        %v1048 = vpack.c.bf16 %v760, %v751
        %v1049 = vpack.c.bf16 %v761, %v752
        %v1050 = vpack.c.bf16 %v762, %v753
        %v1051 = vpack.c.bf16 %v763, %v754
        %v1052 = vpack.c.bf16 %v764, %v755
        %v1053 = vpack.c.bf16 %v765, %v756
        %v1054 = vpack.c.bf16 %v766, %v757
        %v1055 = vpack.c.bf16 %v776, %v767
        %v1056 = vpack.c.bf16 %v777, %v768
        %v1057 = vpack.c.bf16 %v778, %v769
        %v1058 = vpack.c.bf16 %v779, %v770
        %v1059 = vpack.c.bf16 %v780, %v771
        %v1060 = vpack.c.bf16 %v781, %v772
        %v1061 = vpack.c.bf16 %v782, %v773
        %v1062 = vpack.c.bf16 %v783, %v774
        %v1063 = vpack.c.bf16 %v784, %v775
        %v1064 = vpack.c.bf16 %v794, %v785
        %v1065 = vpack.c.bf16 %v795, %v786
        %v1066 = vpack.c.bf16 %v796, %v787
        %v1067 = vpack.c.bf16 %v797, %v788
        %v1068 = vpack.c.bf16 %v798, %v789
        %v1069 = vpack.c.bf16 %v799, %v790
        %v1070 = vpack.c.bf16 %v800, %v791
        %v1071 = vpack.c.bf16 %v801, %v792
        %v1072 = vpack.c.bf16 %v802, %v793
        %v1073 = vpack.c.bf16 %v812, %v803
        %v1074 = vpack.c.bf16 %v813, %v804
        %v1075 = vpack.c.bf16 %v814, %v805
        %v1076 = vpack.c.bf16 %v815, %v806
        %v1077 = vpack.c.bf16 %v816, %v807
        %v1078 = vpack.c.bf16 %v817, %v808
        %v1079 = vpack.c.bf16 %v818, %v809
        %v1080 = vpack.c.bf16 %v819, %v810
        %v1081 = vpack.c.bf16 %v820, %v811
        %v1082 = vpack.c.bf16 %v830, %v821
        %v1083 = vpack.c.bf16 %v831, %v822
        %v1084 = vpack.c.bf16 %v832, %v823
        %v1085 = vpack.c.bf16 %v833, %v824
        %v1086 = vpack.c.bf16 %v834, %v825
        %v1087 = vpack.c.bf16 %v835, %v826
        %v1088 = vpack.c.bf16 %v836, %v827
        %v1089 = vpack.c.bf16 %v837, %v828
        %v1090 = vpack.c.bf16 %v838, %v829
        %v1091 = vpack.c.bf16 %v848, %v839
        %v1092 = vpack.c.bf16 %v849, %v840
        %v1093 = vpack.c.bf16 %v850, %v841
        %v1094 = vpack.c.bf16 %v851, %v842
        %v1095 = vpack.c.bf16 %v852, %v843
        %v1096 = vpack.c.bf16 %v853, %v844
        %v1097 = vpack.c.bf16 %v854, %v845
        %v1098 = vpack.c.bf16 %v855, %v846
        %v1099 = vpack.c.bf16 %v856, %v847
        %v1100 = vpack.c.bf16 %v866, %v857
        %v1101 = vpack.c.bf16 %v867, %v858
        %v1102 = vpack.c.bf16 %v868, %v859
        %v1103 = vpack.c.bf16 %v869, %v860
        %v1104 = vpack.c.bf16 %v870, %v861
        %v1105 = vpack.c.bf16 %v871, %v862
        %v1106 = vpack.c.bf16 %v872, %v863
        %v1107 = vpack.c.bf16 %v873, %v864
        %v1108 = vpack.c.bf16 %v874, %v865
        %v1109 = vpack.c.bf16 %v884, %v875
        %v1110 = vpack.c.bf16 %v885, %v876
        %v1111 = vpack.c.bf16 %v886, %v877
        %v1112 = vpack.c.bf16 %v887, %v878
        %v1113 = vpack.c.bf16 %v888, %v879
        %v1114 = vpack.c.bf16 %v889, %v880
        %v1115 = vpack.c.bf16 %v890, %v881
        %v1116 = vpack.c.bf16 %v891, %v882
        %v1117 = vpack.c.bf16 %v892, %v883
        %v1118 = vpack.c.bf16 %v902, %v893
        %v1119 = vpack.c.bf16 %v903, %v894
        %v1120 = vpack.c.bf16 %v904, %v895
        %v1121 = vpack.c.bf16 %v905, %v896
        %v1122 = vpack.c.bf16 %v906, %v897
        %v1123 = vpack.c.bf16 %v907, %v898
        %v1124 = vpack.c.bf16 %v908, %v899
        %v1125 = vpack.c.bf16 %v909, %v900
        %v1126 = vpack.c.bf16 %v910, %v901
        %v1127 = vld [vmem:[#allocation5] sm:$0xff]
        %v1128 = vld [vmem:[#allocation5 + $0x8] sm:$0xff]
        %v1129 = vld [vmem:[#allocation5 + $0x10] sm:$0xff]
        %v1130 = vld [vmem:[#allocation5 + $0x18] sm:$0xff]
        %v1131 = vld [vmem:[#allocation5 + $0x20] sm:$0xff]
        %v1132 = vld [vmem:[#allocation5 + $0x28] sm:$0xff]
        %v1133 = vld [vmem:[#allocation5 + $0x30] sm:$0xff]
        %v1134 = vld [vmem:[#allocation5 + $0x38] sm:$0xff]
        %v1135 = vld [vmem:[#allocation5 + $0x40] sm:$0xff]
        %v1136 = vld [vmem:[#allocation5 + $0x48] sm:$0xff]
        %v1137 = vld [vmem:[#allocation5 + $0x50] sm:$0xff]
        %v1138 = vld [vmem:[#allocation5 + $0x58] sm:$0xff]
        %v1139 = vld [vmem:[#allocation5 + $0x60] sm:$0xff]
        %v1140 = vld [vmem:[#allocation5 + $0x68] sm:$0xff]
        %v1141 = vld [vmem:[#allocation5 + $0x70] sm:$0xff]
        %v1142 = vld [vmem:[#allocation5 + $0x78] sm:$0xff]
        %v1143 = vld [vmem:[#allocation5 + $0x80] sm:$0xff]
        %v1144 = vld [vmem:[#allocation5 + $0x88] sm:$0xff]
        %v1145 = vld [vmem:[#allocation5 + $0x90] sm:$0xff]
        %v1146 = vld [vmem:[#allocation5 + $0x98] sm:$0xff]
        %v1147 = vld [vmem:[#allocation5 + $0xa0] sm:$0xff]
        %v1148 = vld [vmem:[#allocation5 + $0xa8] sm:$0xff]
        %v1149 = vld [vmem:[#allocation5 + $0xb0] sm:$0xff]
        %v1150 = vld [vmem:[#allocation5 + $0xb8] sm:$0xff]
        %v1151 = vld [vmem:[#allocation5 + $0xc0] sm:$0xff]
        %v1152 = vld [vmem:[#allocation5 + $0xc8] sm:$0xff]
        %v1153 = vld [vmem:[#allocation5 + $0xd0] sm:$0xff]
        %v1154 = vld [vmem:[#allocation5 + $0xd8] sm:$0xff]
        %v1155 = vld [vmem:[#allocation5 + $0xe0] sm:$0xff]
        %v1156 = vld [vmem:[#allocation5 + $0xe8] sm:$0xff]
        %v1157 = vld [vmem:[#allocation5 + $0xf0] sm:$0xff]
        %v1158 = vld [vmem:[#allocation5 + $0xf8] sm:$0xff]
        %v1159 = vld [vmem:[#allocation5 + $0x100] sm:$0xff]
        %v1160 = vld [vmem:[#allocation5 + $0x108] sm:$0xff]
        %v1161 = vld [vmem:[#allocation5 + $0x110] sm:$0xff]
        %v1162 = vld [vmem:[#allocation5 + $0x118] sm:$0xff]
        %v1163 = vld [vmem:[#allocation5 + $0x120] sm:$0xff]
        %v1164 = vld [vmem:[#allocation5 + $0x128] sm:$0xff]
        %v1165 = vld [vmem:[#allocation5 + $0x130] sm:$0xff]
        %v1166 = vld [vmem:[#allocation5 + $0x138] sm:$0xff]
        %v1167 = vld [vmem:[#allocation5 + $0x140] sm:$0xff]
        %v1168 = vld [vmem:[#allocation5 + $0x148] sm:$0xff]
        %v1169 = vld [vmem:[#allocation5 + $0x150] sm:$0xff]
        %v1170 = vld [vmem:[#allocation5 + $0x158] sm:$0xff]
        %v1171 = vld [vmem:[#allocation5 + $0x160] sm:$0xff]
        %v1172 = vld [vmem:[#allocation5 + $0x168] sm:$0xff]
        %v1173 = vld [vmem:[#allocation5 + $0x170] sm:$0xff]
        %v1174 = vld [vmem:[#allocation5 + $0x178] sm:$0xff]
        %v1175 = vld [vmem:[#allocation5 + $0x180] sm:$0xff]
        %v1176 = vld [vmem:[#allocation5 + $0x188] sm:$0xff]
        %v1177 = vld [vmem:[#allocation5 + $0x190] sm:$0xff]
        %v1178 = vld [vmem:[#allocation5 + $0x198] sm:$0xff]
        %v1179 = vld [vmem:[#allocation5 + $0x1a0] sm:$0xff]
        %v1180 = vld [vmem:[#allocation5 + $0x1a8] sm:$0xff]
        %v1181 = vld [vmem:[#allocation5 + $0x1b0] sm:$0xff]
        %v1182 = vld [vmem:[#allocation5 + $0x1b8] sm:$0xff]
        %v1183 = vld [vmem:[#allocation5 + $0x1c0] sm:$0xff]
        %v1184 = vld [vmem:[#allocation5 + $0x1c8] sm:$0xff]
        %v1185 = vld [vmem:[#allocation5 + $0x1d0] sm:$0xff]
        %v1186 = vld [vmem:[#allocation5 + $0x1d8] sm:$0xff]
        %v1187 = vld [vmem:[#allocation5 + $0x1e0] sm:$0xff]
        %v1188 = vld [vmem:[#allocation5 + $0x1e8] sm:$0xff]
        %v1189 = vld [vmem:[#allocation5 + $0x1f0] sm:$0xff]
        %v1190 = vld [vmem:[#allocation5 + $0x1f8] sm:$0xff]
        %v1191 = vld [vmem:[#allocation5 + $0x200] sm:$0xff]
        %v1192 = vld [vmem:[#allocation5 + $0x208] sm:$0xff]
        %v1193 = vld [vmem:[#allocation5 + $0x210] sm:$0xff]
        %v1194 = vld [vmem:[#allocation5 + $0x218] sm:$0xff]
        %v1195 = vld [vmem:[#allocation5 + $0x220] sm:$0xff]
        %v1196 = vld [vmem:[#allocation5 + $0x228] sm:$0xff]
        %v1197 = vld [vmem:[#allocation5 + $0x230] sm:$0xff]
        %v1198 = vld [vmem:[#allocation5 + $0x238] sm:$0xff]
        %v1199 = vld [vmem:[#allocation5 + $0x240] sm:$0xff]
        %v1200 = vld [vmem:[#allocation5 + $0x248] sm:$0xff]
        %v1201 = vld [vmem:[#allocation5 + $0x250] sm:$0xff]
        %v1202 = vld [vmem:[#allocation5 + $0x258] sm:$0xff]
        %v1203 = vld [vmem:[#allocation5 + $0x260] sm:$0xff]
        %v1204 = vld [vmem:[#allocation5 + $0x268] sm:$0xff]
        %v1205 = vld [vmem:[#allocation5 + $0x270] sm:$0xff]
        %v1206 = vld [vmem:[#allocation5 + $0x278] sm:$0xff]
        %v1207 = vld [vmem:[#allocation5 + $0x280] sm:$0xff]
        %v1208 = vld [vmem:[#allocation5 + $0x288] sm:$0xff]
        %v1209 = vld [vmem:[#allocation5 + $0x290] sm:$0xff]
        %v1210 = vld [vmem:[#allocation5 + $0x298] sm:$0xff]
        %v1211 = vld [vmem:[#allocation5 + $0x2a0] sm:$0xff]
        %v1212 = vld [vmem:[#allocation5 + $0x2a8] sm:$0xff]
        %v1213 = vld [vmem:[#allocation5 + $0x2b0] sm:$0xff]
        %v1214 = vld [vmem:[#allocation5 + $0x2b8] sm:$0xff]
        %v1215 = vld [vmem:[#allocation5 + $0x2c0] sm:$0xff]
        %v1216 = vld [vmem:[#allocation5 + $0x2c8] sm:$0xff]
        %v1217 = vld [vmem:[#allocation5 + $0x2d0] sm:$0xff]
        %v1218 = vld [vmem:[#allocation5 + $0x2d8] sm:$0xff]
        %v1219 = vld [vmem:[#allocation5 + $0x2e0] sm:$0xff]
        %v1220 = vld [vmem:[#allocation5 + $0x2e8] sm:$0xff]
        %v1221 = vld [vmem:[#allocation5 + $0x2f0] sm:$0xff]
        %v1222 = vld [vmem:[#allocation5 + $0x2f8] sm:$0xff]
        %v1223 = vld [vmem:[#allocation5 + $0x300] sm:$0xff]
        %v1224 = vld [vmem:[#allocation5 + $0x308] sm:$0xff]
        %v1225 = vld [vmem:[#allocation5 + $0x310] sm:$0xff]
        %v1226 = vld [vmem:[#allocation5 + $0x318] sm:$0xff]
        %v1227 = vld [vmem:[#allocation5 + $0x320] sm:$0xff]
        %v1228 = vld [vmem:[#allocation5 + $0x328] sm:$0xff]
        %v1229 = vld [vmem:[#allocation5 + $0x330] sm:$0xff]
        %v1230 = vld [vmem:[#allocation5 + $0x338] sm:$0xff]
        %v1231 = vld [vmem:[#allocation5 + $0x340] sm:$0xff]
        %v1232 = vld [vmem:[#allocation5 + $0x348] sm:$0xff]
        %v1233 = vld [vmem:[#allocation5 + $0x350] sm:$0xff]
        %v1234 = vld [vmem:[#allocation5 + $0x358] sm:$0xff]
        %v1235 = vld [vmem:[#allocation5 + $0x360] sm:$0xff]
        %v1236 = vld [vmem:[#allocation5 + $0x368] sm:$0xff]
        %v1237 = vld [vmem:[#allocation5 + $0x370] sm:$0xff]
        %v1238 = vld [vmem:[#allocation5 + $0x378] sm:$0xff]
        %v1239 = vld [vmem:[#allocation5 + $0x380] sm:$0xff]
        %v1240 = vld [vmem:[#allocation5 + $0x388] sm:$0xff]
        %v1241 = vld [vmem:[#allocation5 + $0x390] sm:$0xff]
        %v1242 = vld [vmem:[#allocation5 + $0x398] sm:$0xff]
        %v1243 = vld [vmem:[#allocation5 + $0x3a0] sm:$0xff]
        %v1244 = vld [vmem:[#allocation5 + $0x3a8] sm:$0xff]
        %v1245 = vld [vmem:[#allocation5 + $0x3b0] sm:$0xff]
        %v1246 = vld [vmem:[#allocation5 + $0x3b8] sm:$0xff]
        %v1247 = vld [vmem:[#allocation5 + $0x3c0] sm:$0xff]
        %v1248 = vld [vmem:[#allocation5 + $0x3c8] sm:$0xff]
        %v1249 = vld [vmem:[#allocation5 + $0x3d0] sm:$0xff]
        %v1250 = vld [vmem:[#allocation5 + $0x3d8] sm:$0xff]
        %v1251 = vld [vmem:[#allocation5 + $0x3e0] sm:$0xff]
        %v1252 = vld [vmem:[#allocation5 + $0x3e8] sm:$0xff]
        %v1253 = vld [vmem:[#allocation5 + $0x3f0] sm:$0xff]
        %v1254 = vld [vmem:[#allocation5 + $0x3f8] sm:$0xff]
        %v1255 = vld [vmem:[#allocation5 + $0x400] sm:$0xff]
        %v1256 = vld [vmem:[#allocation5 + $0x408] sm:$0xff]
        %v1257 = vld [vmem:[#allocation5 + $0x410] sm:$0xff]
        %v1258 = vld [vmem:[#allocation5 + $0x418] sm:$0xff]
        %v1259 = vld [vmem:[#allocation5 + $0x420] sm:$0xff]
        %v1260 = vld [vmem:[#allocation5 + $0x428] sm:$0xff]
        %v1261 = vld [vmem:[#allocation5 + $0x430] sm:$0xff]
        %v1262 = vld [vmem:[#allocation5 + $0x438] sm:$0xff]
        %v1263 = vld [vmem:[#allocation5 + $0x440] sm:$0xff]
        %v1264 = vld [vmem:[#allocation5 + $0x448] sm:$0xff]
        %v1265 = vld [vmem:[#allocation5 + $0x450] sm:$0xff]
        %v1266 = vld [vmem:[#allocation5 + $0x458] sm:$0xff]
        %v1267 = vld [vmem:[#allocation5 + $0x460] sm:$0xff]
        %v1268 = vld [vmem:[#allocation5 + $0x468] sm:$0xff]
        %v1269 = vld [vmem:[#allocation5 + $0x470] sm:$0xff]
        %v1270 = vld [vmem:[#allocation5 + $0x478] sm:$0xff]
        %v1271 = vld [vmem:[#allocation5 + $0x480] sm:$0xff]
        %v1272 = vld [vmem:[#allocation5 + $0x488] sm:$0xff]
        %v1273 = vld [vmem:[#allocation5 + $0x490] sm:$0xff]
        %v1274 = vld [vmem:[#allocation5 + $0x498] sm:$0xff]
        %v1275 = vld [vmem:[#allocation5 + $0x4a0] sm:$0xff]
        %v1276 = vld [vmem:[#allocation5 + $0x4a8] sm:$0xff]
        %v1277 = vld [vmem:[#allocation5 + $0x4b0] sm:$0xff]
        %v1278 = vld [vmem:[#allocation5 + $0x4b8] sm:$0xff]
        %v1279 = vld [vmem:[#allocation5 + $0x4c0] sm:$0xff]
        %v1280 = vld [vmem:[#allocation5 + $0x4c8] sm:$0xff]
        %v1281 = vld [vmem:[#allocation5 + $0x4d0] sm:$0xff]
        %v1282 = vld [vmem:[#allocation5 + $0x4d8] sm:$0xff]
        %v1283 = vld [vmem:[#allocation5 + $0x4e0] sm:$0xff]
        %v1284 = vld [vmem:[#allocation5 + $0x4e8] sm:$0xff]
        %v1285 = vld [vmem:[#allocation5 + $0x4f0] sm:$0xff]
        %v1286 = vld [vmem:[#allocation5 + $0x4f8] sm:$0xff]
        %v1287 = vld [vmem:[#allocation5 + $0x500] sm:$0xff]
        %v1288 = vld [vmem:[#allocation5 + $0x508] sm:$0xff]
        %v1289 = vld [vmem:[#allocation5 + $0x510] sm:$0xff]
        %v1290 = vld [vmem:[#allocation5 + $0x518] sm:$0xff]
        %v1291 = vld [vmem:[#allocation5 + $0x520] sm:$0xff]
        %v1292 = vld [vmem:[#allocation5 + $0x528] sm:$0xff]
        %v1293 = vld [vmem:[#allocation5 + $0x530] sm:$0xff]
        %v1294 = vld [vmem:[#allocation5 + $0x538] sm:$0xff]
        %v1295 = vld [vmem:[#allocation5 + $0x540] sm:$0xff]
        %v1296 = vld [vmem:[#allocation5 + $0x548] sm:$0xff]
        %v1297 = vld [vmem:[#allocation5 + $0x550] sm:$0xff]
        %v1298 = vld [vmem:[#allocation5 + $0x558] sm:$0xff]
        %v1299 = vld [vmem:[#allocation5 + $0x560] sm:$0xff]
        %v1300 = vld [vmem:[#allocation5 + $0x568] sm:$0xff]
        %v1301 = vld [vmem:[#allocation5 + $0x570] sm:$0xff]
        %v1302 = vld [vmem:[#allocation5 + $0x578] sm:$0xff]
        %v1303 = vld [vmem:[#allocation5 + $0x580] sm:$0xff]
        %v1304 = vld [vmem:[#allocation5 + $0x588] sm:$0xff]
        %v1305 = vld [vmem:[#allocation5 + $0x590] sm:$0xff]
        %v1306 = vld [vmem:[#allocation5 + $0x598] sm:$0xff]
        %v1307 = vld [vmem:[#allocation5 + $0x5a0] sm:$0xff]
        %v1308 = vld [vmem:[#allocation5 + $0x5a8] sm:$0xff]
        %v1309 = vld [vmem:[#allocation5 + $0x5b0] sm:$0xff]
        %v1310 = vld [vmem:[#allocation5 + $0x5b8] sm:$0xff]
        %v1311 = vld [vmem:[#allocation5 + $0x5c0] sm:$0xff]
        %v1312 = vld [vmem:[#allocation5 + $0x5c8] sm:$0xff]
        %v1313 = vld [vmem:[#allocation5 + $0x5d0] sm:$0xff]
        %v1314 = vld [vmem:[#allocation5 + $0x5d8] sm:$0xff]
        %v1315 = vld [vmem:[#allocation5 + $0x5e0] sm:$0xff]
        %v1316 = vld [vmem:[#allocation5 + $0x5e8] sm:$0xff]
        %v1317 = vld [vmem:[#allocation5 + $0x5f0] sm:$0xff]
        %v1318 = vld [vmem:[#allocation5 + $0x5f8] sm:$0xff]
        %v1319 = vld [vmem:[#allocation5 + $0x600] sm:$0xff]
        %v1320 = vld [vmem:[#allocation5 + $0x608] sm:$0xff]
        %v1321 = vld [vmem:[#allocation5 + $0x610] sm:$0xff]
        %v1322 = vld [vmem:[#allocation5 + $0x618] sm:$0xff]
        %v1323 = vld [vmem:[#allocation5 + $0x620] sm:$0xff]
        %v1324 = vld [vmem:[#allocation5 + $0x628] sm:$0xff]
        %v1325 = vld [vmem:[#allocation5 + $0x630] sm:$0xff]
        %v1326 = vld [vmem:[#allocation5 + $0x638] sm:$0xff]
        %v1327 = vld [vmem:[#allocation5 + $0x640] sm:$0xff]
        %v1328 = vld [vmem:[#allocation5 + $0x648] sm:$0xff]
        %v1329 = vld [vmem:[#allocation5 + $0x650] sm:$0xff]
        %v1330 = vld [vmem:[#allocation5 + $0x658] sm:$0xff]
        %v1331 = vld [vmem:[#allocation5 + $0x660] sm:$0xff]
        %v1332 = vld [vmem:[#allocation5 + $0x668] sm:$0xff]
        %v1333 = vld [vmem:[#allocation5 + $0x670] sm:$0xff]
        %v1334 = vld [vmem:[#allocation5 + $0x678] sm:$0xff]
        %v1335 = vld [vmem:[#allocation5 + $0x680] sm:$0xff]
        %v1336 = vld [vmem:[#allocation5 + $0x688] sm:$0xff]
        %v1337 = vld [vmem:[#allocation5 + $0x690] sm:$0xff]
        %v1338 = vld [vmem:[#allocation5 + $0x698] sm:$0xff]
        %v1339 = vld [vmem:[#allocation5 + $0x6a0] sm:$0xff]
        %v1340 = vld [vmem:[#allocation5 + $0x6a8] sm:$0xff]
        %v1341 = vld [vmem:[#allocation5 + $0x6b0] sm:$0xff]
        %v1342 = vld [vmem:[#allocation5 + $0x6b8] sm:$0xff]
        %v1343 = vld [vmem:[#allocation5 + $0x6c0] sm:$0xff]
        %v1344 = vld [vmem:[#allocation5 + $0x6c8] sm:$0xff]
        %v1345 = vld [vmem:[#allocation5 + $0x6d0] sm:$0xff]
        %v1346 = vld [vmem:[#allocation5 + $0x6d8] sm:$0xff]
        %v1347 = vld [vmem:[#allocation5 + $0x6e0] sm:$0xff]
        %v1348 = vld [vmem:[#allocation5 + $0x6e8] sm:$0xff]
        %v1349 = vld [vmem:[#allocation5 + $0x6f0] sm:$0xff]
        %v1350 = vld [vmem:[#allocation5 + $0x6f8] sm:$0xff]
        %v1351 = vld [vmem:[#allocation5 + $0x700] sm:$0xff]
        %v1352 = vld [vmem:[#allocation5 + $0x708] sm:$0xff]
        %v1353 = vld [vmem:[#allocation5 + $0x710] sm:$0xff]
        %v1354 = vld [vmem:[#allocation5 + $0x718] sm:$0xff]
        %v1355 = vld [vmem:[#allocation5 + $0x720] sm:$0xff]
        %v1356 = vld [vmem:[#allocation5 + $0x728] sm:$0xff]
        %v1357 = vld [vmem:[#allocation5 + $0x730] sm:$0xff]
        %v1358 = vld [vmem:[#allocation5 + $0x738] sm:$0xff]
        %v1359 = vld [vmem:[#allocation5 + $0x740] sm:$0xff]
        %v1360 = vld [vmem:[#allocation5 + $0x748] sm:$0xff]
        %v1361 = vld [vmem:[#allocation5 + $0x750] sm:$0xff]
        %v1362 = vld [vmem:[#allocation5 + $0x758] sm:$0xff]
        %v1363 = vld [vmem:[#allocation5 + $0x760] sm:$0xff]
        %v1364 = vld [vmem:[#allocation5 + $0x768] sm:$0xff]
        %v1365 = vld [vmem:[#allocation5 + $0x770] sm:$0xff]
        %v1366 = vld [vmem:[#allocation5 + $0x778] sm:$0xff]
        %v1367 = vld [vmem:[#allocation5 + $0x780] sm:$0xff]
        %v1368 = vld [vmem:[#allocation5 + $0x788] sm:$0xff]
        %v1369 = vld [vmem:[#allocation5 + $0x790] sm:$0xff]
        %v1370 = vld [vmem:[#allocation5 + $0x798] sm:$0xff]
        %v1371 = vld [vmem:[#allocation5 + $0x7a0] sm:$0xff]
        %v1372 = vld [vmem:[#allocation5 + $0x7a8] sm:$0xff]
        %v1373 = vld [vmem:[#allocation5 + $0x7b0] sm:$0xff]
        %v1374 = vld [vmem:[#allocation5 + $0x7b8] sm:$0xff]
        %v1375 = vld [vmem:[#allocation5 + $0x7c0] sm:$0xff]
        %v1376 = vld [vmem:[#allocation5 + $0x7c8] sm:$0xff]
        %v1377 = vld [vmem:[#allocation5 + $0x7d0] sm:$0xff]
        %v1378 = vld [vmem:[#allocation5 + $0x7d8] sm:$0xff]
        %v1379 = vld [vmem:[#allocation5 + $0x7e0] sm:$0xff]
        %v1380 = vld [vmem:[#allocation5 + $0x7e8] sm:$0xff]
        %v1381 = vld [vmem:[#allocation5 + $0x7f0] sm:$0xff]
        %v1382 = vld [vmem:[#allocation5 + $0x7f8] sm:$0xff]
        %v1383 = vld [vmem:[#allocation5 + $0x800] sm:$0xff]
        %v1384 = vld [vmem:[#allocation5 + $0x808] sm:$0xff]
        %v1385 = vld [vmem:[#allocation5 + $0x810] sm:$0xff]
        %v1386 = vld [vmem:[#allocation5 + $0x818] sm:$0xff]
        %v1387 = vld [vmem:[#allocation5 + $0x820] sm:$0xff]
        %v1388 = vld [vmem:[#allocation5 + $0x828] sm:$0xff]
        %v1389 = vld [vmem:[#allocation5 + $0x830] sm:$0xff]
        %v1390 = vld [vmem:[#allocation5 + $0x838] sm:$0xff]
        %v1391 = vld [vmem:[#allocation5 + $0x840] sm:$0xff]
        %v1392 = vld [vmem:[#allocation5 + $0x848] sm:$0xff]
        %v1393 = vld [vmem:[#allocation5 + $0x850] sm:$0xff]
        %v1394 = vld [vmem:[#allocation5 + $0x858] sm:$0xff]
        %v1395 = vld [vmem:[#allocation5 + $0x860] sm:$0xff]
        %v1396 = vld [vmem:[#allocation5 + $0x868] sm:$0xff]
        %v1397 = vld [vmem:[#allocation7] sm:$0xf]
        %v1399 = vlaneseq
        %v1400 = vshrl.u32 %v1399, 7
        %v1401 = vsub.s32 0, %v1400
        %v1402 = vrot.slane %v1397, %v1401
        %v1403 = vlaneseq
        %v1404 = vshrl.u32 %v1403, 7
        %v1405 = vsub.s32 1, %v1404
        %v1406 = vrot.slane %v1397, %v1405
        %v1407 = vlaneseq
        %v1408 = vshrl.u32 %v1407, 7
        %v1409 = vsub.s32 2, %v1408
        %v1410 = vrot.slane %v1397, %v1409
        %v1411 = vlaneseq
        %v1412 = vshrl.u32 %v1411, 7
        %v1413 = vsub.s32 3, %v1412
        %v1414 = vrot.slane %v1397, %v1413
        %v1689 = vunpack.c.l.b16 %v1127
        %v1690 = vunpack.c.h.b16 %v1127
        %v1691 = vunpack.c.l.b16 %v1128
        %v1692 = vunpack.c.h.b16 %v1128
        %v1693 = vunpack.c.l.b16 %v1129
        %v1694 = vunpack.c.h.b16 %v1129
        %v1695 = vunpack.c.l.b16 %v1130
        %v1696 = vunpack.c.h.b16 %v1130
        %v1697 = vunpack.c.l.b16 %v1131
        %v1698 = vunpack.c.h.b16 %v1131
        %v1699 = vunpack.c.l.b16 %v1132
        %v1700 = vunpack.c.h.b16 %v1132
        %v1701 = vunpack.c.l.b16 %v1133
        %v1702 = vunpack.c.h.b16 %v1133
        %v1703 = vunpack.c.l.b16 %v1134
        %v1704 = vunpack.c.h.b16 %v1134
        %v1705 = vunpack.c.l.b16 %v1135
        %v1706 = vunpack.c.h.b16 %v1135
        %v1707 = vunpack.c.l.b16 %v1136
        %v1708 = vunpack.c.h.b16 %v1136
        %v1709 = vunpack.c.l.b16 %v1137
        %v1710 = vunpack.c.h.b16 %v1137
        %v1711 = vunpack.c.l.b16 %v1138
        %v1712 = vunpack.c.h.b16 %v1138
        %v1713 = vunpack.c.l.b16 %v1139
        %v1714 = vunpack.c.h.b16 %v1139
        %v1715 = vunpack.c.l.b16 %v1140
        %v1716 = vunpack.c.h.b16 %v1140
        %v1717 = vunpack.c.l.b16 %v1141
        %v1718 = vunpack.c.h.b16 %v1141
        %v1719 = vunpack.c.l.b16 %v1142
        %v1720 = vunpack.c.h.b16 %v1142
        %v1721 = vunpack.c.l.b16 %v1143
        %v1722 = vunpack.c.h.b16 %v1143
        %v1723 = vunpack.c.l.b16 %v1144
        %v1724 = vunpack.c.h.b16 %v1144
        %v1725 = vunpack.c.l.b16 %v1145
        %v1726 = vunpack.c.h.b16 %v1145
        %v1727 = vunpack.c.l.b16 %v1146
        %v1728 = vunpack.c.h.b16 %v1146
        %v1729 = vunpack.c.l.b16 %v1147
        %v1730 = vunpack.c.h.b16 %v1147
        %v1731 = vunpack.c.l.b16 %v1148
        %v1732 = vunpack.c.h.b16 %v1148
        %v1733 = vunpack.c.l.b16 %v1149
        %v1734 = vunpack.c.h.b16 %v1149
        %v1735 = vunpack.c.l.b16 %v1150
        %v1736 = vunpack.c.h.b16 %v1150
        %v1737 = vunpack.c.l.b16 %v1151
        %v1738 = vunpack.c.h.b16 %v1151
        %v1739 = vunpack.c.l.b16 %v1152
        %v1740 = vunpack.c.h.b16 %v1152
        %v1741 = vunpack.c.l.b16 %v1153
        %v1742 = vunpack.c.h.b16 %v1153
        %v1743 = vunpack.c.l.b16 %v1154
        %v1744 = vunpack.c.h.b16 %v1154
        %v1745 = vunpack.c.l.b16 %v1155
        %v1746 = vunpack.c.h.b16 %v1155
        %v1747 = vunpack.c.l.b16 %v1156
        %v1748 = vunpack.c.h.b16 %v1156
        %v1749 = vunpack.c.l.b16 %v1157
        %v1750 = vunpack.c.h.b16 %v1157
        %v1751 = vunpack.c.l.b16 %v1158
        %v1752 = vunpack.c.h.b16 %v1158
        %v1753 = vunpack.c.l.b16 %v1159
        %v1754 = vunpack.c.h.b16 %v1159
        %v1755 = vunpack.c.l.b16 %v1160
        %v1756 = vunpack.c.h.b16 %v1160
        %v1757 = vunpack.c.l.b16 %v1161
        %v1758 = vunpack.c.h.b16 %v1161
        %v1759 = vunpack.c.l.b16 %v1162
        %v1760 = vunpack.c.h.b16 %v1162
        %v1761 = vunpack.c.l.b16 %v1163
        %v1762 = vunpack.c.h.b16 %v1163
        %v1763 = vunpack.c.l.b16 %v1164
        %v1764 = vunpack.c.h.b16 %v1164
        %v1765 = vunpack.c.l.b16 %v1165
        %v1766 = vunpack.c.h.b16 %v1165
        %v1767 = vunpack.c.l.b16 %v1166
        %v1768 = vunpack.c.h.b16 %v1166
        %v1769 = vunpack.c.l.b16 %v1167
        %v1770 = vunpack.c.h.b16 %v1167
        %v1771 = vunpack.c.l.b16 %v1168
        %v1772 = vunpack.c.h.b16 %v1168
        %v1773 = vunpack.c.l.b16 %v1169
        %v1774 = vunpack.c.h.b16 %v1169
        %v1775 = vunpack.c.l.b16 %v1170
        %v1776 = vunpack.c.h.b16 %v1170
        %v1777 = vunpack.c.l.b16 %v1171
        %v1778 = vunpack.c.h.b16 %v1171
        %v1779 = vunpack.c.l.b16 %v1172
        %v1780 = vunpack.c.h.b16 %v1172
        %v1781 = vunpack.c.l.b16 %v1173
        %v1782 = vunpack.c.h.b16 %v1173
        %v1783 = vunpack.c.l.b16 %v1174
        %v1784 = vunpack.c.h.b16 %v1174
        %v1785 = vunpack.c.l.b16 %v1175
        %v1786 = vunpack.c.h.b16 %v1175
        %v1787 = vunpack.c.l.b16 %v1176
        %v1788 = vunpack.c.h.b16 %v1176
        %v1789 = vunpack.c.l.b16 %v1177
        %v1790 = vunpack.c.h.b16 %v1177
        %v1791 = vunpack.c.l.b16 %v1178
        %v1792 = vunpack.c.h.b16 %v1178
        %v1793 = vunpack.c.l.b16 %v1179
        %v1794 = vunpack.c.h.b16 %v1179
        %v1795 = vunpack.c.l.b16 %v1180
        %v1796 = vunpack.c.h.b16 %v1180
        %v1797 = vunpack.c.l.b16 %v1181
        %v1798 = vunpack.c.h.b16 %v1181
        %v1799 = vunpack.c.l.b16 %v1182
        %v1800 = vunpack.c.h.b16 %v1182
        %v1801 = vunpack.c.l.b16 %v1183
        %v1802 = vunpack.c.h.b16 %v1183
        %v1803 = vunpack.c.l.b16 %v1184
        %v1804 = vunpack.c.h.b16 %v1184
        %v1805 = vunpack.c.l.b16 %v1185
        %v1806 = vunpack.c.h.b16 %v1185
        %v1807 = vunpack.c.l.b16 %v1186
        %v1808 = vunpack.c.h.b16 %v1186
        %v1809 = vunpack.c.l.b16 %v1187
        %v1810 = vunpack.c.h.b16 %v1187
        %v1811 = vunpack.c.l.b16 %v1188
        %v1812 = vunpack.c.h.b16 %v1188
        %v1813 = vunpack.c.l.b16 %v1189
        %v1814 = vunpack.c.h.b16 %v1189
        %v1815 = vunpack.c.l.b16 %v1190
        %v1816 = vunpack.c.h.b16 %v1190
        %v1817 = vunpack.c.l.b16 %v1191
        %v1818 = vunpack.c.h.b16 %v1191
        %v1819 = vunpack.c.l.b16 %v1192
        %v1820 = vunpack.c.h.b16 %v1192
        %v1821 = vunpack.c.l.b16 %v1193
        %v1822 = vunpack.c.h.b16 %v1193
        %v1823 = vunpack.c.l.b16 %v1194
        %v1824 = vunpack.c.h.b16 %v1194
        %v1825 = vunpack.c.l.b16 %v1195
        %v1826 = vunpack.c.h.b16 %v1195
        %v1827 = vunpack.c.l.b16 %v1196
        %v1828 = vunpack.c.h.b16 %v1196
        %v1829 = vunpack.c.l.b16 %v1197
        %v1830 = vunpack.c.h.b16 %v1197
        %v1831 = vunpack.c.l.b16 %v1198
        %v1832 = vunpack.c.h.b16 %v1198
        %v1833 = vunpack.c.l.b16 %v1199
        %v1834 = vunpack.c.h.b16 %v1199
        %v1835 = vunpack.c.l.b16 %v1200
        %v1836 = vunpack.c.h.b16 %v1200
        %v1837 = vunpack.c.l.b16 %v1201
        %v1838 = vunpack.c.h.b16 %v1201
        %v1839 = vunpack.c.l.b16 %v1202
        %v1840 = vunpack.c.h.b16 %v1202
        %v1841 = vunpack.c.l.b16 %v1203
        %v1842 = vunpack.c.h.b16 %v1203
        %v1843 = vunpack.c.l.b16 %v1204
        %v1844 = vunpack.c.h.b16 %v1204
        %v1845 = vunpack.c.l.b16 %v1205
        %v1846 = vunpack.c.h.b16 %v1205
        %v1847 = vunpack.c.l.b16 %v1206
        %v1848 = vunpack.c.h.b16 %v1206
        %v1849 = vunpack.c.l.b16 %v1207
        %v1850 = vunpack.c.h.b16 %v1207
        %v1851 = vunpack.c.l.b16 %v1208
        %v1852 = vunpack.c.h.b16 %v1208
        %v1853 = vunpack.c.l.b16 %v1209
        %v1854 = vunpack.c.h.b16 %v1209
        %v1855 = vunpack.c.l.b16 %v1210
        %v1856 = vunpack.c.h.b16 %v1210
        %v1857 = vunpack.c.l.b16 %v1211
        %v1858 = vunpack.c.h.b16 %v1211
        %v1859 = vunpack.c.l.b16 %v1212
        %v1860 = vunpack.c.h.b16 %v1212
        %v1861 = vunpack.c.l.b16 %v1213
        %v1862 = vunpack.c.h.b16 %v1213
        %v1863 = vunpack.c.l.b16 %v1214
        %v1864 = vunpack.c.h.b16 %v1214
        %v1865 = vunpack.c.l.b16 %v1215
        %v1866 = vunpack.c.h.b16 %v1215
        %v1867 = vunpack.c.l.b16 %v1216
        %v1868 = vunpack.c.h.b16 %v1216
        %v1869 = vunpack.c.l.b16 %v1217
        %v1870 = vunpack.c.h.b16 %v1217
        %v1871 = vunpack.c.l.b16 %v1218
        %v1872 = vunpack.c.h.b16 %v1218
        %v1873 = vunpack.c.l.b16 %v1219
        %v1874 = vunpack.c.h.b16 %v1219
        %v1875 = vunpack.c.l.b16 %v1220
        %v1876 = vunpack.c.h.b16 %v1220
        %v1877 = vunpack.c.l.b16 %v1221
        %v1878 = vunpack.c.h.b16 %v1221
        %v1879 = vunpack.c.l.b16 %v1222
        %v1880 = vunpack.c.h.b16 %v1222
        %v1881 = vunpack.c.l.b16 %v1223
        %v1882 = vunpack.c.h.b16 %v1223
        %v1883 = vunpack.c.l.b16 %v1224
        %v1884 = vunpack.c.h.b16 %v1224
        %v1885 = vunpack.c.l.b16 %v1225
        %v1886 = vunpack.c.h.b16 %v1225
        %v1887 = vunpack.c.l.b16 %v1226
        %v1888 = vunpack.c.h.b16 %v1226
        %v1889 = vunpack.c.l.b16 %v1227
        %v1890 = vunpack.c.h.b16 %v1227
        %v1891 = vunpack.c.l.b16 %v1228
        %v1892 = vunpack.c.h.b16 %v1228
        %v1893 = vunpack.c.l.b16 %v1229
        %v1894 = vunpack.c.h.b16 %v1229
        %v1895 = vunpack.c.l.b16 %v1230
        %v1896 = vunpack.c.h.b16 %v1230
        %v1897 = vunpack.c.l.b16 %v1231
        %v1898 = vunpack.c.h.b16 %v1231
        %v1899 = vunpack.c.l.b16 %v1232
        %v1900 = vunpack.c.h.b16 %v1232
        %v1901 = vunpack.c.l.b16 %v1233
        %v1902 = vunpack.c.h.b16 %v1233
        %v1903 = vunpack.c.l.b16 %v1234
        %v1904 = vunpack.c.h.b16 %v1234
        %v1905 = vunpack.c.l.b16 %v1235
        %v1906 = vunpack.c.h.b16 %v1235
        %v1907 = vunpack.c.l.b16 %v1236
        %v1908 = vunpack.c.h.b16 %v1236
        %v1909 = vunpack.c.l.b16 %v1237
        %v1910 = vunpack.c.h.b16 %v1237
        %v1911 = vunpack.c.l.b16 %v1238
        %v1912 = vunpack.c.h.b16 %v1238
        %v1913 = vunpack.c.l.b16 %v1239
        %v1914 = vunpack.c.h.b16 %v1239
        %v1915 = vunpack.c.l.b16 %v1240
        %v1916 = vunpack.c.h.b16 %v1240
        %v1917 = vunpack.c.l.b16 %v1241
        %v1918 = vunpack.c.h.b16 %v1241
        %v1919 = vunpack.c.l.b16 %v1242
        %v1920 = vunpack.c.h.b16 %v1242
        %v1921 = vunpack.c.l.b16 %v1243
        %v1922 = vunpack.c.h.b16 %v1243
        %v1923 = vunpack.c.l.b16 %v1244
        %v1924 = vunpack.c.h.b16 %v1244
        %v1925 = vunpack.c.l.b16 %v1245
        %v1926 = vunpack.c.h.b16 %v1245
        %v1927 = vunpack.c.l.b16 %v1246
        %v1928 = vunpack.c.h.b16 %v1246
        %v1929 = vunpack.c.l.b16 %v1247
        %v1930 = vunpack.c.h.b16 %v1247
        %v1931 = vunpack.c.l.b16 %v1248
        %v1932 = vunpack.c.h.b16 %v1248
        %v1933 = vunpack.c.l.b16 %v1249
        %v1934 = vunpack.c.h.b16 %v1249
        %v1935 = vunpack.c.l.b16 %v1250
        %v1936 = vunpack.c.h.b16 %v1250
        %v1937 = vunpack.c.l.b16 %v1251
        %v1938 = vunpack.c.h.b16 %v1251
        %v1939 = vunpack.c.l.b16 %v1252
        %v1940 = vunpack.c.h.b16 %v1252
        %v1941 = vunpack.c.l.b16 %v1253
        %v1942 = vunpack.c.h.b16 %v1253
        %v1943 = vunpack.c.l.b16 %v1254
        %v1944 = vunpack.c.h.b16 %v1254
        %v1945 = vunpack.c.l.b16 %v1255
        %v1946 = vunpack.c.h.b16 %v1255
        %v1947 = vunpack.c.l.b16 %v1256
        %v1948 = vunpack.c.h.b16 %v1256
        %v1949 = vunpack.c.l.b16 %v1257
        %v1950 = vunpack.c.h.b16 %v1257
        %v1951 = vunpack.c.l.b16 %v1258
        %v1952 = vunpack.c.h.b16 %v1258
        %v1953 = vunpack.c.l.b16 %v1259
        %v1954 = vunpack.c.h.b16 %v1259
        %v1955 = vunpack.c.l.b16 %v1260
        %v1956 = vunpack.c.h.b16 %v1260
        %v1957 = vunpack.c.l.b16 %v1261
        %v1958 = vunpack.c.h.b16 %v1261
        %v1959 = vunpack.c.l.b16 %v1262
        %v1960 = vunpack.c.h.b16 %v1262
        %v1961 = vunpack.c.l.b16 %v1263
        %v1962 = vunpack.c.h.b16 %v1263
        %v1963 = vunpack.c.l.b16 %v1264
        %v1964 = vunpack.c.h.b16 %v1264
        %v1965 = vunpack.c.l.b16 %v1265
        %v1966 = vunpack.c.h.b16 %v1265
        %v1967 = vunpack.c.l.b16 %v1266
        %v1968 = vunpack.c.h.b16 %v1266
        %v1969 = vunpack.c.l.b16 %v1267
        %v1970 = vunpack.c.h.b16 %v1267
        %v1971 = vunpack.c.l.b16 %v1268
        %v1972 = vunpack.c.h.b16 %v1268
        %v1973 = vunpack.c.l.b16 %v1269
        %v1974 = vunpack.c.h.b16 %v1269
        %v1975 = vunpack.c.l.b16 %v1270
        %v1976 = vunpack.c.h.b16 %v1270
        %v1977 = vunpack.c.l.b16 %v1271
        %v1978 = vunpack.c.h.b16 %v1271
        %v1979 = vunpack.c.l.b16 %v1272
        %v1980 = vunpack.c.h.b16 %v1272
        %v1981 = vunpack.c.l.b16 %v1273
        %v1982 = vunpack.c.h.b16 %v1273
        %v1983 = vunpack.c.l.b16 %v1274
        %v1984 = vunpack.c.h.b16 %v1274
        %v1985 = vunpack.c.l.b16 %v1275
        %v1986 = vunpack.c.h.b16 %v1275
        %v1987 = vunpack.c.l.b16 %v1276
        %v1988 = vunpack.c.h.b16 %v1276
        %v1989 = vunpack.c.l.b16 %v1277
        %v1990 = vunpack.c.h.b16 %v1277
        %v1991 = vunpack.c.l.b16 %v1278
        %v1992 = vunpack.c.h.b16 %v1278
        %v1993 = vunpack.c.l.b16 %v1279
        %v1994 = vunpack.c.h.b16 %v1279
        %v1995 = vunpack.c.l.b16 %v1280
        %v1996 = vunpack.c.h.b16 %v1280
        %v1997 = vunpack.c.l.b16 %v1281
        %v1998 = vunpack.c.h.b16 %v1281
        %v1999 = vunpack.c.l.b16 %v1282
        %v2000 = vunpack.c.h.b16 %v1282
        %v2001 = vunpack.c.l.b16 %v1283
        %v2002 = vunpack.c.h.b16 %v1283
        %v2003 = vunpack.c.l.b16 %v1284
        %v2004 = vunpack.c.h.b16 %v1284
        %v2005 = vunpack.c.l.b16 %v1285
        %v2006 = vunpack.c.h.b16 %v1285
        %v2007 = vunpack.c.l.b16 %v1286
        %v2008 = vunpack.c.h.b16 %v1286
        %v2009 = vunpack.c.l.b16 %v1287
        %v2010 = vunpack.c.h.b16 %v1287
        %v2011 = vunpack.c.l.b16 %v1288
        %v2012 = vunpack.c.h.b16 %v1288
        %v2013 = vunpack.c.l.b16 %v1289
        %v2014 = vunpack.c.h.b16 %v1289
        %v2015 = vunpack.c.l.b16 %v1290
        %v2016 = vunpack.c.h.b16 %v1290
        %v2017 = vunpack.c.l.b16 %v1291
        %v2018 = vunpack.c.h.b16 %v1291
        %v2019 = vunpack.c.l.b16 %v1292
        %v2020 = vunpack.c.h.b16 %v1292
        %v2021 = vunpack.c.l.b16 %v1293
        %v2022 = vunpack.c.h.b16 %v1293
        %v2023 = vunpack.c.l.b16 %v1294
        %v2024 = vunpack.c.h.b16 %v1294
        %v2025 = vunpack.c.l.b16 %v1295
        %v2026 = vunpack.c.h.b16 %v1295
        %v2027 = vunpack.c.l.b16 %v1296
        %v2028 = vunpack.c.h.b16 %v1296
        %v2029 = vunpack.c.l.b16 %v1297
        %v2030 = vunpack.c.h.b16 %v1297
        %v2031 = vunpack.c.l.b16 %v1298
        %v2032 = vunpack.c.h.b16 %v1298
        %v2033 = vunpack.c.l.b16 %v1299
        %v2034 = vunpack.c.h.b16 %v1299
        %v2035 = vunpack.c.l.b16 %v1300
        %v2036 = vunpack.c.h.b16 %v1300
        %v2037 = vunpack.c.l.b16 %v1301
        %v2038 = vunpack.c.h.b16 %v1301
        %v2039 = vunpack.c.l.b16 %v1302
        %v2040 = vunpack.c.h.b16 %v1302
        %v2041 = vunpack.c.l.b16 %v1303
        %v2042 = vunpack.c.h.b16 %v1303
        %v2043 = vunpack.c.l.b16 %v1304
        %v2044 = vunpack.c.h.b16 %v1304
        %v2045 = vunpack.c.l.b16 %v1305
        %v2046 = vunpack.c.h.b16 %v1305
        %v2047 = vunpack.c.l.b16 %v1306
        %v2048 = vunpack.c.h.b16 %v1306
        %v2049 = vunpack.c.l.b16 %v1307
        %v2050 = vunpack.c.h.b16 %v1307
        %v2051 = vunpack.c.l.b16 %v1308
        %v2052 = vunpack.c.h.b16 %v1308
        %v2053 = vunpack.c.l.b16 %v1309
        %v2054 = vunpack.c.h.b16 %v1309
        %v2055 = vunpack.c.l.b16 %v1310
        %v2056 = vunpack.c.h.b16 %v1310
        %v2057 = vunpack.c.l.b16 %v1311
        %v2058 = vunpack.c.h.b16 %v1311
        %v2059 = vunpack.c.l.b16 %v1312
        %v2060 = vunpack.c.h.b16 %v1312
        %v2061 = vunpack.c.l.b16 %v1313
        %v2062 = vunpack.c.h.b16 %v1313
        %v2063 = vunpack.c.l.b16 %v1314
        %v2064 = vunpack.c.h.b16 %v1314
        %v2065 = vunpack.c.l.b16 %v1315
        %v2066 = vunpack.c.h.b16 %v1315
        %v2067 = vunpack.c.l.b16 %v1316
        %v2068 = vunpack.c.h.b16 %v1316
        %v2069 = vunpack.c.l.b16 %v1317
        %v2070 = vunpack.c.h.b16 %v1317
        %v2071 = vunpack.c.l.b16 %v1318
        %v2072 = vunpack.c.h.b16 %v1318
        %v2073 = vunpack.c.l.b16 %v1319
        %v2074 = vunpack.c.h.b16 %v1319
        %v2075 = vunpack.c.l.b16 %v1320
        %v2076 = vunpack.c.h.b16 %v1320
        %v2077 = vunpack.c.l.b16 %v1321
        %v2078 = vunpack.c.h.b16 %v1321
        %v2079 = vunpack.c.l.b16 %v1322
        %v2080 = vunpack.c.h.b16 %v1322
        %v2081 = vunpack.c.l.b16 %v1323
        %v2082 = vunpack.c.h.b16 %v1323
        %v2083 = vunpack.c.l.b16 %v1324
        %v2084 = vunpack.c.h.b16 %v1324
        %v2085 = vunpack.c.l.b16 %v1325
        %v2086 = vunpack.c.h.b16 %v1325
        %v2087 = vunpack.c.l.b16 %v1326
        %v2088 = vunpack.c.h.b16 %v1326
        %v2089 = vunpack.c.l.b16 %v1327
        %v2090 = vunpack.c.h.b16 %v1327
        %v2091 = vunpack.c.l.b16 %v1328
        %v2092 = vunpack.c.h.b16 %v1328
        %v2093 = vunpack.c.l.b16 %v1329
        %v2094 = vunpack.c.h.b16 %v1329
        %v2095 = vunpack.c.l.b16 %v1330
        %v2096 = vunpack.c.h.b16 %v1330
        %v2097 = vunpack.c.l.b16 %v1331
        %v2098 = vunpack.c.h.b16 %v1331
        %v2099 = vunpack.c.l.b16 %v1332
        %v2100 = vunpack.c.h.b16 %v1332
        %v2101 = vunpack.c.l.b16 %v1333
        %v2102 = vunpack.c.h.b16 %v1333
        %v2103 = vunpack.c.l.b16 %v1334
        %v2104 = vunpack.c.h.b16 %v1334
        %v2105 = vunpack.c.l.b16 %v1335
        %v2106 = vunpack.c.h.b16 %v1335
        %v2107 = vunpack.c.l.b16 %v1336
        %v2108 = vunpack.c.h.b16 %v1336
        %v2109 = vunpack.c.l.b16 %v1337
        %v2110 = vunpack.c.h.b16 %v1337
        %v2111 = vunpack.c.l.b16 %v1338
        %v2112 = vunpack.c.h.b16 %v1338
        %v2113 = vunpack.c.l.b16 %v1339
        %v2114 = vunpack.c.h.b16 %v1339
        %v2115 = vunpack.c.l.b16 %v1340
        %v2116 = vunpack.c.h.b16 %v1340
        %v2117 = vunpack.c.l.b16 %v1341
        %v2118 = vunpack.c.h.b16 %v1341
        %v2119 = vunpack.c.l.b16 %v1342
        %v2120 = vunpack.c.h.b16 %v1342
        %v2121 = vunpack.c.l.b16 %v1343
        %v2122 = vunpack.c.h.b16 %v1343
        %v2123 = vunpack.c.l.b16 %v1344
        %v2124 = vunpack.c.h.b16 %v1344
        %v2125 = vunpack.c.l.b16 %v1345
        %v2126 = vunpack.c.h.b16 %v1345
        %v2127 = vunpack.c.l.b16 %v1346
        %v2128 = vunpack.c.h.b16 %v1346
        %v2129 = vunpack.c.l.b16 %v1347
        %v2130 = vunpack.c.h.b16 %v1347
        %v2131 = vunpack.c.l.b16 %v1348
        %v2132 = vunpack.c.h.b16 %v1348
        %v2133 = vunpack.c.l.b16 %v1349
        %v2134 = vunpack.c.h.b16 %v1349
        %v2135 = vunpack.c.l.b16 %v1350
        %v2136 = vunpack.c.h.b16 %v1350
        %v2137 = vunpack.c.l.b16 %v1351
        %v2138 = vunpack.c.h.b16 %v1351
        %v2139 = vunpack.c.l.b16 %v1352
        %v2140 = vunpack.c.h.b16 %v1352
        %v2141 = vunpack.c.l.b16 %v1353
        %v2142 = vunpack.c.h.b16 %v1353
        %v2143 = vunpack.c.l.b16 %v1354
        %v2144 = vunpack.c.h.b16 %v1354
        %v2145 = vunpack.c.l.b16 %v1355
        %v2146 = vunpack.c.h.b16 %v1355
        %v2147 = vunpack.c.l.b16 %v1356
        %v2148 = vunpack.c.h.b16 %v1356
        %v2149 = vunpack.c.l.b16 %v1357
        %v2150 = vunpack.c.h.b16 %v1357
        %v2151 = vunpack.c.l.b16 %v1358
        %v2152 = vunpack.c.h.b16 %v1358
        %v2153 = vunpack.c.l.b16 %v1359
        %v2154 = vunpack.c.h.b16 %v1359
        %v2155 = vunpack.c.l.b16 %v1360
        %v2156 = vunpack.c.h.b16 %v1360
        %v2157 = vunpack.c.l.b16 %v1361
        %v2158 = vunpack.c.h.b16 %v1361
        %v2159 = vunpack.c.l.b16 %v1362
        %v2160 = vunpack.c.h.b16 %v1362
        %v2161 = vunpack.c.l.b16 %v1363
        %v2162 = vunpack.c.h.b16 %v1363
        %v2163 = vunpack.c.l.b16 %v1364
        %v2164 = vunpack.c.h.b16 %v1364
        %v2165 = vunpack.c.l.b16 %v1365
        %v2166 = vunpack.c.h.b16 %v1365
        %v2167 = vunpack.c.l.b16 %v1366
        %v2168 = vunpack.c.h.b16 %v1366
        %v2169 = vunpack.c.l.b16 %v1367
        %v2170 = vunpack.c.h.b16 %v1367
        %v2171 = vunpack.c.l.b16 %v1368
        %v2172 = vunpack.c.h.b16 %v1368
        %v2173 = vunpack.c.l.b16 %v1369
        %v2174 = vunpack.c.h.b16 %v1369
        %v2175 = vunpack.c.l.b16 %v1370
        %v2176 = vunpack.c.h.b16 %v1370
        %v2177 = vunpack.c.l.b16 %v1371
        %v2178 = vunpack.c.h.b16 %v1371
        %v2179 = vunpack.c.l.b16 %v1372
        %v2180 = vunpack.c.h.b16 %v1372
        %v2181 = vunpack.c.l.b16 %v1373
        %v2182 = vunpack.c.h.b16 %v1373
        %v2183 = vunpack.c.l.b16 %v1374
        %v2184 = vunpack.c.h.b16 %v1374
        %v2185 = vunpack.c.l.b16 %v1375
        %v2186 = vunpack.c.h.b16 %v1375
        %v2187 = vunpack.c.l.b16 %v1376
        %v2188 = vunpack.c.h.b16 %v1376
        %v2189 = vunpack.c.l.b16 %v1377
        %v2190 = vunpack.c.h.b16 %v1377
        %v2191 = vunpack.c.l.b16 %v1378
        %v2192 = vunpack.c.h.b16 %v1378
        %v2193 = vunpack.c.l.b16 %v1379
        %v2194 = vunpack.c.h.b16 %v1379
        %v2195 = vunpack.c.l.b16 %v1380
        %v2196 = vunpack.c.h.b16 %v1380
        %v2197 = vunpack.c.l.b16 %v1381
        %v2198 = vunpack.c.h.b16 %v1381
        %v2199 = vunpack.c.l.b16 %v1382
        %v2200 = vunpack.c.h.b16 %v1382
        %v2201 = vunpack.c.l.b16 %v1383
        %v2202 = vunpack.c.h.b16 %v1383
        %v2203 = vunpack.c.l.b16 %v1384
        %v2204 = vunpack.c.h.b16 %v1384
        %v2205 = vunpack.c.l.b16 %v1385
        %v2206 = vunpack.c.h.b16 %v1385
        %v2207 = vunpack.c.l.b16 %v1386
        %v2208 = vunpack.c.h.b16 %v1386
        %v2209 = vunpack.c.l.b16 %v1387
        %v2210 = vunpack.c.h.b16 %v1387
        %v2211 = vunpack.c.l.b16 %v1388
        %v2212 = vunpack.c.h.b16 %v1388
        %v2213 = vunpack.c.l.b16 %v1389
        %v2214 = vunpack.c.h.b16 %v1389
        %v2215 = vunpack.c.l.b16 %v1390
        %v2216 = vunpack.c.h.b16 %v1390
        %v2217 = vunpack.c.l.b16 %v1391
        %v2218 = vunpack.c.h.b16 %v1391
        %v2219 = vunpack.c.l.b16 %v1392
        %v2220 = vunpack.c.h.b16 %v1392
        %v2221 = vunpack.c.l.b16 %v1393
        %v2222 = vunpack.c.h.b16 %v1393
        %v2223 = vunpack.c.l.b16 %v1394
        %v2224 = vunpack.c.h.b16 %v1394
        %v2225 = vunpack.c.l.b16 %v1395
        %v2226 = vunpack.c.h.b16 %v1395
        %v2227 = vunpack.c.l.b16 %v1396
        %v2228 = vunpack.c.h.b16 %v1396
        %v2229 = vpack.c.b16 %v1693, %v1689
        %v2230 = vpack.c.b16 %v1694, %v1690
        %v2231 = vpack.c.b16 %v1695, %v1691
        %v2232 = vpack.c.b16 %v1696, %v1692
        %v2233 = vpack.c.b16 %v1701, %v1697
        %v2234 = vpack.c.b16 %v1702, %v1698
        %v2235 = vpack.c.b16 %v1703, %v1699
        %v2236 = vpack.c.b16 %v1704, %v1700
        %v2237 = vpack.c.b16 %v1709, %v1705
        %v2238 = vpack.c.b16 %v1710, %v1706
        %v2239 = vpack.c.b16 %v1711, %v1707
        %v2240 = vpack.c.b16 %v1712, %v1708
        %v2241 = vpack.c.b16 %v1717, %v1713
        %v2242 = vpack.c.b16 %v1718, %v1714
        %v2243 = vpack.c.b16 %v1719, %v1715
        %v2244 = vpack.c.b16 %v1720, %v1716
        %v2245 = vpack.c.b16 %v1725, %v1721
        %v2246 = vpack.c.b16 %v1726, %v1722
        %v2247 = vpack.c.b16 %v1727, %v1723
        %v2248 = vpack.c.b16 %v1728, %v1724
        %v2249 = vpack.c.b16 %v1733, %v1729
        %v2250 = vpack.c.b16 %v1734, %v1730
        %v2251 = vpack.c.b16 %v1735, %v1731
        %v2252 = vpack.c.b16 %v1736, %v1732
        %v2253 = vpack.c.b16 %v1741, %v1737
        %v2254 = vpack.c.b16 %v1742, %v1738
        %v2255 = vpack.c.b16 %v1743, %v1739
        %v2256 = vpack.c.b16 %v1744, %v1740
        %v2257 = vpack.c.b16 %v1749, %v1745
        %v2258 = vpack.c.b16 %v1750, %v1746
        %v2259 = vpack.c.b16 %v1751, %v1747
        %v2260 = vpack.c.b16 %v1752, %v1748
        %v2261 = vpack.c.b16 %v1757, %v1753
        %v2262 = vpack.c.b16 %v1758, %v1754
        %v2263 = vpack.c.b16 %v1759, %v1755
        %v2264 = vpack.c.b16 %v1760, %v1756
        %v2265 = vpack.c.b16 %v1765, %v1761
        %v2266 = vpack.c.b16 %v1766, %v1762
        %v2267 = vpack.c.b16 %v1767, %v1763
        %v2268 = vpack.c.b16 %v1768, %v1764
        %v2269 = vpack.c.b16 %v1773, %v1769
        %v2270 = vpack.c.b16 %v1774, %v1770
        %v2271 = vpack.c.b16 %v1775, %v1771
        %v2272 = vpack.c.b16 %v1776, %v1772
        %v2273 = vpack.c.b16 %v1781, %v1777
        %v2274 = vpack.c.b16 %v1782, %v1778
        %v2275 = vpack.c.b16 %v1783, %v1779
        %v2276 = vpack.c.b16 %v1784, %v1780
        %v2277 = vpack.c.b16 %v1789, %v1785
        %v2278 = vpack.c.b16 %v1790, %v1786
        %v2279 = vpack.c.b16 %v1791, %v1787
        %v2280 = vpack.c.b16 %v1792, %v1788
        %v2281 = vpack.c.b16 %v1797, %v1793
        %v2282 = vpack.c.b16 %v1798, %v1794
        %v2283 = vpack.c.b16 %v1799, %v1795
        %v2284 = vpack.c.b16 %v1800, %v1796
        %v2285 = vpack.c.b16 %v1805, %v1801
        %v2286 = vpack.c.b16 %v1806, %v1802
        %v2287 = vpack.c.b16 %v1807, %v1803
        %v2288 = vpack.c.b16 %v1808, %v1804
        %v2289 = vpack.c.b16 %v1813, %v1809
        %v2290 = vpack.c.b16 %v1814, %v1810
        %v2291 = vpack.c.b16 %v1815, %v1811
        %v2292 = vpack.c.b16 %v1816, %v1812
        %v2293 = vpack.c.b16 %v1821, %v1817
        %v2294 = vpack.c.b16 %v1822, %v1818
        %v2295 = vpack.c.b16 %v1823, %v1819
        %v2296 = vpack.c.b16 %v1824, %v1820
        %v2297 = vpack.c.b16 %v1829, %v1825
        %v2298 = vpack.c.b16 %v1830, %v1826
        %v2299 = vpack.c.b16 %v1831, %v1827
        %v2300 = vpack.c.b16 %v1832, %v1828
        %v2301 = vpack.c.b16 %v1837, %v1833
        %v2302 = vpack.c.b16 %v1838, %v1834
        %v2303 = vpack.c.b16 %v1839, %v1835
        %v2304 = vpack.c.b16 %v1840, %v1836
        %v2305 = vpack.c.b16 %v1845, %v1841
        %v2306 = vpack.c.b16 %v1846, %v1842
        %v2307 = vpack.c.b16 %v1847, %v1843
        %v2308 = vpack.c.b16 %v1848, %v1844
        %v2309 = vpack.c.b16 %v1853, %v1849
        %v2310 = vpack.c.b16 %v1854, %v1850
        %v2311 = vpack.c.b16 %v1855, %v1851
        %v2312 = vpack.c.b16 %v1856, %v1852
        %v2313 = vpack.c.b16 %v1861, %v1857
        %v2314 = vpack.c.b16 %v1862, %v1858
        %v2315 = vpack.c.b16 %v1863, %v1859
        %v2316 = vpack.c.b16 %v1864, %v1860
        %v2317 = vpack.c.b16 %v1869, %v1865
        %v2318 = vpack.c.b16 %v1870, %v1866
        %v2319 = vpack.c.b16 %v1871, %v1867
        %v2320 = vpack.c.b16 %v1872, %v1868
        %v2321 = vpack.c.b16 %v1877, %v1873
        %v2322 = vpack.c.b16 %v1878, %v1874
        %v2323 = vpack.c.b16 %v1879, %v1875
        %v2324 = vpack.c.b16 %v1880, %v1876
        %v2325 = vpack.c.b16 %v1885, %v1881
        %v2326 = vpack.c.b16 %v1886, %v1882
        %v2327 = vpack.c.b16 %v1887, %v1883
        %v2328 = vpack.c.b16 %v1888, %v1884
        %v2329 = vpack.c.b16 %v1893, %v1889
        %v2330 = vpack.c.b16 %v1894, %v1890
        %v2331 = vpack.c.b16 %v1895, %v1891
        %v2332 = vpack.c.b16 %v1896, %v1892
        %v2333 = vpack.c.b16 %v1901, %v1897
        %v2334 = vpack.c.b16 %v1902, %v1898
        %v2335 = vpack.c.b16 %v1903, %v1899
        %v2336 = vpack.c.b16 %v1904, %v1900
        %v2337 = vpack.c.b16 %v1909, %v1905
        %v2338 = vpack.c.b16 %v1910, %v1906
        %v2339 = vpack.c.b16 %v1911, %v1907
        %v2340 = vpack.c.b16 %v1912, %v1908
        %v2341 = vpack.c.b16 %v1917, %v1913
        %v2342 = vpack.c.b16 %v1918, %v1914
        %v2343 = vpack.c.b16 %v1919, %v1915
        %v2344 = vpack.c.b16 %v1920, %v1916
        %v2345 = vpack.c.b16 %v1925, %v1921
        %v2346 = vpack.c.b16 %v1926, %v1922
        %v2347 = vpack.c.b16 %v1927, %v1923
        %v2348 = vpack.c.b16 %v1928, %v1924
        %v2349 = vpack.c.b16 %v1933, %v1929
        %v2350 = vpack.c.b16 %v1934, %v1930
        %v2351 = vpack.c.b16 %v1935, %v1931
        %v2352 = vpack.c.b16 %v1936, %v1932
        %v2353 = vpack.c.b16 %v1941, %v1937
        %v2354 = vpack.c.b16 %v1942, %v1938
        %v2355 = vpack.c.b16 %v1943, %v1939
        %v2356 = vpack.c.b16 %v1944, %v1940
        %v2357 = vpack.c.b16 %v1949, %v1945
        %v2358 = vpack.c.b16 %v1950, %v1946
        %v2359 = vpack.c.b16 %v1951, %v1947
        %v2360 = vpack.c.b16 %v1952, %v1948
        %v2361 = vpack.c.b16 %v1957, %v1953
        %v2362 = vpack.c.b16 %v1958, %v1954
        %v2363 = vpack.c.b16 %v1959, %v1955
        %v2364 = vpack.c.b16 %v1960, %v1956
        %v2365 = vpack.c.b16 %v1965, %v1961
        %v2366 = vpack.c.b16 %v1966, %v1962
        %v2367 = vpack.c.b16 %v1967, %v1963
        %v2368 = vpack.c.b16 %v1968, %v1964
        %v2369 = vpack.c.b16 %v1973, %v1969
        %v2370 = vpack.c.b16 %v1974, %v1970
        %v2371 = vpack.c.b16 %v1975, %v1971
        %v2372 = vpack.c.b16 %v1976, %v1972
        %v2373 = vpack.c.b16 %v1981, %v1977
        %v2374 = vpack.c.b16 %v1982, %v1978
        %v2375 = vpack.c.b16 %v1983, %v1979
        %v2376 = vpack.c.b16 %v1984, %v1980
        %v2377 = vpack.c.b16 %v1989, %v1985
        %v2378 = vpack.c.b16 %v1990, %v1986
        %v2379 = vpack.c.b16 %v1991, %v1987
        %v2380 = vpack.c.b16 %v1992, %v1988
        %v2381 = vpack.c.b16 %v1997, %v1993
        %v2382 = vpack.c.b16 %v1998, %v1994
        %v2383 = vpack.c.b16 %v1999, %v1995
        %v2384 = vpack.c.b16 %v2000, %v1996
        %v2385 = vpack.c.b16 %v2005, %v2001
        %v2386 = vpack.c.b16 %v2006, %v2002
        %v2387 = vpack.c.b16 %v2007, %v2003
        %v2388 = vpack.c.b16 %v2008, %v2004
        %v2389 = vpack.c.b16 %v2013, %v2009
        %v2390 = vpack.c.b16 %v2014, %v2010
        %v2391 = vpack.c.b16 %v2015, %v2011
        %v2392 = vpack.c.b16 %v2016, %v2012
        %v2393 = vpack.c.b16 %v2021, %v2017
        %v2394 = vpack.c.b16 %v2022, %v2018
        %v2395 = vpack.c.b16 %v2023, %v2019
        %v2396 = vpack.c.b16 %v2024, %v2020
        %v2397 = vpack.c.b16 %v2029, %v2025
        %v2398 = vpack.c.b16 %v2030, %v2026
        %v2399 = vpack.c.b16 %v2031, %v2027
        %v2400 = vpack.c.b16 %v2032, %v2028
        %v2401 = vpack.c.b16 %v2037, %v2033
        %v2402 = vpack.c.b16 %v2038, %v2034
        %v2403 = vpack.c.b16 %v2039, %v2035
        %v2404 = vpack.c.b16 %v2040, %v2036
        %v2405 = vpack.c.b16 %v2045, %v2041
        %v2406 = vpack.c.b16 %v2046, %v2042
        %v2407 = vpack.c.b16 %v2047, %v2043
        %v2408 = vpack.c.b16 %v2048, %v2044
        %v2409 = vpack.c.b16 %v2053, %v2049
        %v2410 = vpack.c.b16 %v2054, %v2050
        %v2411 = vpack.c.b16 %v2055, %v2051
        %v2412 = vpack.c.b16 %v2056, %v2052
        %v2413 = vpack.c.b16 %v2061, %v2057
        %v2414 = vpack.c.b16 %v2062, %v2058
        %v2415 = vpack.c.b16 %v2063, %v2059
        %v2416 = vpack.c.b16 %v2064, %v2060
        %v2417 = vpack.c.b16 %v2069, %v2065
        %v2418 = vpack.c.b16 %v2070, %v2066
        %v2419 = vpack.c.b16 %v2071, %v2067
        %v2420 = vpack.c.b16 %v2072, %v2068
        %v2421 = vpack.c.b16 %v2077, %v2073
        %v2422 = vpack.c.b16 %v2078, %v2074
        %v2423 = vpack.c.b16 %v2079, %v2075
        %v2424 = vpack.c.b16 %v2080, %v2076
        %v2425 = vpack.c.b16 %v2085, %v2081
        %v2426 = vpack.c.b16 %v2086, %v2082
        %v2427 = vpack.c.b16 %v2087, %v2083
        %v2428 = vpack.c.b16 %v2088, %v2084
        %v2429 = vpack.c.b16 %v2093, %v2089
        %v2430 = vpack.c.b16 %v2094, %v2090
        %v2431 = vpack.c.b16 %v2095, %v2091
        %v2432 = vpack.c.b16 %v2096, %v2092
        %v2433 = vpack.c.b16 %v2101, %v2097
        %v2434 = vpack.c.b16 %v2102, %v2098
        %v2435 = vpack.c.b16 %v2103, %v2099
        %v2436 = vpack.c.b16 %v2104, %v2100
        %v2437 = vpack.c.b16 %v2109, %v2105
        %v2438 = vpack.c.b16 %v2110, %v2106
        %v2439 = vpack.c.b16 %v2111, %v2107
        %v2440 = vpack.c.b16 %v2112, %v2108
        %v2441 = vpack.c.b16 %v2117, %v2113
        %v2442 = vpack.c.b16 %v2118, %v2114
        %v2443 = vpack.c.b16 %v2119, %v2115
        %v2444 = vpack.c.b16 %v2120, %v2116
        %v2445 = vpack.c.b16 %v2125, %v2121
        %v2446 = vpack.c.b16 %v2126, %v2122
        %v2447 = vpack.c.b16 %v2127, %v2123
        %v2448 = vpack.c.b16 %v2128, %v2124
        %v2449 = vpack.c.b16 %v2133, %v2129
        %v2450 = vpack.c.b16 %v2134, %v2130
        %v2451 = vpack.c.b16 %v2135, %v2131
        %v2452 = vpack.c.b16 %v2136, %v2132
        %v2453 = vpack.c.b16 %v2141, %v2137
        %v2454 = vpack.c.b16 %v2142, %v2138
        %v2455 = vpack.c.b16 %v2143, %v2139
        %v2456 = vpack.c.b16 %v2144, %v2140
        %v2457 = vpack.c.b16 %v2149, %v2145
        %v2458 = vpack.c.b16 %v2150, %v2146
        %v2459 = vpack.c.b16 %v2151, %v2147
        %v2460 = vpack.c.b16 %v2152, %v2148
        %v2461 = vpack.c.b16 %v2157, %v2153
        %v2462 = vpack.c.b16 %v2158, %v2154
        %v2463 = vpack.c.b16 %v2159, %v2155
        %v2464 = vpack.c.b16 %v2160, %v2156
        %v2465 = vpack.c.b16 %v2165, %v2161
        %v2466 = vpack.c.b16 %v2166, %v2162
        %v2467 = vpack.c.b16 %v2167, %v2163
        %v2468 = vpack.c.b16 %v2168, %v2164
        %v2469 = vpack.c.b16 %v2173, %v2169
        %v2470 = vpack.c.b16 %v2174, %v2170
        %v2471 = vpack.c.b16 %v2175, %v2171
        %v2472 = vpack.c.b16 %v2176, %v2172
        %v2473 = vpack.c.b16 %v2181, %v2177
        %v2474 = vpack.c.b16 %v2182, %v2178
        %v2475 = vpack.c.b16 %v2183, %v2179
        %v2476 = vpack.c.b16 %v2184, %v2180
        %v2477 = vpack.c.b16 %v2189, %v2185
        %v2478 = vpack.c.b16 %v2190, %v2186
        %v2479 = vpack.c.b16 %v2191, %v2187
        %v2480 = vpack.c.b16 %v2192, %v2188
        %v2481 = vpack.c.b16 %v2197, %v2193
        %v2482 = vpack.c.b16 %v2198, %v2194
        %v2483 = vpack.c.b16 %v2199, %v2195
        %v2484 = vpack.c.b16 %v2200, %v2196
        %v2485 = vpack.c.b16 %v2205, %v2201
        %v2486 = vpack.c.b16 %v2206, %v2202
        %v2487 = vpack.c.b16 %v2207, %v2203
        %v2488 = vpack.c.b16 %v2208, %v2204
        %v2489 = vpack.c.b16 %v2213, %v2209
        %v2490 = vpack.c.b16 %v2214, %v2210
        %v2491 = vpack.c.b16 %v2215, %v2211
        %v2492 = vpack.c.b16 %v2216, %v2212
        %v2493 = vpack.c.b16 %v2221, %v2217
        %v2494 = vpack.c.b16 %v2222, %v2218
        %v2495 = vpack.c.b16 %v2223, %v2219
        %v2496 = vpack.c.b16 %v2224, %v2220
        %v2497 = vpack.c.b16 %v2225, %v2225
        %v2498 = vpack.c.b16 %v2226, %v2226
        %v2499 = vpack.c.b16 %v2227, %v2227
        %v2500 = vpack.c.b16 %v2228, %v2228
        %vm2769 = vcmask 457728
        %v2771 = vsel %vm2769, %v919, 0
        %v2774 = vsel %vm2769, %v928, 0
        %v2777 = vsel %vm2769, %v937, 0
        %v2780 = vsel %vm2769, %v946, 0
        %v2783 = vsel %vm2769, %v955, 0
        %v2786 = vsel %vm2769, %v964, 0
        %v2789 = vsel %vm2769, %v973, 0
        %v2792 = vsel %vm2769, %v982, 0
        %v2795 = vsel %vm2769, %v991, 0
        %v2798 = vsel %vm2769, %v1000, 0
        %v2801 = vsel %vm2769, %v1009, 0
        %v2804 = vsel %vm2769, %v1018, 0
        %v2807 = vsel %vm2769, %v1027, 0
        %v2810 = vsel %vm2769, %v1036, 0
        %v2813 = vsel %vm2769, %v1045, 0
        %v2816 = vsel %vm2769, %v1054, 0
        %v2819 = vsel %vm2769, %v1063, 0
        %v2822 = vsel %vm2769, %v1072, 0
        %v2825 = vsel %vm2769, %v1081, 0
        %v2828 = vsel %vm2769, %v1090, 0
        %v2831 = vsel %vm2769, %v1099, 0
        %v2834 = vsel %vm2769, %v1108, 0
        %v2837 = vsel %vm2769, %v1117, 0
        %v2840 = vsel %vm2769, %v1126, 0
        %vm2842 = vcmask 1043456
        %v2844 = vsel %vm2842, %v2497, 0
        %v2847 = vsel %vm2842, %v2498, 0
        %v2850 = vsel %vm2842, %v2499, 0
        %v2853 = vsel %vm2842, %v2500, 0
        %2855 = vmatprep.subr.bf16.mxu0 %v2258
        %2856 = vmatpush1.bf16.msra.mxu0 %v2257
        %2857 = vmatprep.subr.bf16.mxu0 %v2254
        %2858 = vmatpush1.bf16.msra.mxu0 %v2253
        %2859 = vmatprep.subr.bf16.mxu0 %v2250
        %2860 = vmatpush1.bf16.msra.mxu0 %v2249
        %2861 = vmatprep.subr.bf16.mxu0 %v2246
        %2862 = vmatpush1.bf16.msra.mxu0 %v2245
        %2863 = vmatprep.subr.bf16.mxu0 %v2242
        %2864 = vmatpush1.bf16.msra.mxu0 %v2241
        %2865 = vmatprep.subr.bf16.mxu0 %v2238
        %2866 = vmatpush1.bf16.msra.mxu0 %v2237
        %2867 = vmatprep.subr.bf16.mxu0 %v2234
        %2868 = vmatpush1.bf16.msra.mxu0 %v2233
        %2869 = vmatprep.subr.bf16.mxu0 %v2230
        %2870 = vmatpush1.bf16.msra.mxu0 %v2229
        %2871 = vmatprep.subr.bf16.mxu0 %v2290
        %2872 = vmatpush2.bf16.msra.mxu0 %v2289
        %2873 = vmatprep.subr.bf16.mxu0 %v2286
        %2874 = vmatpush2.bf16.msra.mxu0 %v2285
        %2875 = vmatprep.subr.bf16.mxu0 %v2282
        %2876 = vmatpush2.bf16.msra.mxu0 %v2281
        %2877 = vmatprep.subr.bf16.mxu0 %v2278
        %2878 = vmatpush2.bf16.msra.mxu0 %v2277
        %2879 = vmatprep.subr.bf16.mxu0 %v2274
        %2880 = vmatpush2.bf16.msra.mxu0 %v2273
        %2881 = vmatprep.subr.bf16.mxu0 %v2270
        %2882 = vmatpush2.bf16.msra.mxu0 %v2269
        %2883 = vmatprep.subr.bf16.mxu0 %v2266
        %2884 = vmatpush2.bf16.msra.mxu0 %v2265
        %2885 = vmatprep.subr.bf16.mxu0 %v2262
        %2886 = vmatpush2.bf16.msra.mxu0 %v2261
        %2887 = vmatprep.mubr.bf16.mxu0 %v912
        %2888 = vmatmul.mubr.bf16.gmra.mxu0 %v911
        %v2889 = vpop.f32.mrf.mxu0
        %v2890 = vadd.f32 %v1402, %v2889
        %v2891 = vpop.f32.mrf.mxu0
        %v2892 = vadd.f32 %v1406, %v2891
        %v2893 = vpop.f32.mrf.mxu0
        %v2894 = vadd.f32 %v1402, %v2893
        %v2895 = vpop.f32.mrf.mxu0
        %v2896 = vadd.f32 %v1406, %v2895
        %2897 = vmatprep.mubr.bf16.mxu0 %v921
        %2898 = vmatmul.mubr.bf16.gmra.mxu0 %v920
        %v2899 = vpop.f32.mrf.mxu0
        %v2900 = vadd.f32 %v1402, %v2899
        %v2901 = vpop.f32.mrf.mxu0
        %v2902 = vadd.f32 %v1406, %v2901
        %v2903 = vpop.f32.mrf.mxu0
        %v2904 = vadd.f32 %v1402, %v2903
        %v2905 = vpop.f32.mrf.mxu0
        %v2906 = vadd.f32 %v1406, %v2905
        %2907 = vmatprep.mubr.bf16.mxu0 %v930
        %2908 = vmatmul.mubr.bf16.gmra.mxu0 %v929
        %v2909 = vpop.f32.mrf.mxu0
        %v2910 = vadd.f32 %v1402, %v2909
        %v2911 = vpop.f32.mrf.mxu0
        %v2912 = vadd.f32 %v1406, %v2911
        %v2913 = vpop.f32.mrf.mxu0
        %v2914 = vadd.f32 %v1402, %v2913
        %v2915 = vpop.f32.mrf.mxu0
        %v2916 = vadd.f32 %v1406, %v2915
        %2917 = vmatprep.mubr.bf16.mxu0 %v939
        %2918 = vmatmul.mubr.bf16.gmra.mxu0 %v938
        %v2919 = vpop.f32.mrf.mxu0
        %v2920 = vadd.f32 %v1402, %v2919
        %v2921 = vpop.f32.mrf.mxu0
        %v2922 = vadd.f32 %v1406, %v2921
        %v2923 = vpop.f32.mrf.mxu0
        %v2924 = vadd.f32 %v1402, %v2923
        %v2925 = vpop.f32.mrf.mxu0
        %v2926 = vadd.f32 %v1406, %v2925
        %2927 = vmatprep.mubr.bf16.mxu0 %v948
        %2928 = vmatmul.mubr.bf16.gmra.mxu0 %v947
        %v2929 = vpop.f32.mrf.mxu0
        %v2930 = vadd.f32 %v1402, %v2929
        %v2931 = vpop.f32.mrf.mxu0
        %v2932 = vadd.f32 %v1406, %v2931
        %v2933 = vpop.f32.mrf.mxu0
        %v2934 = vadd.f32 %v1402, %v2933
        %v2935 = vpop.f32.mrf.mxu0
        %v2936 = vadd.f32 %v1406, %v2935
        %2937 = vmatprep.mubr.bf16.mxu0 %v957
        %2938 = vmatmul.mubr.bf16.gmra.mxu0 %v956
        %v2939 = vpop.f32.mrf.mxu0
        %v2940 = vadd.f32 %v1402, %v2939
        %v2941 = vpop.f32.mrf.mxu0
        %v2942 = vadd.f32 %v1406, %v2941
        %v2943 = vpop.f32.mrf.mxu0
        %v2944 = vadd.f32 %v1402, %v2943
        %v2945 = vpop.f32.mrf.mxu0
        %v2946 = vadd.f32 %v1406, %v2945
        %2947 = vmatprep.mubr.bf16.mxu0 %v966
        %2948 = vmatmul.mubr.bf16.gmra.mxu0 %v965
        %v2949 = vpop.f32.mrf.mxu0
        %v2950 = vadd.f32 %v1402, %v2949
        %v2951 = vpop.f32.mrf.mxu0
        %v2952 = vadd.f32 %v1406, %v2951
        %v2953 = vpop.f32.mrf.mxu0
        %v2954 = vadd.f32 %v1402, %v2953
        %v2955 = vpop.f32.mrf.mxu0
        %v2956 = vadd.f32 %v1406, %v2955
        %2957 = vmatprep.mubr.bf16.mxu0 %v975
        %2958 = vmatmul.mubr.bf16.gmra.mxu0 %v974
        %v2959 = vpop.f32.mrf.mxu0
        %v2960 = vadd.f32 %v1402, %v2959
        %v2961 = vpop.f32.mrf.mxu0
        %v2962 = vadd.f32 %v1406, %v2961
        %v2963 = vpop.f32.mrf.mxu0
        %v2964 = vadd.f32 %v1402, %v2963
        %v2965 = vpop.f32.mrf.mxu0
        %v2966 = vadd.f32 %v1406, %v2965
        %2967 = vmatprep.mubr.bf16.mxu0 %v984
        %2968 = vmatmul.mubr.bf16.gmra.mxu0 %v983
        %v2969 = vpop.f32.mrf.mxu0
        %v2970 = vadd.f32 %v1402, %v2969
        %v2971 = vpop.f32.mrf.mxu0
        %v2972 = vadd.f32 %v1406, %v2971
        %v2973 = vpop.f32.mrf.mxu0
        %v2974 = vadd.f32 %v1402, %v2973
        %v2975 = vpop.f32.mrf.mxu0
        %v2976 = vadd.f32 %v1406, %v2975
        %2977 = vmatprep.mubr.bf16.mxu0 %v993
        %2978 = vmatmul.mubr.bf16.gmra.mxu0 %v992
        %v2979 = vpop.f32.mrf.mxu0
        %v2980 = vadd.f32 %v1402, %v2979
        %v2981 = vpop.f32.mrf.mxu0
        %v2982 = vadd.f32 %v1406, %v2981
        %v2983 = vpop.f32.mrf.mxu0
        %v2984 = vadd.f32 %v1402, %v2983
        %v2985 = vpop.f32.mrf.mxu0
        %v2986 = vadd.f32 %v1406, %v2985
        %2987 = vmatprep.mubr.bf16.mxu0 %v1002
        %2988 = vmatmul.mubr.bf16.gmra.mxu0 %v1001
        %v2989 = vpop.f32.mrf.mxu0
        %v2990 = vadd.f32 %v1402, %v2989
        %v2991 = vpop.f32.mrf.mxu0
        %v2992 = vadd.f32 %v1406, %v2991
        %v2993 = vpop.f32.mrf.mxu0
        %v2994 = vadd.f32 %v1402, %v2993
        %v2995 = vpop.f32.mrf.mxu0
        %v2996 = vadd.f32 %v1406, %v2995
        %2997 = vmatprep.mubr.bf16.mxu0 %v1011
        %2998 = vmatmul.mubr.bf16.gmra.mxu0 %v1010
        %v2999 = vpop.f32.mrf.mxu0
        %v3000 = vadd.f32 %v1402, %v2999
        %v3001 = vpop.f32.mrf.mxu0
        %v3002 = vadd.f32 %v1406, %v3001
        %v3003 = vpop.f32.mrf.mxu0
        %v3004 = vadd.f32 %v1402, %v3003
        %v3005 = vpop.f32.mrf.mxu0
        %v3006 = vadd.f32 %v1406, %v3005
        %3007 = vmatprep.mubr.bf16.mxu0 %v1020
        %3008 = vmatmul.mubr.bf16.gmra.mxu0 %v1019
        %v3009 = vpop.f32.mrf.mxu0
        %v3010 = vadd.f32 %v1402, %v3009
        %v3011 = vpop.f32.mrf.mxu0
        %v3012 = vadd.f32 %v1406, %v3011
        %v3013 = vpop.f32.mrf.mxu0
        %v3014 = vadd.f32 %v1402, %v3013
        %v3015 = vpop.f32.mrf.mxu0
        %v3016 = vadd.f32 %v1406, %v3015
        %3017 = vmatprep.mubr.bf16.mxu0 %v1029
        %3018 = vmatmul.mubr.bf16.gmra.mxu0 %v1028
        %v3019 = vpop.f32.mrf.mxu0
        %v3020 = vadd.f32 %v1402, %v3019
        %v3021 = vpop.f32.mrf.mxu0
        %v3022 = vadd.f32 %v1406, %v3021
        %v3023 = vpop.f32.mrf.mxu0
        %v3024 = vadd.f32 %v1402, %v3023
        %v3025 = vpop.f32.mrf.mxu0
        %v3026 = vadd.f32 %v1406, %v3025
        %3027 = vmatprep.mubr.bf16.mxu0 %v1038
        %3028 = vmatmul.mubr.bf16.gmra.mxu0 %v1037
        %v3029 = vpop.f32.mrf.mxu0
        %v3030 = vadd.f32 %v1402, %v3029
        %v3031 = vpop.f32.mrf.mxu0
        %v3032 = vadd.f32 %v1406, %v3031
        %v3033 = vpop.f32.mrf.mxu0
        %v3034 = vadd.f32 %v1402, %v3033
        %v3035 = vpop.f32.mrf.mxu0
        %v3036 = vadd.f32 %v1406, %v3035
        %3037 = vmatprep.mubr.bf16.mxu0 %v1047
        %3038 = vmatmul.mubr.bf16.gmra.mxu0 %v1046
        %v3039 = vpop.f32.mrf.mxu0
        %v3040 = vadd.f32 %v1402, %v3039
        %v3041 = vpop.f32.mrf.mxu0
        %v3042 = vadd.f32 %v1406, %v3041
        %v3043 = vpop.f32.mrf.mxu0
        %v3044 = vadd.f32 %v1402, %v3043
        %v3045 = vpop.f32.mrf.mxu0
        %v3046 = vadd.f32 %v1406, %v3045
        %3047 = vmatprep.mubr.bf16.mxu0 %v1056
        %3048 = vmatmul.mubr.bf16.gmra.mxu0 %v1055
        %v3049 = vpop.f32.mrf.mxu0
        %v3050 = vadd.f32 %v1402, %v3049
        %v3051 = vpop.f32.mrf.mxu0
        %v3052 = vadd.f32 %v1406, %v3051
        %v3053 = vpop.f32.mrf.mxu0
        %v3054 = vadd.f32 %v1402, %v3053
        %v3055 = vpop.f32.mrf.mxu0
        %v3056 = vadd.f32 %v1406, %v3055
        %3057 = vmatprep.mubr.bf16.mxu0 %v1065
        %3058 = vmatmul.mubr.bf16.gmra.mxu0 %v1064
        %v3059 = vpop.f32.mrf.mxu0
        %v3060 = vadd.f32 %v1402, %v3059
        %v3061 = vpop.f32.mrf.mxu0
        %v3062 = vadd.f32 %v1406, %v3061
        %v3063 = vpop.f32.mrf.mxu0
        %v3064 = vadd.f32 %v1402, %v3063
        %v3065 = vpop.f32.mrf.mxu0
        %v3066 = vadd.f32 %v1406, %v3065
        %3067 = vmatprep.mubr.bf16.mxu0 %v1074
        %3068 = vmatmul.mubr.bf16.gmra.mxu0 %v1073
        %v3069 = vpop.f32.mrf.mxu0
        %v3070 = vadd.f32 %v1402, %v3069
        %v3071 = vpop.f32.mrf.mxu0
        %v3072 = vadd.f32 %v1406, %v3071
        %v3073 = vpop.f32.mrf.mxu0
        %v3074 = vadd.f32 %v1402, %v3073
        %v3075 = vpop.f32.mrf.mxu0
        %v3076 = vadd.f32 %v1406, %v3075
        %3077 = vmatprep.mubr.bf16.mxu0 %v1083
        %3078 = vmatmul.mubr.bf16.gmra.mxu0 %v1082
        %v3079 = vpop.f32.mrf.mxu0
        %v3080 = vadd.f32 %v1402, %v3079
        %v3081 = vpop.f32.mrf.mxu0
        %v3082 = vadd.f32 %v1406, %v3081
        %v3083 = vpop.f32.mrf.mxu0
        %v3084 = vadd.f32 %v1402, %v3083
        %v3085 = vpop.f32.mrf.mxu0
        %v3086 = vadd.f32 %v1406, %v3085
        %3087 = vmatprep.mubr.bf16.mxu0 %v1092
        %3088 = vmatmul.mubr.bf16.gmra.mxu0 %v1091
        %v3089 = vpop.f32.mrf.mxu0
        %v3090 = vadd.f32 %v1402, %v3089
        %v3091 = vpop.f32.mrf.mxu0
        %v3092 = vadd.f32 %v1406, %v3091
        %v3093 = vpop.f32.mrf.mxu0
        %v3094 = vadd.f32 %v1402, %v3093
        %v3095 = vpop.f32.mrf.mxu0
        %v3096 = vadd.f32 %v1406, %v3095
        %3097 = vmatprep.mubr.bf16.mxu0 %v1101
        %3098 = vmatmul.mubr.bf16.gmra.mxu0 %v1100
        %v3099 = vpop.f32.mrf.mxu0
        %v3100 = vadd.f32 %v1402, %v3099
        %v3101 = vpop.f32.mrf.mxu0
        %v3102 = vadd.f32 %v1406, %v3101
        %v3103 = vpop.f32.mrf.mxu0
        %v3104 = vadd.f32 %v1402, %v3103
        %v3105 = vpop.f32.mrf.mxu0
        %v3106 = vadd.f32 %v1406, %v3105
        %3107 = vmatprep.mubr.bf16.mxu0 %v1110
        %3108 = vmatmul.mubr.bf16.gmra.mxu0 %v1109
        %v3109 = vpop.f32.mrf.mxu0
        %v3110 = vadd.f32 %v1402, %v3109
        %v3111 = vpop.f32.mrf.mxu0
        %v3112 = vadd.f32 %v1406, %v3111
        %v3113 = vpop.f32.mrf.mxu0
        %v3114 = vadd.f32 %v1402, %v3113
        %v3115 = vpop.f32.mrf.mxu0
        %v3116 = vadd.f32 %v1406, %v3115
        %3117 = vmatprep.mubr.bf16.mxu0 %v1119
        %3118 = vmatmul.mubr.bf16.gmra.mxu0 %v1118
        %v3119 = vpop.f32.mrf.mxu0
        %v3120 = vadd.f32 %v1402, %v3119
        %v3121 = vpop.f32.mrf.mxu0
        %v3122 = vadd.f32 %v1406, %v3121
        %v3123 = vpop.f32.mrf.mxu0
        %v3124 = vadd.f32 %v1402, %v3123
        %v3125 = vpop.f32.mrf.mxu0
        %v3126 = vadd.f32 %v1406, %v3125
        %3127 = vdwg.mxu0
        %3128 = vmatprep.subr.bf16.mxu0 %v2322
        %3129 = vmatpush1.bf16.msra.mxu0 %v2321
        %3130 = vmatprep.subr.bf16.mxu0 %v2318
        %3131 = vmatpush1.bf16.msra.mxu0 %v2317
        %3132 = vmatprep.subr.bf16.mxu0 %v2314
        %3133 = vmatpush1.bf16.msra.mxu0 %v2313
        %3134 = vmatprep.subr.bf16.mxu0 %v2310
        %3135 = vmatpush1.bf16.msra.mxu0 %v2309
        %3136 = vmatprep.subr.bf16.mxu0 %v2306
        %3137 = vmatpush1.bf16.msra.mxu0 %v2305
        %3138 = vmatprep.subr.bf16.mxu0 %v2302
        %3139 = vmatpush1.bf16.msra.mxu0 %v2301
        %3140 = vmatprep.subr.bf16.mxu0 %v2298
        %3141 = vmatpush1.bf16.msra.mxu0 %v2297
        %3142 = vmatprep.subr.bf16.mxu0 %v2294
        %3143 = vmatpush1.bf16.msra.mxu0 %v2293
        %3144 = vmatprep.subr.bf16.mxu0 %v2354
        %3145 = vmatpush2.bf16.msra.mxu0 %v2353
        %3146 = vmatprep.subr.bf16.mxu0 %v2350
        %3147 = vmatpush2.bf16.msra.mxu0 %v2349
        %3148 = vmatprep.subr.bf16.mxu0 %v2346
        %3149 = vmatpush2.bf16.msra.mxu0 %v2345
        %3150 = vmatprep.subr.bf16.mxu0 %v2342
        %3151 = vmatpush2.bf16.msra.mxu0 %v2341
        %3152 = vmatprep.subr.bf16.mxu0 %v2338
        %3153 = vmatpush2.bf16.msra.mxu0 %v2337
        %3154 = vmatprep.subr.bf16.mxu0 %v2334
        %3155 = vmatpush2.bf16.msra.mxu0 %v2333
        %3156 = vmatprep.subr.bf16.mxu0 %v2330
        %3157 = vmatpush2.bf16.msra.mxu0 %v2329
        %3158 = vmatprep.subr.bf16.mxu0 %v2326
        %3159 = vmatpush2.bf16.msra.mxu0 %v2325
        %3160 = vmatprep.mubr.bf16.mxu0 %v914
        %3161 = vmatmul.mubr.bf16.gmra.mxu0 %v913
        %v3162 = vpop.f32.mrf.mxu0
        %v3163 = vadd.f32 %v2890, %v3162
        %v3164 = vpop.f32.mrf.mxu0
        %v3165 = vadd.f32 %v2892, %v3164
        %v3166 = vpop.f32.mrf.mxu0
        %v3167 = vadd.f32 %v2894, %v3166
        %v3168 = vpop.f32.mrf.mxu0
        %v3169 = vadd.f32 %v2896, %v3168
        %3170 = vmatprep.mubr.bf16.mxu0 %v923
        %3171 = vmatmul.mubr.bf16.gmra.mxu0 %v922
        %v3172 = vpop.f32.mrf.mxu0
        %v3173 = vadd.f32 %v2900, %v3172
        %v3174 = vpop.f32.mrf.mxu0
        %v3175 = vadd.f32 %v2902, %v3174
        %v3176 = vpop.f32.mrf.mxu0
        %v3177 = vadd.f32 %v2904, %v3176
        %v3178 = vpop.f32.mrf.mxu0
        %v3179 = vadd.f32 %v2906, %v3178
        %3180 = vmatprep.mubr.bf16.mxu0 %v932
        %3181 = vmatmul.mubr.bf16.gmra.mxu0 %v931
        %v3182 = vpop.f32.mrf.mxu0
        %v3183 = vadd.f32 %v2910, %v3182
        %v3184 = vpop.f32.mrf.mxu0
        %v3185 = vadd.f32 %v2912, %v3184
        %v3186 = vpop.f32.mrf.mxu0
        %v3187 = vadd.f32 %v2914, %v3186
        %v3188 = vpop.f32.mrf.mxu0
        %v3189 = vadd.f32 %v2916, %v3188
        %3190 = vmatprep.mubr.bf16.mxu0 %v941
        %3191 = vmatmul.mubr.bf16.gmra.mxu0 %v940
        %v3192 = vpop.f32.mrf.mxu0
        %v3193 = vadd.f32 %v2920, %v3192
        %v3194 = vpop.f32.mrf.mxu0
        %v3195 = vadd.f32 %v2922, %v3194
        %v3196 = vpop.f32.mrf.mxu0
        %v3197 = vadd.f32 %v2924, %v3196
        %v3198 = vpop.f32.mrf.mxu0
        %v3199 = vadd.f32 %v2926, %v3198
        %3200 = vmatprep.mubr.bf16.mxu0 %v950
        %3201 = vmatmul.mubr.bf16.gmra.mxu0 %v949
        %v3202 = vpop.f32.mrf.mxu0
        %v3203 = vadd.f32 %v2930, %v3202
        %v3204 = vpop.f32.mrf.mxu0
        %v3205 = vadd.f32 %v2932, %v3204
        %v3206 = vpop.f32.mrf.mxu0
        %v3207 = vadd.f32 %v2934, %v3206
        %v3208 = vpop.f32.mrf.mxu0
        %v3209 = vadd.f32 %v2936, %v3208
        %3210 = vmatprep.mubr.bf16.mxu0 %v959
        %3211 = vmatmul.mubr.bf16.gmra.mxu0 %v958
        %v3212 = vpop.f32.mrf.mxu0
        %v3213 = vadd.f32 %v2940, %v3212
        %v3214 = vpop.f32.mrf.mxu0
        %v3215 = vadd.f32 %v2942, %v3214
        %v3216 = vpop.f32.mrf.mxu0
        %v3217 = vadd.f32 %v2944, %v3216
        %v3218 = vpop.f32.mrf.mxu0
        %v3219 = vadd.f32 %v2946, %v3218
        %3220 = vmatprep.mubr.bf16.mxu0 %v968
        %3221 = vmatmul.mubr.bf16.gmra.mxu0 %v967
        %v3222 = vpop.f32.mrf.mxu0
        %v3223 = vadd.f32 %v2950, %v3222
        %v3224 = vpop.f32.mrf.mxu0
        %v3225 = vadd.f32 %v2952, %v3224
        %v3226 = vpop.f32.mrf.mxu0
        %v3227 = vadd.f32 %v2954, %v3226
        %v3228 = vpop.f32.mrf.mxu0
        %v3229 = vadd.f32 %v2956, %v3228
        %3230 = vmatprep.mubr.bf16.mxu0 %v977
        %3231 = vmatmul.mubr.bf16.gmra.mxu0 %v976
        %v3232 = vpop.f32.mrf.mxu0
        %v3233 = vadd.f32 %v2960, %v3232
        %v3234 = vpop.f32.mrf.mxu0
        %v3235 = vadd.f32 %v2962, %v3234
        %v3236 = vpop.f32.mrf.mxu0
        %v3237 = vadd.f32 %v2964, %v3236
        %v3238 = vpop.f32.mrf.mxu0
        %v3239 = vadd.f32 %v2966, %v3238
        %3240 = vmatprep.mubr.bf16.mxu0 %v986
        %3241 = vmatmul.mubr.bf16.gmra.mxu0 %v985
        %v3242 = vpop.f32.mrf.mxu0
        %v3243 = vadd.f32 %v2970, %v3242
        %v3244 = vpop.f32.mrf.mxu0
        %v3245 = vadd.f32 %v2972, %v3244
        %v3246 = vpop.f32.mrf.mxu0
        %v3247 = vadd.f32 %v2974, %v3246
        %v3248 = vpop.f32.mrf.mxu0
        %v3249 = vadd.f32 %v2976, %v3248
        %3250 = vmatprep.mubr.bf16.mxu0 %v995
        %3251 = vmatmul.mubr.bf16.gmra.mxu0 %v994
        %v3252 = vpop.f32.mrf.mxu0
        %v3253 = vadd.f32 %v2980, %v3252
        %v3254 = vpop.f32.mrf.mxu0
        %v3255 = vadd.f32 %v2982, %v3254
        %v3256 = vpop.f32.mrf.mxu0
        %v3257 = vadd.f32 %v2984, %v3256
        %v3258 = vpop.f32.mrf.mxu0
        %v3259 = vadd.f32 %v2986, %v3258
        %3260 = vmatprep.mubr.bf16.mxu0 %v1004
        %3261 = vmatmul.mubr.bf16.gmra.mxu0 %v1003
        %v3262 = vpop.f32.mrf.mxu0
        %v3263 = vadd.f32 %v2990, %v3262
        %v3264 = vpop.f32.mrf.mxu0
        %v3265 = vadd.f32 %v2992, %v3264
        %v3266 = vpop.f32.mrf.mxu0
        %v3267 = vadd.f32 %v2994, %v3266
        %v3268 = vpop.f32.mrf.mxu0
        %v3269 = vadd.f32 %v2996, %v3268
        %3270 = vmatprep.mubr.bf16.mxu0 %v1013
        %3271 = vmatmul.mubr.bf16.gmra.mxu0 %v1012
        %v3272 = vpop.f32.mrf.mxu0
        %v3273 = vadd.f32 %v3000, %v3272
        %v3274 = vpop.f32.mrf.mxu0
        %v3275 = vadd.f32 %v3002, %v3274
        %v3276 = vpop.f32.mrf.mxu0
        %v3277 = vadd.f32 %v3004, %v3276
        %v3278 = vpop.f32.mrf.mxu0
        %v3279 = vadd.f32 %v3006, %v3278
        %3280 = vmatprep.mubr.bf16.mxu0 %v1022
        %3281 = vmatmul.mubr.bf16.gmra.mxu0 %v1021
        %v3282 = vpop.f32.mrf.mxu0
        %v3283 = vadd.f32 %v3010, %v3282
        %v3284 = vpop.f32.mrf.mxu0
        %v3285 = vadd.f32 %v3012, %v3284
        %v3286 = vpop.f32.mrf.mxu0
        %v3287 = vadd.f32 %v3014, %v3286
        %v3288 = vpop.f32.mrf.mxu0
        %v3289 = vadd.f32 %v3016, %v3288
        %3290 = vmatprep.mubr.bf16.mxu0 %v1031
        %3291 = vmatmul.mubr.bf16.gmra.mxu0 %v1030
        %v3292 = vpop.f32.mrf.mxu0
        %v3293 = vadd.f32 %v3020, %v3292
        %v3294 = vpop.f32.mrf.mxu0
        %v3295 = vadd.f32 %v3022, %v3294
        %v3296 = vpop.f32.mrf.mxu0
        %v3297 = vadd.f32 %v3024, %v3296
        %v3298 = vpop.f32.mrf.mxu0
        %v3299 = vadd.f32 %v3026, %v3298
        %3300 = vmatprep.mubr.bf16.mxu0 %v1040
        %3301 = vmatmul.mubr.bf16.gmra.mxu0 %v1039
        %v3302 = vpop.f32.mrf.mxu0
        %v3303 = vadd.f32 %v3030, %v3302
        %v3304 = vpop.f32.mrf.mxu0
        %v3305 = vadd.f32 %v3032, %v3304
        %v3306 = vpop.f32.mrf.mxu0
        %v3307 = vadd.f32 %v3034, %v3306
        %v3308 = vpop.f32.mrf.mxu0
        %v3309 = vadd.f32 %v3036, %v3308
        %3310 = vmatprep.mubr.bf16.mxu0 %v1049
        %3311 = vmatmul.mubr.bf16.gmra.mxu0 %v1048
        %v3312 = vpop.f32.mrf.mxu0
        %v3313 = vadd.f32 %v3040, %v3312
        %v3314 = vpop.f32.mrf.mxu0
        %v3315 = vadd.f32 %v3042, %v3314
        %v3316 = vpop.f32.mrf.mxu0
        %v3317 = vadd.f32 %v3044, %v3316
        %v3318 = vpop.f32.mrf.mxu0
        %v3319 = vadd.f32 %v3046, %v3318
        %3320 = vmatprep.mubr.bf16.mxu0 %v1058
        %3321 = vmatmul.mubr.bf16.gmra.mxu0 %v1057
        %v3322 = vpop.f32.mrf.mxu0
        %v3323 = vadd.f32 %v3050, %v3322
        %v3324 = vpop.f32.mrf.mxu0
        %v3325 = vadd.f32 %v3052, %v3324
        %v3326 = vpop.f32.mrf.mxu0
        %v3327 = vadd.f32 %v3054, %v3326
        %v3328 = vpop.f32.mrf.mxu0
        %v3329 = vadd.f32 %v3056, %v3328
        %3330 = vmatprep.mubr.bf16.mxu0 %v1067
        %3331 = vmatmul.mubr.bf16.gmra.mxu0 %v1066
        %v3332 = vpop.f32.mrf.mxu0
        %v3333 = vadd.f32 %v3060, %v3332
        %v3334 = vpop.f32.mrf.mxu0
        %v3335 = vadd.f32 %v3062, %v3334
        %v3336 = vpop.f32.mrf.mxu0
        %v3337 = vadd.f32 %v3064, %v3336
        %v3338 = vpop.f32.mrf.mxu0
        %v3339 = vadd.f32 %v3066, %v3338
        %3340 = vmatprep.mubr.bf16.mxu0 %v1076
        %3341 = vmatmul.mubr.bf16.gmra.mxu0 %v1075
        %v3342 = vpop.f32.mrf.mxu0
        %v3343 = vadd.f32 %v3070, %v3342
        %v3344 = vpop.f32.mrf.mxu0
        %v3345 = vadd.f32 %v3072, %v3344
        %v3346 = vpop.f32.mrf.mxu0
        %v3347 = vadd.f32 %v3074, %v3346
        %v3348 = vpop.f32.mrf.mxu0
        %v3349 = vadd.f32 %v3076, %v3348
        %3350 = vmatprep.mubr.bf16.mxu0 %v1085
        %3351 = vmatmul.mubr.bf16.gmra.mxu0 %v1084
        %v3352 = vpop.f32.mrf.mxu0
        %v3353 = vadd.f32 %v3080, %v3352
        %v3354 = vpop.f32.mrf.mxu0
        %v3355 = vadd.f32 %v3082, %v3354
        %v3356 = vpop.f32.mrf.mxu0
        %v3357 = vadd.f32 %v3084, %v3356
        %v3358 = vpop.f32.mrf.mxu0
        %v3359 = vadd.f32 %v3086, %v3358
        %3360 = vmatprep.mubr.bf16.mxu0 %v1094
        %3361 = vmatmul.mubr.bf16.gmra.mxu0 %v1093
        %v3362 = vpop.f32.mrf.mxu0
        %v3363 = vadd.f32 %v3090, %v3362
        %v3364 = vpop.f32.mrf.mxu0
        %v3365 = vadd.f32 %v3092, %v3364
        %v3366 = vpop.f32.mrf.mxu0
        %v3367 = vadd.f32 %v3094, %v3366
        %v3368 = vpop.f32.mrf.mxu0
        %v3369 = vadd.f32 %v3096, %v3368
        %3370 = vmatprep.mubr.bf16.mxu0 %v1103
        %3371 = vmatmul.mubr.bf16.gmra.mxu0 %v1102
        %v3372 = vpop.f32.mrf.mxu0
        %v3373 = vadd.f32 %v3100, %v3372
        %v3374 = vpop.f32.mrf.mxu0
        %v3375 = vadd.f32 %v3102, %v3374
        %v3376 = vpop.f32.mrf.mxu0
        %v3377 = vadd.f32 %v3104, %v3376
        %v3378 = vpop.f32.mrf.mxu0
        %v3379 = vadd.f32 %v3106, %v3378
        %3380 = vmatprep.mubr.bf16.mxu0 %v1112
        %3381 = vmatmul.mubr.bf16.gmra.mxu0 %v1111
        %v3382 = vpop.f32.mrf.mxu0
        %v3383 = vadd.f32 %v3110, %v3382
        %v3384 = vpop.f32.mrf.mxu0
        %v3385 = vadd.f32 %v3112, %v3384
        %v3386 = vpop.f32.mrf.mxu0
        %v3387 = vadd.f32 %v3114, %v3386
        %v3388 = vpop.f32.mrf.mxu0
        %v3389 = vadd.f32 %v3116, %v3388
        %3390 = vmatprep.mubr.bf16.mxu0 %v1121
        %3391 = vmatmul.mubr.bf16.gmra.mxu0 %v1120
        %v3392 = vpop.f32.mrf.mxu0
        %v3393 = vadd.f32 %v3120, %v3392
        %v3394 = vpop.f32.mrf.mxu0
        %v3395 = vadd.f32 %v3122, %v3394
        %v3396 = vpop.f32.mrf.mxu0
        %v3397 = vadd.f32 %v3124, %v3396
        %v3398 = vpop.f32.mrf.mxu0
        %v3399 = vadd.f32 %v3126, %v3398
        %3400 = vdwg.mxu0
        %3401 = vmatprep.subr.bf16.mxu0 %v2386
        %3402 = vmatpush1.bf16.msra.mxu0 %v2385
        %3403 = vmatprep.subr.bf16.mxu0 %v2382
        %3404 = vmatpush1.bf16.msra.mxu0 %v2381
        %3405 = vmatprep.subr.bf16.mxu0 %v2378
        %3406 = vmatpush1.bf16.msra.mxu0 %v2377
        %3407 = vmatprep.subr.bf16.mxu0 %v2374
        %3408 = vmatpush1.bf16.msra.mxu0 %v2373
        %3409 = vmatprep.subr.bf16.mxu0 %v2370
        %3410 = vmatpush1.bf16.msra.mxu0 %v2369
        %3411 = vmatprep.subr.bf16.mxu0 %v2366
        %3412 = vmatpush1.bf16.msra.mxu0 %v2365
        %3413 = vmatprep.subr.bf16.mxu0 %v2362
        %3414 = vmatpush1.bf16.msra.mxu0 %v2361
        %3415 = vmatprep.subr.bf16.mxu0 %v2358
        %3416 = vmatpush1.bf16.msra.mxu0 %v2357
        %3417 = vmatprep.subr.bf16.mxu0 %v2418
        %3418 = vmatpush2.bf16.msra.mxu0 %v2417
        %3419 = vmatprep.subr.bf16.mxu0 %v2414
        %3420 = vmatpush2.bf16.msra.mxu0 %v2413
        %3421 = vmatprep.subr.bf16.mxu0 %v2410
        %3422 = vmatpush2.bf16.msra.mxu0 %v2409
        %3423 = vmatprep.subr.bf16.mxu0 %v2406
        %3424 = vmatpush2.bf16.msra.mxu0 %v2405
        %3425 = vmatprep.subr.bf16.mxu0 %v2402
        %3426 = vmatpush2.bf16.msra.mxu0 %v2401
        %3427 = vmatprep.subr.bf16.mxu0 %v2398
        %3428 = vmatpush2.bf16.msra.mxu0 %v2397
        %3429 = vmatprep.subr.bf16.mxu0 %v2394
        %3430 = vmatpush2.bf16.msra.mxu0 %v2393
        %3431 = vmatprep.subr.bf16.mxu0 %v2390
        %3432 = vmatpush2.bf16.msra.mxu0 %v2389
        %3433 = vmatprep.mubr.bf16.mxu0 %v916
        %3434 = vmatmul.mubr.bf16.gmra.mxu0 %v915
        %v3435 = vpop.f32.mrf.mxu0
        %v3436 = vadd.f32 %v3163, %v3435
        %v3437 = vpop.f32.mrf.mxu0
        %v3438 = vadd.f32 %v3165, %v3437
        %v3439 = vpop.f32.mrf.mxu0
        %v3440 = vadd.f32 %v3167, %v3439
        %v3441 = vpop.f32.mrf.mxu0
        %v3442 = vadd.f32 %v3169, %v3441
        %3443 = vmatprep.mubr.bf16.mxu0 %v925
        %3444 = vmatmul.mubr.bf16.gmra.mxu0 %v924
        %v3445 = vpop.f32.mrf.mxu0
        %v3446 = vadd.f32 %v3173, %v3445
        %v3447 = vpop.f32.mrf.mxu0
        %v3448 = vadd.f32 %v3175, %v3447
        %v3449 = vpop.f32.mrf.mxu0
        %v3450 = vadd.f32 %v3177, %v3449
        %v3451 = vpop.f32.mrf.mxu0
        %v3452 = vadd.f32 %v3179, %v3451
        %3453 = vmatprep.mubr.bf16.mxu0 %v934
        %3454 = vmatmul.mubr.bf16.gmra.mxu0 %v933
        %v3455 = vpop.f32.mrf.mxu0
        %v3456 = vadd.f32 %v3183, %v3455
        %v3457 = vpop.f32.mrf.mxu0
        %v3458 = vadd.f32 %v3185, %v3457
        %v3459 = vpop.f32.mrf.mxu0
        %v3460 = vadd.f32 %v3187, %v3459
        %v3461 = vpop.f32.mrf.mxu0
        %v3462 = vadd.f32 %v3189, %v3461
        %3463 = vmatprep.mubr.bf16.mxu0 %v943
        %3464 = vmatmul.mubr.bf16.gmra.mxu0 %v942
        %v3465 = vpop.f32.mrf.mxu0
        %v3466 = vadd.f32 %v3193, %v3465
        %v3467 = vpop.f32.mrf.mxu0
        %v3468 = vadd.f32 %v3195, %v3467
        %v3469 = vpop.f32.mrf.mxu0
        %v3470 = vadd.f32 %v3197, %v3469
        %v3471 = vpop.f32.mrf.mxu0
        %v3472 = vadd.f32 %v3199, %v3471
        %3473 = vmatprep.mubr.bf16.mxu0 %v952
        %3474 = vmatmul.mubr.bf16.gmra.mxu0 %v951
        %v3475 = vpop.f32.mrf.mxu0
        %v3476 = vadd.f32 %v3203, %v3475
        %v3477 = vpop.f32.mrf.mxu0
        %v3478 = vadd.f32 %v3205, %v3477
        %v3479 = vpop.f32.mrf.mxu0
        %v3480 = vadd.f32 %v3207, %v3479
        %v3481 = vpop.f32.mrf.mxu0
        %v3482 = vadd.f32 %v3209, %v3481
        %3483 = vmatprep.mubr.bf16.mxu0 %v961
        %3484 = vmatmul.mubr.bf16.gmra.mxu0 %v960
        %v3485 = vpop.f32.mrf.mxu0
        %v3486 = vadd.f32 %v3213, %v3485
        %v3487 = vpop.f32.mrf.mxu0
        %v3488 = vadd.f32 %v3215, %v3487
        %v3489 = vpop.f32.mrf.mxu0
        %v3490 = vadd.f32 %v3217, %v3489
        %v3491 = vpop.f32.mrf.mxu0
        %v3492 = vadd.f32 %v3219, %v3491
        %3493 = vmatprep.mubr.bf16.mxu0 %v970
        %3494 = vmatmul.mubr.bf16.gmra.mxu0 %v969
        %v3495 = vpop.f32.mrf.mxu0
        %v3496 = vadd.f32 %v3223, %v3495
        %v3497 = vpop.f32.mrf.mxu0
        %v3498 = vadd.f32 %v3225, %v3497
        %v3499 = vpop.f32.mrf.mxu0
        %v3500 = vadd.f32 %v3227, %v3499
        %v3501 = vpop.f32.mrf.mxu0
        %v3502 = vadd.f32 %v3229, %v3501
        %3503 = vmatprep.mubr.bf16.mxu0 %v979
        %3504 = vmatmul.mubr.bf16.gmra.mxu0 %v978
        %v3505 = vpop.f32.mrf.mxu0
        %v3506 = vadd.f32 %v3233, %v3505
        %v3507 = vpop.f32.mrf.mxu0
        %v3508 = vadd.f32 %v3235, %v3507
        %v3509 = vpop.f32.mrf.mxu0
        %v3510 = vadd.f32 %v3237, %v3509
        %v3511 = vpop.f32.mrf.mxu0
        %v3512 = vadd.f32 %v3239, %v3511
        %3513 = vmatprep.mubr.bf16.mxu0 %v988
        %3514 = vmatmul.mubr.bf16.gmra.mxu0 %v987
        %v3515 = vpop.f32.mrf.mxu0
        %v3516 = vadd.f32 %v3243, %v3515
        %v3517 = vpop.f32.mrf.mxu0
        %v3518 = vadd.f32 %v3245, %v3517
        %v3519 = vpop.f32.mrf.mxu0
        %v3520 = vadd.f32 %v3247, %v3519
        %v3521 = vpop.f32.mrf.mxu0
        %v3522 = vadd.f32 %v3249, %v3521
        %3523 = vmatprep.mubr.bf16.mxu0 %v997
        %3524 = vmatmul.mubr.bf16.gmra.mxu0 %v996
        %v3525 = vpop.f32.mrf.mxu0
        %v3526 = vadd.f32 %v3253, %v3525
        %v3527 = vpop.f32.mrf.mxu0
        %v3528 = vadd.f32 %v3255, %v3527
        %v3529 = vpop.f32.mrf.mxu0
        %v3530 = vadd.f32 %v3257, %v3529
        %v3531 = vpop.f32.mrf.mxu0
        %v3532 = vadd.f32 %v3259, %v3531
        %3533 = vmatprep.mubr.bf16.mxu0 %v1006
        %3534 = vmatmul.mubr.bf16.gmra.mxu0 %v1005
        %v3535 = vpop.f32.mrf.mxu0
        %v3536 = vadd.f32 %v3263, %v3535
        %v3537 = vpop.f32.mrf.mxu0
        %v3538 = vadd.f32 %v3265, %v3537
        %v3539 = vpop.f32.mrf.mxu0
        %v3540 = vadd.f32 %v3267, %v3539
        %v3541 = vpop.f32.mrf.mxu0
        %v3542 = vadd.f32 %v3269, %v3541
        %3543 = vmatprep.mubr.bf16.mxu0 %v1015
        %3544 = vmatmul.mubr.bf16.gmra.mxu0 %v1014
        %v3545 = vpop.f32.mrf.mxu0
        %v3546 = vadd.f32 %v3273, %v3545
        %v3547 = vpop.f32.mrf.mxu0
        %v3548 = vadd.f32 %v3275, %v3547
        %v3549 = vpop.f32.mrf.mxu0
        %v3550 = vadd.f32 %v3277, %v3549
        %v3551 = vpop.f32.mrf.mxu0
        %v3552 = vadd.f32 %v3279, %v3551
        %3553 = vmatprep.mubr.bf16.mxu0 %v1024
        %3554 = vmatmul.mubr.bf16.gmra.mxu0 %v1023
        %v3555 = vpop.f32.mrf.mxu0
        %v3556 = vadd.f32 %v3283, %v3555
        %v3557 = vpop.f32.mrf.mxu0
        %v3558 = vadd.f32 %v3285, %v3557
        %v3559 = vpop.f32.mrf.mxu0
        %v3560 = vadd.f32 %v3287, %v3559
        %v3561 = vpop.f32.mrf.mxu0
        %v3562 = vadd.f32 %v3289, %v3561
        %3563 = vmatprep.mubr.bf16.mxu0 %v1033
        %3564 = vmatmul.mubr.bf16.gmra.mxu0 %v1032
        %v3565 = vpop.f32.mrf.mxu0
        %v3566 = vadd.f32 %v3293, %v3565
        %v3567 = vpop.f32.mrf.mxu0
        %v3568 = vadd.f32 %v3295, %v3567
        %v3569 = vpop.f32.mrf.mxu0
        %v3570 = vadd.f32 %v3297, %v3569
        %v3571 = vpop.f32.mrf.mxu0
        %v3572 = vadd.f32 %v3299, %v3571
        %3573 = vmatprep.mubr.bf16.mxu0 %v1042
        %3574 = vmatmul.mubr.bf16.gmra.mxu0 %v1041
        %v3575 = vpop.f32.mrf.mxu0
        %v3576 = vadd.f32 %v3303, %v3575
        %v3577 = vpop.f32.mrf.mxu0
        %v3578 = vadd.f32 %v3305, %v3577
        %v3579 = vpop.f32.mrf.mxu0
        %v3580 = vadd.f32 %v3307, %v3579
        %v3581 = vpop.f32.mrf.mxu0
        %v3582 = vadd.f32 %v3309, %v3581
        %3583 = vmatprep.mubr.bf16.mxu0 %v1051
        %3584 = vmatmul.mubr.bf16.gmra.mxu0 %v1050
        %v3585 = vpop.f32.mrf.mxu0
        %v3586 = vadd.f32 %v3313, %v3585
        %v3587 = vpop.f32.mrf.mxu0
        %v3588 = vadd.f32 %v3315, %v3587
        %v3589 = vpop.f32.mrf.mxu0
        %v3590 = vadd.f32 %v3317, %v3589
        %v3591 = vpop.f32.mrf.mxu0
        %v3592 = vadd.f32 %v3319, %v3591
        %3593 = vmatprep.mubr.bf16.mxu0 %v1060
        %3594 = vmatmul.mubr.bf16.gmra.mxu0 %v1059
        %v3595 = vpop.f32.mrf.mxu0
        %v3596 = vadd.f32 %v3323, %v3595
        %v3597 = vpop.f32.mrf.mxu0
        %v3598 = vadd.f32 %v3325, %v3597
        %v3599 = vpop.f32.mrf.mxu0
        %v3600 = vadd.f32 %v3327, %v3599
        %v3601 = vpop.f32.mrf.mxu0
        %v3602 = vadd.f32 %v3329, %v3601
        %3603 = vmatprep.mubr.bf16.mxu0 %v1069
        %3604 = vmatmul.mubr.bf16.gmra.mxu0 %v1068
        %v3605 = vpop.f32.mrf.mxu0
        %v3606 = vadd.f32 %v3333, %v3605
        %v3607 = vpop.f32.mrf.mxu0
        %v3608 = vadd.f32 %v3335, %v3607
        %v3609 = vpop.f32.mrf.mxu0
        %v3610 = vadd.f32 %v3337, %v3609
        %v3611 = vpop.f32.mrf.mxu0
        %v3612 = vadd.f32 %v3339, %v3611
        %3613 = vmatprep.mubr.bf16.mxu0 %v1078
        %3614 = vmatmul.mubr.bf16.gmra.mxu0 %v1077
        %v3615 = vpop.f32.mrf.mxu0
        %v3616 = vadd.f32 %v3343, %v3615
        %v3617 = vpop.f32.mrf.mxu0
        %v3618 = vadd.f32 %v3345, %v3617
        %v3619 = vpop.f32.mrf.mxu0
        %v3620 = vadd.f32 %v3347, %v3619
        %v3621 = vpop.f32.mrf.mxu0
        %v3622 = vadd.f32 %v3349, %v3621
        %3623 = vmatprep.mubr.bf16.mxu0 %v1087
        %3624 = vmatmul.mubr.bf16.gmra.mxu0 %v1086
        %v3625 = vpop.f32.mrf.mxu0
        %v3626 = vadd.f32 %v3353, %v3625
        %v3627 = vpop.f32.mrf.mxu0
        %v3628 = vadd.f32 %v3355, %v3627
        %v3629 = vpop.f32.mrf.mxu0
        %v3630 = vadd.f32 %v3357, %v3629
        %v3631 = vpop.f32.mrf.mxu0
        %v3632 = vadd.f32 %v3359, %v3631
        %3633 = vmatprep.mubr.bf16.mxu0 %v1096
        %3634 = vmatmul.mubr.bf16.gmra.mxu0 %v1095
        %v3635 = vpop.f32.mrf.mxu0
        %v3636 = vadd.f32 %v3363, %v3635
        %v3637 = vpop.f32.mrf.mxu0
        %v3638 = vadd.f32 %v3365, %v3637
        %v3639 = vpop.f32.mrf.mxu0
        %v3640 = vadd.f32 %v3367, %v3639
        %v3641 = vpop.f32.mrf.mxu0
        %v3642 = vadd.f32 %v3369, %v3641
        %3643 = vmatprep.mubr.bf16.mxu0 %v1105
        %3644 = vmatmul.mubr.bf16.gmra.mxu0 %v1104
        %v3645 = vpop.f32.mrf.mxu0
        %v3646 = vadd.f32 %v3373, %v3645
        %v3647 = vpop.f32.mrf.mxu0
        %v3648 = vadd.f32 %v3375, %v3647
        %v3649 = vpop.f32.mrf.mxu0
        %v3650 = vadd.f32 %v3377, %v3649
        %v3651 = vpop.f32.mrf.mxu0
        %v3652 = vadd.f32 %v3379, %v3651
        %3653 = vmatprep.mubr.bf16.mxu0 %v1114
        %3654 = vmatmul.mubr.bf16.gmra.mxu0 %v1113
        %v3655 = vpop.f32.mrf.mxu0
        %v3656 = vadd.f32 %v3383, %v3655
        %v3657 = vpop.f32.mrf.mxu0
        %v3658 = vadd.f32 %v3385, %v3657
        %v3659 = vpop.f32.mrf.mxu0
        %v3660 = vadd.f32 %v3387, %v3659
        %v3661 = vpop.f32.mrf.mxu0
        %v3662 = vadd.f32 %v3389, %v3661
        %3663 = vmatprep.mubr.bf16.mxu0 %v1123
        %3664 = vmatmul.mubr.bf16.gmra.mxu0 %v1122
        %v3665 = vpop.f32.mrf.mxu0
        %v3666 = vadd.f32 %v3393, %v3665
        %v3667 = vpop.f32.mrf.mxu0
        %v3668 = vadd.f32 %v3395, %v3667
        %v3669 = vpop.f32.mrf.mxu0
        %v3670 = vadd.f32 %v3397, %v3669
        %v3671 = vpop.f32.mrf.mxu0
        %v3672 = vadd.f32 %v3399, %v3671
        %3673 = vdwg.mxu0
        %3674 = vmatprep.subr.bf16.mxu0 %v2450
        %3675 = vmatpush1.bf16.msra.mxu0 %v2449
        %3676 = vmatprep.subr.bf16.mxu0 %v2446
        %3677 = vmatpush1.bf16.msra.mxu0 %v2445
        %3678 = vmatprep.subr.bf16.mxu0 %v2442
        %3679 = vmatpush1.bf16.msra.mxu0 %v2441
        %3680 = vmatprep.subr.bf16.mxu0 %v2438
        %3681 = vmatpush1.bf16.msra.mxu0 %v2437
        %3682 = vmatprep.subr.bf16.mxu0 %v2434
        %3683 = vmatpush1.bf16.msra.mxu0 %v2433
        %3684 = vmatprep.subr.bf16.mxu0 %v2430
        %3685 = vmatpush1.bf16.msra.mxu0 %v2429
        %3686 = vmatprep.subr.bf16.mxu0 %v2426
        %3687 = vmatpush1.bf16.msra.mxu0 %v2425
        %3688 = vmatprep.subr.bf16.mxu0 %v2422
        %3689 = vmatpush1.bf16.msra.mxu0 %v2421
        %3690 = vmatprep.subr.bf16.mxu0 %v2482
        %3691 = vmatpush2.bf16.msra.mxu0 %v2481
        %3692 = vmatprep.subr.bf16.mxu0 %v2478
        %3693 = vmatpush2.bf16.msra.mxu0 %v2477
        %3694 = vmatprep.subr.bf16.mxu0 %v2474
        %3695 = vmatpush2.bf16.msra.mxu0 %v2473
        %3696 = vmatprep.subr.bf16.mxu0 %v2470
        %3697 = vmatpush2.bf16.msra.mxu0 %v2469
        %3698 = vmatprep.subr.bf16.mxu0 %v2466
        %3699 = vmatpush2.bf16.msra.mxu0 %v2465
        %3700 = vmatprep.subr.bf16.mxu0 %v2462
        %3701 = vmatpush2.bf16.msra.mxu0 %v2461
        %3702 = vmatprep.subr.bf16.mxu0 %v2458
        %3703 = vmatpush2.bf16.msra.mxu0 %v2457
        %3704 = vmatprep.subr.bf16.mxu0 %v2454
        %3705 = vmatpush2.bf16.msra.mxu0 %v2453
        %3706 = vmatprep.mubr.bf16.mxu0 %v918
        %3707 = vmatmul.mubr.bf16.gmra.mxu0 %v917
        %v3708 = vpop.f32.mrf.mxu0
        %v3709 = vadd.f32 %v3436, %v3708
        %v3710 = vpop.f32.mrf.mxu0
        %v3711 = vadd.f32 %v3438, %v3710
        %v3712 = vpop.f32.mrf.mxu0
        %v3713 = vadd.f32 %v3440, %v3712
        %v3714 = vpop.f32.mrf.mxu0
        %v3715 = vadd.f32 %v3442, %v3714
        %3716 = vmatprep.mubr.bf16.mxu0 %v927
        %3717 = vmatmul.mubr.bf16.gmra.mxu0 %v926
        %v3718 = vpop.f32.mrf.mxu0
        %v3719 = vadd.f32 %v3446, %v3718
        %v3720 = vpop.f32.mrf.mxu0
        %v3721 = vadd.f32 %v3448, %v3720
        %v3722 = vpop.f32.mrf.mxu0
        %v3723 = vadd.f32 %v3450, %v3722
        %v3724 = vpop.f32.mrf.mxu0
        %v3725 = vadd.f32 %v3452, %v3724
        %3726 = vmatprep.mubr.bf16.mxu0 %v936
        %3727 = vmatmul.mubr.bf16.gmra.mxu0 %v935
        %v3728 = vpop.f32.mrf.mxu0
        %v3729 = vadd.f32 %v3456, %v3728
        %v3730 = vpop.f32.mrf.mxu0
        %v3731 = vadd.f32 %v3458, %v3730
        %v3732 = vpop.f32.mrf.mxu0
        %v3733 = vadd.f32 %v3460, %v3732
        %v3734 = vpop.f32.mrf.mxu0
        %v3735 = vadd.f32 %v3462, %v3734
        %3736 = vmatprep.mubr.bf16.mxu0 %v945
        %3737 = vmatmul.mubr.bf16.gmra.mxu0 %v944
        %v3738 = vpop.f32.mrf.mxu0
        %v3739 = vadd.f32 %v3466, %v3738
        %v3740 = vpop.f32.mrf.mxu0
        %v3741 = vadd.f32 %v3468, %v3740
        %v3742 = vpop.f32.mrf.mxu0
        %v3743 = vadd.f32 %v3470, %v3742
        %v3744 = vpop.f32.mrf.mxu0
        %v3745 = vadd.f32 %v3472, %v3744
        %3746 = vmatprep.mubr.bf16.mxu0 %v954
        %3747 = vmatmul.mubr.bf16.gmra.mxu0 %v953
        %v3748 = vpop.f32.mrf.mxu0
        %v3749 = vadd.f32 %v3476, %v3748
        %v3750 = vpop.f32.mrf.mxu0
        %v3751 = vadd.f32 %v3478, %v3750
        %v3752 = vpop.f32.mrf.mxu0
        %v3753 = vadd.f32 %v3480, %v3752
        %v3754 = vpop.f32.mrf.mxu0
        %v3755 = vadd.f32 %v3482, %v3754
        %3756 = vmatprep.mubr.bf16.mxu0 %v963
        %3757 = vmatmul.mubr.bf16.gmra.mxu0 %v962
        %v3758 = vpop.f32.mrf.mxu0
        %v3759 = vadd.f32 %v3486, %v3758
        %v3760 = vpop.f32.mrf.mxu0
        %v3761 = vadd.f32 %v3488, %v3760
        %v3762 = vpop.f32.mrf.mxu0
        %v3763 = vadd.f32 %v3490, %v3762
        %v3764 = vpop.f32.mrf.mxu0
        %v3765 = vadd.f32 %v3492, %v3764
        %3766 = vmatprep.mubr.bf16.mxu0 %v972
        %3767 = vmatmul.mubr.bf16.gmra.mxu0 %v971
        %v3768 = vpop.f32.mrf.mxu0
        %v3769 = vadd.f32 %v3496, %v3768
        %v3770 = vpop.f32.mrf.mxu0
        %v3771 = vadd.f32 %v3498, %v3770
        %v3772 = vpop.f32.mrf.mxu0
        %v3773 = vadd.f32 %v3500, %v3772
        %v3774 = vpop.f32.mrf.mxu0
        %v3775 = vadd.f32 %v3502, %v3774
        %3776 = vmatprep.mubr.bf16.mxu0 %v981
        %3777 = vmatmul.mubr.bf16.gmra.mxu0 %v980
        %v3778 = vpop.f32.mrf.mxu0
        %v3779 = vadd.f32 %v3506, %v3778
        %v3780 = vpop.f32.mrf.mxu0
        %v3781 = vadd.f32 %v3508, %v3780
        %v3782 = vpop.f32.mrf.mxu0
        %v3783 = vadd.f32 %v3510, %v3782
        %v3784 = vpop.f32.mrf.mxu0
        %v3785 = vadd.f32 %v3512, %v3784
        %3786 = vmatprep.mubr.bf16.mxu0 %v990
        %3787 = vmatmul.mubr.bf16.gmra.mxu0 %v989
        %v3788 = vpop.f32.mrf.mxu0
        %v3789 = vadd.f32 %v3516, %v3788
        %v3790 = vpop.f32.mrf.mxu0
        %v3791 = vadd.f32 %v3518, %v3790
        %v3792 = vpop.f32.mrf.mxu0
        %v3793 = vadd.f32 %v3520, %v3792
        %v3794 = vpop.f32.mrf.mxu0
        %v3795 = vadd.f32 %v3522, %v3794
        %3796 = vmatprep.mubr.bf16.mxu0 %v999
        %3797 = vmatmul.mubr.bf16.gmra.mxu0 %v998
        %v3798 = vpop.f32.mrf.mxu0
        %v3799 = vadd.f32 %v3526, %v3798
        %v3800 = vpop.f32.mrf.mxu0
        %v3801 = vadd.f32 %v3528, %v3800
        %v3802 = vpop.f32.mrf.mxu0
        %v3803 = vadd.f32 %v3530, %v3802
        %v3804 = vpop.f32.mrf.mxu0
        %v3805 = vadd.f32 %v3532, %v3804
        %3806 = vmatprep.mubr.bf16.mxu0 %v1008
        %3807 = vmatmul.mubr.bf16.gmra.mxu0 %v1007
        %v3808 = vpop.f32.mrf.mxu0
        %v3809 = vadd.f32 %v3536, %v3808
        %v3810 = vpop.f32.mrf.mxu0
        %v3811 = vadd.f32 %v3538, %v3810
        %v3812 = vpop.f32.mrf.mxu0
        %v3813 = vadd.f32 %v3540, %v3812
        %v3814 = vpop.f32.mrf.mxu0
        %v3815 = vadd.f32 %v3542, %v3814
        %3816 = vmatprep.mubr.bf16.mxu0 %v1017
        %3817 = vmatmul.mubr.bf16.gmra.mxu0 %v1016
        %v3818 = vpop.f32.mrf.mxu0
        %v3819 = vadd.f32 %v3546, %v3818
        %v3820 = vpop.f32.mrf.mxu0
        %v3821 = vadd.f32 %v3548, %v3820
        %v3822 = vpop.f32.mrf.mxu0
        %v3823 = vadd.f32 %v3550, %v3822
        %v3824 = vpop.f32.mrf.mxu0
        %v3825 = vadd.f32 %v3552, %v3824
        %3826 = vmatprep.mubr.bf16.mxu0 %v1026
        %3827 = vmatmul.mubr.bf16.gmra.mxu0 %v1025
        %v3828 = vpop.f32.mrf.mxu0
        %v3829 = vadd.f32 %v3556, %v3828
        %v3830 = vpop.f32.mrf.mxu0
        %v3831 = vadd.f32 %v3558, %v3830
        %v3832 = vpop.f32.mrf.mxu0
        %v3833 = vadd.f32 %v3560, %v3832
        %v3834 = vpop.f32.mrf.mxu0
        %v3835 = vadd.f32 %v3562, %v3834
        %3836 = vmatprep.mubr.bf16.mxu0 %v1035
        %3837 = vmatmul.mubr.bf16.gmra.mxu0 %v1034
        %v3838 = vpop.f32.mrf.mxu0
        %v3839 = vadd.f32 %v3566, %v3838
        %v3840 = vpop.f32.mrf.mxu0
        %v3841 = vadd.f32 %v3568, %v3840
        %v3842 = vpop.f32.mrf.mxu0
        %v3843 = vadd.f32 %v3570, %v3842
        %v3844 = vpop.f32.mrf.mxu0
        %v3845 = vadd.f32 %v3572, %v3844
        %3846 = vmatprep.mubr.bf16.mxu0 %v1044
        %3847 = vmatmul.mubr.bf16.gmra.mxu0 %v1043
        %v3848 = vpop.f32.mrf.mxu0
        %v3849 = vadd.f32 %v3576, %v3848
        %v3850 = vpop.f32.mrf.mxu0
        %v3851 = vadd.f32 %v3578, %v3850
        %v3852 = vpop.f32.mrf.mxu0
        %v3853 = vadd.f32 %v3580, %v3852
        %v3854 = vpop.f32.mrf.mxu0
        %v3855 = vadd.f32 %v3582, %v3854
        %3856 = vmatprep.mubr.bf16.mxu0 %v1053
        %3857 = vmatmul.mubr.bf16.gmra.mxu0 %v1052
        %v3858 = vpop.f32.mrf.mxu0
        %v3859 = vadd.f32 %v3586, %v3858
        %v3860 = vpop.f32.mrf.mxu0
        %v3861 = vadd.f32 %v3588, %v3860
        %v3862 = vpop.f32.mrf.mxu0
        %v3863 = vadd.f32 %v3590, %v3862
        %v3864 = vpop.f32.mrf.mxu0
        %v3865 = vadd.f32 %v3592, %v3864
        %3866 = vmatprep.mubr.bf16.mxu0 %v1062
        %3867 = vmatmul.mubr.bf16.gmra.mxu0 %v1061
        %v3868 = vpop.f32.mrf.mxu0
        %v3869 = vadd.f32 %v3596, %v3868
        %v3870 = vpop.f32.mrf.mxu0
        %v3871 = vadd.f32 %v3598, %v3870
        %v3872 = vpop.f32.mrf.mxu0
        %v3873 = vadd.f32 %v3600, %v3872
        %v3874 = vpop.f32.mrf.mxu0
        %v3875 = vadd.f32 %v3602, %v3874
        %3876 = vmatprep.mubr.bf16.mxu0 %v1071
        %3877 = vmatmul.mubr.bf16.gmra.mxu0 %v1070
        %v3878 = vpop.f32.mrf.mxu0
        %v3879 = vadd.f32 %v3606, %v3878
        %v3880 = vpop.f32.mrf.mxu0
        %v3881 = vadd.f32 %v3608, %v3880
        %v3882 = vpop.f32.mrf.mxu0
        %v3883 = vadd.f32 %v3610, %v3882
        %v3884 = vpop.f32.mrf.mxu0
        %v3885 = vadd.f32 %v3612, %v3884
        %3886 = vmatprep.mubr.bf16.mxu0 %v1080
        %3887 = vmatmul.mubr.bf16.gmra.mxu0 %v1079
        %v3888 = vpop.f32.mrf.mxu0
        %v3889 = vadd.f32 %v3616, %v3888
        %v3890 = vpop.f32.mrf.mxu0
        %v3891 = vadd.f32 %v3618, %v3890
        %v3892 = vpop.f32.mrf.mxu0
        %v3893 = vadd.f32 %v3620, %v3892
        %v3894 = vpop.f32.mrf.mxu0
        %v3895 = vadd.f32 %v3622, %v3894
        %3896 = vmatprep.mubr.bf16.mxu0 %v1089
        %3897 = vmatmul.mubr.bf16.gmra.mxu0 %v1088
        %v3898 = vpop.f32.mrf.mxu0
        %v3899 = vadd.f32 %v3626, %v3898
        %v3900 = vpop.f32.mrf.mxu0
        %v3901 = vadd.f32 %v3628, %v3900
        %v3902 = vpop.f32.mrf.mxu0
        %v3903 = vadd.f32 %v3630, %v3902
        %v3904 = vpop.f32.mrf.mxu0
        %v3905 = vadd.f32 %v3632, %v3904
        %3906 = vmatprep.mubr.bf16.mxu0 %v1098
        %3907 = vmatmul.mubr.bf16.gmra.mxu0 %v1097
        %v3908 = vpop.f32.mrf.mxu0
        %v3909 = vadd.f32 %v3636, %v3908
        %v3910 = vpop.f32.mrf.mxu0
        %v3911 = vadd.f32 %v3638, %v3910
        %v3912 = vpop.f32.mrf.mxu0
        %v3913 = vadd.f32 %v3640, %v3912
        %v3914 = vpop.f32.mrf.mxu0
        %v3915 = vadd.f32 %v3642, %v3914
        %3916 = vmatprep.mubr.bf16.mxu0 %v1107
        %3917 = vmatmul.mubr.bf16.gmra.mxu0 %v1106
        %v3918 = vpop.f32.mrf.mxu0
        %v3919 = vadd.f32 %v3646, %v3918
        %v3920 = vpop.f32.mrf.mxu0
        %v3921 = vadd.f32 %v3648, %v3920
        %v3922 = vpop.f32.mrf.mxu0
        %v3923 = vadd.f32 %v3650, %v3922
        %v3924 = vpop.f32.mrf.mxu0
        %v3925 = vadd.f32 %v3652, %v3924
        %3926 = vmatprep.mubr.bf16.mxu0 %v1116
        %3927 = vmatmul.mubr.bf16.gmra.mxu0 %v1115
        %v3928 = vpop.f32.mrf.mxu0
        %v3929 = vadd.f32 %v3656, %v3928
        %v3930 = vpop.f32.mrf.mxu0
        %v3931 = vadd.f32 %v3658, %v3930
        %v3932 = vpop.f32.mrf.mxu0
        %v3933 = vadd.f32 %v3660, %v3932
        %v3934 = vpop.f32.mrf.mxu0
        %v3935 = vadd.f32 %v3662, %v3934
        %3936 = vmatprep.mubr.bf16.mxu0 %v1125
        %3937 = vmatmul.mubr.bf16.gmra.mxu0 %v1124
        %v3938 = vpop.f32.mrf.mxu0
        %v3939 = vadd.f32 %v3666, %v3938
        %v3940 = vpop.f32.mrf.mxu0
        %v3941 = vadd.f32 %v3668, %v3940
        %v3942 = vpop.f32.mrf.mxu0
        %v3943 = vadd.f32 %v3670, %v3942
        %v3944 = vpop.f32.mrf.mxu0
        %v3945 = vadd.f32 %v3672, %v3944
        %3946 = vdwg.mxu0
        %3947 = vmatprep.subr.bf16.mxu0 0
        %3948 = vmatpush1.bf16.msra.mxu0 0
        %3949 = vmatprep.subr.bf16.mxu0 0
        %3950 = vmatpush1.bf16.msra.mxu0 0
        %3951 = vmatprep.subr.bf16.mxu0 0
        %3952 = vmatpush1.bf16.msra.mxu0 0
        %3953 = vmatprep.subr.bf16.mxu0 0
        %3954 = vmatpush1.bf16.msra.mxu0 0
        %3955 = vmatprep.subr.bf16.mxu0 %v2847
        %3956 = vmatpush1.bf16.msra.mxu0 %v2844
        %3957 = vmatprep.subr.bf16.mxu0 %v2494
        %3958 = vmatpush1.bf16.msra.mxu0 %v2493
        %3959 = vmatprep.subr.bf16.mxu0 %v2490
        %3960 = vmatpush1.bf16.msra.mxu0 %v2489
        %3961 = vmatprep.subr.bf16.mxu0 %v2486
        %3962 = vmatpush1.bf16.msra.mxu0 %v2485
        %3963 = vmatprep.subr.bf16.mxu0 0
        %3964 = vmatpush2.bf16.msra.mxu0 0
        %3965 = vmatprep.subr.bf16.mxu0 0
        %3966 = vmatpush2.bf16.msra.mxu0 0
        %3967 = vmatprep.subr.bf16.mxu0 0
        %3968 = vmatpush2.bf16.msra.mxu0 0
        %3969 = vmatprep.subr.bf16.mxu0 0
        %3970 = vmatpush2.bf16.msra.mxu0 0
        %3971 = vmatprep.subr.bf16.mxu0 0
        %3972 = vmatpush2.bf16.msra.mxu0 0
        %3973 = vmatprep.subr.bf16.mxu0 0
        %3974 = vmatpush2.bf16.msra.mxu0 0
        %3975 = vmatprep.subr.bf16.mxu0 0
        %3976 = vmatpush2.bf16.msra.mxu0 0
        %3977 = vmatprep.subr.bf16.mxu0 0
        %3978 = vmatpush2.bf16.msra.mxu0 0
        %3979 = vmatprep.mubr.bf16.mxu0 0
        %3980 = vmatmul.mubr.bf16.gmra.mxu0 %v2771
        %v3981 = vpop.f32.mrf.mxu0
        %v3982 = vadd.f32 %v3709, %v3981
        %v3983 = vpop.f32.mrf.mxu0
        %v3984 = vadd.f32 %v3711, %v3983
        %v3985 = vpop.f32.mrf.mxu0
        %v3986 = vadd.f32 %v3713, %v3985
        %v3987 = vpop.f32.mrf.mxu0
        %v3988 = vadd.f32 %v3715, %v3987
        %3989 = vmatprep.mubr.bf16.mxu0 0
        %3990 = vmatmul.mubr.bf16.gmra.mxu0 %v2774
        %v3991 = vpop.f32.mrf.mxu0
        %v3992 = vadd.f32 %v3719, %v3991
        %v3993 = vpop.f32.mrf.mxu0
        %v3994 = vadd.f32 %v3721, %v3993
        %v3995 = vpop.f32.mrf.mxu0
        %v3996 = vadd.f32 %v3723, %v3995
        %v3997 = vpop.f32.mrf.mxu0
        %v3998 = vadd.f32 %v3725, %v3997
        %3999 = vmatprep.mubr.bf16.mxu0 0
        %4000 = vmatmul.mubr.bf16.gmra.mxu0 %v2777
        %v4001 = vpop.f32.mrf.mxu0
        %v4002 = vadd.f32 %v3729, %v4001
        %v4003 = vpop.f32.mrf.mxu0
        %v4004 = vadd.f32 %v3731, %v4003
        %v4005 = vpop.f32.mrf.mxu0
        %v4006 = vadd.f32 %v3733, %v4005
        %v4007 = vpop.f32.mrf.mxu0
        %v4008 = vadd.f32 %v3735, %v4007
        %4009 = vmatprep.mubr.bf16.mxu0 0
        %4010 = vmatmul.mubr.bf16.gmra.mxu0 %v2780
        %v4011 = vpop.f32.mrf.mxu0
        %v4012 = vadd.f32 %v3739, %v4011
        %v4013 = vpop.f32.mrf.mxu0
        %v4014 = vadd.f32 %v3741, %v4013
        %v4015 = vpop.f32.mrf.mxu0
        %v4016 = vadd.f32 %v3743, %v4015
        %v4017 = vpop.f32.mrf.mxu0
        %v4018 = vadd.f32 %v3745, %v4017
        %4019 = vmatprep.mubr.bf16.mxu0 0
        %4020 = vmatmul.mubr.bf16.gmra.mxu0 %v2783
        %v4021 = vpop.f32.mrf.mxu0
        %v4022 = vadd.f32 %v3749, %v4021
        %v4023 = vpop.f32.mrf.mxu0
        %v4024 = vadd.f32 %v3751, %v4023
        %v4025 = vpop.f32.mrf.mxu0
        %v4026 = vadd.f32 %v3753, %v4025
        %v4027 = vpop.f32.mrf.mxu0
        %v4028 = vadd.f32 %v3755, %v4027
        %4029 = vmatprep.mubr.bf16.mxu0 0
        %4030 = vmatmul.mubr.bf16.gmra.mxu0 %v2786
        %v4031 = vpop.f32.mrf.mxu0
        %v4032 = vadd.f32 %v3759, %v4031
        %v4033 = vpop.f32.mrf.mxu0
        %v4034 = vadd.f32 %v3761, %v4033
        %v4035 = vpop.f32.mrf.mxu0
        %v4036 = vadd.f32 %v3763, %v4035
        %v4037 = vpop.f32.mrf.mxu0
        %v4038 = vadd.f32 %v3765, %v4037
        %4039 = vmatprep.mubr.bf16.mxu0 0
        %4040 = vmatmul.mubr.bf16.gmra.mxu0 %v2789
        %v4041 = vpop.f32.mrf.mxu0
        %v4042 = vadd.f32 %v3769, %v4041
        %v4043 = vpop.f32.mrf.mxu0
        %v4044 = vadd.f32 %v3771, %v4043
        %v4045 = vpop.f32.mrf.mxu0
        %v4046 = vadd.f32 %v3773, %v4045
        %v4047 = vpop.f32.mrf.mxu0
        %v4048 = vadd.f32 %v3775, %v4047
        %4049 = vmatprep.mubr.bf16.mxu0 0
        %4050 = vmatmul.mubr.bf16.gmra.mxu0 %v2792
        %v4051 = vpop.f32.mrf.mxu0
        %v4052 = vadd.f32 %v3779, %v4051
        %v4053 = vpop.f32.mrf.mxu0
        %v4054 = vadd.f32 %v3781, %v4053
        %v4055 = vpop.f32.mrf.mxu0
        %v4056 = vadd.f32 %v3783, %v4055
        %v4057 = vpop.f32.mrf.mxu0
        %v4058 = vadd.f32 %v3785, %v4057
        %4059 = vmatprep.mubr.bf16.mxu0 0
        %4060 = vmatmul.mubr.bf16.gmra.mxu0 %v2795
        %v4061 = vpop.f32.mrf.mxu0
        %v4062 = vadd.f32 %v3789, %v4061
        %v4063 = vpop.f32.mrf.mxu0
        %v4064 = vadd.f32 %v3791, %v4063
        %v4065 = vpop.f32.mrf.mxu0
        %v4066 = vadd.f32 %v3793, %v4065
        %v4067 = vpop.f32.mrf.mxu0
        %v4068 = vadd.f32 %v3795, %v4067
        %4069 = vmatprep.mubr.bf16.mxu0 0
        %4070 = vmatmul.mubr.bf16.gmra.mxu0 %v2798
        %v4071 = vpop.f32.mrf.mxu0
        %v4072 = vadd.f32 %v3799, %v4071
        %v4073 = vpop.f32.mrf.mxu0
        %v4074 = vadd.f32 %v3801, %v4073
        %v4075 = vpop.f32.mrf.mxu0
        %v4076 = vadd.f32 %v3803, %v4075
        %v4077 = vpop.f32.mrf.mxu0
        %v4078 = vadd.f32 %v3805, %v4077
        %4079 = vmatprep.mubr.bf16.mxu0 0
        %4080 = vmatmul.mubr.bf16.gmra.mxu0 %v2801
        %v4081 = vpop.f32.mrf.mxu0
        %v4082 = vadd.f32 %v3809, %v4081
        %v4083 = vpop.f32.mrf.mxu0
        %v4084 = vadd.f32 %v3811, %v4083
        %v4085 = vpop.f32.mrf.mxu0
        %v4086 = vadd.f32 %v3813, %v4085
        %v4087 = vpop.f32.mrf.mxu0
        %v4088 = vadd.f32 %v3815, %v4087
        %4089 = vmatprep.mubr.bf16.mxu0 0
        %4090 = vmatmul.mubr.bf16.gmra.mxu0 %v2804
        %v4091 = vpop.f32.mrf.mxu0
        %v4092 = vadd.f32 %v3819, %v4091
        %v4093 = vpop.f32.mrf.mxu0
        %v4094 = vadd.f32 %v3821, %v4093
        %v4095 = vpop.f32.mrf.mxu0
        %v4096 = vadd.f32 %v3823, %v4095
        %v4097 = vpop.f32.mrf.mxu0
        %v4098 = vadd.f32 %v3825, %v4097
        %4099 = vmatprep.mubr.bf16.mxu0 0
        %4100 = vmatmul.mubr.bf16.gmra.mxu0 %v2807
        %v4101 = vpop.f32.mrf.mxu0
        %v4102 = vadd.f32 %v3829, %v4101
        %v4103 = vpop.f32.mrf.mxu0
        %v4104 = vadd.f32 %v3831, %v4103
        %v4105 = vpop.f32.mrf.mxu0
        %v4106 = vadd.f32 %v3833, %v4105
        %v4107 = vpop.f32.mrf.mxu0
        %v4108 = vadd.f32 %v3835, %v4107
        %4109 = vmatprep.mubr.bf16.mxu0 0
        %4110 = vmatmul.mubr.bf16.gmra.mxu0 %v2810
        %v4111 = vpop.f32.mrf.mxu0
        %v4112 = vadd.f32 %v3839, %v4111
        %v4113 = vpop.f32.mrf.mxu0
        %v4114 = vadd.f32 %v3841, %v4113
        %v4115 = vpop.f32.mrf.mxu0
        %v4116 = vadd.f32 %v3843, %v4115
        %v4117 = vpop.f32.mrf.mxu0
        %v4118 = vadd.f32 %v3845, %v4117
        %4119 = vmatprep.mubr.bf16.mxu0 0
        %4120 = vmatmul.mubr.bf16.gmra.mxu0 %v2813
        %v4121 = vpop.f32.mrf.mxu0
        %v4122 = vadd.f32 %v3849, %v4121
        %v4123 = vpop.f32.mrf.mxu0
        %v4124 = vadd.f32 %v3851, %v4123
        %v4125 = vpop.f32.mrf.mxu0
        %v4126 = vadd.f32 %v3853, %v4125
        %v4127 = vpop.f32.mrf.mxu0
        %v4128 = vadd.f32 %v3855, %v4127
        %4129 = vmatprep.mubr.bf16.mxu0 0
        %4130 = vmatmul.mubr.bf16.gmra.mxu0 %v2816
        %v4131 = vpop.f32.mrf.mxu0
        %v4132 = vadd.f32 %v3859, %v4131
        %v4133 = vpop.f32.mrf.mxu0
        %v4134 = vadd.f32 %v3861, %v4133
        %v4135 = vpop.f32.mrf.mxu0
        %v4136 = vadd.f32 %v3863, %v4135
        %v4137 = vpop.f32.mrf.mxu0
        %v4138 = vadd.f32 %v3865, %v4137
        %4139 = vmatprep.mubr.bf16.mxu0 0
        %4140 = vmatmul.mubr.bf16.gmra.mxu0 %v2819
        %v4141 = vpop.f32.mrf.mxu0
        %v4142 = vadd.f32 %v3869, %v4141
        %v4143 = vpop.f32.mrf.mxu0
        %v4144 = vadd.f32 %v3871, %v4143
        %v4145 = vpop.f32.mrf.mxu0
        %v4146 = vadd.f32 %v3873, %v4145
        %v4147 = vpop.f32.mrf.mxu0
        %v4148 = vadd.f32 %v3875, %v4147
        %4149 = vmatprep.mubr.bf16.mxu0 0
        %4150 = vmatmul.mubr.bf16.gmra.mxu0 %v2822
        %v4151 = vpop.f32.mrf.mxu0
        %v4152 = vadd.f32 %v3879, %v4151
        %v4153 = vpop.f32.mrf.mxu0
        %v4154 = vadd.f32 %v3881, %v4153
        %v4155 = vpop.f32.mrf.mxu0
        %v4156 = vadd.f32 %v3883, %v4155
        %v4157 = vpop.f32.mrf.mxu0
        %v4158 = vadd.f32 %v3885, %v4157
        %4159 = vmatprep.mubr.bf16.mxu0 0
        %4160 = vmatmul.mubr.bf16.gmra.mxu0 %v2825
        %v4161 = vpop.f32.mrf.mxu0
        %v4162 = vadd.f32 %v3889, %v4161
        %v4163 = vpop.f32.mrf.mxu0
        %v4164 = vadd.f32 %v3891, %v4163
        %v4165 = vpop.f32.mrf.mxu0
        %v4166 = vadd.f32 %v3893, %v4165
        %v4167 = vpop.f32.mrf.mxu0
        %v4168 = vadd.f32 %v3895, %v4167
        %4169 = vmatprep.mubr.bf16.mxu0 0
        %4170 = vmatmul.mubr.bf16.gmra.mxu0 %v2828
        %v4171 = vpop.f32.mrf.mxu0
        %v4172 = vadd.f32 %v3899, %v4171
        %v4173 = vpop.f32.mrf.mxu0
        %v4174 = vadd.f32 %v3901, %v4173
        %v4175 = vpop.f32.mrf.mxu0
        %v4176 = vadd.f32 %v3903, %v4175
        %v4177 = vpop.f32.mrf.mxu0
        %v4178 = vadd.f32 %v3905, %v4177
        %4179 = vmatprep.mubr.bf16.mxu0 0
        %4180 = vmatmul.mubr.bf16.gmra.mxu0 %v2831
        %v4181 = vpop.f32.mrf.mxu0
        %v4182 = vadd.f32 %v3909, %v4181
        %v4183 = vpop.f32.mrf.mxu0
        %v4184 = vadd.f32 %v3911, %v4183
        %v4185 = vpop.f32.mrf.mxu0
        %v4186 = vadd.f32 %v3913, %v4185
        %v4187 = vpop.f32.mrf.mxu0
        %v4188 = vadd.f32 %v3915, %v4187
        %4189 = vmatprep.mubr.bf16.mxu0 0
        %4190 = vmatmul.mubr.bf16.gmra.mxu0 %v2834
        %v4191 = vpop.f32.mrf.mxu0
        %v4192 = vadd.f32 %v3919, %v4191
        %v4193 = vpop.f32.mrf.mxu0
        %v4194 = vadd.f32 %v3921, %v4193
        %v4195 = vpop.f32.mrf.mxu0
        %v4196 = vadd.f32 %v3923, %v4195
        %v4197 = vpop.f32.mrf.mxu0
        %v4198 = vadd.f32 %v3925, %v4197
        %4199 = vmatprep.mubr.bf16.mxu0 0
        %4200 = vmatmul.mubr.bf16.gmra.mxu0 %v2837
        %v4201 = vpop.f32.mrf.mxu0
        %v4202 = vadd.f32 %v3929, %v4201
        %v4203 = vpop.f32.mrf.mxu0
        %v4204 = vadd.f32 %v3931, %v4203
        %v4205 = vpop.f32.mrf.mxu0
        %v4206 = vadd.f32 %v3933, %v4205
        %v4207 = vpop.f32.mrf.mxu0
        %v4208 = vadd.f32 %v3935, %v4207
        %4209 = vmatprep.mubr.bf16.mxu0 0
        %4210 = vmatmul.mubr.bf16.gmra.mxu0 %v2840
        %v4211 = vpop.f32.mrf.mxu0
        %v4212 = vadd.f32 %v3939, %v4211
        %v4213 = vpop.f32.mrf.mxu0
        %v4214 = vadd.f32 %v3941, %v4213
        %v4215 = vpop.f32.mrf.mxu0
        %v4216 = vadd.f32 %v3943, %v4215
        %v4217 = vpop.f32.mrf.mxu0
        %v4218 = vadd.f32 %v3945, %v4217
        %4219 = vdwg.mxu0
        %4220 = vmatprep.subr.bf16.mxu0 %v2260
        %4221 = vmatpush1.bf16.msra.mxu0 %v2259
        %4222 = vmatprep.subr.bf16.mxu0 %v2256
        %4223 = vmatpush1.bf16.msra.mxu0 %v2255
        %4224 = vmatprep.subr.bf16.mxu0 %v2252
        %4225 = vmatpush1.bf16.msra.mxu0 %v2251
        %4226 = vmatprep.subr.bf16.mxu0 %v2248
        %4227 = vmatpush1.bf16.msra.mxu0 %v2247
        %4228 = vmatprep.subr.bf16.mxu0 %v2244
        %4229 = vmatpush1.bf16.msra.mxu0 %v2243
        %4230 = vmatprep.subr.bf16.mxu0 %v2240
        %4231 = vmatpush1.bf16.msra.mxu0 %v2239
        %4232 = vmatprep.subr.bf16.mxu0 %v2236
        %4233 = vmatpush1.bf16.msra.mxu0 %v2235
        %4234 = vmatprep.subr.bf16.mxu0 %v2232
        %4235 = vmatpush1.bf16.msra.mxu0 %v2231
        %4236 = vmatprep.subr.bf16.mxu0 %v2292
        %4237 = vmatpush2.bf16.msra.mxu0 %v2291
        %4238 = vmatprep.subr.bf16.mxu0 %v2288
        %4239 = vmatpush2.bf16.msra.mxu0 %v2287
        %4240 = vmatprep.subr.bf16.mxu0 %v2284
        %4241 = vmatpush2.bf16.msra.mxu0 %v2283
        %4242 = vmatprep.subr.bf16.mxu0 %v2280
        %4243 = vmatpush2.bf16.msra.mxu0 %v2279
        %4244 = vmatprep.subr.bf16.mxu0 %v2276
        %4245 = vmatpush2.bf16.msra.mxu0 %v2275
        %4246 = vmatprep.subr.bf16.mxu0 %v2272
        %4247 = vmatpush2.bf16.msra.mxu0 %v2271
        %4248 = vmatprep.subr.bf16.mxu0 %v2268
        %4249 = vmatpush2.bf16.msra.mxu0 %v2267
        %4250 = vmatprep.subr.bf16.mxu0 %v2264
        %4251 = vmatpush2.bf16.msra.mxu0 %v2263
        %4252 = vmatprep.mubr.bf16.mxu0 %v912
        %4253 = vmatmul.mubr.bf16.gmra.mxu0 %v911
        %v4254 = vpop.f32.mrf.mxu0
        %v4255 = vadd.f32 %v1410, %v4254
        %v4256 = vpop.f32.mrf.mxu0
        %v4257 = vadd.f32 %v1414, %v4256
        %v4258 = vpop.f32.mrf.mxu0
        %v4259 = vadd.f32 %v1410, %v4258
        %v4260 = vpop.f32.mrf.mxu0
        %v4261 = vadd.f32 %v1414, %v4260
        %4262 = vmatprep.mubr.bf16.mxu0 %v921
        %4263 = vmatmul.mubr.bf16.gmra.mxu0 %v920
        %v4264 = vpop.f32.mrf.mxu0
        %v4265 = vadd.f32 %v1410, %v4264
        %v4266 = vpop.f32.mrf.mxu0
        %v4267 = vadd.f32 %v1414, %v4266
        %v4268 = vpop.f32.mrf.mxu0
        %v4269 = vadd.f32 %v1410, %v4268
        %v4270 = vpop.f32.mrf.mxu0
        %v4271 = vadd.f32 %v1414, %v4270
        %4272 = vmatprep.mubr.bf16.mxu0 %v930
        %4273 = vmatmul.mubr.bf16.gmra.mxu0 %v929
        %v4274 = vpop.f32.mrf.mxu0
        %v4275 = vadd.f32 %v1410, %v4274
        %v4276 = vpop.f32.mrf.mxu0
        %v4277 = vadd.f32 %v1414, %v4276
        %v4278 = vpop.f32.mrf.mxu0
        %v4279 = vadd.f32 %v1410, %v4278
        %v4280 = vpop.f32.mrf.mxu0
        %v4281 = vadd.f32 %v1414, %v4280
        %4282 = vmatprep.mubr.bf16.mxu0 %v939
        %4283 = vmatmul.mubr.bf16.gmra.mxu0 %v938
        %v4284 = vpop.f32.mrf.mxu0
        %v4285 = vadd.f32 %v1410, %v4284
        %v4286 = vpop.f32.mrf.mxu0
        %v4287 = vadd.f32 %v1414, %v4286
        %v4288 = vpop.f32.mrf.mxu0
        %v4289 = vadd.f32 %v1410, %v4288
        %v4290 = vpop.f32.mrf.mxu0
        %v4291 = vadd.f32 %v1414, %v4290
        %4292 = vmatprep.mubr.bf16.mxu0 %v948
        %4293 = vmatmul.mubr.bf16.gmra.mxu0 %v947
        %v4294 = vpop.f32.mrf.mxu0
        %v4295 = vadd.f32 %v1410, %v4294
        %v4296 = vpop.f32.mrf.mxu0
        %v4297 = vadd.f32 %v1414, %v4296
        %v4298 = vpop.f32.mrf.mxu0
        %v4299 = vadd.f32 %v1410, %v4298
        %v4300 = vpop.f32.mrf.mxu0
        %v4301 = vadd.f32 %v1414, %v4300
        %4302 = vmatprep.mubr.bf16.mxu0 %v957
        %4303 = vmatmul.mubr.bf16.gmra.mxu0 %v956
        %v4304 = vpop.f32.mrf.mxu0
        %v4305 = vadd.f32 %v1410, %v4304
        %v4306 = vpop.f32.mrf.mxu0
        %v4307 = vadd.f32 %v1414, %v4306
        %v4308 = vpop.f32.mrf.mxu0
        %v4309 = vadd.f32 %v1410, %v4308
        %v4310 = vpop.f32.mrf.mxu0
        %v4311 = vadd.f32 %v1414, %v4310
        %4312 = vmatprep.mubr.bf16.mxu0 %v966
        %4313 = vmatmul.mubr.bf16.gmra.mxu0 %v965
        %v4314 = vpop.f32.mrf.mxu0
        %v4315 = vadd.f32 %v1410, %v4314
        %v4316 = vpop.f32.mrf.mxu0
        %v4317 = vadd.f32 %v1414, %v4316
        %v4318 = vpop.f32.mrf.mxu0
        %v4319 = vadd.f32 %v1410, %v4318
        %v4320 = vpop.f32.mrf.mxu0
        %v4321 = vadd.f32 %v1414, %v4320
        %4322 = vmatprep.mubr.bf16.mxu0 %v975
        %4323 = vmatmul.mubr.bf16.gmra.mxu0 %v974
        %v4324 = vpop.f32.mrf.mxu0
        %v4325 = vadd.f32 %v1410, %v4324
        %v4326 = vpop.f32.mrf.mxu0
        %v4327 = vadd.f32 %v1414, %v4326
        %v4328 = vpop.f32.mrf.mxu0
        %v4329 = vadd.f32 %v1410, %v4328
        %v4330 = vpop.f32.mrf.mxu0
        %v4331 = vadd.f32 %v1414, %v4330
        %4332 = vmatprep.mubr.bf16.mxu0 %v984
        %4333 = vmatmul.mubr.bf16.gmra.mxu0 %v983
        %v4334 = vpop.f32.mrf.mxu0
        %v4335 = vadd.f32 %v1410, %v4334
        %v4336 = vpop.f32.mrf.mxu0
        %v4337 = vadd.f32 %v1414, %v4336
        %v4338 = vpop.f32.mrf.mxu0
        %v4339 = vadd.f32 %v1410, %v4338
        %v4340 = vpop.f32.mrf.mxu0
        %v4341 = vadd.f32 %v1414, %v4340
        %4342 = vmatprep.mubr.bf16.mxu0 %v993
        %4343 = vmatmul.mubr.bf16.gmra.mxu0 %v992
        %v4344 = vpop.f32.mrf.mxu0
        %v4345 = vadd.f32 %v1410, %v4344
        %v4346 = vpop.f32.mrf.mxu0
        %v4347 = vadd.f32 %v1414, %v4346
        %v4348 = vpop.f32.mrf.mxu0
        %v4349 = vadd.f32 %v1410, %v4348
        %v4350 = vpop.f32.mrf.mxu0
        %v4351 = vadd.f32 %v1414, %v4350
        %4352 = vmatprep.mubr.bf16.mxu0 %v1002
        %4353 = vmatmul.mubr.bf16.gmra.mxu0 %v1001
        %v4354 = vpop.f32.mrf.mxu0
        %v4355 = vadd.f32 %v1410, %v4354
        %v4356 = vpop.f32.mrf.mxu0
        %v4357 = vadd.f32 %v1414, %v4356
        %v4358 = vpop.f32.mrf.mxu0
        %v4359 = vadd.f32 %v1410, %v4358
        %v4360 = vpop.f32.mrf.mxu0
        %v4361 = vadd.f32 %v1414, %v4360
        %4362 = vmatprep.mubr.bf16.mxu0 %v1011
        %4363 = vmatmul.mubr.bf16.gmra.mxu0 %v1010
        %v4364 = vpop.f32.mrf.mxu0
        %v4365 = vadd.f32 %v1410, %v4364
        %v4366 = vpop.f32.mrf.mxu0
        %v4367 = vadd.f32 %v1414, %v4366
        %v4368 = vpop.f32.mrf.mxu0
        %v4369 = vadd.f32 %v1410, %v4368
        %v4370 = vpop.f32.mrf.mxu0
        %v4371 = vadd.f32 %v1414, %v4370
        %4372 = vmatprep.mubr.bf16.mxu0 %v1020
        %4373 = vmatmul.mubr.bf16.gmra.mxu0 %v1019
        %v4374 = vpop.f32.mrf.mxu0
        %v4375 = vadd.f32 %v1410, %v4374
        %v4376 = vpop.f32.mrf.mxu0
        %v4377 = vadd.f32 %v1414, %v4376
        %v4378 = vpop.f32.mrf.mxu0
        %v4379 = vadd.f32 %v1410, %v4378
        %v4380 = vpop.f32.mrf.mxu0
        %v4381 = vadd.f32 %v1414, %v4380
        %4382 = vmatprep.mubr.bf16.mxu0 %v1029
        %4383 = vmatmul.mubr.bf16.gmra.mxu0 %v1028
        %v4384 = vpop.f32.mrf.mxu0
        %v4385 = vadd.f32 %v1410, %v4384
        %v4386 = vpop.f32.mrf.mxu0
        %v4387 = vadd.f32 %v1414, %v4386
        %v4388 = vpop.f32.mrf.mxu0
        %v4389 = vadd.f32 %v1410, %v4388
        %v4390 = vpop.f32.mrf.mxu0
        %v4391 = vadd.f32 %v1414, %v4390
        %4392 = vmatprep.mubr.bf16.mxu0 %v1038
        %4393 = vmatmul.mubr.bf16.gmra.mxu0 %v1037
        %v4394 = vpop.f32.mrf.mxu0
        %v4395 = vadd.f32 %v1410, %v4394
        %v4396 = vpop.f32.mrf.mxu0
        %v4397 = vadd.f32 %v1414, %v4396
        %v4398 = vpop.f32.mrf.mxu0
        %v4399 = vadd.f32 %v1410, %v4398
        %v4400 = vpop.f32.mrf.mxu0
        %v4401 = vadd.f32 %v1414, %v4400
        %4402 = vmatprep.mubr.bf16.mxu0 %v1047
        %4403 = vmatmul.mubr.bf16.gmra.mxu0 %v1046
        %v4404 = vpop.f32.mrf.mxu0
        %v4405 = vadd.f32 %v1410, %v4404
        %v4406 = vpop.f32.mrf.mxu0
        %v4407 = vadd.f32 %v1414, %v4406
        %v4408 = vpop.f32.mrf.mxu0
        %v4409 = vadd.f32 %v1410, %v4408
        %v4410 = vpop.f32.mrf.mxu0
        %v4411 = vadd.f32 %v1414, %v4410
        %4412 = vmatprep.mubr.bf16.mxu0 %v1056
        %4413 = vmatmul.mubr.bf16.gmra.mxu0 %v1055
        %v4414 = vpop.f32.mrf.mxu0
        %v4415 = vadd.f32 %v1410, %v4414
        %v4416 = vpop.f32.mrf.mxu0
        %v4417 = vadd.f32 %v1414, %v4416
        %v4418 = vpop.f32.mrf.mxu0
        %v4419 = vadd.f32 %v1410, %v4418
        %v4420 = vpop.f32.mrf.mxu0
        %v4421 = vadd.f32 %v1414, %v4420
        %4422 = vmatprep.mubr.bf16.mxu0 %v1065
        %4423 = vmatmul.mubr.bf16.gmra.mxu0 %v1064
        %v4424 = vpop.f32.mrf.mxu0
        %v4425 = vadd.f32 %v1410, %v4424
        %v4426 = vpop.f32.mrf.mxu0
        %v4427 = vadd.f32 %v1414, %v4426
        %v4428 = vpop.f32.mrf.mxu0
        %v4429 = vadd.f32 %v1410, %v4428
        %v4430 = vpop.f32.mrf.mxu0
        %v4431 = vadd.f32 %v1414, %v4430
        %4432 = vmatprep.mubr.bf16.mxu0 %v1074
        %4433 = vmatmul.mubr.bf16.gmra.mxu0 %v1073
        %v4434 = vpop.f32.mrf.mxu0
        %v4435 = vadd.f32 %v1410, %v4434
        %v4436 = vpop.f32.mrf.mxu0
        %v4437 = vadd.f32 %v1414, %v4436
        %v4438 = vpop.f32.mrf.mxu0
        %v4439 = vadd.f32 %v1410, %v4438
        %v4440 = vpop.f32.mrf.mxu0
        %v4441 = vadd.f32 %v1414, %v4440
        %4442 = vmatprep.mubr.bf16.mxu0 %v1083
        %4443 = vmatmul.mubr.bf16.gmra.mxu0 %v1082
        %v4444 = vpop.f32.mrf.mxu0
        %v4445 = vadd.f32 %v1410, %v4444
        %v4446 = vpop.f32.mrf.mxu0
        %v4447 = vadd.f32 %v1414, %v4446
        %v4448 = vpop.f32.mrf.mxu0
        %v4449 = vadd.f32 %v1410, %v4448
        %v4450 = vpop.f32.mrf.mxu0
        %v4451 = vadd.f32 %v1414, %v4450
        %4452 = vmatprep.mubr.bf16.mxu0 %v1092
        %4453 = vmatmul.mubr.bf16.gmra.mxu0 %v1091
        %v4454 = vpop.f32.mrf.mxu0
        %v4455 = vadd.f32 %v1410, %v4454
        %v4456 = vpop.f32.mrf.mxu0
        %v4457 = vadd.f32 %v1414, %v4456
        %v4458 = vpop.f32.mrf.mxu0
        %v4459 = vadd.f32 %v1410, %v4458
        %v4460 = vpop.f32.mrf.mxu0
        %v4461 = vadd.f32 %v1414, %v4460
        %4462 = vmatprep.mubr.bf16.mxu0 %v1101
        %4463 = vmatmul.mubr.bf16.gmra.mxu0 %v1100
        %v4464 = vpop.f32.mrf.mxu0
        %v4465 = vadd.f32 %v1410, %v4464
        %v4466 = vpop.f32.mrf.mxu0
        %v4467 = vadd.f32 %v1414, %v4466
        %v4468 = vpop.f32.mrf.mxu0
        %v4469 = vadd.f32 %v1410, %v4468
        %v4470 = vpop.f32.mrf.mxu0
        %v4471 = vadd.f32 %v1414, %v4470
        %4472 = vmatprep.mubr.bf16.mxu0 %v1110
        %4473 = vmatmul.mubr.bf16.gmra.mxu0 %v1109
        %v4474 = vpop.f32.mrf.mxu0
        %v4475 = vadd.f32 %v1410, %v4474
        %v4476 = vpop.f32.mrf.mxu0
        %v4477 = vadd.f32 %v1414, %v4476
        %v4478 = vpop.f32.mrf.mxu0
        %v4479 = vadd.f32 %v1410, %v4478
        %v4480 = vpop.f32.mrf.mxu0
        %v4481 = vadd.f32 %v1414, %v4480
        %4482 = vmatprep.mubr.bf16.mxu0 %v1119
        %4483 = vmatmul.mubr.bf16.gmra.mxu0 %v1118
        %v4484 = vpop.f32.mrf.mxu0
        %v4485 = vadd.f32 %v1410, %v4484
        %v4486 = vpop.f32.mrf.mxu0
        %v4487 = vadd.f32 %v1414, %v4486
        %v4488 = vpop.f32.mrf.mxu0
        %v4489 = vadd.f32 %v1410, %v4488
        %v4490 = vpop.f32.mrf.mxu0
        %v4491 = vadd.f32 %v1414, %v4490
        %4492 = vdwg.mxu0
        %4493 = vmatprep.subr.bf16.mxu0 %v2324
        %4494 = vmatpush1.bf16.msra.mxu0 %v2323
        %4495 = vmatprep.subr.bf16.mxu0 %v2320
        %4496 = vmatpush1.bf16.msra.mxu0 %v2319
        %4497 = vmatprep.subr.bf16.mxu0 %v2316
        %4498 = vmatpush1.bf16.msra.mxu0 %v2315
        %4499 = vmatprep.subr.bf16.mxu0 %v2312
        %4500 = vmatpush1.bf16.msra.mxu0 %v2311
        %4501 = vmatprep.subr.bf16.mxu0 %v2308
        %4502 = vmatpush1.bf16.msra.mxu0 %v2307
        %4503 = vmatprep.subr.bf16.mxu0 %v2304
        %4504 = vmatpush1.bf16.msra.mxu0 %v2303
        %4505 = vmatprep.subr.bf16.mxu0 %v2300
        %4506 = vmatpush1.bf16.msra.mxu0 %v2299
        %4507 = vmatprep.subr.bf16.mxu0 %v2296
        %4508 = vmatpush1.bf16.msra.mxu0 %v2295
        %4509 = vmatprep.subr.bf16.mxu0 %v2356
        %4510 = vmatpush2.bf16.msra.mxu0 %v2355
        %4511 = vmatprep.subr.bf16.mxu0 %v2352
        %4512 = vmatpush2.bf16.msra.mxu0 %v2351
        %4513 = vmatprep.subr.bf16.mxu0 %v2348
        %4514 = vmatpush2.bf16.msra.mxu0 %v2347
        %4515 = vmatprep.subr.bf16.mxu0 %v2344
        %4516 = vmatpush2.bf16.msra.mxu0 %v2343
        %4517 = vmatprep.subr.bf16.mxu0 %v2340
        %4518 = vmatpush2.bf16.msra.mxu0 %v2339
        %4519 = vmatprep.subr.bf16.mxu0 %v2336
        %4520 = vmatpush2.bf16.msra.mxu0 %v2335
        %4521 = vmatprep.subr.bf16.mxu0 %v2332
        %4522 = vmatpush2.bf16.msra.mxu0 %v2331
        %4523 = vmatprep.subr.bf16.mxu0 %v2328
        %4524 = vmatpush2.bf16.msra.mxu0 %v2327
        %4525 = vmatprep.mubr.bf16.mxu0 %v914
        %4526 = vmatmul.mubr.bf16.gmra.mxu0 %v913
        %v4527 = vpop.f32.mrf.mxu0
        %v4528 = vadd.f32 %v4255, %v4527
        %v4529 = vpop.f32.mrf.mxu0
        %v4530 = vadd.f32 %v4257, %v4529
        %v4531 = vpop.f32.mrf.mxu0
        %v4532 = vadd.f32 %v4259, %v4531
        %v4533 = vpop.f32.mrf.mxu0
        %v4534 = vadd.f32 %v4261, %v4533
        %4535 = vmatprep.mubr.bf16.mxu0 %v923
        %4536 = vmatmul.mubr.bf16.gmra.mxu0 %v922
        %v4537 = vpop.f32.mrf.mxu0
        %v4538 = vadd.f32 %v4265, %v4537
        %v4539 = vpop.f32.mrf.mxu0
        %v4540 = vadd.f32 %v4267, %v4539
        %v4541 = vpop.f32.mrf.mxu0
        %v4542 = vadd.f32 %v4269, %v4541
        %v4543 = vpop.f32.mrf.mxu0
        %v4544 = vadd.f32 %v4271, %v4543
        %4545 = vmatprep.mubr.bf16.mxu0 %v932
        %4546 = vmatmul.mubr.bf16.gmra.mxu0 %v931
        %v4547 = vpop.f32.mrf.mxu0
        %v4548 = vadd.f32 %v4275, %v4547
        %v4549 = vpop.f32.mrf.mxu0
        %v4550 = vadd.f32 %v4277, %v4549
        %v4551 = vpop.f32.mrf.mxu0
        %v4552 = vadd.f32 %v4279, %v4551
        %v4553 = vpop.f32.mrf.mxu0
        %v4554 = vadd.f32 %v4281, %v4553
        %4555 = vmatprep.mubr.bf16.mxu0 %v941
        %4556 = vmatmul.mubr.bf16.gmra.mxu0 %v940
        %v4557 = vpop.f32.mrf.mxu0
        %v4558 = vadd.f32 %v4285, %v4557
        %v4559 = vpop.f32.mrf.mxu0
        %v4560 = vadd.f32 %v4287, %v4559
        %v4561 = vpop.f32.mrf.mxu0
        %v4562 = vadd.f32 %v4289, %v4561
        %v4563 = vpop.f32.mrf.mxu0
        %v4564 = vadd.f32 %v4291, %v4563
        %4565 = vmatprep.mubr.bf16.mxu0 %v950
        %4566 = vmatmul.mubr.bf16.gmra.mxu0 %v949
        %v4567 = vpop.f32.mrf.mxu0
        %v4568 = vadd.f32 %v4295, %v4567
        %v4569 = vpop.f32.mrf.mxu0
        %v4570 = vadd.f32 %v4297, %v4569
        %v4571 = vpop.f32.mrf.mxu0
        %v4572 = vadd.f32 %v4299, %v4571
        %v4573 = vpop.f32.mrf.mxu0
        %v4574 = vadd.f32 %v4301, %v4573
        %4575 = vmatprep.mubr.bf16.mxu0 %v959
        %4576 = vmatmul.mubr.bf16.gmra.mxu0 %v958
        %v4577 = vpop.f32.mrf.mxu0
        %v4578 = vadd.f32 %v4305, %v4577
        %v4579 = vpop.f32.mrf.mxu0
        %v4580 = vadd.f32 %v4307, %v4579
        %v4581 = vpop.f32.mrf.mxu0
        %v4582 = vadd.f32 %v4309, %v4581
        %v4583 = vpop.f32.mrf.mxu0
        %v4584 = vadd.f32 %v4311, %v4583
        %4585 = vmatprep.mubr.bf16.mxu0 %v968
        %4586 = vmatmul.mubr.bf16.gmra.mxu0 %v967
        %v4587 = vpop.f32.mrf.mxu0
        %v4588 = vadd.f32 %v4315, %v4587
        %v4589 = vpop.f32.mrf.mxu0
        %v4590 = vadd.f32 %v4317, %v4589
        %v4591 = vpop.f32.mrf.mxu0
        %v4592 = vadd.f32 %v4319, %v4591
        %v4593 = vpop.f32.mrf.mxu0
        %v4594 = vadd.f32 %v4321, %v4593
        %4595 = vmatprep.mubr.bf16.mxu0 %v977
        %4596 = vmatmul.mubr.bf16.gmra.mxu0 %v976
        %v4597 = vpop.f32.mrf.mxu0
        %v4598 = vadd.f32 %v4325, %v4597
        %v4599 = vpop.f32.mrf.mxu0
        %v4600 = vadd.f32 %v4327, %v4599
        %v4601 = vpop.f32.mrf.mxu0
        %v4602 = vadd.f32 %v4329, %v4601
        %v4603 = vpop.f32.mrf.mxu0
        %v4604 = vadd.f32 %v4331, %v4603
        %4605 = vmatprep.mubr.bf16.mxu0 %v986
        %4606 = vmatmul.mubr.bf16.gmra.mxu0 %v985
        %v4607 = vpop.f32.mrf.mxu0
        %v4608 = vadd.f32 %v4335, %v4607
        %v4609 = vpop.f32.mrf.mxu0
        %v4610 = vadd.f32 %v4337, %v4609
        %v4611 = vpop.f32.mrf.mxu0
        %v4612 = vadd.f32 %v4339, %v4611
        %v4613 = vpop.f32.mrf.mxu0
        %v4614 = vadd.f32 %v4341, %v4613
        %4615 = vmatprep.mubr.bf16.mxu0 %v995
        %4616 = vmatmul.mubr.bf16.gmra.mxu0 %v994
        %v4617 = vpop.f32.mrf.mxu0
        %v4618 = vadd.f32 %v4345, %v4617
        %v4619 = vpop.f32.mrf.mxu0
        %v4620 = vadd.f32 %v4347, %v4619
        %v4621 = vpop.f32.mrf.mxu0
        %v4622 = vadd.f32 %v4349, %v4621
        %v4623 = vpop.f32.mrf.mxu0
        %v4624 = vadd.f32 %v4351, %v4623
        %4625 = vmatprep.mubr.bf16.mxu0 %v1004
        %4626 = vmatmul.mubr.bf16.gmra.mxu0 %v1003
        %v4627 = vpop.f32.mrf.mxu0
        %v4628 = vadd.f32 %v4355, %v4627
        %v4629 = vpop.f32.mrf.mxu0
        %v4630 = vadd.f32 %v4357, %v4629
        %v4631 = vpop.f32.mrf.mxu0
        %v4632 = vadd.f32 %v4359, %v4631
        %v4633 = vpop.f32.mrf.mxu0
        %v4634 = vadd.f32 %v4361, %v4633
        %4635 = vmatprep.mubr.bf16.mxu0 %v1013
        %4636 = vmatmul.mubr.bf16.gmra.mxu0 %v1012
        %v4637 = vpop.f32.mrf.mxu0
        %v4638 = vadd.f32 %v4365, %v4637
        %v4639 = vpop.f32.mrf.mxu0
        %v4640 = vadd.f32 %v4367, %v4639
        %v4641 = vpop.f32.mrf.mxu0
        %v4642 = vadd.f32 %v4369, %v4641
        %v4643 = vpop.f32.mrf.mxu0
        %v4644 = vadd.f32 %v4371, %v4643
        %4645 = vmatprep.mubr.bf16.mxu0 %v1022
        %4646 = vmatmul.mubr.bf16.gmra.mxu0 %v1021
        %v4647 = vpop.f32.mrf.mxu0
        %v4648 = vadd.f32 %v4375, %v4647
        %v4649 = vpop.f32.mrf.mxu0
        %v4650 = vadd.f32 %v4377, %v4649
        %v4651 = vpop.f32.mrf.mxu0
        %v4652 = vadd.f32 %v4379, %v4651
        %v4653 = vpop.f32.mrf.mxu0
        %v4654 = vadd.f32 %v4381, %v4653
        %4655 = vmatprep.mubr.bf16.mxu0 %v1031
        %4656 = vmatmul.mubr.bf16.gmra.mxu0 %v1030
        %v4657 = vpop.f32.mrf.mxu0
        %v4658 = vadd.f32 %v4385, %v4657
        %v4659 = vpop.f32.mrf.mxu0
        %v4660 = vadd.f32 %v4387, %v4659
        %v4661 = vpop.f32.mrf.mxu0
        %v4662 = vadd.f32 %v4389, %v4661
        %v4663 = vpop.f32.mrf.mxu0
        %v4664 = vadd.f32 %v4391, %v4663
        %4665 = vmatprep.mubr.bf16.mxu0 %v1040
        %4666 = vmatmul.mubr.bf16.gmra.mxu0 %v1039
        %v4667 = vpop.f32.mrf.mxu0
        %v4668 = vadd.f32 %v4395, %v4667
        %v4669 = vpop.f32.mrf.mxu0
        %v4670 = vadd.f32 %v4397, %v4669
        %v4671 = vpop.f32.mrf.mxu0
        %v4672 = vadd.f32 %v4399, %v4671
        %v4673 = vpop.f32.mrf.mxu0
        %v4674 = vadd.f32 %v4401, %v4673
        %4675 = vmatprep.mubr.bf16.mxu0 %v1049
        %4676 = vmatmul.mubr.bf16.gmra.mxu0 %v1048
        %v4677 = vpop.f32.mrf.mxu0
        %v4678 = vadd.f32 %v4405, %v4677
        %v4679 = vpop.f32.mrf.mxu0
        %v4680 = vadd.f32 %v4407, %v4679
        %v4681 = vpop.f32.mrf.mxu0
        %v4682 = vadd.f32 %v4409, %v4681
        %v4683 = vpop.f32.mrf.mxu0
        %v4684 = vadd.f32 %v4411, %v4683
        %4685 = vmatprep.mubr.bf16.mxu0 %v1058
        %4686 = vmatmul.mubr.bf16.gmra.mxu0 %v1057
        %v4687 = vpop.f32.mrf.mxu0
        %v4688 = vadd.f32 %v4415, %v4687
        %v4689 = vpop.f32.mrf.mxu0
        %v4690 = vadd.f32 %v4417, %v4689
        %v4691 = vpop.f32.mrf.mxu0
        %v4692 = vadd.f32 %v4419, %v4691
        %v4693 = vpop.f32.mrf.mxu0
        %v4694 = vadd.f32 %v4421, %v4693
        %4695 = vmatprep.mubr.bf16.mxu0 %v1067
        %4696 = vmatmul.mubr.bf16.gmra.mxu0 %v1066
        %v4697 = vpop.f32.mrf.mxu0
        %v4698 = vadd.f32 %v4425, %v4697
        %v4699 = vpop.f32.mrf.mxu0
        %v4700 = vadd.f32 %v4427, %v4699
        %v4701 = vpop.f32.mrf.mxu0
        %v4702 = vadd.f32 %v4429, %v4701
        %v4703 = vpop.f32.mrf.mxu0
        %v4704 = vadd.f32 %v4431, %v4703
        %4705 = vmatprep.mubr.bf16.mxu0 %v1076
        %4706 = vmatmul.mubr.bf16.gmra.mxu0 %v1075
        %v4707 = vpop.f32.mrf.mxu0
        %v4708 = vadd.f32 %v4435, %v4707
        %v4709 = vpop.f32.mrf.mxu0
        %v4710 = vadd.f32 %v4437, %v4709
        %v4711 = vpop.f32.mrf.mxu0
        %v4712 = vadd.f32 %v4439, %v4711
        %v4713 = vpop.f32.mrf.mxu0
        %v4714 = vadd.f32 %v4441, %v4713
        %4715 = vmatprep.mubr.bf16.mxu0 %v1085
        %4716 = vmatmul.mubr.bf16.gmra.mxu0 %v1084
        %v4717 = vpop.f32.mrf.mxu0
        %v4718 = vadd.f32 %v4445, %v4717
        %v4719 = vpop.f32.mrf.mxu0
        %v4720 = vadd.f32 %v4447, %v4719
        %v4721 = vpop.f32.mrf.mxu0
        %v4722 = vadd.f32 %v4449, %v4721
        %v4723 = vpop.f32.mrf.mxu0
        %v4724 = vadd.f32 %v4451, %v4723
        %4725 = vmatprep.mubr.bf16.mxu0 %v1094
        %4726 = vmatmul.mubr.bf16.gmra.mxu0 %v1093
        %v4727 = vpop.f32.mrf.mxu0
        %v4728 = vadd.f32 %v4455, %v4727
        %v4729 = vpop.f32.mrf.mxu0
        %v4730 = vadd.f32 %v4457, %v4729
        %v4731 = vpop.f32.mrf.mxu0
        %v4732 = vadd.f32 %v4459, %v4731
        %v4733 = vpop.f32.mrf.mxu0
        %v4734 = vadd.f32 %v4461, %v4733
        %4735 = vmatprep.mubr.bf16.mxu0 %v1103
        %4736 = vmatmul.mubr.bf16.gmra.mxu0 %v1102
        %v4737 = vpop.f32.mrf.mxu0
        %v4738 = vadd.f32 %v4465, %v4737
        %v4739 = vpop.f32.mrf.mxu0
        %v4740 = vadd.f32 %v4467, %v4739
        %v4741 = vpop.f32.mrf.mxu0
        %v4742 = vadd.f32 %v4469, %v4741
        %v4743 = vpop.f32.mrf.mxu0
        %v4744 = vadd.f32 %v4471, %v4743
        %4745 = vmatprep.mubr.bf16.mxu0 %v1112
        %4746 = vmatmul.mubr.bf16.gmra.mxu0 %v1111
        %v4747 = vpop.f32.mrf.mxu0
        %v4748 = vadd.f32 %v4475, %v4747
        %v4749 = vpop.f32.mrf.mxu0
        %v4750 = vadd.f32 %v4477, %v4749
        %v4751 = vpop.f32.mrf.mxu0
        %v4752 = vadd.f32 %v4479, %v4751
        %v4753 = vpop.f32.mrf.mxu0
        %v4754 = vadd.f32 %v4481, %v4753
        %4755 = vmatprep.mubr.bf16.mxu0 %v1121
        %4756 = vmatmul.mubr.bf16.gmra.mxu0 %v1120
        %v4757 = vpop.f32.mrf.mxu0
        %v4758 = vadd.f32 %v4485, %v4757
        %v4759 = vpop.f32.mrf.mxu0
        %v4760 = vadd.f32 %v4487, %v4759
        %v4761 = vpop.f32.mrf.mxu0
        %v4762 = vadd.f32 %v4489, %v4761
        %v4763 = vpop.f32.mrf.mxu0
        %v4764 = vadd.f32 %v4491, %v4763
        %4765 = vdwg.mxu0
        %4766 = vmatprep.subr.bf16.mxu0 %v2388
        %4767 = vmatpush1.bf16.msra.mxu0 %v2387
        %4768 = vmatprep.subr.bf16.mxu0 %v2384
        %4769 = vmatpush1.bf16.msra.mxu0 %v2383
        %4770 = vmatprep.subr.bf16.mxu0 %v2380
        %4771 = vmatpush1.bf16.msra.mxu0 %v2379
        %4772 = vmatprep.subr.bf16.mxu0 %v2376
        %4773 = vmatpush1.bf16.msra.mxu0 %v2375
        %4774 = vmatprep.subr.bf16.mxu0 %v2372
        %4775 = vmatpush1.bf16.msra.mxu0 %v2371
        %4776 = vmatprep.subr.bf16.mxu0 %v2368
        %4777 = vmatpush1.bf16.msra.mxu0 %v2367
        %4778 = vmatprep.subr.bf16.mxu0 %v2364
        %4779 = vmatpush1.bf16.msra.mxu0 %v2363
        %4780 = vmatprep.subr.bf16.mxu0 %v2360
        %4781 = vmatpush1.bf16.msra.mxu0 %v2359
        %4782 = vmatprep.subr.bf16.mxu0 %v2420
        %4783 = vmatpush2.bf16.msra.mxu0 %v2419
        %4784 = vmatprep.subr.bf16.mxu0 %v2416
        %4785 = vmatpush2.bf16.msra.mxu0 %v2415
        %4786 = vmatprep.subr.bf16.mxu0 %v2412
        %4787 = vmatpush2.bf16.msra.mxu0 %v2411
        %4788 = vmatprep.subr.bf16.mxu0 %v2408
        %4789 = vmatpush2.bf16.msra.mxu0 %v2407
        %4790 = vmatprep.subr.bf16.mxu0 %v2404
        %4791 = vmatpush2.bf16.msra.mxu0 %v2403
        %4792 = vmatprep.subr.bf16.mxu0 %v2400
        %4793 = vmatpush2.bf16.msra.mxu0 %v2399
        %4794 = vmatprep.subr.bf16.mxu0 %v2396
        %4795 = vmatpush2.bf16.msra.mxu0 %v2395
        %4796 = vmatprep.subr.bf16.mxu0 %v2392
        %4797 = vmatpush2.bf16.msra.mxu0 %v2391
        %4798 = vmatprep.mubr.bf16.mxu0 %v916
        %4799 = vmatmul.mubr.bf16.gmra.mxu0 %v915
        %v4800 = vpop.f32.mrf.mxu0
        %v4801 = vadd.f32 %v4528, %v4800
        %v4802 = vpop.f32.mrf.mxu0
        %v4803 = vadd.f32 %v4530, %v4802
        %v4804 = vpop.f32.mrf.mxu0
        %v4805 = vadd.f32 %v4532, %v4804
        %v4806 = vpop.f32.mrf.mxu0
        %v4807 = vadd.f32 %v4534, %v4806
        %4808 = vmatprep.mubr.bf16.mxu0 %v925
        %4809 = vmatmul.mubr.bf16.gmra.mxu0 %v924
        %v4810 = vpop.f32.mrf.mxu0
        %v4811 = vadd.f32 %v4538, %v4810
        %v4812 = vpop.f32.mrf.mxu0
        %v4813 = vadd.f32 %v4540, %v4812
        %v4814 = vpop.f32.mrf.mxu0
        %v4815 = vadd.f32 %v4542, %v4814
        %v4816 = vpop.f32.mrf.mxu0
        %v4817 = vadd.f32 %v4544, %v4816
        %4818 = vmatprep.mubr.bf16.mxu0 %v934
        %4819 = vmatmul.mubr.bf16.gmra.mxu0 %v933
        %v4820 = vpop.f32.mrf.mxu0
        %v4821 = vadd.f32 %v4548, %v4820
        %v4822 = vpop.f32.mrf.mxu0
        %v4823 = vadd.f32 %v4550, %v4822
        %v4824 = vpop.f32.mrf.mxu0
        %v4825 = vadd.f32 %v4552, %v4824
        %v4826 = vpop.f32.mrf.mxu0
        %v4827 = vadd.f32 %v4554, %v4826
        %4828 = vmatprep.mubr.bf16.mxu0 %v943
        %4829 = vmatmul.mubr.bf16.gmra.mxu0 %v942
        %v4830 = vpop.f32.mrf.mxu0
        %v4831 = vadd.f32 %v4558, %v4830
        %v4832 = vpop.f32.mrf.mxu0
        %v4833 = vadd.f32 %v4560, %v4832
        %v4834 = vpop.f32.mrf.mxu0
        %v4835 = vadd.f32 %v4562, %v4834
        %v4836 = vpop.f32.mrf.mxu0
        %v4837 = vadd.f32 %v4564, %v4836
        %4838 = vmatprep.mubr.bf16.mxu0 %v952
        %4839 = vmatmul.mubr.bf16.gmra.mxu0 %v951
        %v4840 = vpop.f32.mrf.mxu0
        %v4841 = vadd.f32 %v4568, %v4840
        %v4842 = vpop.f32.mrf.mxu0
        %v4843 = vadd.f32 %v4570, %v4842
        %v4844 = vpop.f32.mrf.mxu0
        %v4845 = vadd.f32 %v4572, %v4844
        %v4846 = vpop.f32.mrf.mxu0
        %v4847 = vadd.f32 %v4574, %v4846
        %4848 = vmatprep.mubr.bf16.mxu0 %v961
        %4849 = vmatmul.mubr.bf16.gmra.mxu0 %v960
        %v4850 = vpop.f32.mrf.mxu0
        %v4851 = vadd.f32 %v4578, %v4850
        %v4852 = vpop.f32.mrf.mxu0
        %v4853 = vadd.f32 %v4580, %v4852
        %v4854 = vpop.f32.mrf.mxu0
        %v4855 = vadd.f32 %v4582, %v4854
        %v4856 = vpop.f32.mrf.mxu0
        %v4857 = vadd.f32 %v4584, %v4856
        %4858 = vmatprep.mubr.bf16.mxu0 %v970
        %4859 = vmatmul.mubr.bf16.gmra.mxu0 %v969
        %v4860 = vpop.f32.mrf.mxu0
        %v4861 = vadd.f32 %v4588, %v4860
        %v4862 = vpop.f32.mrf.mxu0
        %v4863 = vadd.f32 %v4590, %v4862
        %v4864 = vpop.f32.mrf.mxu0
        %v4865 = vadd.f32 %v4592, %v4864
        %v4866 = vpop.f32.mrf.mxu0
        %v4867 = vadd.f32 %v4594, %v4866
        %4868 = vmatprep.mubr.bf16.mxu0 %v979
        %4869 = vmatmul.mubr.bf16.gmra.mxu0 %v978
        %v4870 = vpop.f32.mrf.mxu0
        %v4871 = vadd.f32 %v4598, %v4870
        %v4872 = vpop.f32.mrf.mxu0
        %v4873 = vadd.f32 %v4600, %v4872
        %v4874 = vpop.f32.mrf.mxu0
        %v4875 = vadd.f32 %v4602, %v4874
        %v4876 = vpop.f32.mrf.mxu0
        %v4877 = vadd.f32 %v4604, %v4876
        %4878 = vmatprep.mubr.bf16.mxu0 %v988
        %4879 = vmatmul.mubr.bf16.gmra.mxu0 %v987
        %v4880 = vpop.f32.mrf.mxu0
        %v4881 = vadd.f32 %v4608, %v4880
        %v4882 = vpop.f32.mrf.mxu0
        %v4883 = vadd.f32 %v4610, %v4882
        %v4884 = vpop.f32.mrf.mxu0
        %v4885 = vadd.f32 %v4612, %v4884
        %v4886 = vpop.f32.mrf.mxu0
        %v4887 = vadd.f32 %v4614, %v4886
        %4888 = vmatprep.mubr.bf16.mxu0 %v997
        %4889 = vmatmul.mubr.bf16.gmra.mxu0 %v996
        %v4890 = vpop.f32.mrf.mxu0
        %v4891 = vadd.f32 %v4618, %v4890
        %v4892 = vpop.f32.mrf.mxu0
        %v4893 = vadd.f32 %v4620, %v4892
        %v4894 = vpop.f32.mrf.mxu0
        %v4895 = vadd.f32 %v4622, %v4894
        %v4896 = vpop.f32.mrf.mxu0
        %v4897 = vadd.f32 %v4624, %v4896
        %4898 = vmatprep.mubr.bf16.mxu0 %v1006
        %4899 = vmatmul.mubr.bf16.gmra.mxu0 %v1005
        %v4900 = vpop.f32.mrf.mxu0
        %v4901 = vadd.f32 %v4628, %v4900
        %v4902 = vpop.f32.mrf.mxu0
        %v4903 = vadd.f32 %v4630, %v4902
        %v4904 = vpop.f32.mrf.mxu0
        %v4905 = vadd.f32 %v4632, %v4904
        %v4906 = vpop.f32.mrf.mxu0
        %v4907 = vadd.f32 %v4634, %v4906
        %4908 = vmatprep.mubr.bf16.mxu0 %v1015
        %4909 = vmatmul.mubr.bf16.gmra.mxu0 %v1014
        %v4910 = vpop.f32.mrf.mxu0
        %v4911 = vadd.f32 %v4638, %v4910
        %v4912 = vpop.f32.mrf.mxu0
        %v4913 = vadd.f32 %v4640, %v4912
        %v4914 = vpop.f32.mrf.mxu0
        %v4915 = vadd.f32 %v4642, %v4914
        %v4916 = vpop.f32.mrf.mxu0
        %v4917 = vadd.f32 %v4644, %v4916
        %4918 = vmatprep.mubr.bf16.mxu0 %v1024
        %4919 = vmatmul.mubr.bf16.gmra.mxu0 %v1023
        %v4920 = vpop.f32.mrf.mxu0
        %v4921 = vadd.f32 %v4648, %v4920
        %v4922 = vpop.f32.mrf.mxu0
        %v4923 = vadd.f32 %v4650, %v4922
        %v4924 = vpop.f32.mrf.mxu0
        %v4925 = vadd.f32 %v4652, %v4924
        %v4926 = vpop.f32.mrf.mxu0
        %v4927 = vadd.f32 %v4654, %v4926
        %4928 = vmatprep.mubr.bf16.mxu0 %v1033
        %4929 = vmatmul.mubr.bf16.gmra.mxu0 %v1032
        %v4930 = vpop.f32.mrf.mxu0
        %v4931 = vadd.f32 %v4658, %v4930
        %v4932 = vpop.f32.mrf.mxu0
        %v4933 = vadd.f32 %v4660, %v4932
        %v4934 = vpop.f32.mrf.mxu0
        %v4935 = vadd.f32 %v4662, %v4934
        %v4936 = vpop.f32.mrf.mxu0
        %v4937 = vadd.f32 %v4664, %v4936
        %4938 = vmatprep.mubr.bf16.mxu0 %v1042
        %4939 = vmatmul.mubr.bf16.gmra.mxu0 %v1041
        %v4940 = vpop.f32.mrf.mxu0
        %v4941 = vadd.f32 %v4668, %v4940
        %v4942 = vpop.f32.mrf.mxu0
        %v4943 = vadd.f32 %v4670, %v4942
        %v4944 = vpop.f32.mrf.mxu0
        %v4945 = vadd.f32 %v4672, %v4944
        %v4946 = vpop.f32.mrf.mxu0
        %v4947 = vadd.f32 %v4674, %v4946
        %4948 = vmatprep.mubr.bf16.mxu0 %v1051
        %4949 = vmatmul.mubr.bf16.gmra.mxu0 %v1050
        %v4950 = vpop.f32.mrf.mxu0
        %v4951 = vadd.f32 %v4678, %v4950
        %v4952 = vpop.f32.mrf.mxu0
        %v4953 = vadd.f32 %v4680, %v4952
        %v4954 = vpop.f32.mrf.mxu0
        %v4955 = vadd.f32 %v4682, %v4954
        %v4956 = vpop.f32.mrf.mxu0
        %v4957 = vadd.f32 %v4684, %v4956
        %4958 = vmatprep.mubr.bf16.mxu0 %v1060
        %4959 = vmatmul.mubr.bf16.gmra.mxu0 %v1059
        %v4960 = vpop.f32.mrf.mxu0
        %v4961 = vadd.f32 %v4688, %v4960
        %v4962 = vpop.f32.mrf.mxu0
        %v4963 = vadd.f32 %v4690, %v4962
        %v4964 = vpop.f32.mrf.mxu0
        %v4965 = vadd.f32 %v4692, %v4964
        %v4966 = vpop.f32.mrf.mxu0
        %v4967 = vadd.f32 %v4694, %v4966
        %4968 = vmatprep.mubr.bf16.mxu0 %v1069
        %4969 = vmatmul.mubr.bf16.gmra.mxu0 %v1068
        %v4970 = vpop.f32.mrf.mxu0
        %v4971 = vadd.f32 %v4698, %v4970
        %v4972 = vpop.f32.mrf.mxu0
        %v4973 = vadd.f32 %v4700, %v4972
        %v4974 = vpop.f32.mrf.mxu0
        %v4975 = vadd.f32 %v4702, %v4974
        %v4976 = vpop.f32.mrf.mxu0
        %v4977 = vadd.f32 %v4704, %v4976
        %4978 = vmatprep.mubr.bf16.mxu0 %v1078
        %4979 = vmatmul.mubr.bf16.gmra.mxu0 %v1077
        %v4980 = vpop.f32.mrf.mxu0
        %v4981 = vadd.f32 %v4708, %v4980
        %v4982 = vpop.f32.mrf.mxu0
        %v4983 = vadd.f32 %v4710, %v4982
        %v4984 = vpop.f32.mrf.mxu0
        %v4985 = vadd.f32 %v4712, %v4984
        %v4986 = vpop.f32.mrf.mxu0
        %v4987 = vadd.f32 %v4714, %v4986
        %4988 = vmatprep.mubr.bf16.mxu0 %v1087
        %4989 = vmatmul.mubr.bf16.gmra.mxu0 %v1086
        %v4990 = vpop.f32.mrf.mxu0
        %v4991 = vadd.f32 %v4718, %v4990
        %v4992 = vpop.f32.mrf.mxu0
        %v4993 = vadd.f32 %v4720, %v4992
        %v4994 = vpop.f32.mrf.mxu0
        %v4995 = vadd.f32 %v4722, %v4994
        %v4996 = vpop.f32.mrf.mxu0
        %v4997 = vadd.f32 %v4724, %v4996
        %4998 = vmatprep.mubr.bf16.mxu0 %v1096
        %4999 = vmatmul.mubr.bf16.gmra.mxu0 %v1095
        %v5000 = vpop.f32.mrf.mxu0
        %v5001 = vadd.f32 %v4728, %v5000
        %v5002 = vpop.f32.mrf.mxu0
        %v5003 = vadd.f32 %v4730, %v5002
        %v5004 = vpop.f32.mrf.mxu0
        %v5005 = vadd.f32 %v4732, %v5004
        %v5006 = vpop.f32.mrf.mxu0
        %v5007 = vadd.f32 %v4734, %v5006
        %5008 = vmatprep.mubr.bf16.mxu0 %v1105
        %5009 = vmatmul.mubr.bf16.gmra.mxu0 %v1104
        %v5010 = vpop.f32.mrf.mxu0
        %v5011 = vadd.f32 %v4738, %v5010
        %v5012 = vpop.f32.mrf.mxu0
        %v5013 = vadd.f32 %v4740, %v5012
        %v5014 = vpop.f32.mrf.mxu0
        %v5015 = vadd.f32 %v4742, %v5014
        %v5016 = vpop.f32.mrf.mxu0
        %v5017 = vadd.f32 %v4744, %v5016
        %5018 = vmatprep.mubr.bf16.mxu0 %v1114
        %5019 = vmatmul.mubr.bf16.gmra.mxu0 %v1113
        %v5020 = vpop.f32.mrf.mxu0
        %v5021 = vadd.f32 %v4748, %v5020
        %v5022 = vpop.f32.mrf.mxu0
        %v5023 = vadd.f32 %v4750, %v5022
        %v5024 = vpop.f32.mrf.mxu0
        %v5025 = vadd.f32 %v4752, %v5024
        %v5026 = vpop.f32.mrf.mxu0
        %v5027 = vadd.f32 %v4754, %v5026
        %5028 = vmatprep.mubr.bf16.mxu0 %v1123
        %5029 = vmatmul.mubr.bf16.gmra.mxu0 %v1122
        %v5030 = vpop.f32.mrf.mxu0
        %v5031 = vadd.f32 %v4758, %v5030
        %v5032 = vpop.f32.mrf.mxu0
        %v5033 = vadd.f32 %v4760, %v5032
        %v5034 = vpop.f32.mrf.mxu0
        %v5035 = vadd.f32 %v4762, %v5034
        %v5036 = vpop.f32.mrf.mxu0
        %v5037 = vadd.f32 %v4764, %v5036
        %5038 = vdwg.mxu0
        %5039 = vmatprep.subr.bf16.mxu0 %v2452
        %5040 = vmatpush1.bf16.msra.mxu0 %v2451
        %5041 = vmatprep.subr.bf16.mxu0 %v2448
        %5042 = vmatpush1.bf16.msra.mxu0 %v2447
        %5043 = vmatprep.subr.bf16.mxu0 %v2444
        %5044 = vmatpush1.bf16.msra.mxu0 %v2443
        %5045 = vmatprep.subr.bf16.mxu0 %v2440
        %5046 = vmatpush1.bf16.msra.mxu0 %v2439
        %5047 = vmatprep.subr.bf16.mxu0 %v2436
        %5048 = vmatpush1.bf16.msra.mxu0 %v2435
        %5049 = vmatprep.subr.bf16.mxu0 %v2432
        %5050 = vmatpush1.bf16.msra.mxu0 %v2431
        %5051 = vmatprep.subr.bf16.mxu0 %v2428
        %5052 = vmatpush1.bf16.msra.mxu0 %v2427
        %5053 = vmatprep.subr.bf16.mxu0 %v2424
        %5054 = vmatpush1.bf16.msra.mxu0 %v2423
        %5055 = vmatprep.subr.bf16.mxu0 %v2484
        %5056 = vmatpush2.bf16.msra.mxu0 %v2483
        %5057 = vmatprep.subr.bf16.mxu0 %v2480
        %5058 = vmatpush2.bf16.msra.mxu0 %v2479
        %5059 = vmatprep.subr.bf16.mxu0 %v2476
        %5060 = vmatpush2.bf16.msra.mxu0 %v2475
        %5061 = vmatprep.subr.bf16.mxu0 %v2472
        %5062 = vmatpush2.bf16.msra.mxu0 %v2471
        %5063 = vmatprep.subr.bf16.mxu0 %v2468
        %5064 = vmatpush2.bf16.msra.mxu0 %v2467
        %5065 = vmatprep.subr.bf16.mxu0 %v2464
        %5066 = vmatpush2.bf16.msra.mxu0 %v2463
        %5067 = vmatprep.subr.bf16.mxu0 %v2460
        %5068 = vmatpush2.bf16.msra.mxu0 %v2459
        %5069 = vmatprep.subr.bf16.mxu0 %v2456
        %5070 = vmatpush2.bf16.msra.mxu0 %v2455
        %5071 = vmatprep.mubr.bf16.mxu0 %v918
        %5072 = vmatmul.mubr.bf16.gmra.mxu0 %v917
        %v5073 = vpop.f32.mrf.mxu0
        %v5074 = vadd.f32 %v4801, %v5073
        %v5075 = vpop.f32.mrf.mxu0
        %v5076 = vadd.f32 %v4803, %v5075
        %v5077 = vpop.f32.mrf.mxu0
        %v5078 = vadd.f32 %v4805, %v5077
        %v5079 = vpop.f32.mrf.mxu0
        %v5080 = vadd.f32 %v4807, %v5079
        %5081 = vmatprep.mubr.bf16.mxu0 %v927
        %5082 = vmatmul.mubr.bf16.gmra.mxu0 %v926
        %v5083 = vpop.f32.mrf.mxu0
        %v5084 = vadd.f32 %v4811, %v5083
        %v5085 = vpop.f32.mrf.mxu0
        %v5086 = vadd.f32 %v4813, %v5085
        %v5087 = vpop.f32.mrf.mxu0
        %v5088 = vadd.f32 %v4815, %v5087
        %v5089 = vpop.f32.mrf.mxu0
        %v5090 = vadd.f32 %v4817, %v5089
        %5091 = vmatprep.mubr.bf16.mxu0 %v936
        %5092 = vmatmul.mubr.bf16.gmra.mxu0 %v935
        %v5093 = vpop.f32.mrf.mxu0
        %v5094 = vadd.f32 %v4821, %v5093
        %v5095 = vpop.f32.mrf.mxu0
        %v5096 = vadd.f32 %v4823, %v5095
        %v5097 = vpop.f32.mrf.mxu0
        %v5098 = vadd.f32 %v4825, %v5097
        %v5099 = vpop.f32.mrf.mxu0
        %v5100 = vadd.f32 %v4827, %v5099
        %5101 = vmatprep.mubr.bf16.mxu0 %v945
        %5102 = vmatmul.mubr.bf16.gmra.mxu0 %v944
        %v5103 = vpop.f32.mrf.mxu0
        %v5104 = vadd.f32 %v4831, %v5103
        %v5105 = vpop.f32.mrf.mxu0
        %v5106 = vadd.f32 %v4833, %v5105
        %v5107 = vpop.f32.mrf.mxu0
        %v5108 = vadd.f32 %v4835, %v5107
        %v5109 = vpop.f32.mrf.mxu0
        %v5110 = vadd.f32 %v4837, %v5109
        %5111 = vmatprep.mubr.bf16.mxu0 %v954
        %5112 = vmatmul.mubr.bf16.gmra.mxu0 %v953
        %v5113 = vpop.f32.mrf.mxu0
        %v5114 = vadd.f32 %v4841, %v5113
        %v5115 = vpop.f32.mrf.mxu0
        %v5116 = vadd.f32 %v4843, %v5115
        %v5117 = vpop.f32.mrf.mxu0
        %v5118 = vadd.f32 %v4845, %v5117
        %v5119 = vpop.f32.mrf.mxu0
        %v5120 = vadd.f32 %v4847, %v5119
        %5121 = vmatprep.mubr.bf16.mxu0 %v963
        %5122 = vmatmul.mubr.bf16.gmra.mxu0 %v962
        %v5123 = vpop.f32.mrf.mxu0
        %v5124 = vadd.f32 %v4851, %v5123
        %v5125 = vpop.f32.mrf.mxu0
        %v5126 = vadd.f32 %v4853, %v5125
        %v5127 = vpop.f32.mrf.mxu0
        %v5128 = vadd.f32 %v4855, %v5127
        %v5129 = vpop.f32.mrf.mxu0
        %v5130 = vadd.f32 %v4857, %v5129
        %5131 = vmatprep.mubr.bf16.mxu0 %v972
        %5132 = vmatmul.mubr.bf16.gmra.mxu0 %v971
        %v5133 = vpop.f32.mrf.mxu0
        %v5134 = vadd.f32 %v4861, %v5133
        %v5135 = vpop.f32.mrf.mxu0
        %v5136 = vadd.f32 %v4863, %v5135
        %v5137 = vpop.f32.mrf.mxu0
        %v5138 = vadd.f32 %v4865, %v5137
        %v5139 = vpop.f32.mrf.mxu0
        %v5140 = vadd.f32 %v4867, %v5139
        %5141 = vmatprep.mubr.bf16.mxu0 %v981
        %5142 = vmatmul.mubr.bf16.gmra.mxu0 %v980
        %v5143 = vpop.f32.mrf.mxu0
        %v5144 = vadd.f32 %v4871, %v5143
        %v5145 = vpop.f32.mrf.mxu0
        %v5146 = vadd.f32 %v4873, %v5145
        %v5147 = vpop.f32.mrf.mxu0
        %v5148 = vadd.f32 %v4875, %v5147
        %v5149 = vpop.f32.mrf.mxu0
        %v5150 = vadd.f32 %v4877, %v5149
        %5151 = vmatprep.mubr.bf16.mxu0 %v990
        %5152 = vmatmul.mubr.bf16.gmra.mxu0 %v989
        %v5153 = vpop.f32.mrf.mxu0
        %v5154 = vadd.f32 %v4881, %v5153
        %v5155 = vpop.f32.mrf.mxu0
        %v5156 = vadd.f32 %v4883, %v5155
        %v5157 = vpop.f32.mrf.mxu0
        %v5158 = vadd.f32 %v4885, %v5157
        %v5159 = vpop.f32.mrf.mxu0
        %v5160 = vadd.f32 %v4887, %v5159
        %5161 = vmatprep.mubr.bf16.mxu0 %v999
        %5162 = vmatmul.mubr.bf16.gmra.mxu0 %v998
        %v5163 = vpop.f32.mrf.mxu0
        %v5164 = vadd.f32 %v4891, %v5163
        %v5165 = vpop.f32.mrf.mxu0
        %v5166 = vadd.f32 %v4893, %v5165
        %v5167 = vpop.f32.mrf.mxu0
        %v5168 = vadd.f32 %v4895, %v5167
        %v5169 = vpop.f32.mrf.mxu0
        %v5170 = vadd.f32 %v4897, %v5169
        %5171 = vmatprep.mubr.bf16.mxu0 %v1008
        %5172 = vmatmul.mubr.bf16.gmra.mxu0 %v1007
        %v5173 = vpop.f32.mrf.mxu0
        %v5174 = vadd.f32 %v4901, %v5173
        %v5175 = vpop.f32.mrf.mxu0
        %v5176 = vadd.f32 %v4903, %v5175
        %v5177 = vpop.f32.mrf.mxu0
        %v5178 = vadd.f32 %v4905, %v5177
        %v5179 = vpop.f32.mrf.mxu0
        %v5180 = vadd.f32 %v4907, %v5179
        %5181 = vmatprep.mubr.bf16.mxu0 %v1017
        %5182 = vmatmul.mubr.bf16.gmra.mxu0 %v1016
        %v5183 = vpop.f32.mrf.mxu0
        %v5184 = vadd.f32 %v4911, %v5183
        %v5185 = vpop.f32.mrf.mxu0
        %v5186 = vadd.f32 %v4913, %v5185
        %v5187 = vpop.f32.mrf.mxu0
        %v5188 = vadd.f32 %v4915, %v5187
        %v5189 = vpop.f32.mrf.mxu0
        %v5190 = vadd.f32 %v4917, %v5189
        %5191 = vmatprep.mubr.bf16.mxu0 %v1026
        %5192 = vmatmul.mubr.bf16.gmra.mxu0 %v1025
        %v5193 = vpop.f32.mrf.mxu0
        %v5194 = vadd.f32 %v4921, %v5193
        %v5195 = vpop.f32.mrf.mxu0
        %v5196 = vadd.f32 %v4923, %v5195
        %v5197 = vpop.f32.mrf.mxu0
        %v5198 = vadd.f32 %v4925, %v5197
        %v5199 = vpop.f32.mrf.mxu0
        %v5200 = vadd.f32 %v4927, %v5199
        %5201 = vmatprep.mubr.bf16.mxu0 %v1035
        %5202 = vmatmul.mubr.bf16.gmra.mxu0 %v1034
        %v5203 = vpop.f32.mrf.mxu0
        %v5204 = vadd.f32 %v4931, %v5203
        %v5205 = vpop.f32.mrf.mxu0
        %v5206 = vadd.f32 %v4933, %v5205
        %v5207 = vpop.f32.mrf.mxu0
        %v5208 = vadd.f32 %v4935, %v5207
        %v5209 = vpop.f32.mrf.mxu0
        %v5210 = vadd.f32 %v4937, %v5209
        %5211 = vmatprep.mubr.bf16.mxu0 %v1044
        %5212 = vmatmul.mubr.bf16.gmra.mxu0 %v1043
        %v5213 = vpop.f32.mrf.mxu0
        %v5214 = vadd.f32 %v4941, %v5213
        %v5215 = vpop.f32.mrf.mxu0
        %v5216 = vadd.f32 %v4943, %v5215
        %v5217 = vpop.f32.mrf.mxu0
        %v5218 = vadd.f32 %v4945, %v5217
        %v5219 = vpop.f32.mrf.mxu0
        %v5220 = vadd.f32 %v4947, %v5219
        %5221 = vmatprep.mubr.bf16.mxu0 %v1053
        %5222 = vmatmul.mubr.bf16.gmra.mxu0 %v1052
        %v5223 = vpop.f32.mrf.mxu0
        %v5224 = vadd.f32 %v4951, %v5223
        %v5225 = vpop.f32.mrf.mxu0
        %v5226 = vadd.f32 %v4953, %v5225
        %v5227 = vpop.f32.mrf.mxu0
        %v5228 = vadd.f32 %v4955, %v5227
        %v5229 = vpop.f32.mrf.mxu0
        %v5230 = vadd.f32 %v4957, %v5229
        %5231 = vmatprep.mubr.bf16.mxu0 %v1062
        %5232 = vmatmul.mubr.bf16.gmra.mxu0 %v1061
        %v5233 = vpop.f32.mrf.mxu0
        %v5234 = vadd.f32 %v4961, %v5233
        %v5235 = vpop.f32.mrf.mxu0
        %v5236 = vadd.f32 %v4963, %v5235
        %v5237 = vpop.f32.mrf.mxu0
        %v5238 = vadd.f32 %v4965, %v5237
        %v5239 = vpop.f32.mrf.mxu0
        %v5240 = vadd.f32 %v4967, %v5239
        %5241 = vmatprep.mubr.bf16.mxu0 %v1071
        %5242 = vmatmul.mubr.bf16.gmra.mxu0 %v1070
        %v5243 = vpop.f32.mrf.mxu0
        %v5244 = vadd.f32 %v4971, %v5243
        %v5245 = vpop.f32.mrf.mxu0
        %v5246 = vadd.f32 %v4973, %v5245
        %v5247 = vpop.f32.mrf.mxu0
        %v5248 = vadd.f32 %v4975, %v5247
        %v5249 = vpop.f32.mrf.mxu0
        %v5250 = vadd.f32 %v4977, %v5249
        %5251 = vmatprep.mubr.bf16.mxu0 %v1080
        %5252 = vmatmul.mubr.bf16.gmra.mxu0 %v1079
        %v5253 = vpop.f32.mrf.mxu0
        %v5254 = vadd.f32 %v4981, %v5253
        %v5255 = vpop.f32.mrf.mxu0
        %v5256 = vadd.f32 %v4983, %v5255
        %v5257 = vpop.f32.mrf.mxu0
        %v5258 = vadd.f32 %v4985, %v5257
        %v5259 = vpop.f32.mrf.mxu0
        %v5260 = vadd.f32 %v4987, %v5259
        %5261 = vmatprep.mubr.bf16.mxu0 %v1089
        %5262 = vmatmul.mubr.bf16.gmra.mxu0 %v1088
        %v5263 = vpop.f32.mrf.mxu0
        %v5264 = vadd.f32 %v4991, %v5263
        %v5265 = vpop.f32.mrf.mxu0
        %v5266 = vadd.f32 %v4993, %v5265
        %v5267 = vpop.f32.mrf.mxu0
        %v5268 = vadd.f32 %v4995, %v5267
        %v5269 = vpop.f32.mrf.mxu0
        %v5270 = vadd.f32 %v4997, %v5269
        %5271 = vmatprep.mubr.bf16.mxu0 %v1098
        %5272 = vmatmul.mubr.bf16.gmra.mxu0 %v1097
        %v5273 = vpop.f32.mrf.mxu0
        %v5274 = vadd.f32 %v5001, %v5273
        %v5275 = vpop.f32.mrf.mxu0
        %v5276 = vadd.f32 %v5003, %v5275
        %v5277 = vpop.f32.mrf.mxu0
        %v5278 = vadd.f32 %v5005, %v5277
        %v5279 = vpop.f32.mrf.mxu0
        %v5280 = vadd.f32 %v5007, %v5279
        %5281 = vmatprep.mubr.bf16.mxu0 %v1107
        %5282 = vmatmul.mubr.bf16.gmra.mxu0 %v1106
        %v5283 = vpop.f32.mrf.mxu0
        %v5284 = vadd.f32 %v5011, %v5283
        %v5285 = vpop.f32.mrf.mxu0
        %v5286 = vadd.f32 %v5013, %v5285
        %v5287 = vpop.f32.mrf.mxu0
        %v5288 = vadd.f32 %v5015, %v5287
        %v5289 = vpop.f32.mrf.mxu0
        %v5290 = vadd.f32 %v5017, %v5289
        %5291 = vmatprep.mubr.bf16.mxu0 %v1116
        %5292 = vmatmul.mubr.bf16.gmra.mxu0 %v1115
        %v5293 = vpop.f32.mrf.mxu0
        %v5294 = vadd.f32 %v5021, %v5293
        %v5295 = vpop.f32.mrf.mxu0
        %v5296 = vadd.f32 %v5023, %v5295
        %v5297 = vpop.f32.mrf.mxu0
        %v5298 = vadd.f32 %v5025, %v5297
        %v5299 = vpop.f32.mrf.mxu0
        %v5300 = vadd.f32 %v5027, %v5299
        %5301 = vmatprep.mubr.bf16.mxu0 %v1125
        %5302 = vmatmul.mubr.bf16.gmra.mxu0 %v1124
        %v5303 = vpop.f32.mrf.mxu0
        %v5304 = vadd.f32 %v5031, %v5303
        %v5305 = vpop.f32.mrf.mxu0
        %v5306 = vadd.f32 %v5033, %v5305
        %v5307 = vpop.f32.mrf.mxu0
        %v5308 = vadd.f32 %v5035, %v5307
        %v5309 = vpop.f32.mrf.mxu0
        %v5310 = vadd.f32 %v5037, %v5309
        %5311 = vdwg.mxu0
        %5312 = vmatprep.subr.bf16.mxu0 0
        %5313 = vmatpush1.bf16.msra.mxu0 0
        %5314 = vmatprep.subr.bf16.mxu0 0
        %5315 = vmatpush1.bf16.msra.mxu0 0
        %5316 = vmatprep.subr.bf16.mxu0 0
        %5317 = vmatpush1.bf16.msra.mxu0 0
        %5318 = vmatprep.subr.bf16.mxu0 0
        %5319 = vmatpush1.bf16.msra.mxu0 0
        %5320 = vmatprep.subr.bf16.mxu0 %v2853
        %5321 = vmatpush1.bf16.msra.mxu0 %v2850
        %5322 = vmatprep.subr.bf16.mxu0 %v2496
        %5323 = vmatpush1.bf16.msra.mxu0 %v2495
        %5324 = vmatprep.subr.bf16.mxu0 %v2492
        %5325 = vmatpush1.bf16.msra.mxu0 %v2491
        %5326 = vmatprep.subr.bf16.mxu0 %v2488
        %5327 = vmatpush1.bf16.msra.mxu0 %v2487
        %5328 = vmatprep.subr.bf16.mxu0 0
        %5329 = vmatpush2.bf16.msra.mxu0 0
        %5330 = vmatprep.subr.bf16.mxu0 0
        %5331 = vmatpush2.bf16.msra.mxu0 0
        %5332 = vmatprep.subr.bf16.mxu0 0
        %5333 = vmatpush2.bf16.msra.mxu0 0
        %5334 = vmatprep.subr.bf16.mxu0 0
        %5335 = vmatpush2.bf16.msra.mxu0 0
        %5336 = vmatprep.subr.bf16.mxu0 0
        %5337 = vmatpush2.bf16.msra.mxu0 0
        %5338 = vmatprep.subr.bf16.mxu0 0
        %5339 = vmatpush2.bf16.msra.mxu0 0
        %5340 = vmatprep.subr.bf16.mxu0 0
        %5341 = vmatpush2.bf16.msra.mxu0 0
        %5342 = vmatprep.subr.bf16.mxu0 0
        %5343 = vmatpush2.bf16.msra.mxu0 0
        %5344 = vmatprep.mubr.bf16.mxu0 0
        %5345 = vmatmul.mubr.bf16.gmra.mxu0 %v2771
        %v5346 = vpop.f32.mrf.mxu0
        %v5347 = vadd.f32 %v5074, %v5346
        %v5348 = vpop.f32.mrf.mxu0
        %v5349 = vadd.f32 %v5076, %v5348
        %v5350 = vpop.f32.mrf.mxu0
        %v5351 = vadd.f32 %v5078, %v5350
        %v5352 = vpop.f32.mrf.mxu0
        %v5353 = vadd.f32 %v5080, %v5352
        %5354 = vmatprep.mubr.bf16.mxu0 0
        %5355 = vmatmul.mubr.bf16.gmra.mxu0 %v2774
        %v5356 = vpop.f32.mrf.mxu0
        %v5357 = vadd.f32 %v5084, %v5356
        %v5358 = vpop.f32.mrf.mxu0
        %v5359 = vadd.f32 %v5086, %v5358
        %v5360 = vpop.f32.mrf.mxu0
        %v5361 = vadd.f32 %v5088, %v5360
        %v5362 = vpop.f32.mrf.mxu0
        %v5363 = vadd.f32 %v5090, %v5362
        %5364 = vmatprep.mubr.bf16.mxu0 0
        %5365 = vmatmul.mubr.bf16.gmra.mxu0 %v2777
        %v5366 = vpop.f32.mrf.mxu0
        %v5367 = vadd.f32 %v5094, %v5366
        %v5368 = vpop.f32.mrf.mxu0
        %v5369 = vadd.f32 %v5096, %v5368
        %v5370 = vpop.f32.mrf.mxu0
        %v5371 = vadd.f32 %v5098, %v5370
        %v5372 = vpop.f32.mrf.mxu0
        %v5373 = vadd.f32 %v5100, %v5372
        %5374 = vmatprep.mubr.bf16.mxu0 0
        %5375 = vmatmul.mubr.bf16.gmra.mxu0 %v2780
        %v5376 = vpop.f32.mrf.mxu0
        %v5377 = vadd.f32 %v5104, %v5376
        %v5378 = vpop.f32.mrf.mxu0
        %v5379 = vadd.f32 %v5106, %v5378
        %v5380 = vpop.f32.mrf.mxu0
        %v5381 = vadd.f32 %v5108, %v5380
        %v5382 = vpop.f32.mrf.mxu0
        %v5383 = vadd.f32 %v5110, %v5382
        %5384 = vmatprep.mubr.bf16.mxu0 0
        %5385 = vmatmul.mubr.bf16.gmra.mxu0 %v2783
        %v5386 = vpop.f32.mrf.mxu0
        %v5387 = vadd.f32 %v5114, %v5386
        %v5388 = vpop.f32.mrf.mxu0
        %v5389 = vadd.f32 %v5116, %v5388
        %v5390 = vpop.f32.mrf.mxu0
        %v5391 = vadd.f32 %v5118, %v5390
        %v5392 = vpop.f32.mrf.mxu0
        %v5393 = vadd.f32 %v5120, %v5392
        %5394 = vmatprep.mubr.bf16.mxu0 0
        %5395 = vmatmul.mubr.bf16.gmra.mxu0 %v2786
        %v5396 = vpop.f32.mrf.mxu0
        %v5397 = vadd.f32 %v5124, %v5396
        %v5398 = vpop.f32.mrf.mxu0
        %v5399 = vadd.f32 %v5126, %v5398
        %v5400 = vpop.f32.mrf.mxu0
        %v5401 = vadd.f32 %v5128, %v5400
        %v5402 = vpop.f32.mrf.mxu0
        %v5403 = vadd.f32 %v5130, %v5402
        %5404 = vmatprep.mubr.bf16.mxu0 0
        %5405 = vmatmul.mubr.bf16.gmra.mxu0 %v2789
        %v5406 = vpop.f32.mrf.mxu0
        %v5407 = vadd.f32 %v5134, %v5406
        %v5408 = vpop.f32.mrf.mxu0
        %v5409 = vadd.f32 %v5136, %v5408
        %v5410 = vpop.f32.mrf.mxu0
        %v5411 = vadd.f32 %v5138, %v5410
        %v5412 = vpop.f32.mrf.mxu0
        %v5413 = vadd.f32 %v5140, %v5412
        %5414 = vmatprep.mubr.bf16.mxu0 0
        %5415 = vmatmul.mubr.bf16.gmra.mxu0 %v2792
        %v5416 = vpop.f32.mrf.mxu0
        %v5417 = vadd.f32 %v5144, %v5416
        %v5418 = vpop.f32.mrf.mxu0
        %v5419 = vadd.f32 %v5146, %v5418
        %v5420 = vpop.f32.mrf.mxu0
        %v5421 = vadd.f32 %v5148, %v5420
        %v5422 = vpop.f32.mrf.mxu0
        %v5423 = vadd.f32 %v5150, %v5422
        %5424 = vmatprep.mubr.bf16.mxu0 0
        %5425 = vmatmul.mubr.bf16.gmra.mxu0 %v2795
        %v5426 = vpop.f32.mrf.mxu0
        %v5427 = vadd.f32 %v5154, %v5426
        %v5428 = vpop.f32.mrf.mxu0
        %v5429 = vadd.f32 %v5156, %v5428
        %v5430 = vpop.f32.mrf.mxu0
        %v5431 = vadd.f32 %v5158, %v5430
        %v5432 = vpop.f32.mrf.mxu0
        %v5433 = vadd.f32 %v5160, %v5432
        %5434 = vmatprep.mubr.bf16.mxu0 0
        %5435 = vmatmul.mubr.bf16.gmra.mxu0 %v2798
        %v5436 = vpop.f32.mrf.mxu0
        %v5437 = vadd.f32 %v5164, %v5436
        %v5438 = vpop.f32.mrf.mxu0
        %v5439 = vadd.f32 %v5166, %v5438
        %v5440 = vpop.f32.mrf.mxu0
        %v5441 = vadd.f32 %v5168, %v5440
        %v5442 = vpop.f32.mrf.mxu0
        %v5443 = vadd.f32 %v5170, %v5442
        %5444 = vmatprep.mubr.bf16.mxu0 0
        %5445 = vmatmul.mubr.bf16.gmra.mxu0 %v2801
        %v5446 = vpop.f32.mrf.mxu0
        %v5447 = vadd.f32 %v5174, %v5446
        %v5448 = vpop.f32.mrf.mxu0
        %v5449 = vadd.f32 %v5176, %v5448
        %v5450 = vpop.f32.mrf.mxu0
        %v5451 = vadd.f32 %v5178, %v5450
        %v5452 = vpop.f32.mrf.mxu0
        %v5453 = vadd.f32 %v5180, %v5452
        %5454 = vmatprep.mubr.bf16.mxu0 0
        %5455 = vmatmul.mubr.bf16.gmra.mxu0 %v2804
        %v5456 = vpop.f32.mrf.mxu0
        %v5457 = vadd.f32 %v5184, %v5456
        %v5458 = vpop.f32.mrf.mxu0
        %v5459 = vadd.f32 %v5186, %v5458
        %v5460 = vpop.f32.mrf.mxu0
        %v5461 = vadd.f32 %v5188, %v5460
        %v5462 = vpop.f32.mrf.mxu0
        %v5463 = vadd.f32 %v5190, %v5462
        %5464 = vmatprep.mubr.bf16.mxu0 0
        %5465 = vmatmul.mubr.bf16.gmra.mxu0 %v2807
        %v5466 = vpop.f32.mrf.mxu0
        %v5467 = vadd.f32 %v5194, %v5466
        %v5468 = vpop.f32.mrf.mxu0
        %v5469 = vadd.f32 %v5196, %v5468
        %v5470 = vpop.f32.mrf.mxu0
        %v5471 = vadd.f32 %v5198, %v5470
        %v5472 = vpop.f32.mrf.mxu0
        %v5473 = vadd.f32 %v5200, %v5472
        %5474 = vmatprep.mubr.bf16.mxu0 0
        %5475 = vmatmul.mubr.bf16.gmra.mxu0 %v2810
        %v5476 = vpop.f32.mrf.mxu0
        %v5477 = vadd.f32 %v5204, %v5476
        %v5478 = vpop.f32.mrf.mxu0
        %v5479 = vadd.f32 %v5206, %v5478
        %v5480 = vpop.f32.mrf.mxu0
        %v5481 = vadd.f32 %v5208, %v5480
        %v5482 = vpop.f32.mrf.mxu0
        %v5483 = vadd.f32 %v5210, %v5482
        %5484 = vmatprep.mubr.bf16.mxu0 0
        %5485 = vmatmul.mubr.bf16.gmra.mxu0 %v2813
        %v5486 = vpop.f32.mrf.mxu0
        %v5487 = vadd.f32 %v5214, %v5486
        %v5488 = vpop.f32.mrf.mxu0
        %v5489 = vadd.f32 %v5216, %v5488
        %v5490 = vpop.f32.mrf.mxu0
        %v5491 = vadd.f32 %v5218, %v5490
        %v5492 = vpop.f32.mrf.mxu0
        %v5493 = vadd.f32 %v5220, %v5492
        %5494 = vmatprep.mubr.bf16.mxu0 0
        %5495 = vmatmul.mubr.bf16.gmra.mxu0 %v2816
        %v5496 = vpop.f32.mrf.mxu0
        %v5497 = vadd.f32 %v5224, %v5496
        %v5498 = vpop.f32.mrf.mxu0
        %v5499 = vadd.f32 %v5226, %v5498
        %v5500 = vpop.f32.mrf.mxu0
        %v5501 = vadd.f32 %v5228, %v5500
        %v5502 = vpop.f32.mrf.mxu0
        %v5503 = vadd.f32 %v5230, %v5502
        %5504 = vmatprep.mubr.bf16.mxu0 0
        %5505 = vmatmul.mubr.bf16.gmra.mxu0 %v2819
        %v5506 = vpop.f32.mrf.mxu0
        %v5507 = vadd.f32 %v5234, %v5506
        %v5508 = vpop.f32.mrf.mxu0
        %v5509 = vadd.f32 %v5236, %v5508
        %v5510 = vpop.f32.mrf.mxu0
        %v5511 = vadd.f32 %v5238, %v5510
        %v5512 = vpop.f32.mrf.mxu0
        %v5513 = vadd.f32 %v5240, %v5512
        %5514 = vmatprep.mubr.bf16.mxu0 0
        %5515 = vmatmul.mubr.bf16.gmra.mxu0 %v2822
        %v5516 = vpop.f32.mrf.mxu0
        %v5517 = vadd.f32 %v5244, %v5516
        %v5518 = vpop.f32.mrf.mxu0
        %v5519 = vadd.f32 %v5246, %v5518
        %v5520 = vpop.f32.mrf.mxu0
        %v5521 = vadd.f32 %v5248, %v5520
        %v5522 = vpop.f32.mrf.mxu0
        %v5523 = vadd.f32 %v5250, %v5522
        %5524 = vmatprep.mubr.bf16.mxu0 0
        %5525 = vmatmul.mubr.bf16.gmra.mxu0 %v2825
        %v5526 = vpop.f32.mrf.mxu0
        %v5527 = vadd.f32 %v5254, %v5526
        %v5528 = vpop.f32.mrf.mxu0
        %v5529 = vadd.f32 %v5256, %v5528
        %v5530 = vpop.f32.mrf.mxu0
        %v5531 = vadd.f32 %v5258, %v5530
        %v5532 = vpop.f32.mrf.mxu0
        %v5533 = vadd.f32 %v5260, %v5532
        %5534 = vmatprep.mubr.bf16.mxu0 0
        %5535 = vmatmul.mubr.bf16.gmra.mxu0 %v2828
        %v5536 = vpop.f32.mrf.mxu0
        %v5537 = vadd.f32 %v5264, %v5536
        %v5538 = vpop.f32.mrf.mxu0
        %v5539 = vadd.f32 %v5266, %v5538
        %v5540 = vpop.f32.mrf.mxu0
        %v5541 = vadd.f32 %v5268, %v5540
        %v5542 = vpop.f32.mrf.mxu0
        %v5543 = vadd.f32 %v5270, %v5542
        %5544 = vmatprep.mubr.bf16.mxu0 0
        %5545 = vmatmul.mubr.bf16.gmra.mxu0 %v2831
        %v5546 = vpop.f32.mrf.mxu0
        %v5547 = vadd.f32 %v5274, %v5546
        %v5548 = vpop.f32.mrf.mxu0
        %v5549 = vadd.f32 %v5276, %v5548
        %v5550 = vpop.f32.mrf.mxu0
        %v5551 = vadd.f32 %v5278, %v5550
        %v5552 = vpop.f32.mrf.mxu0
        %v5553 = vadd.f32 %v5280, %v5552
        %5554 = vmatprep.mubr.bf16.mxu0 0
        %5555 = vmatmul.mubr.bf16.gmra.mxu0 %v2834
        %v5556 = vpop.f32.mrf.mxu0
        %v5557 = vadd.f32 %v5284, %v5556
        %v5558 = vpop.f32.mrf.mxu0
        %v5559 = vadd.f32 %v5286, %v5558
        %v5560 = vpop.f32.mrf.mxu0
        %v5561 = vadd.f32 %v5288, %v5560
        %v5562 = vpop.f32.mrf.mxu0
        %v5563 = vadd.f32 %v5290, %v5562
        %5564 = vmatprep.mubr.bf16.mxu0 0
        %5565 = vmatmul.mubr.bf16.gmra.mxu0 %v2837
        %v5566 = vpop.f32.mrf.mxu0
        %v5567 = vadd.f32 %v5294, %v5566
        %v5568 = vpop.f32.mrf.mxu0
        %v5569 = vadd.f32 %v5296, %v5568
        %v5570 = vpop.f32.mrf.mxu0
        %v5571 = vadd.f32 %v5298, %v5570
        %v5572 = vpop.f32.mrf.mxu0
        %v5573 = vadd.f32 %v5300, %v5572
        %5574 = vmatprep.mubr.bf16.mxu0 0
        %5575 = vmatmul.mubr.bf16.gmra.mxu0 %v2840
        %v5576 = vpop.f32.mrf.mxu0
        %v5577 = vadd.f32 %v5304, %v5576
        %v5578 = vpop.f32.mrf.mxu0
        %v5579 = vadd.f32 %v5306, %v5578
        %v5580 = vpop.f32.mrf.mxu0
        %v5581 = vadd.f32 %v5308, %v5580
        %v5582 = vpop.f32.mrf.mxu0
        %v5583 = vadd.f32 %v5310, %v5582
        %5584 = vdwg.mxu0
        %v5585 = vmax.f32 %v3982, 0.0
        %v5586 = vmax.f32 %v3984, 0.0
        %v5587 = vmax.f32 %v5347, 0.0
        %v5588 = vmax.f32 %v5349, 0.0
        %v5589 = vmax.f32 %v3986, 0.0
        %v5590 = vmax.f32 %v3988, 0.0
        %v5591 = vmax.f32 %v5351, 0.0
        %v5592 = vmax.f32 %v5353, 0.0
        %v5593 = vmax.f32 %v3992, 0.0
        %v5594 = vmax.f32 %v3994, 0.0
        %v5595 = vmax.f32 %v5357, 0.0
        %v5596 = vmax.f32 %v5359, 0.0
        %v5597 = vmax.f32 %v3996, 0.0
        %v5598 = vmax.f32 %v3998, 0.0
        %v5599 = vmax.f32 %v5361, 0.0
        %v5600 = vmax.f32 %v5363, 0.0
        %v5601 = vmax.f32 %v4002, 0.0
        %v5602 = vmax.f32 %v4004, 0.0
        %v5603 = vmax.f32 %v5367, 0.0
        %v5604 = vmax.f32 %v5369, 0.0
        %v5605 = vmax.f32 %v4006, 0.0
        %v5606 = vmax.f32 %v4008, 0.0
        %v5607 = vmax.f32 %v5371, 0.0
        %v5608 = vmax.f32 %v5373, 0.0
        %v5609 = vmax.f32 %v4012, 0.0
        %v5610 = vmax.f32 %v4014, 0.0
        %v5611 = vmax.f32 %v5377, 0.0
        %v5612 = vmax.f32 %v5379, 0.0
        %v5613 = vmax.f32 %v4016, 0.0
        %v5614 = vmax.f32 %v4018, 0.0
        %v5615 = vmax.f32 %v5381, 0.0
        %v5616 = vmax.f32 %v5383, 0.0
        %v5617 = vmax.f32 %v4022, 0.0
        %v5618 = vmax.f32 %v4024, 0.0
        %v5619 = vmax.f32 %v5387, 0.0
        %v5620 = vmax.f32 %v5389, 0.0
        %v5621 = vmax.f32 %v4026, 0.0
        %v5622 = vmax.f32 %v4028, 0.0
        %v5623 = vmax.f32 %v5391, 0.0
        %v5624 = vmax.f32 %v5393, 0.0
        %v5625 = vmax.f32 %v4032, 0.0
        %v5626 = vmax.f32 %v4034, 0.0
        %v5627 = vmax.f32 %v5397, 0.0
        %v5628 = vmax.f32 %v5399, 0.0
        %v5629 = vmax.f32 %v4036, 0.0
        %v5630 = vmax.f32 %v4038, 0.0
        %v5631 = vmax.f32 %v5401, 0.0
        %v5632 = vmax.f32 %v5403, 0.0
        %v5633 = vmax.f32 %v4042, 0.0
        %v5634 = vmax.f32 %v4044, 0.0
        %v5635 = vmax.f32 %v5407, 0.0
        %v5636 = vmax.f32 %v5409, 0.0
        %v5637 = vmax.f32 %v4046, 0.0
        %v5638 = vmax.f32 %v4048, 0.0
        %v5639 = vmax.f32 %v5411, 0.0
        %v5640 = vmax.f32 %v5413, 0.0
        %v5641 = vmax.f32 %v4052, 0.0
        %v5642 = vmax.f32 %v4054, 0.0
        %v5643 = vmax.f32 %v5417, 0.0
        %v5644 = vmax.f32 %v5419, 0.0
        %v5645 = vmax.f32 %v4056, 0.0
        %v5646 = vmax.f32 %v4058, 0.0
        %v5647 = vmax.f32 %v5421, 0.0
        %v5648 = vmax.f32 %v5423, 0.0
        %v5649 = vmax.f32 %v4062, 0.0
        %v5650 = vmax.f32 %v4064, 0.0
        %v5651 = vmax.f32 %v5427, 0.0
        %v5652 = vmax.f32 %v5429, 0.0
        %v5653 = vmax.f32 %v4066, 0.0
        %v5654 = vmax.f32 %v4068, 0.0
        %v5655 = vmax.f32 %v5431, 0.0
        %v5656 = vmax.f32 %v5433, 0.0
        %v5657 = vmax.f32 %v4072, 0.0
        %v5658 = vmax.f32 %v4074, 0.0
        %v5659 = vmax.f32 %v5437, 0.0
        %v5660 = vmax.f32 %v5439, 0.0
        %v5661 = vmax.f32 %v4076, 0.0
        %v5662 = vmax.f32 %v4078, 0.0
        %v5663 = vmax.f32 %v5441, 0.0
        %v5664 = vmax.f32 %v5443, 0.0
        %v5665 = vmax.f32 %v4082, 0.0
        %v5666 = vmax.f32 %v4084, 0.0
        %v5667 = vmax.f32 %v5447, 0.0
        %v5668 = vmax.f32 %v5449, 0.0
        %v5669 = vmax.f32 %v4086, 0.0
        %v5670 = vmax.f32 %v4088, 0.0
        %v5671 = vmax.f32 %v5451, 0.0
        %v5672 = vmax.f32 %v5453, 0.0
        %v5673 = vmax.f32 %v4092, 0.0
        %v5674 = vmax.f32 %v4094, 0.0
        %v5675 = vmax.f32 %v5457, 0.0
        %v5676 = vmax.f32 %v5459, 0.0
        %v5677 = vmax.f32 %v4096, 0.0
        %v5678 = vmax.f32 %v4098, 0.0
        %v5679 = vmax.f32 %v5461, 0.0
        %v5680 = vmax.f32 %v5463, 0.0
        %v5681 = vmax.f32 %v4102, 0.0
        %v5682 = vmax.f32 %v4104, 0.0
        %v5683 = vmax.f32 %v5467, 0.0
        %v5684 = vmax.f32 %v5469, 0.0
        %v5685 = vmax.f32 %v4106, 0.0
        %v5686 = vmax.f32 %v4108, 0.0
        %v5687 = vmax.f32 %v5471, 0.0
        %v5688 = vmax.f32 %v5473, 0.0
        %v5689 = vmax.f32 %v4112, 0.0
        %v5690 = vmax.f32 %v4114, 0.0
        %v5691 = vmax.f32 %v5477, 0.0
        %v5692 = vmax.f32 %v5479, 0.0
        %v5693 = vmax.f32 %v4116, 0.0
        %v5694 = vmax.f32 %v4118, 0.0
        %v5695 = vmax.f32 %v5481, 0.0
        %v5696 = vmax.f32 %v5483, 0.0
        %v5697 = vmax.f32 %v4122, 0.0
        %v5698 = vmax.f32 %v4124, 0.0
        %v5699 = vmax.f32 %v5487, 0.0
        %v5700 = vmax.f32 %v5489, 0.0
        %v5701 = vmax.f32 %v4126, 0.0
        %v5702 = vmax.f32 %v4128, 0.0
        %v5703 = vmax.f32 %v5491, 0.0
        %v5704 = vmax.f32 %v5493, 0.0
        %v5705 = vmax.f32 %v4132, 0.0
        %v5706 = vmax.f32 %v4134, 0.0
        %v5707 = vmax.f32 %v5497, 0.0
        %v5708 = vmax.f32 %v5499, 0.0
        %v5709 = vmax.f32 %v4136, 0.0
        %v5710 = vmax.f32 %v4138, 0.0
        %v5711 = vmax.f32 %v5501, 0.0
        %v5712 = vmax.f32 %v5503, 0.0
        %v5713 = vmax.f32 %v4142, 0.0
        %v5714 = vmax.f32 %v4144, 0.0
        %v5715 = vmax.f32 %v5507, 0.0
        %v5716 = vmax.f32 %v5509, 0.0
        %v5717 = vmax.f32 %v4146, 0.0
        %v5718 = vmax.f32 %v4148, 0.0
        %v5719 = vmax.f32 %v5511, 0.0
        %v5720 = vmax.f32 %v5513, 0.0
        %v5721 = vmax.f32 %v4152, 0.0
        %v5722 = vmax.f32 %v4154, 0.0
        %v5723 = vmax.f32 %v5517, 0.0
        %v5724 = vmax.f32 %v5519, 0.0
        %v5725 = vmax.f32 %v4156, 0.0
        %v5726 = vmax.f32 %v4158, 0.0
        %v5727 = vmax.f32 %v5521, 0.0
        %v5728 = vmax.f32 %v5523, 0.0
        %v5729 = vmax.f32 %v4162, 0.0
        %v5730 = vmax.f32 %v4164, 0.0
        %v5731 = vmax.f32 %v5527, 0.0
        %v5732 = vmax.f32 %v5529, 0.0
        %v5733 = vmax.f32 %v4166, 0.0
        %v5734 = vmax.f32 %v4168, 0.0
        %v5735 = vmax.f32 %v5531, 0.0
        %v5736 = vmax.f32 %v5533, 0.0
        %v5737 = vmax.f32 %v4172, 0.0
        %v5738 = vmax.f32 %v4174, 0.0
        %v5739 = vmax.f32 %v5537, 0.0
        %v5740 = vmax.f32 %v5539, 0.0
        %v5741 = vmax.f32 %v4176, 0.0
        %v5742 = vmax.f32 %v4178, 0.0
        %v5743 = vmax.f32 %v5541, 0.0
        %v5744 = vmax.f32 %v5543, 0.0
        %v5745 = vmax.f32 %v4182, 0.0
        %v5746 = vmax.f32 %v4184, 0.0
        %v5747 = vmax.f32 %v5547, 0.0
        %v5748 = vmax.f32 %v5549, 0.0
        %v5749 = vmax.f32 %v4186, 0.0
        %v5750 = vmax.f32 %v4188, 0.0
        %v5751 = vmax.f32 %v5551, 0.0
        %v5752 = vmax.f32 %v5553, 0.0
        %v5753 = vmax.f32 %v4192, 0.0
        %v5754 = vmax.f32 %v4194, 0.0
        %v5755 = vmax.f32 %v5557, 0.0
        %v5756 = vmax.f32 %v5559, 0.0
        %v5757 = vmax.f32 %v4196, 0.0
        %v5758 = vmax.f32 %v4198, 0.0
        %v5759 = vmax.f32 %v5561, 0.0
        %v5760 = vmax.f32 %v5563, 0.0
        %v5761 = vmax.f32 %v4202, 0.0
        %v5762 = vmax.f32 %v4204, 0.0
        %v5763 = vmax.f32 %v5567, 0.0
        %v5764 = vmax.f32 %v5569, 0.0
        %v5765 = vmax.f32 %v4206, 0.0
        %v5766 = vmax.f32 %v4208, 0.0
        %v5767 = vmax.f32 %v5571, 0.0
        %v5768 = vmax.f32 %v5573, 0.0
        %v5769 = vmax.f32 %v4212, 0.0
        %v5770 = vmax.f32 %v4214, 0.0
        %v5771 = vmax.f32 %v5577, 0.0
        %v5772 = vmax.f32 %v5579, 0.0
        %v5773 = vmax.f32 %v4216, 0.0
        %v5774 = vmax.f32 %v4218, 0.0
        %v5775 = vmax.f32 %v5581, 0.0
        %v5776 = vmax.f32 %v5583, 0.0
        %v5777 = vpack.c.bf16 %v5589, %v5585
        %v5778 = vpack.c.bf16 %v5590, %v5586
        %v5779 = vpack.c.bf16 %v5591, %v5587
        %v5780 = vpack.c.bf16 %v5592, %v5588
        %v5781 = vpack.c.bf16 %v5597, %v5593
        %v5782 = vpack.c.bf16 %v5598, %v5594
        %v5783 = vpack.c.bf16 %v5599, %v5595
        %v5784 = vpack.c.bf16 %v5600, %v5596
        %v5785 = vpack.c.bf16 %v5605, %v5601
        %v5786 = vpack.c.bf16 %v5606, %v5602
        %v5787 = vpack.c.bf16 %v5607, %v5603
        %v5788 = vpack.c.bf16 %v5608, %v5604
        %v5789 = vpack.c.bf16 %v5613, %v5609
        %v5790 = vpack.c.bf16 %v5614, %v5610
        %v5791 = vpack.c.bf16 %v5615, %v5611
        %v5792 = vpack.c.bf16 %v5616, %v5612
        %v5793 = vpack.c.bf16 %v5621, %v5617
        %v5794 = vpack.c.bf16 %v5622, %v5618
        %v5795 = vpack.c.bf16 %v5623, %v5619
        %v5796 = vpack.c.bf16 %v5624, %v5620
        %v5797 = vpack.c.bf16 %v5629, %v5625
        %v5798 = vpack.c.bf16 %v5630, %v5626
        %v5799 = vpack.c.bf16 %v5631, %v5627
        %v5800 = vpack.c.bf16 %v5632, %v5628
        %v5801 = vpack.c.bf16 %v5637, %v5633
        %v5802 = vpack.c.bf16 %v5638, %v5634
        %v5803 = vpack.c.bf16 %v5639, %v5635
        %v5804 = vpack.c.bf16 %v5640, %v5636
        %v5805 = vpack.c.bf16 %v5645, %v5641
        %v5806 = vpack.c.bf16 %v5646, %v5642
        %v5807 = vpack.c.bf16 %v5647, %v5643
        %v5808 = vpack.c.bf16 %v5648, %v5644
        %v5809 = vpack.c.bf16 %v5653, %v5649
        %v5810 = vpack.c.bf16 %v5654, %v5650
        %v5811 = vpack.c.bf16 %v5655, %v5651
        %v5812 = vpack.c.bf16 %v5656, %v5652
        %v5813 = vpack.c.bf16 %v5661, %v5657
        %v5814 = vpack.c.bf16 %v5662, %v5658
        %v5815 = vpack.c.bf16 %v5663, %v5659
        %v5816 = vpack.c.bf16 %v5664, %v5660
        %v5817 = vpack.c.bf16 %v5669, %v5665
        %v5818 = vpack.c.bf16 %v5670, %v5666
        %v5819 = vpack.c.bf16 %v5671, %v5667
        %v5820 = vpack.c.bf16 %v5672, %v5668
        %v5821 = vpack.c.bf16 %v5677, %v5673
        %v5822 = vpack.c.bf16 %v5678, %v5674
        %v5823 = vpack.c.bf16 %v5679, %v5675
        %v5824 = vpack.c.bf16 %v5680, %v5676
        %v5825 = vpack.c.bf16 %v5685, %v5681
        %v5826 = vpack.c.bf16 %v5686, %v5682
        %v5827 = vpack.c.bf16 %v5687, %v5683
        %v5828 = vpack.c.bf16 %v5688, %v5684
        %v5829 = vpack.c.bf16 %v5693, %v5689
        %v5830 = vpack.c.bf16 %v5694, %v5690
        %v5831 = vpack.c.bf16 %v5695, %v5691
        %v5832 = vpack.c.bf16 %v5696, %v5692
        %v5833 = vpack.c.bf16 %v5701, %v5697
        %v5834 = vpack.c.bf16 %v5702, %v5698
        %v5835 = vpack.c.bf16 %v5703, %v5699
        %v5836 = vpack.c.bf16 %v5704, %v5700
        %v5837 = vpack.c.bf16 %v5709, %v5705
        %v5838 = vpack.c.bf16 %v5710, %v5706
        %v5839 = vpack.c.bf16 %v5711, %v5707
        %v5840 = vpack.c.bf16 %v5712, %v5708
        %v5841 = vpack.c.bf16 %v5717, %v5713
        %v5842 = vpack.c.bf16 %v5718, %v5714
        %v5843 = vpack.c.bf16 %v5719, %v5715
        %v5844 = vpack.c.bf16 %v5720, %v5716
        %v5845 = vpack.c.bf16 %v5725, %v5721
        %v5846 = vpack.c.bf16 %v5726, %v5722
        %v5847 = vpack.c.bf16 %v5727, %v5723
        %v5848 = vpack.c.bf16 %v5728, %v5724
        %v5849 = vpack.c.bf16 %v5733, %v5729
        %v5850 = vpack.c.bf16 %v5734, %v5730
        %v5851 = vpack.c.bf16 %v5735, %v5731
        %v5852 = vpack.c.bf16 %v5736, %v5732
        %v5853 = vpack.c.bf16 %v5741, %v5737
        %v5854 = vpack.c.bf16 %v5742, %v5738
        %v5855 = vpack.c.bf16 %v5743, %v5739
        %v5856 = vpack.c.bf16 %v5744, %v5740
        %v5857 = vpack.c.bf16 %v5749, %v5745
        %v5858 = vpack.c.bf16 %v5750, %v5746
        %v5859 = vpack.c.bf16 %v5751, %v5747
        %v5860 = vpack.c.bf16 %v5752, %v5748
        %v5861 = vpack.c.bf16 %v5757, %v5753
        %v5862 = vpack.c.bf16 %v5758, %v5754
        %v5863 = vpack.c.bf16 %v5759, %v5755
        %v5864 = vpack.c.bf16 %v5760, %v5756
        %v5865 = vpack.c.bf16 %v5765, %v5761
        %v5866 = vpack.c.bf16 %v5766, %v5762
        %v5867 = vpack.c.bf16 %v5767, %v5763
        %v5868 = vpack.c.bf16 %v5768, %v5764
        %v5869 = vpack.c.bf16 %v5773, %v5769
        %v5870 = vpack.c.bf16 %v5774, %v5770
        %v5871 = vpack.c.bf16 %v5775, %v5771
        %v5872 = vpack.c.bf16 %v5776, %v5772
        %v5873 = vld [vmem:[#allocation8] sm:$0xff]
        %v5874 = vld [vmem:[#allocation8 + $0x8] sm:$0xff]
        %v5875 = vld [vmem:[#allocation8 + $0x10] sm:$0xff]
        %v5876 = vld [vmem:[#allocation8 + $0x18] sm:$0xff]
        %v5877 = vld [vmem:[#allocation8 + $0x20] sm:$0xff]
        %v5878 = vld [vmem:[#allocation8 + $0x28] sm:$0xff]
        %v5879 = vld [vmem:[#allocation8 + $0x30] sm:$0xff]
        %v5880 = vld [vmem:[#allocation8 + $0x38] sm:$0xff]
        %v5881 = vld [vmem:[#allocation8 + $0x40] sm:$0xff]
        %v5882 = vld [vmem:[#allocation8 + $0x48] sm:$0xff]
        %v5883 = vld [vmem:[#allocation8 + $0x50] sm:$0xff]
        %v5884 = vld [vmem:[#allocation8 + $0x58] sm:$0xff]
        %v5885 = vld [vmem:[#allocation8 + $0x60] sm:$0xff]
        %v5886 = vld [vmem:[#allocation8 + $0x68] sm:$0xff]
        %v5887 = vld [vmem:[#allocation8 + $0x70] sm:$0xff]
        %v5888 = vld [vmem:[#allocation8 + $0x78] sm:$0xff]
        %v5889 = vld [vmem:[#allocation8 + $0x80] sm:$0xff]
        %v5890 = vld [vmem:[#allocation8 + $0x88] sm:$0xff]
        %v5891 = vld [vmem:[#allocation8 + $0x90] sm:$0xff]
        %v5892 = vld [vmem:[#allocation8 + $0x98] sm:$0xff]
        %v5893 = vld [vmem:[#allocation8 + $0xa0] sm:$0xff]
        %v5894 = vld [vmem:[#allocation8 + $0xa8] sm:$0xff]
        %v5895 = vld [vmem:[#allocation8 + $0xb0] sm:$0xff]
        %v5896 = vld [vmem:[#allocation8 + $0xb8] sm:$0xff]
        %v5897 = vld [vmem:[#allocation8 + $0xc0] sm:$0xff]
        %v5898 = vld [vmem:[#allocation8 + $0xc8] sm:$0xff]
        %v5899 = vld [vmem:[#allocation8 + $0xd0] sm:$0xff]
        %v5900 = vld [vmem:[#allocation8 + $0xd8] sm:$0xff]
        %v5901 = vld [vmem:[#allocation8 + $0xe0] sm:$0xff]
        %v5902 = vld [vmem:[#allocation8 + $0xe8] sm:$0xff]
        %v5903 = vld [vmem:[#allocation8 + $0xf0] sm:$0xff]
        %v5904 = vld [vmem:[#allocation8 + $0xf8] sm:$0xff]
        %v5905 = vld [vmem:[#allocation8 + $0x100] sm:$0xff]
        %v5906 = vld [vmem:[#allocation8 + $0x108] sm:$0xff]
        %v5907 = vld [vmem:[#allocation8 + $0x110] sm:$0xff]
        %v5908 = vld [vmem:[#allocation8 + $0x118] sm:$0xff]
        %v5909 = vld [vmem:[#allocation8 + $0x120] sm:$0xff]
        %v5910 = vld [vmem:[#allocation8 + $0x128] sm:$0xff]
        %v5911 = vld [vmem:[#allocation8 + $0x130] sm:$0xff]
        %v5912 = vld [vmem:[#allocation8 + $0x138] sm:$0xff]
        %v5913 = vld [vmem:[#allocation8 + $0x140] sm:$0xff]
        %v5914 = vld [vmem:[#allocation8 + $0x148] sm:$0xff]
        %v5915 = vld [vmem:[#allocation8 + $0x150] sm:$0xff]
        %v5916 = vld [vmem:[#allocation8 + $0x158] sm:$0xff]
        %v5917 = vld [vmem:[#allocation8 + $0x160] sm:$0xff]
        %v5918 = vld [vmem:[#allocation8 + $0x168] sm:$0xff]
        %v5919 = vld [vmem:[#allocation8 + $0x170] sm:$0xff]
        %v5920 = vld [vmem:[#allocation8 + $0x178] sm:$0xff]
        %v5921 = vld [vmem:[#allocation8 + $0x180] sm:$0xff]
        %v5922 = vld [vmem:[#allocation8 + $0x188] sm:$0xff]
        %v5923 = vld [vmem:[#allocation8 + $0x190] sm:$0xff]
        %v5924 = vld [vmem:[#allocation8 + $0x198] sm:$0xff]
        %v5925 = vld [vmem:[#allocation8 + $0x1a0] sm:$0xff]
        %v5926 = vld [vmem:[#allocation8 + $0x1a8] sm:$0xff]
        %v5927 = vld [vmem:[#allocation8 + $0x1b0] sm:$0xff]
        %v5928 = vld [vmem:[#allocation8 + $0x1b8] sm:$0xff]
        %v5929 = vld [vmem:[#allocation8 + $0x1c0] sm:$0xff]
        %v5930 = vld [vmem:[#allocation8 + $0x1c8] sm:$0xff]
        %v5931 = vld [vmem:[#allocation8 + $0x1d0] sm:$0xff]
        %v5932 = vld [vmem:[#allocation8 + $0x1d8] sm:$0xff]
        %v5933 = vld [vmem:[#allocation8 + $0x1e0] sm:$0xff]
        %v5934 = vld [vmem:[#allocation8 + $0x1e8] sm:$0xff]
        %v5935 = vld [vmem:[#allocation8 + $0x1f0] sm:$0xff]
        %v5936 = vld [vmem:[#allocation8 + $0x1f8] sm:$0xff]
        %v5937 = vld [vmem:[#allocation10] sm:$0x3]
        %v5939 = vlaneseq
        %v5940 = vshrl.u32 %v5939, 7
        %v5941 = vsub.s32 0, %v5940
        %v5942 = vrot.slane %v5937, %v5941
        %v5943 = vlaneseq
        %v5944 = vshrl.u32 %v5943, 7
        %v5945 = vsub.s32 1, %v5944
        %v5946 = vrot.slane %v5937, %v5945
        %v6013 = vunpack.c.l.b16 %v5873
        %v6014 = vunpack.c.h.b16 %v5873
        %v6015 = vunpack.c.l.b16 %v5874
        %v6016 = vunpack.c.h.b16 %v5874
        %v6017 = vunpack.c.l.b16 %v5875
        %v6018 = vunpack.c.h.b16 %v5875
        %v6019 = vunpack.c.l.b16 %v5876
        %v6020 = vunpack.c.h.b16 %v5876
        %v6021 = vunpack.c.l.b16 %v5877
        %v6022 = vunpack.c.h.b16 %v5877
        %v6023 = vunpack.c.l.b16 %v5878
        %v6024 = vunpack.c.h.b16 %v5878
        %v6025 = vunpack.c.l.b16 %v5879
        %v6026 = vunpack.c.h.b16 %v5879
        %v6027 = vunpack.c.l.b16 %v5880
        %v6028 = vunpack.c.h.b16 %v5880
        %v6029 = vunpack.c.l.b16 %v5881
        %v6030 = vunpack.c.h.b16 %v5881
        %v6031 = vunpack.c.l.b16 %v5882
        %v6032 = vunpack.c.h.b16 %v5882
        %v6033 = vunpack.c.l.b16 %v5883
        %v6034 = vunpack.c.h.b16 %v5883
        %v6035 = vunpack.c.l.b16 %v5884
        %v6036 = vunpack.c.h.b16 %v5884
        %v6037 = vunpack.c.l.b16 %v5885
        %v6038 = vunpack.c.h.b16 %v5885
        %v6039 = vunpack.c.l.b16 %v5886
        %v6040 = vunpack.c.h.b16 %v5886
        %v6041 = vunpack.c.l.b16 %v5887
        %v6042 = vunpack.c.h.b16 %v5887
        %v6043 = vunpack.c.l.b16 %v5888
        %v6044 = vunpack.c.h.b16 %v5888
        %v6045 = vunpack.c.l.b16 %v5889
        %v6046 = vunpack.c.h.b16 %v5889
        %v6047 = vunpack.c.l.b16 %v5890
        %v6048 = vunpack.c.h.b16 %v5890
        %v6049 = vunpack.c.l.b16 %v5891
        %v6050 = vunpack.c.h.b16 %v5891
        %v6051 = vunpack.c.l.b16 %v5892
        %v6052 = vunpack.c.h.b16 %v5892
        %v6053 = vunpack.c.l.b16 %v5893
        %v6054 = vunpack.c.h.b16 %v5893
        %v6055 = vunpack.c.l.b16 %v5894
        %v6056 = vunpack.c.h.b16 %v5894
        %v6057 = vunpack.c.l.b16 %v5895
        %v6058 = vunpack.c.h.b16 %v5895
        %v6059 = vunpack.c.l.b16 %v5896
        %v6060 = vunpack.c.h.b16 %v5896
        %v6061 = vunpack.c.l.b16 %v5897
        %v6062 = vunpack.c.h.b16 %v5897
        %v6063 = vunpack.c.l.b16 %v5898
        %v6064 = vunpack.c.h.b16 %v5898
        %v6065 = vunpack.c.l.b16 %v5899
        %v6066 = vunpack.c.h.b16 %v5899
        %v6067 = vunpack.c.l.b16 %v5900
        %v6068 = vunpack.c.h.b16 %v5900
        %v6069 = vunpack.c.l.b16 %v5901
        %v6070 = vunpack.c.h.b16 %v5901
        %v6071 = vunpack.c.l.b16 %v5902
        %v6072 = vunpack.c.h.b16 %v5902
        %v6073 = vunpack.c.l.b16 %v5903
        %v6074 = vunpack.c.h.b16 %v5903
        %v6075 = vunpack.c.l.b16 %v5904
        %v6076 = vunpack.c.h.b16 %v5904
        %v6077 = vunpack.c.l.b16 %v5905
        %v6078 = vunpack.c.h.b16 %v5905
        %v6079 = vunpack.c.l.b16 %v5906
        %v6080 = vunpack.c.h.b16 %v5906
        %v6081 = vunpack.c.l.b16 %v5907
        %v6082 = vunpack.c.h.b16 %v5907
        %v6083 = vunpack.c.l.b16 %v5908
        %v6084 = vunpack.c.h.b16 %v5908
        %v6085 = vunpack.c.l.b16 %v5909
        %v6086 = vunpack.c.h.b16 %v5909
        %v6087 = vunpack.c.l.b16 %v5910
        %v6088 = vunpack.c.h.b16 %v5910
        %v6089 = vunpack.c.l.b16 %v5911
        %v6090 = vunpack.c.h.b16 %v5911
        %v6091 = vunpack.c.l.b16 %v5912
        %v6092 = vunpack.c.h.b16 %v5912
        %v6093 = vunpack.c.l.b16 %v5913
        %v6094 = vunpack.c.h.b16 %v5913
        %v6095 = vunpack.c.l.b16 %v5914
        %v6096 = vunpack.c.h.b16 %v5914
        %v6097 = vunpack.c.l.b16 %v5915
        %v6098 = vunpack.c.h.b16 %v5915
        %v6099 = vunpack.c.l.b16 %v5916
        %v6100 = vunpack.c.h.b16 %v5916
        %v6101 = vunpack.c.l.b16 %v5917
        %v6102 = vunpack.c.h.b16 %v5917
        %v6103 = vunpack.c.l.b16 %v5918
        %v6104 = vunpack.c.h.b16 %v5918
        %v6105 = vunpack.c.l.b16 %v5919
        %v6106 = vunpack.c.h.b16 %v5919
        %v6107 = vunpack.c.l.b16 %v5920
        %v6108 = vunpack.c.h.b16 %v5920
        %v6109 = vunpack.c.l.b16 %v5921
        %v6110 = vunpack.c.h.b16 %v5921
        %v6111 = vunpack.c.l.b16 %v5922
        %v6112 = vunpack.c.h.b16 %v5922
        %v6113 = vunpack.c.l.b16 %v5923
        %v6114 = vunpack.c.h.b16 %v5923
        %v6115 = vunpack.c.l.b16 %v5924
        %v6116 = vunpack.c.h.b16 %v5924
        %v6117 = vunpack.c.l.b16 %v5925
        %v6118 = vunpack.c.h.b16 %v5925
        %v6119 = vunpack.c.l.b16 %v5926
        %v6120 = vunpack.c.h.b16 %v5926
        %v6121 = vunpack.c.l.b16 %v5927
        %v6122 = vunpack.c.h.b16 %v5927
        %v6123 = vunpack.c.l.b16 %v5928
        %v6124 = vunpack.c.h.b16 %v5928
        %v6125 = vunpack.c.l.b16 %v5929
        %v6126 = vunpack.c.h.b16 %v5929
        %v6127 = vunpack.c.l.b16 %v5930
        %v6128 = vunpack.c.h.b16 %v5930
        %v6129 = vunpack.c.l.b16 %v5931
        %v6130 = vunpack.c.h.b16 %v5931
        %v6131 = vunpack.c.l.b16 %v5932
        %v6132 = vunpack.c.h.b16 %v5932
        %v6133 = vunpack.c.l.b16 %v5933
        %v6134 = vunpack.c.h.b16 %v5933
        %v6135 = vunpack.c.l.b16 %v5934
        %v6136 = vunpack.c.h.b16 %v5934
        %v6137 = vunpack.c.l.b16 %v5935
        %v6138 = vunpack.c.h.b16 %v5935
        %v6139 = vunpack.c.l.b16 %v5936
        %v6140 = vunpack.c.h.b16 %v5936
        %v6141 = vpack.c.b16 %v6015, %v6013
        %v6142 = vpack.c.b16 %v6016, %v6014
        %v6143 = vpack.c.b16 %v6019, %v6017
        %v6144 = vpack.c.b16 %v6020, %v6018
        %v6145 = vpack.c.b16 %v6023, %v6021
        %v6146 = vpack.c.b16 %v6024, %v6022
        %v6147 = vpack.c.b16 %v6027, %v6025
        %v6148 = vpack.c.b16 %v6028, %v6026
        %v6149 = vpack.c.b16 %v6031, %v6029
        %v6150 = vpack.c.b16 %v6032, %v6030
        %v6151 = vpack.c.b16 %v6035, %v6033
        %v6152 = vpack.c.b16 %v6036, %v6034
        %v6153 = vpack.c.b16 %v6039, %v6037
        %v6154 = vpack.c.b16 %v6040, %v6038
        %v6155 = vpack.c.b16 %v6043, %v6041
        %v6156 = vpack.c.b16 %v6044, %v6042
        %v6157 = vpack.c.b16 %v6047, %v6045
        %v6158 = vpack.c.b16 %v6048, %v6046
        %v6159 = vpack.c.b16 %v6051, %v6049
        %v6160 = vpack.c.b16 %v6052, %v6050
        %v6161 = vpack.c.b16 %v6055, %v6053
        %v6162 = vpack.c.b16 %v6056, %v6054
        %v6163 = vpack.c.b16 %v6059, %v6057
        %v6164 = vpack.c.b16 %v6060, %v6058
        %v6165 = vpack.c.b16 %v6063, %v6061
        %v6166 = vpack.c.b16 %v6064, %v6062
        %v6167 = vpack.c.b16 %v6067, %v6065
        %v6168 = vpack.c.b16 %v6068, %v6066
        %v6169 = vpack.c.b16 %v6071, %v6069
        %v6170 = vpack.c.b16 %v6072, %v6070
        %v6171 = vpack.c.b16 %v6075, %v6073
        %v6172 = vpack.c.b16 %v6076, %v6074
        %v6173 = vpack.c.b16 %v6079, %v6077
        %v6174 = vpack.c.b16 %v6080, %v6078
        %v6175 = vpack.c.b16 %v6083, %v6081
        %v6176 = vpack.c.b16 %v6084, %v6082
        %v6177 = vpack.c.b16 %v6087, %v6085
        %v6178 = vpack.c.b16 %v6088, %v6086
        %v6179 = vpack.c.b16 %v6091, %v6089
        %v6180 = vpack.c.b16 %v6092, %v6090
        %v6181 = vpack.c.b16 %v6095, %v6093
        %v6182 = vpack.c.b16 %v6096, %v6094
        %v6183 = vpack.c.b16 %v6099, %v6097
        %v6184 = vpack.c.b16 %v6100, %v6098
        %v6185 = vpack.c.b16 %v6103, %v6101
        %v6186 = vpack.c.b16 %v6104, %v6102
        %v6187 = vpack.c.b16 %v6107, %v6105
        %v6188 = vpack.c.b16 %v6108, %v6106
        %v6189 = vpack.c.b16 %v6111, %v6109
        %v6190 = vpack.c.b16 %v6112, %v6110
        %v6191 = vpack.c.b16 %v6115, %v6113
        %v6192 = vpack.c.b16 %v6116, %v6114
        %v6193 = vpack.c.b16 %v6119, %v6117
        %v6194 = vpack.c.b16 %v6120, %v6118
        %v6195 = vpack.c.b16 %v6123, %v6121
        %v6196 = vpack.c.b16 %v6124, %v6122
        %v6197 = vpack.c.b16 %v6127, %v6125
        %v6198 = vpack.c.b16 %v6128, %v6126
        %v6199 = vpack.c.b16 %v6131, %v6129
        %v6200 = vpack.c.b16 %v6132, %v6130
        %v6201 = vpack.c.b16 %v6135, %v6133
        %v6202 = vpack.c.b16 %v6136, %v6134
        %v6203 = vpack.c.b16 %v6139, %v6137
        %v6204 = vpack.c.b16 %v6140, %v6138
        %6269 = vmatprep.subr.bf16.mxu0 %v6156
        %6270 = vmatpush1.bf16.msra.mxu0 %v6155
        %6271 = vmatprep.subr.bf16.mxu0 %v6154
        %6272 = vmatpush1.bf16.msra.mxu0 %v6153
        %6273 = vmatprep.subr.bf16.mxu0 %v6152
        %6274 = vmatpush1.bf16.msra.mxu0 %v6151
        %6275 = vmatprep.subr.bf16.mxu0 %v6150
        %6276 = vmatpush1.bf16.msra.mxu0 %v6149
        %6277 = vmatprep.subr.bf16.mxu0 %v6148
        %6278 = vmatpush1.bf16.msra.mxu0 %v6147
        %6279 = vmatprep.subr.bf16.mxu0 %v6146
        %6280 = vmatpush1.bf16.msra.mxu0 %v6145
        %6281 = vmatprep.subr.bf16.mxu0 %v6144
        %6282 = vmatpush1.bf16.msra.mxu0 %v6143
        %6283 = vmatprep.subr.bf16.mxu0 %v6142
        %6284 = vmatpush1.bf16.msra.mxu0 %v6141
        %6285 = vmatprep.subr.bf16.mxu0 %v6172
        %6286 = vmatpush2.bf16.msra.mxu0 %v6171
        %6287 = vmatprep.subr.bf16.mxu0 %v6170
        %6288 = vmatpush2.bf16.msra.mxu0 %v6169
        %6289 = vmatprep.subr.bf16.mxu0 %v6168
        %6290 = vmatpush2.bf16.msra.mxu0 %v6167
        %6291 = vmatprep.subr.bf16.mxu0 %v6166
        %6292 = vmatpush2.bf16.msra.mxu0 %v6165
        %6293 = vmatprep.subr.bf16.mxu0 %v6164
        %6294 = vmatpush2.bf16.msra.mxu0 %v6163
        %6295 = vmatprep.subr.bf16.mxu0 %v6162
        %6296 = vmatpush2.bf16.msra.mxu0 %v6161
        %6297 = vmatprep.subr.bf16.mxu0 %v6160
        %6298 = vmatpush2.bf16.msra.mxu0 %v6159
        %6299 = vmatprep.subr.bf16.mxu0 %v6158
        %6300 = vmatpush2.bf16.msra.mxu0 %v6157
        %6301 = vmatprep.mubr.bf16.mxu0 %v5778
        %6302 = vmatmul.mubr.bf16.gmra.mxu0 %v5777
        %v6303 = vpop.f32.mrf.mxu0
        %v6304 = vadd.f32 %v5942, %v6303
        %v6305 = vpop.f32.mrf.mxu0
        %v6306 = vadd.f32 %v5946, %v6305
        %v6307 = vpop.f32.mrf.mxu0
        %v6308 = vadd.f32 %v5942, %v6307
        %v6309 = vpop.f32.mrf.mxu0
        %v6310 = vadd.f32 %v5946, %v6309
        %6311 = vmatprep.mubr.bf16.mxu0 %v5782
        %6312 = vmatmul.mubr.bf16.gmra.mxu0 %v5781
        %v6313 = vpop.f32.mrf.mxu0
        %v6314 = vadd.f32 %v5942, %v6313
        %v6315 = vpop.f32.mrf.mxu0
        %v6316 = vadd.f32 %v5946, %v6315
        %v6317 = vpop.f32.mrf.mxu0
        %v6318 = vadd.f32 %v5942, %v6317
        %v6319 = vpop.f32.mrf.mxu0
        %v6320 = vadd.f32 %v5946, %v6319
        %6321 = vmatprep.mubr.bf16.mxu0 %v5786
        %6322 = vmatmul.mubr.bf16.gmra.mxu0 %v5785
        %v6323 = vpop.f32.mrf.mxu0
        %v6324 = vadd.f32 %v5942, %v6323
        %v6325 = vpop.f32.mrf.mxu0
        %v6326 = vadd.f32 %v5946, %v6325
        %v6327 = vpop.f32.mrf.mxu0
        %v6328 = vadd.f32 %v5942, %v6327
        %v6329 = vpop.f32.mrf.mxu0
        %v6330 = vadd.f32 %v5946, %v6329
        %6331 = vmatprep.mubr.bf16.mxu0 %v5790
        %6332 = vmatmul.mubr.bf16.gmra.mxu0 %v5789
        %v6333 = vpop.f32.mrf.mxu0
        %v6334 = vadd.f32 %v5942, %v6333
        %v6335 = vpop.f32.mrf.mxu0
        %v6336 = vadd.f32 %v5946, %v6335
        %v6337 = vpop.f32.mrf.mxu0
        %v6338 = vadd.f32 %v5942, %v6337
        %v6339 = vpop.f32.mrf.mxu0
        %v6340 = vadd.f32 %v5946, %v6339
        %6341 = vmatprep.mubr.bf16.mxu0 %v5794
        %6342 = vmatmul.mubr.bf16.gmra.mxu0 %v5793
        %v6343 = vpop.f32.mrf.mxu0
        %v6344 = vadd.f32 %v5942, %v6343
        %v6345 = vpop.f32.mrf.mxu0
        %v6346 = vadd.f32 %v5946, %v6345
        %v6347 = vpop.f32.mrf.mxu0
        %v6348 = vadd.f32 %v5942, %v6347
        %v6349 = vpop.f32.mrf.mxu0
        %v6350 = vadd.f32 %v5946, %v6349
        %6351 = vmatprep.mubr.bf16.mxu0 %v5798
        %6352 = vmatmul.mubr.bf16.gmra.mxu0 %v5797
        %v6353 = vpop.f32.mrf.mxu0
        %v6354 = vadd.f32 %v5942, %v6353
        %v6355 = vpop.f32.mrf.mxu0
        %v6356 = vadd.f32 %v5946, %v6355
        %v6357 = vpop.f32.mrf.mxu0
        %v6358 = vadd.f32 %v5942, %v6357
        %v6359 = vpop.f32.mrf.mxu0
        %v6360 = vadd.f32 %v5946, %v6359
        %6361 = vmatprep.mubr.bf16.mxu0 %v5802
        %6362 = vmatmul.mubr.bf16.gmra.mxu0 %v5801
        %v6363 = vpop.f32.mrf.mxu0
        %v6364 = vadd.f32 %v5942, %v6363
        %v6365 = vpop.f32.mrf.mxu0
        %v6366 = vadd.f32 %v5946, %v6365
        %v6367 = vpop.f32.mrf.mxu0
        %v6368 = vadd.f32 %v5942, %v6367
        %v6369 = vpop.f32.mrf.mxu0
        %v6370 = vadd.f32 %v5946, %v6369
        %6371 = vmatprep.mubr.bf16.mxu0 %v5806
        %6372 = vmatmul.mubr.bf16.gmra.mxu0 %v5805
        %v6373 = vpop.f32.mrf.mxu0
        %v6374 = vadd.f32 %v5942, %v6373
        %v6375 = vpop.f32.mrf.mxu0
        %v6376 = vadd.f32 %v5946, %v6375
        %v6377 = vpop.f32.mrf.mxu0
        %v6378 = vadd.f32 %v5942, %v6377
        %v6379 = vpop.f32.mrf.mxu0
        %v6380 = vadd.f32 %v5946, %v6379
        %6381 = vmatprep.mubr.bf16.mxu0 %v5810
        %6382 = vmatmul.mubr.bf16.gmra.mxu0 %v5809
        %v6383 = vpop.f32.mrf.mxu0
        %v6384 = vadd.f32 %v5942, %v6383
        %v6385 = vpop.f32.mrf.mxu0
        %v6386 = vadd.f32 %v5946, %v6385
        %v6387 = vpop.f32.mrf.mxu0
        %v6388 = vadd.f32 %v5942, %v6387
        %v6389 = vpop.f32.mrf.mxu0
        %v6390 = vadd.f32 %v5946, %v6389
        %6391 = vmatprep.mubr.bf16.mxu0 %v5814
        %6392 = vmatmul.mubr.bf16.gmra.mxu0 %v5813
        %v6393 = vpop.f32.mrf.mxu0
        %v6394 = vadd.f32 %v5942, %v6393
        %v6395 = vpop.f32.mrf.mxu0
        %v6396 = vadd.f32 %v5946, %v6395
        %v6397 = vpop.f32.mrf.mxu0
        %v6398 = vadd.f32 %v5942, %v6397
        %v6399 = vpop.f32.mrf.mxu0
        %v6400 = vadd.f32 %v5946, %v6399
        %6401 = vmatprep.mubr.bf16.mxu0 %v5818
        %6402 = vmatmul.mubr.bf16.gmra.mxu0 %v5817
        %v6403 = vpop.f32.mrf.mxu0
        %v6404 = vadd.f32 %v5942, %v6403
        %v6405 = vpop.f32.mrf.mxu0
        %v6406 = vadd.f32 %v5946, %v6405
        %v6407 = vpop.f32.mrf.mxu0
        %v6408 = vadd.f32 %v5942, %v6407
        %v6409 = vpop.f32.mrf.mxu0
        %v6410 = vadd.f32 %v5946, %v6409
        %6411 = vmatprep.mubr.bf16.mxu0 %v5822
        %6412 = vmatmul.mubr.bf16.gmra.mxu0 %v5821
        %v6413 = vpop.f32.mrf.mxu0
        %v6414 = vadd.f32 %v5942, %v6413
        %v6415 = vpop.f32.mrf.mxu0
        %v6416 = vadd.f32 %v5946, %v6415
        %v6417 = vpop.f32.mrf.mxu0
        %v6418 = vadd.f32 %v5942, %v6417
        %v6419 = vpop.f32.mrf.mxu0
        %v6420 = vadd.f32 %v5946, %v6419
        %6421 = vmatprep.mubr.bf16.mxu0 %v5826
        %6422 = vmatmul.mubr.bf16.gmra.mxu0 %v5825
        %v6423 = vpop.f32.mrf.mxu0
        %v6424 = vadd.f32 %v5942, %v6423
        %v6425 = vpop.f32.mrf.mxu0
        %v6426 = vadd.f32 %v5946, %v6425
        %v6427 = vpop.f32.mrf.mxu0
        %v6428 = vadd.f32 %v5942, %v6427
        %v6429 = vpop.f32.mrf.mxu0
        %v6430 = vadd.f32 %v5946, %v6429
        %6431 = vmatprep.mubr.bf16.mxu0 %v5830
        %6432 = vmatmul.mubr.bf16.gmra.mxu0 %v5829
        %v6433 = vpop.f32.mrf.mxu0
        %v6434 = vadd.f32 %v5942, %v6433
        %v6435 = vpop.f32.mrf.mxu0
        %v6436 = vadd.f32 %v5946, %v6435
        %v6437 = vpop.f32.mrf.mxu0
        %v6438 = vadd.f32 %v5942, %v6437
        %v6439 = vpop.f32.mrf.mxu0
        %v6440 = vadd.f32 %v5946, %v6439
        %6441 = vmatprep.mubr.bf16.mxu0 %v5834
        %6442 = vmatmul.mubr.bf16.gmra.mxu0 %v5833
        %v6443 = vpop.f32.mrf.mxu0
        %v6444 = vadd.f32 %v5942, %v6443
        %v6445 = vpop.f32.mrf.mxu0
        %v6446 = vadd.f32 %v5946, %v6445
        %v6447 = vpop.f32.mrf.mxu0
        %v6448 = vadd.f32 %v5942, %v6447
        %v6449 = vpop.f32.mrf.mxu0
        %v6450 = vadd.f32 %v5946, %v6449
        %6451 = vmatprep.mubr.bf16.mxu0 %v5838
        %6452 = vmatmul.mubr.bf16.gmra.mxu0 %v5837
        %v6453 = vpop.f32.mrf.mxu0
        %v6454 = vadd.f32 %v5942, %v6453
        %v6455 = vpop.f32.mrf.mxu0
        %v6456 = vadd.f32 %v5946, %v6455
        %v6457 = vpop.f32.mrf.mxu0
        %v6458 = vadd.f32 %v5942, %v6457
        %v6459 = vpop.f32.mrf.mxu0
        %v6460 = vadd.f32 %v5946, %v6459
        %6461 = vmatprep.mubr.bf16.mxu0 %v5842
        %6462 = vmatmul.mubr.bf16.gmra.mxu0 %v5841
        %v6463 = vpop.f32.mrf.mxu0
        %v6464 = vadd.f32 %v5942, %v6463
        %v6465 = vpop.f32.mrf.mxu0
        %v6466 = vadd.f32 %v5946, %v6465
        %v6467 = vpop.f32.mrf.mxu0
        %v6468 = vadd.f32 %v5942, %v6467
        %v6469 = vpop.f32.mrf.mxu0
        %v6470 = vadd.f32 %v5946, %v6469
        %6471 = vmatprep.mubr.bf16.mxu0 %v5846
        %6472 = vmatmul.mubr.bf16.gmra.mxu0 %v5845
        %v6473 = vpop.f32.mrf.mxu0
        %v6474 = vadd.f32 %v5942, %v6473
        %v6475 = vpop.f32.mrf.mxu0
        %v6476 = vadd.f32 %v5946, %v6475
        %v6477 = vpop.f32.mrf.mxu0
        %v6478 = vadd.f32 %v5942, %v6477
        %v6479 = vpop.f32.mrf.mxu0
        %v6480 = vadd.f32 %v5946, %v6479
        %6481 = vmatprep.mubr.bf16.mxu0 %v5850
        %6482 = vmatmul.mubr.bf16.gmra.mxu0 %v5849
        %v6483 = vpop.f32.mrf.mxu0
        %v6484 = vadd.f32 %v5942, %v6483
        %v6485 = vpop.f32.mrf.mxu0
        %v6486 = vadd.f32 %v5946, %v6485
        %v6487 = vpop.f32.mrf.mxu0
        %v6488 = vadd.f32 %v5942, %v6487
        %v6489 = vpop.f32.mrf.mxu0
        %v6490 = vadd.f32 %v5946, %v6489
        %6491 = vmatprep.mubr.bf16.mxu0 %v5854
        %6492 = vmatmul.mubr.bf16.gmra.mxu0 %v5853
        %v6493 = vpop.f32.mrf.mxu0
        %v6494 = vadd.f32 %v5942, %v6493
        %v6495 = vpop.f32.mrf.mxu0
        %v6496 = vadd.f32 %v5946, %v6495
        %v6497 = vpop.f32.mrf.mxu0
        %v6498 = vadd.f32 %v5942, %v6497
        %v6499 = vpop.f32.mrf.mxu0
        %v6500 = vadd.f32 %v5946, %v6499
        %6501 = vmatprep.mubr.bf16.mxu0 %v5858
        %6502 = vmatmul.mubr.bf16.gmra.mxu0 %v5857
        %v6503 = vpop.f32.mrf.mxu0
        %v6504 = vadd.f32 %v5942, %v6503
        %v6505 = vpop.f32.mrf.mxu0
        %v6506 = vadd.f32 %v5946, %v6505
        %v6507 = vpop.f32.mrf.mxu0
        %v6508 = vadd.f32 %v5942, %v6507
        %v6509 = vpop.f32.mrf.mxu0
        %v6510 = vadd.f32 %v5946, %v6509
        %6511 = vmatprep.mubr.bf16.mxu0 %v5862
        %6512 = vmatmul.mubr.bf16.gmra.mxu0 %v5861
        %v6513 = vpop.f32.mrf.mxu0
        %v6514 = vadd.f32 %v5942, %v6513
        %v6515 = vpop.f32.mrf.mxu0
        %v6516 = vadd.f32 %v5946, %v6515
        %v6517 = vpop.f32.mrf.mxu0
        %v6518 = vadd.f32 %v5942, %v6517
        %v6519 = vpop.f32.mrf.mxu0
        %v6520 = vadd.f32 %v5946, %v6519
        %6521 = vmatprep.mubr.bf16.mxu0 %v5866
        %6522 = vmatmul.mubr.bf16.gmra.mxu0 %v5865
        %v6523 = vpop.f32.mrf.mxu0
        %v6524 = vadd.f32 %v5942, %v6523
        %v6525 = vpop.f32.mrf.mxu0
        %v6526 = vadd.f32 %v5946, %v6525
        %v6527 = vpop.f32.mrf.mxu0
        %v6528 = vadd.f32 %v5942, %v6527
        %v6529 = vpop.f32.mrf.mxu0
        %v6530 = vadd.f32 %v5946, %v6529
        %6531 = vmatprep.mubr.bf16.mxu0 %v5870
        %6532 = vmatmul.mubr.bf16.gmra.mxu0 %v5869
        %v6533 = vpop.f32.mrf.mxu0
        %v6534 = vadd.f32 %v5942, %v6533
        %v6535 = vpop.f32.mrf.mxu0
        %v6536 = vadd.f32 %v5946, %v6535
        %v6537 = vpop.f32.mrf.mxu0
        %v6538 = vadd.f32 %v5942, %v6537
        %v6539 = vpop.f32.mrf.mxu0
        %v6540 = vadd.f32 %v5946, %v6539
        %6541 = vdwg.mxu0
        %6542 = vmatprep.subr.bf16.mxu0 %v6188
        %6543 = vmatpush1.bf16.msra.mxu0 %v6187
        %6544 = vmatprep.subr.bf16.mxu0 %v6186
        %6545 = vmatpush1.bf16.msra.mxu0 %v6185
        %6546 = vmatprep.subr.bf16.mxu0 %v6184
        %6547 = vmatpush1.bf16.msra.mxu0 %v6183
        %6548 = vmatprep.subr.bf16.mxu0 %v6182
        %6549 = vmatpush1.bf16.msra.mxu0 %v6181
        %6550 = vmatprep.subr.bf16.mxu0 %v6180
        %6551 = vmatpush1.bf16.msra.mxu0 %v6179
        %6552 = vmatprep.subr.bf16.mxu0 %v6178
        %6553 = vmatpush1.bf16.msra.mxu0 %v6177
        %6554 = vmatprep.subr.bf16.mxu0 %v6176
        %6555 = vmatpush1.bf16.msra.mxu0 %v6175
        %6556 = vmatprep.subr.bf16.mxu0 %v6174
        %6557 = vmatpush1.bf16.msra.mxu0 %v6173
        %6558 = vmatprep.subr.bf16.mxu0 %v6204
        %6559 = vmatpush2.bf16.msra.mxu0 %v6203
        %6560 = vmatprep.subr.bf16.mxu0 %v6202
        %6561 = vmatpush2.bf16.msra.mxu0 %v6201
        %6562 = vmatprep.subr.bf16.mxu0 %v6200
        %6563 = vmatpush2.bf16.msra.mxu0 %v6199
        %6564 = vmatprep.subr.bf16.mxu0 %v6198
        %6565 = vmatpush2.bf16.msra.mxu0 %v6197
        %6566 = vmatprep.subr.bf16.mxu0 %v6196
        %6567 = vmatpush2.bf16.msra.mxu0 %v6195
        %6568 = vmatprep.subr.bf16.mxu0 %v6194
        %6569 = vmatpush2.bf16.msra.mxu0 %v6193
        %6570 = vmatprep.subr.bf16.mxu0 %v6192
        %6571 = vmatpush2.bf16.msra.mxu0 %v6191
        %6572 = vmatprep.subr.bf16.mxu0 %v6190
        %6573 = vmatpush2.bf16.msra.mxu0 %v6189
        %6574 = vmatprep.mubr.bf16.mxu0 %v5780
        %6575 = vmatmul.mubr.bf16.gmra.mxu0 %v5779
        %v6576 = vpop.f32.mrf.mxu0
        %v6577 = vadd.f32 %v6304, %v6576
        %v6578 = vpop.f32.mrf.mxu0
        %v6579 = vadd.f32 %v6306, %v6578
        %v6580 = vpop.f32.mrf.mxu0
        %v6581 = vadd.f32 %v6308, %v6580
        %v6582 = vpop.f32.mrf.mxu0
        %v6583 = vadd.f32 %v6310, %v6582
        %6584 = vmatprep.mubr.bf16.mxu0 %v5784
        %6585 = vmatmul.mubr.bf16.gmra.mxu0 %v5783
        %v6586 = vpop.f32.mrf.mxu0
        %v6587 = vadd.f32 %v6314, %v6586
        %v6588 = vpop.f32.mrf.mxu0
        %v6589 = vadd.f32 %v6316, %v6588
        %v6590 = vpop.f32.mrf.mxu0
        %v6591 = vadd.f32 %v6318, %v6590
        %v6592 = vpop.f32.mrf.mxu0
        %v6593 = vadd.f32 %v6320, %v6592
        %6594 = vmatprep.mubr.bf16.mxu0 %v5788
        %6595 = vmatmul.mubr.bf16.gmra.mxu0 %v5787
        %v6596 = vpop.f32.mrf.mxu0
        %v6597 = vadd.f32 %v6324, %v6596
        %v6598 = vpop.f32.mrf.mxu0
        %v6599 = vadd.f32 %v6326, %v6598
        %v6600 = vpop.f32.mrf.mxu0
        %v6601 = vadd.f32 %v6328, %v6600
        %v6602 = vpop.f32.mrf.mxu0
        %v6603 = vadd.f32 %v6330, %v6602
        %6604 = vmatprep.mubr.bf16.mxu0 %v5792
        %6605 = vmatmul.mubr.bf16.gmra.mxu0 %v5791
        %v6606 = vpop.f32.mrf.mxu0
        %v6607 = vadd.f32 %v6334, %v6606
        %v6608 = vpop.f32.mrf.mxu0
        %v6609 = vadd.f32 %v6336, %v6608
        %v6610 = vpop.f32.mrf.mxu0
        %v6611 = vadd.f32 %v6338, %v6610
        %v6612 = vpop.f32.mrf.mxu0
        %v6613 = vadd.f32 %v6340, %v6612
        %6614 = vmatprep.mubr.bf16.mxu0 %v5796
        %6615 = vmatmul.mubr.bf16.gmra.mxu0 %v5795
        %v6616 = vpop.f32.mrf.mxu0
        %v6617 = vadd.f32 %v6344, %v6616
        %v6618 = vpop.f32.mrf.mxu0
        %v6619 = vadd.f32 %v6346, %v6618
        %v6620 = vpop.f32.mrf.mxu0
        %v6621 = vadd.f32 %v6348, %v6620
        %v6622 = vpop.f32.mrf.mxu0
        %v6623 = vadd.f32 %v6350, %v6622
        %6624 = vmatprep.mubr.bf16.mxu0 %v5800
        %6625 = vmatmul.mubr.bf16.gmra.mxu0 %v5799
        %v6626 = vpop.f32.mrf.mxu0
        %v6627 = vadd.f32 %v6354, %v6626
        %v6628 = vpop.f32.mrf.mxu0
        %v6629 = vadd.f32 %v6356, %v6628
        %v6630 = vpop.f32.mrf.mxu0
        %v6631 = vadd.f32 %v6358, %v6630
        %v6632 = vpop.f32.mrf.mxu0
        %v6633 = vadd.f32 %v6360, %v6632
        %6634 = vmatprep.mubr.bf16.mxu0 %v5804
        %6635 = vmatmul.mubr.bf16.gmra.mxu0 %v5803
        %v6636 = vpop.f32.mrf.mxu0
        %v6637 = vadd.f32 %v6364, %v6636
        %v6638 = vpop.f32.mrf.mxu0
        %v6639 = vadd.f32 %v6366, %v6638
        %v6640 = vpop.f32.mrf.mxu0
        %v6641 = vadd.f32 %v6368, %v6640
        %v6642 = vpop.f32.mrf.mxu0
        %v6643 = vadd.f32 %v6370, %v6642
        %6644 = vmatprep.mubr.bf16.mxu0 %v5808
        %6645 = vmatmul.mubr.bf16.gmra.mxu0 %v5807
        %v6646 = vpop.f32.mrf.mxu0
        %v6647 = vadd.f32 %v6374, %v6646
        %v6648 = vpop.f32.mrf.mxu0
        %v6649 = vadd.f32 %v6376, %v6648
        %v6650 = vpop.f32.mrf.mxu0
        %v6651 = vadd.f32 %v6378, %v6650
        %v6652 = vpop.f32.mrf.mxu0
        %v6653 = vadd.f32 %v6380, %v6652
        %6654 = vmatprep.mubr.bf16.mxu0 %v5812
        %6655 = vmatmul.mubr.bf16.gmra.mxu0 %v5811
        %v6656 = vpop.f32.mrf.mxu0
        %v6657 = vadd.f32 %v6384, %v6656
        %v6658 = vpop.f32.mrf.mxu0
        %v6659 = vadd.f32 %v6386, %v6658
        %v6660 = vpop.f32.mrf.mxu0
        %v6661 = vadd.f32 %v6388, %v6660
        %v6662 = vpop.f32.mrf.mxu0
        %v6663 = vadd.f32 %v6390, %v6662
        %6664 = vmatprep.mubr.bf16.mxu0 %v5816
        %6665 = vmatmul.mubr.bf16.gmra.mxu0 %v5815
        %v6666 = vpop.f32.mrf.mxu0
        %v6667 = vadd.f32 %v6394, %v6666
        %v6668 = vpop.f32.mrf.mxu0
        %v6669 = vadd.f32 %v6396, %v6668
        %v6670 = vpop.f32.mrf.mxu0
        %v6671 = vadd.f32 %v6398, %v6670
        %v6672 = vpop.f32.mrf.mxu0
        %v6673 = vadd.f32 %v6400, %v6672
        %6674 = vmatprep.mubr.bf16.mxu0 %v5820
        %6675 = vmatmul.mubr.bf16.gmra.mxu0 %v5819
        %v6676 = vpop.f32.mrf.mxu0
        %v6677 = vadd.f32 %v6404, %v6676
        %v6678 = vpop.f32.mrf.mxu0
        %v6679 = vadd.f32 %v6406, %v6678
        %v6680 = vpop.f32.mrf.mxu0
        %v6681 = vadd.f32 %v6408, %v6680
        %v6682 = vpop.f32.mrf.mxu0
        %v6683 = vadd.f32 %v6410, %v6682
        %6684 = vmatprep.mubr.bf16.mxu0 %v5824
        %6685 = vmatmul.mubr.bf16.gmra.mxu0 %v5823
        %v6686 = vpop.f32.mrf.mxu0
        %v6687 = vadd.f32 %v6414, %v6686
        %v6688 = vpop.f32.mrf.mxu0
        %v6689 = vadd.f32 %v6416, %v6688
        %v6690 = vpop.f32.mrf.mxu0
        %v6691 = vadd.f32 %v6418, %v6690
        %v6692 = vpop.f32.mrf.mxu0
        %v6693 = vadd.f32 %v6420, %v6692
        %6694 = vmatprep.mubr.bf16.mxu0 %v5828
        %6695 = vmatmul.mubr.bf16.gmra.mxu0 %v5827
        %v6696 = vpop.f32.mrf.mxu0
        %v6697 = vadd.f32 %v6424, %v6696
        %v6698 = vpop.f32.mrf.mxu0
        %v6699 = vadd.f32 %v6426, %v6698
        %v6700 = vpop.f32.mrf.mxu0
        %v6701 = vadd.f32 %v6428, %v6700
        %v6702 = vpop.f32.mrf.mxu0
        %v6703 = vadd.f32 %v6430, %v6702
        %6704 = vmatprep.mubr.bf16.mxu0 %v5832
        %6705 = vmatmul.mubr.bf16.gmra.mxu0 %v5831
        %v6706 = vpop.f32.mrf.mxu0
        %v6707 = vadd.f32 %v6434, %v6706
        %v6708 = vpop.f32.mrf.mxu0
        %v6709 = vadd.f32 %v6436, %v6708
        %v6710 = vpop.f32.mrf.mxu0
        %v6711 = vadd.f32 %v6438, %v6710
        %v6712 = vpop.f32.mrf.mxu0
        %v6713 = vadd.f32 %v6440, %v6712
        %6714 = vmatprep.mubr.bf16.mxu0 %v5836
        %6715 = vmatmul.mubr.bf16.gmra.mxu0 %v5835
        %v6716 = vpop.f32.mrf.mxu0
        %v6717 = vadd.f32 %v6444, %v6716
        %v6718 = vpop.f32.mrf.mxu0
        %v6719 = vadd.f32 %v6446, %v6718
        %v6720 = vpop.f32.mrf.mxu0
        %v6721 = vadd.f32 %v6448, %v6720
        %v6722 = vpop.f32.mrf.mxu0
        %v6723 = vadd.f32 %v6450, %v6722
        %6724 = vmatprep.mubr.bf16.mxu0 %v5840
        %6725 = vmatmul.mubr.bf16.gmra.mxu0 %v5839
        %v6726 = vpop.f32.mrf.mxu0
        %v6727 = vadd.f32 %v6454, %v6726
        %v6728 = vpop.f32.mrf.mxu0
        %v6729 = vadd.f32 %v6456, %v6728
        %v6730 = vpop.f32.mrf.mxu0
        %v6731 = vadd.f32 %v6458, %v6730
        %v6732 = vpop.f32.mrf.mxu0
        %v6733 = vadd.f32 %v6460, %v6732
        %6734 = vmatprep.mubr.bf16.mxu0 %v5844
        %6735 = vmatmul.mubr.bf16.gmra.mxu0 %v5843
        %v6736 = vpop.f32.mrf.mxu0
        %v6737 = vadd.f32 %v6464, %v6736
        %v6738 = vpop.f32.mrf.mxu0
        %v6739 = vadd.f32 %v6466, %v6738
        %v6740 = vpop.f32.mrf.mxu0
        %v6741 = vadd.f32 %v6468, %v6740
        %v6742 = vpop.f32.mrf.mxu0
        %v6743 = vadd.f32 %v6470, %v6742
        %6744 = vmatprep.mubr.bf16.mxu0 %v5848
        %6745 = vmatmul.mubr.bf16.gmra.mxu0 %v5847
        %v6746 = vpop.f32.mrf.mxu0
        %v6747 = vadd.f32 %v6474, %v6746
        %v6748 = vpop.f32.mrf.mxu0
        %v6749 = vadd.f32 %v6476, %v6748
        %v6750 = vpop.f32.mrf.mxu0
        %v6751 = vadd.f32 %v6478, %v6750
        %v6752 = vpop.f32.mrf.mxu0
        %v6753 = vadd.f32 %v6480, %v6752
        %6754 = vmatprep.mubr.bf16.mxu0 %v5852
        %6755 = vmatmul.mubr.bf16.gmra.mxu0 %v5851
        %v6756 = vpop.f32.mrf.mxu0
        %v6757 = vadd.f32 %v6484, %v6756
        %v6758 = vpop.f32.mrf.mxu0
        %v6759 = vadd.f32 %v6486, %v6758
        %v6760 = vpop.f32.mrf.mxu0
        %v6761 = vadd.f32 %v6488, %v6760
        %v6762 = vpop.f32.mrf.mxu0
        %v6763 = vadd.f32 %v6490, %v6762
        %6764 = vmatprep.mubr.bf16.mxu0 %v5856
        %6765 = vmatmul.mubr.bf16.gmra.mxu0 %v5855
        %v6766 = vpop.f32.mrf.mxu0
        %v6767 = vadd.f32 %v6494, %v6766
        %v6768 = vpop.f32.mrf.mxu0
        %v6769 = vadd.f32 %v6496, %v6768
        %v6770 = vpop.f32.mrf.mxu0
        %v6771 = vadd.f32 %v6498, %v6770
        %v6772 = vpop.f32.mrf.mxu0
        %v6773 = vadd.f32 %v6500, %v6772
        %6774 = vmatprep.mubr.bf16.mxu0 %v5860
        %6775 = vmatmul.mubr.bf16.gmra.mxu0 %v5859
        %v6776 = vpop.f32.mrf.mxu0
        %v6777 = vadd.f32 %v6504, %v6776
        %v6778 = vpop.f32.mrf.mxu0
        %v6779 = vadd.f32 %v6506, %v6778
        %v6780 = vpop.f32.mrf.mxu0
        %v6781 = vadd.f32 %v6508, %v6780
        %v6782 = vpop.f32.mrf.mxu0
        %v6783 = vadd.f32 %v6510, %v6782
        %6784 = vmatprep.mubr.bf16.mxu0 %v5864
        %6785 = vmatmul.mubr.bf16.gmra.mxu0 %v5863
        %v6786 = vpop.f32.mrf.mxu0
        %v6787 = vadd.f32 %v6514, %v6786
        %v6788 = vpop.f32.mrf.mxu0
        %v6789 = vadd.f32 %v6516, %v6788
        %v6790 = vpop.f32.mrf.mxu0
        %v6791 = vadd.f32 %v6518, %v6790
        %v6792 = vpop.f32.mrf.mxu0
        %v6793 = vadd.f32 %v6520, %v6792
        %6794 = vmatprep.mubr.bf16.mxu0 %v5868
        %6795 = vmatmul.mubr.bf16.gmra.mxu0 %v5867
        %v6796 = vpop.f32.mrf.mxu0
        %v6797 = vadd.f32 %v6524, %v6796
        %v6798 = vpop.f32.mrf.mxu0
        %v6799 = vadd.f32 %v6526, %v6798
        %v6800 = vpop.f32.mrf.mxu0
        %v6801 = vadd.f32 %v6528, %v6800
        %v6802 = vpop.f32.mrf.mxu0
        %v6803 = vadd.f32 %v6530, %v6802
        %6804 = vmatprep.mubr.bf16.mxu0 %v5872
        %6805 = vmatmul.mubr.bf16.gmra.mxu0 %v5871
        %v6806 = vpop.f32.mrf.mxu0
        %v6807 = vadd.f32 %v6534, %v6806
        %v6808 = vpop.f32.mrf.mxu0
        %v6809 = vadd.f32 %v6536, %v6808
        %v6810 = vpop.f32.mrf.mxu0
        %v6811 = vadd.f32 %v6538, %v6810
        %v6812 = vpop.f32.mrf.mxu0
        %v6813 = vadd.f32 %v6540, %v6812
        %6814 = vdwg.mxu0
        %v6815 = vmax.f32 %v6577, 0.0
        %v6816 = vmax.f32 %v6579, 0.0
        %v6817 = vmax.f32 %v6581, 0.0
        %v6818 = vmax.f32 %v6583, 0.0
        %v6819 = vmax.f32 %v6587, 0.0
        %v6820 = vmax.f32 %v6589, 0.0
        %v6821 = vmax.f32 %v6591, 0.0
        %v6822 = vmax.f32 %v6593, 0.0
        %v6823 = vmax.f32 %v6597, 0.0
        %v6824 = vmax.f32 %v6599, 0.0
        %v6825 = vmax.f32 %v6601, 0.0
        %v6826 = vmax.f32 %v6603, 0.0
        %v6827 = vmax.f32 %v6607, 0.0
        %v6828 = vmax.f32 %v6609, 0.0
        %v6829 = vmax.f32 %v6611, 0.0
        %v6830 = vmax.f32 %v6613, 0.0
        %v6831 = vmax.f32 %v6617, 0.0
        %v6832 = vmax.f32 %v6619, 0.0
        %v6833 = vmax.f32 %v6621, 0.0
        %v6834 = vmax.f32 %v6623, 0.0
        %v6835 = vmax.f32 %v6627, 0.0
        %v6836 = vmax.f32 %v6629, 0.0
        %v6837 = vmax.f32 %v6631, 0.0
        %v6838 = vmax.f32 %v6633, 0.0
        %v6839 = vmax.f32 %v6637, 0.0
        %v6840 = vmax.f32 %v6639, 0.0
        %v6841 = vmax.f32 %v6641, 0.0
        %v6842 = vmax.f32 %v6643, 0.0
        %v6843 = vmax.f32 %v6647, 0.0
        %v6844 = vmax.f32 %v6649, 0.0
        %v6845 = vmax.f32 %v6651, 0.0
        %v6846 = vmax.f32 %v6653, 0.0
        %v6847 = vmax.f32 %v6657, 0.0
        %v6848 = vmax.f32 %v6659, 0.0
        %v6849 = vmax.f32 %v6661, 0.0
        %v6850 = vmax.f32 %v6663, 0.0
        %v6851 = vmax.f32 %v6667, 0.0
        %v6852 = vmax.f32 %v6669, 0.0
        %v6853 = vmax.f32 %v6671, 0.0
        %v6854 = vmax.f32 %v6673, 0.0
        %v6855 = vmax.f32 %v6677, 0.0
        %v6856 = vmax.f32 %v6679, 0.0
        %v6857 = vmax.f32 %v6681, 0.0
        %v6858 = vmax.f32 %v6683, 0.0
        %v6859 = vmax.f32 %v6687, 0.0
        %v6860 = vmax.f32 %v6689, 0.0
        %v6861 = vmax.f32 %v6691, 0.0
        %v6862 = vmax.f32 %v6693, 0.0
        %v6863 = vmax.f32 %v6697, 0.0
        %v6864 = vmax.f32 %v6699, 0.0
        %v6865 = vmax.f32 %v6701, 0.0
        %v6866 = vmax.f32 %v6703, 0.0
        %v6867 = vmax.f32 %v6707, 0.0
        %v6868 = vmax.f32 %v6709, 0.0
        %v6869 = vmax.f32 %v6711, 0.0
        %v6870 = vmax.f32 %v6713, 0.0
        %v6871 = vmax.f32 %v6717, 0.0
        %v6872 = vmax.f32 %v6719, 0.0
        %v6873 = vmax.f32 %v6721, 0.0
        %v6874 = vmax.f32 %v6723, 0.0
        %v6875 = vmax.f32 %v6727, 0.0
        %v6876 = vmax.f32 %v6729, 0.0
        %v6877 = vmax.f32 %v6731, 0.0
        %v6878 = vmax.f32 %v6733, 0.0
        %v6879 = vmax.f32 %v6737, 0.0
        %v6880 = vmax.f32 %v6739, 0.0
        %v6881 = vmax.f32 %v6741, 0.0
        %v6882 = vmax.f32 %v6743, 0.0
        %v6883 = vmax.f32 %v6747, 0.0
        %v6884 = vmax.f32 %v6749, 0.0
        %v6885 = vmax.f32 %v6751, 0.0
        %v6886 = vmax.f32 %v6753, 0.0
        %v6887 = vmax.f32 %v6757, 0.0
        %v6888 = vmax.f32 %v6759, 0.0
        %v6889 = vmax.f32 %v6761, 0.0
        %v6890 = vmax.f32 %v6763, 0.0
        %v6891 = vmax.f32 %v6767, 0.0
        %v6892 = vmax.f32 %v6769, 0.0
        %v6893 = vmax.f32 %v6771, 0.0
        %v6894 = vmax.f32 %v6773, 0.0
        %v6895 = vmax.f32 %v6777, 0.0
        %v6896 = vmax.f32 %v6779, 0.0
        %v6897 = vmax.f32 %v6781, 0.0
        %v6898 = vmax.f32 %v6783, 0.0
        %v6899 = vmax.f32 %v6787, 0.0
        %v6900 = vmax.f32 %v6789, 0.0
        %v6901 = vmax.f32 %v6791, 0.0
        %v6902 = vmax.f32 %v6793, 0.0
        %v6903 = vmax.f32 %v6797, 0.0
        %v6904 = vmax.f32 %v6799, 0.0
        %v6905 = vmax.f32 %v6801, 0.0
        %v6906 = vmax.f32 %v6803, 0.0
        %v6907 = vmax.f32 %v6807, 0.0
        %v6908 = vmax.f32 %v6809, 0.0
        %v6909 = vmax.f32 %v6811, 0.0
        %v6910 = vmax.f32 %v6813, 0.0
        %v6911 = vpack.c.bf16 %v6817, %v6815
        %v6912 = vpack.c.bf16 %v6818, %v6816
        %v6913 = vpack.c.bf16 %v6821, %v6819
        %v6914 = vpack.c.bf16 %v6822, %v6820
        %v6915 = vpack.c.bf16 %v6825, %v6823
        %v6916 = vpack.c.bf16 %v6826, %v6824
        %v6917 = vpack.c.bf16 %v6829, %v6827
        %v6918 = vpack.c.bf16 %v6830, %v6828
        %v6919 = vpack.c.bf16 %v6833, %v6831
        %v6920 = vpack.c.bf16 %v6834, %v6832
        %v6921 = vpack.c.bf16 %v6837, %v6835
        %v6922 = vpack.c.bf16 %v6838, %v6836
        %v6923 = vpack.c.bf16 %v6841, %v6839
        %v6924 = vpack.c.bf16 %v6842, %v6840
        %v6925 = vpack.c.bf16 %v6845, %v6843
        %v6926 = vpack.c.bf16 %v6846, %v6844
        %v6927 = vpack.c.bf16 %v6849, %v6847
        %v6928 = vpack.c.bf16 %v6850, %v6848
        %v6929 = vpack.c.bf16 %v6853, %v6851
        %v6930 = vpack.c.bf16 %v6854, %v6852
        %v6931 = vpack.c.bf16 %v6857, %v6855
        %v6932 = vpack.c.bf16 %v6858, %v6856
        %v6933 = vpack.c.bf16 %v6861, %v6859
        %v6934 = vpack.c.bf16 %v6862, %v6860
        %v6935 = vpack.c.bf16 %v6865, %v6863
        %v6936 = vpack.c.bf16 %v6866, %v6864
        %v6937 = vpack.c.bf16 %v6869, %v6867
        %v6938 = vpack.c.bf16 %v6870, %v6868
        %v6939 = vpack.c.bf16 %v6873, %v6871
        %v6940 = vpack.c.bf16 %v6874, %v6872
        %v6941 = vpack.c.bf16 %v6877, %v6875
        %v6942 = vpack.c.bf16 %v6878, %v6876
        %v6943 = vpack.c.bf16 %v6881, %v6879
        %v6944 = vpack.c.bf16 %v6882, %v6880
        %v6945 = vpack.c.bf16 %v6885, %v6883
        %v6946 = vpack.c.bf16 %v6886, %v6884
        %v6947 = vpack.c.bf16 %v6889, %v6887
        %v6948 = vpack.c.bf16 %v6890, %v6888
        %v6949 = vpack.c.bf16 %v6893, %v6891
        %v6950 = vpack.c.bf16 %v6894, %v6892
        %v6951 = vpack.c.bf16 %v6897, %v6895
        %v6952 = vpack.c.bf16 %v6898, %v6896
        %v6953 = vpack.c.bf16 %v6901, %v6899
        %v6954 = vpack.c.bf16 %v6902, %v6900
        %v6955 = vpack.c.bf16 %v6905, %v6903
        %v6956 = vpack.c.bf16 %v6906, %v6904
        %v6957 = vpack.c.bf16 %v6909, %v6907
        %v6958 = vpack.c.bf16 %v6910, %v6908
        %v6959 = vld [vmem:[#allocation11] sm:$0xf]
        %v6960 = vld [vmem:[#allocation11 + $0x4] sm:$0xf]
        %v6961 = vld [vmem:[#allocation11 + $0x8] sm:$0xf]
        %v6962 = vld [vmem:[#allocation11 + $0xc] sm:$0xf]
        %v6963 = vld [vmem:[#allocation11 + $0x10] sm:$0xf]
        %v6964 = vld [vmem:[#allocation11 + $0x14] sm:$0xf]
        %v6965 = vld [vmem:[#allocation11 + $0x18] sm:$0xf]
        %v6966 = vld [vmem:[#allocation11 + $0x1c] sm:$0xf]
        %v6967 = vld [vmem:[#allocation11 + $0x20] sm:$0xf]
        %v6968 = vld [vmem:[#allocation11 + $0x24] sm:$0xf]
        %v6969 = vld [vmem:[#allocation11 + $0x28] sm:$0xf]
        %v6970 = vld [vmem:[#allocation11 + $0x2c] sm:$0xf]
        %v6971 = vld [vmem:[#allocation11 + $0x30] sm:$0xf]
        %v6972 = vld [vmem:[#allocation11 + $0x34] sm:$0xf]
        %v6973 = vld [vmem:[#allocation11 + $0x38] sm:$0xf]
        %v6974 = vld [vmem:[#allocation11 + $0x3c] sm:$0xf]
        %v6975 = vld [vmem:[#allocation11 + $0x40] sm:$0xf]
        %v6976 = vld [vmem:[#allocation11 + $0x44] sm:$0xf]
        %v6977 = vld [vmem:[#allocation11 + $0x48] sm:$0xf]
        %v6978 = vld [vmem:[#allocation11 + $0x4c] sm:$0xf]
        %v6979 = vld [vmem:[#allocation11 + $0x50] sm:$0xf]
        %v6980 = vld [vmem:[#allocation11 + $0x54] sm:$0xf]
        %v6981 = vld [vmem:[#allocation11 + $0x58] sm:$0xf]
        %v6982 = vld [vmem:[#allocation11 + $0x5c] sm:$0xf]
        %v6983 = vld [vmem:[#allocation11 + $0x60] sm:$0xf]
        %v6984 = vld [vmem:[#allocation11 + $0x64] sm:$0xf]
        %v6985 = vld [vmem:[#allocation11 + $0x68] sm:$0xf]
        %v6986 = vld [vmem:[#allocation11 + $0x6c] sm:$0xf]
        %v6987 = vld [vmem:[#allocation11 + $0x70] sm:$0xf]
        %v6988 = vld [vmem:[#allocation11 + $0x74] sm:$0xf]
        %v6989 = vld [vmem:[#allocation11 + $0x78] sm:$0xf]
        %v6990 = vld [vmem:[#allocation11 + $0x7c] sm:$0xf]
        %v6991 = vld [vmem:[#allocation13] sm:$0x1]
        %v6993 = vlaneseq
        %v6994 = vshrl.u32 %v6993, 7
        %v6995 = vsub.s32 0, %v6994
        %v6996 = vrot.slane %v6991, %v6995
        %v7030 = vunpack.c.l.b16 %v6959
        %v7031 = vunpack.c.l.b16 %v6960
        %v7032 = vunpack.c.l.b16 %v6961
        %v7033 = vunpack.c.l.b16 %v6962
        %v7034 = vunpack.c.l.b16 %v6963
        %v7035 = vunpack.c.l.b16 %v6964
        %v7036 = vunpack.c.l.b16 %v6965
        %v7037 = vunpack.c.l.b16 %v6966
        %v7038 = vunpack.c.l.b16 %v6967
        %v7039 = vunpack.c.l.b16 %v6968
        %v7040 = vunpack.c.l.b16 %v6969
        %v7041 = vunpack.c.l.b16 %v6970
        %v7042 = vunpack.c.l.b16 %v6971
        %v7043 = vunpack.c.l.b16 %v6972
        %v7044 = vunpack.c.l.b16 %v6973
        %v7045 = vunpack.c.l.b16 %v6974
        %v7046 = vunpack.c.l.b16 %v6975
        %v7047 = vunpack.c.l.b16 %v6976
        %v7048 = vunpack.c.l.b16 %v6977
        %v7049 = vunpack.c.l.b16 %v6978
        %v7050 = vunpack.c.l.b16 %v6979
        %v7051 = vunpack.c.l.b16 %v6980
        %v7052 = vunpack.c.l.b16 %v6981
        %v7053 = vunpack.c.l.b16 %v6982
        %v7054 = vunpack.c.l.b16 %v6983
        %v7055 = vunpack.c.l.b16 %v6984
        %v7056 = vunpack.c.l.b16 %v6985
        %v7057 = vunpack.c.l.b16 %v6986
        %v7058 = vunpack.c.l.b16 %v6987
        %v7059 = vunpack.c.l.b16 %v6988
        %v7060 = vunpack.c.l.b16 %v6989
        %v7061 = vunpack.c.l.b16 %v6990
        %v7062 = vpack.c.b16 %v7031, %v7030
        %v7063 = vpack.c.b16 %v7033, %v7032
        %v7064 = vpack.c.b16 %v7035, %v7034
        %v7065 = vpack.c.b16 %v7037, %v7036
        %v7066 = vpack.c.b16 %v7039, %v7038
        %v7067 = vpack.c.b16 %v7041, %v7040
        %v7068 = vpack.c.b16 %v7043, %v7042
        %v7069 = vpack.c.b16 %v7045, %v7044
        %v7070 = vpack.c.b16 %v7047, %v7046
        %v7071 = vpack.c.b16 %v7049, %v7048
        %v7072 = vpack.c.b16 %v7051, %v7050
        %v7073 = vpack.c.b16 %v7053, %v7052
        %v7074 = vpack.c.b16 %v7055, %v7054
        %v7075 = vpack.c.b16 %v7057, %v7056
        %v7076 = vpack.c.b16 %v7059, %v7058
        %v7077 = vpack.c.b16 %v7061, %v7060
        %7094 = vmatprep.subr.bf16.mxu0 0
        %7095 = vmatpush1.bf16.msra.mxu0 %v7069
        %7096 = vmatprep.subr.bf16.mxu0 0
        %7097 = vmatpush1.bf16.msra.mxu0 %v7068
        %7098 = vmatprep.subr.bf16.mxu0 0
        %7099 = vmatpush1.bf16.msra.mxu0 %v7067
        %7100 = vmatprep.subr.bf16.mxu0 0
        %7101 = vmatpush1.bf16.msra.mxu0 %v7066
        %7102 = vmatprep.subr.bf16.mxu0 0
        %7103 = vmatpush1.bf16.msra.mxu0 %v7065
        %7104 = vmatprep.subr.bf16.mxu0 0
        %7105 = vmatpush1.bf16.msra.mxu0 %v7064
        %7106 = vmatprep.subr.bf16.mxu0 0
        %7107 = vmatpush1.bf16.msra.mxu0 %v7063
        %7108 = vmatprep.subr.bf16.mxu0 0
        %7109 = vmatpush1.bf16.msra.mxu0 %v7062
        %7110 = vmatprep.subr.bf16.mxu0 0
        %7111 = vmatpush2.bf16.msra.mxu0 %v7077
        %7112 = vmatprep.subr.bf16.mxu0 0
        %7113 = vmatpush2.bf16.msra.mxu0 %v7076
        %7114 = vmatprep.subr.bf16.mxu0 0
        %7115 = vmatpush2.bf16.msra.mxu0 %v7075
        %7116 = vmatprep.subr.bf16.mxu0 0
        %7117 = vmatpush2.bf16.msra.mxu0 %v7074
        %7118 = vmatprep.subr.bf16.mxu0 0
        %7119 = vmatpush2.bf16.msra.mxu0 %v7073
        %7120 = vmatprep.subr.bf16.mxu0 0
        %7121 = vmatpush2.bf16.msra.mxu0 %v7072
        %7122 = vmatprep.subr.bf16.mxu0 0
        %7123 = vmatpush2.bf16.msra.mxu0 %v7071
        %7124 = vmatprep.subr.bf16.mxu0 0
        %7125 = vmatpush2.bf16.msra.mxu0 %v7070
        %7126 = vmatprep.mubr.bf16.mxu0 %v6912
        %7127 = vmatmul.mubr.bf16.gmra.mxu0 %v6911
        %v7128 = vpop.f32.mrf.mxu0
        %v7129 = vadd.f32 %v6996, %v7128
        %v7130 = vpop.f32.mrf.mxu0
        %v7131 = vpop.f32.mrf.mxu0
        %v7132 = vadd.f32 %v6996, %v7131
        %v7133 = vpop.f32.mrf.mxu0
        %7134 = vmatprep.mubr.bf16.mxu0 %v6914
        %7135 = vmatmul.mubr.bf16.gmra.mxu0 %v6913
        %v7136 = vpop.f32.mrf.mxu0
        %v7137 = vadd.f32 %v6996, %v7136
        %v7138 = vpop.f32.mrf.mxu0
        %v7139 = vpop.f32.mrf.mxu0
        %v7140 = vadd.f32 %v6996, %v7139
        %v7141 = vpop.f32.mrf.mxu0
        %7142 = vmatprep.mubr.bf16.mxu0 %v6916
        %7143 = vmatmul.mubr.bf16.gmra.mxu0 %v6915
        %v7144 = vpop.f32.mrf.mxu0
        %v7145 = vadd.f32 %v6996, %v7144
        %v7146 = vpop.f32.mrf.mxu0
        %v7147 = vpop.f32.mrf.mxu0
        %v7148 = vadd.f32 %v6996, %v7147
        %v7149 = vpop.f32.mrf.mxu0
        %7150 = vmatprep.mubr.bf16.mxu0 %v6918
        %7151 = vmatmul.mubr.bf16.gmra.mxu0 %v6917
        %v7152 = vpop.f32.mrf.mxu0
        %v7153 = vadd.f32 %v6996, %v7152
        %v7154 = vpop.f32.mrf.mxu0
        %v7155 = vpop.f32.mrf.mxu0
        %v7156 = vadd.f32 %v6996, %v7155
        %v7157 = vpop.f32.mrf.mxu0
        %7158 = vmatprep.mubr.bf16.mxu0 %v6920
        %7159 = vmatmul.mubr.bf16.gmra.mxu0 %v6919
        %v7160 = vpop.f32.mrf.mxu0
        %v7161 = vadd.f32 %v6996, %v7160
        %v7162 = vpop.f32.mrf.mxu0
        %v7163 = vpop.f32.mrf.mxu0
        %v7164 = vadd.f32 %v6996, %v7163
        %v7165 = vpop.f32.mrf.mxu0
        %7166 = vmatprep.mubr.bf16.mxu0 %v6922
        %7167 = vmatmul.mubr.bf16.gmra.mxu0 %v6921
        %v7168 = vpop.f32.mrf.mxu0
        %v7169 = vadd.f32 %v6996, %v7168
        %v7170 = vpop.f32.mrf.mxu0
        %v7171 = vpop.f32.mrf.mxu0
        %v7172 = vadd.f32 %v6996, %v7171
        %v7173 = vpop.f32.mrf.mxu0
        %7174 = vmatprep.mubr.bf16.mxu0 %v6924
        %7175 = vmatmul.mubr.bf16.gmra.mxu0 %v6923
        %v7176 = vpop.f32.mrf.mxu0
        %v7177 = vadd.f32 %v6996, %v7176
        %v7178 = vpop.f32.mrf.mxu0
        %v7179 = vpop.f32.mrf.mxu0
        %v7180 = vadd.f32 %v6996, %v7179
        %v7181 = vpop.f32.mrf.mxu0
        %7182 = vmatprep.mubr.bf16.mxu0 %v6926
        %7183 = vmatmul.mubr.bf16.gmra.mxu0 %v6925
        %v7184 = vpop.f32.mrf.mxu0
        %v7185 = vadd.f32 %v6996, %v7184
        %v7186 = vpop.f32.mrf.mxu0
        %v7187 = vpop.f32.mrf.mxu0
        %v7188 = vadd.f32 %v6996, %v7187
        %v7189 = vpop.f32.mrf.mxu0
        %7190 = vmatprep.mubr.bf16.mxu0 %v6928
        %7191 = vmatmul.mubr.bf16.gmra.mxu0 %v6927
        %v7192 = vpop.f32.mrf.mxu0
        %v7193 = vadd.f32 %v6996, %v7192
        %v7194 = vpop.f32.mrf.mxu0
        %v7195 = vpop.f32.mrf.mxu0
        %v7196 = vadd.f32 %v6996, %v7195
        %v7197 = vpop.f32.mrf.mxu0
        %7198 = vmatprep.mubr.bf16.mxu0 %v6930
        %7199 = vmatmul.mubr.bf16.gmra.mxu0 %v6929
        %v7200 = vpop.f32.mrf.mxu0
        %v7201 = vadd.f32 %v6996, %v7200
        %v7202 = vpop.f32.mrf.mxu0
        %v7203 = vpop.f32.mrf.mxu0
        %v7204 = vadd.f32 %v6996, %v7203
        %v7205 = vpop.f32.mrf.mxu0
        %7206 = vmatprep.mubr.bf16.mxu0 %v6932
        %7207 = vmatmul.mubr.bf16.gmra.mxu0 %v6931
        %v7208 = vpop.f32.mrf.mxu0
        %v7209 = vadd.f32 %v6996, %v7208
        %v7210 = vpop.f32.mrf.mxu0
        %v7211 = vpop.f32.mrf.mxu0
        %v7212 = vadd.f32 %v6996, %v7211
        %v7213 = vpop.f32.mrf.mxu0
        %7214 = vmatprep.mubr.bf16.mxu0 %v6934
        %7215 = vmatmul.mubr.bf16.gmra.mxu0 %v6933
        %v7216 = vpop.f32.mrf.mxu0
        %v7217 = vadd.f32 %v6996, %v7216
        %v7218 = vpop.f32.mrf.mxu0
        %v7219 = vpop.f32.mrf.mxu0
        %v7220 = vadd.f32 %v6996, %v7219
        %v7221 = vpop.f32.mrf.mxu0
        %7222 = vmatprep.mubr.bf16.mxu0 %v6936
        %7223 = vmatmul.mubr.bf16.gmra.mxu0 %v6935
        %v7224 = vpop.f32.mrf.mxu0
        %v7225 = vadd.f32 %v6996, %v7224
        %v7226 = vpop.f32.mrf.mxu0
        %v7227 = vpop.f32.mrf.mxu0
        %v7228 = vadd.f32 %v6996, %v7227
        %v7229 = vpop.f32.mrf.mxu0
        %7230 = vmatprep.mubr.bf16.mxu0 %v6938
        %7231 = vmatmul.mubr.bf16.gmra.mxu0 %v6937
        %v7232 = vpop.f32.mrf.mxu0
        %v7233 = vadd.f32 %v6996, %v7232
        %v7234 = vpop.f32.mrf.mxu0
        %v7235 = vpop.f32.mrf.mxu0
        %v7236 = vadd.f32 %v6996, %v7235
        %v7237 = vpop.f32.mrf.mxu0
        %7238 = vmatprep.mubr.bf16.mxu0 %v6940
        %7239 = vmatmul.mubr.bf16.gmra.mxu0 %v6939
        %v7240 = vpop.f32.mrf.mxu0
        %v7241 = vadd.f32 %v6996, %v7240
        %v7242 = vpop.f32.mrf.mxu0
        %v7243 = vpop.f32.mrf.mxu0
        %v7244 = vadd.f32 %v6996, %v7243
        %v7245 = vpop.f32.mrf.mxu0
        %7246 = vmatprep.mubr.bf16.mxu0 %v6942
        %7247 = vmatmul.mubr.bf16.gmra.mxu0 %v6941
        %v7248 = vpop.f32.mrf.mxu0
        %v7249 = vadd.f32 %v6996, %v7248
        %v7250 = vpop.f32.mrf.mxu0
        %v7251 = vpop.f32.mrf.mxu0
        %v7252 = vadd.f32 %v6996, %v7251
        %v7253 = vpop.f32.mrf.mxu0
        %7254 = vmatprep.mubr.bf16.mxu0 %v6944
        %7255 = vmatmul.mubr.bf16.gmra.mxu0 %v6943
        %v7256 = vpop.f32.mrf.mxu0
        %v7257 = vadd.f32 %v6996, %v7256
        %v7258 = vpop.f32.mrf.mxu0
        %v7259 = vpop.f32.mrf.mxu0
        %v7260 = vadd.f32 %v6996, %v7259
        %v7261 = vpop.f32.mrf.mxu0
        %7262 = vmatprep.mubr.bf16.mxu0 %v6946
        %7263 = vmatmul.mubr.bf16.gmra.mxu0 %v6945
        %v7264 = vpop.f32.mrf.mxu0
        %v7265 = vadd.f32 %v6996, %v7264
        %v7266 = vpop.f32.mrf.mxu0
        %v7267 = vpop.f32.mrf.mxu0
        %v7268 = vadd.f32 %v6996, %v7267
        %v7269 = vpop.f32.mrf.mxu0
        %7270 = vmatprep.mubr.bf16.mxu0 %v6948
        %7271 = vmatmul.mubr.bf16.gmra.mxu0 %v6947
        %v7272 = vpop.f32.mrf.mxu0
        %v7273 = vadd.f32 %v6996, %v7272
        %v7274 = vpop.f32.mrf.mxu0
        %v7275 = vpop.f32.mrf.mxu0
        %v7276 = vadd.f32 %v6996, %v7275
        %v7277 = vpop.f32.mrf.mxu0
        %7278 = vmatprep.mubr.bf16.mxu0 %v6950
        %7279 = vmatmul.mubr.bf16.gmra.mxu0 %v6949
        %v7280 = vpop.f32.mrf.mxu0
        %v7281 = vadd.f32 %v6996, %v7280
        %v7282 = vpop.f32.mrf.mxu0
        %v7283 = vpop.f32.mrf.mxu0
        %v7284 = vadd.f32 %v6996, %v7283
        %v7285 = vpop.f32.mrf.mxu0
        %7286 = vmatprep.mubr.bf16.mxu0 %v6952
        %7287 = vmatmul.mubr.bf16.gmra.mxu0 %v6951
        %v7288 = vpop.f32.mrf.mxu0
        %v7289 = vadd.f32 %v6996, %v7288
        %v7290 = vpop.f32.mrf.mxu0
        %v7291 = vpop.f32.mrf.mxu0
        %v7292 = vadd.f32 %v6996, %v7291
        %v7293 = vpop.f32.mrf.mxu0
        %7294 = vmatprep.mubr.bf16.mxu0 %v6954
        %7295 = vmatmul.mubr.bf16.gmra.mxu0 %v6953
        %v7296 = vpop.f32.mrf.mxu0
        %v7297 = vadd.f32 %v6996, %v7296
        %v7298 = vpop.f32.mrf.mxu0
        %v7299 = vpop.f32.mrf.mxu0
        %v7300 = vadd.f32 %v6996, %v7299
        %v7301 = vpop.f32.mrf.mxu0
        %7302 = vmatprep.mubr.bf16.mxu0 %v6956
        %7303 = vmatmul.mubr.bf16.gmra.mxu0 %v6955
        %v7304 = vpop.f32.mrf.mxu0
        %v7305 = vadd.f32 %v6996, %v7304
        %v7306 = vpop.f32.mrf.mxu0
        %v7307 = vpop.f32.mrf.mxu0
        %v7308 = vadd.f32 %v6996, %v7307
        %v7309 = vpop.f32.mrf.mxu0
        %7310 = vmatprep.mubr.bf16.mxu0 %v6958
        %7311 = vmatmul.mubr.bf16.gmra.mxu0 %v6957
        %v7312 = vpop.f32.mrf.mxu0
        %v7313 = vadd.f32 %v6996, %v7312
        %v7314 = vpop.f32.mrf.mxu0
        %v7315 = vpop.f32.mrf.mxu0
        %v7316 = vadd.f32 %v6996, %v7315
        %v7317 = vpop.f32.mrf.mxu0
        %7318 = vdwg.mxu0
        %v7319 = vmax.f32 %v7129, 0.0
        %v7320 = vmax.f32 %v7132, 0.0
        %v7321 = vmax.f32 %v7137, 0.0
        %v7322 = vmax.f32 %v7140, 0.0
        %v7323 = vmax.f32 %v7145, 0.0
        %v7324 = vmax.f32 %v7148, 0.0
        %v7325 = vmax.f32 %v7153, 0.0
        %v7326 = vmax.f32 %v7156, 0.0
        %v7327 = vmax.f32 %v7161, 0.0
        %v7328 = vmax.f32 %v7164, 0.0
        %v7329 = vmax.f32 %v7169, 0.0
        %v7330 = vmax.f32 %v7172, 0.0
        %v7331 = vmax.f32 %v7177, 0.0
        %v7332 = vmax.f32 %v7180, 0.0
        %v7333 = vmax.f32 %v7185, 0.0
        %v7334 = vmax.f32 %v7188, 0.0
        %v7335 = vmax.f32 %v7193, 0.0
        %v7336 = vmax.f32 %v7196, 0.0
        %v7337 = vmax.f32 %v7201, 0.0
        %v7338 = vmax.f32 %v7204, 0.0
        %v7339 = vmax.f32 %v7209, 0.0
        %v7340 = vmax.f32 %v7212, 0.0
        %v7341 = vmax.f32 %v7217, 0.0
        %v7342 = vmax.f32 %v7220, 0.0
        %v7343 = vmax.f32 %v7225, 0.0
        %v7344 = vmax.f32 %v7228, 0.0
        %v7345 = vmax.f32 %v7233, 0.0
        %v7346 = vmax.f32 %v7236, 0.0
        %v7347 = vmax.f32 %v7241, 0.0
        %v7348 = vmax.f32 %v7244, 0.0
        %v7349 = vmax.f32 %v7249, 0.0
        %v7350 = vmax.f32 %v7252, 0.0
        %v7351 = vmax.f32 %v7257, 0.0
        %v7352 = vmax.f32 %v7260, 0.0
        %v7353 = vmax.f32 %v7265, 0.0
        %v7354 = vmax.f32 %v7268, 0.0
        %v7355 = vmax.f32 %v7273, 0.0
        %v7356 = vmax.f32 %v7276, 0.0
        %v7357 = vmax.f32 %v7281, 0.0
        %v7358 = vmax.f32 %v7284, 0.0
        %v7359 = vmax.f32 %v7289, 0.0
        %v7360 = vmax.f32 %v7292, 0.0
        %v7361 = vmax.f32 %v7297, 0.0
        %v7362 = vmax.f32 %v7300, 0.0
        %v7363 = vmax.f32 %v7305, 0.0
        %v7364 = vmax.f32 %v7308, 0.0
        %v7365 = vmax.f32 %v7313, 0.0
        %v7366 = vmax.f32 %v7316, 0.0
        %v7367 = vpack.c.bf16 %v7320, %v7319
        %v7368 = vpack.c.bf16 %v7322, %v7321
        %v7369 = vpack.c.bf16 %v7324, %v7323
        %v7370 = vpack.c.bf16 %v7326, %v7325
        %v7371 = vpack.c.bf16 %v7328, %v7327
        %v7372 = vpack.c.bf16 %v7330, %v7329
        %v7373 = vpack.c.bf16 %v7332, %v7331
        %v7374 = vpack.c.bf16 %v7334, %v7333
        %v7375 = vpack.c.bf16 %v7336, %v7335
        %v7376 = vpack.c.bf16 %v7338, %v7337
        %v7377 = vpack.c.bf16 %v7340, %v7339
        %v7378 = vpack.c.bf16 %v7342, %v7341
        %v7379 = vpack.c.bf16 %v7344, %v7343
        %v7380 = vpack.c.bf16 %v7346, %v7345
        %v7381 = vpack.c.bf16 %v7348, %v7347
        %v7382 = vpack.c.bf16 %v7350, %v7349
        %v7383 = vpack.c.bf16 %v7352, %v7351
        %v7384 = vpack.c.bf16 %v7354, %v7353
        %v7385 = vpack.c.bf16 %v7356, %v7355
        %v7386 = vpack.c.bf16 %v7358, %v7357
        %v7387 = vpack.c.bf16 %v7360, %v7359
        %v7388 = vpack.c.bf16 %v7362, %v7361
        %v7389 = vpack.c.bf16 %v7364, %v7363
        %v7390 = vpack.c.bf16 %v7366, %v7365
        %v7391 = vld [vmem:[#allocation14] sm:$0xf]
        %v7392 = vld [vmem:[#allocation14 + $0x4] sm:$0xf]
        %v7393 = vld [vmem:[#allocation14 + $0x8] sm:$0xf]
        %v7394 = vld [vmem:[#allocation14 + $0xc] sm:$0xf]
        %v7395 = vld [vmem:[#allocation14 + $0x10] sm:$0xf]
        %v7396 = vld [vmem:[#allocation14 + $0x14] sm:$0xf]
        %v7397 = vld [vmem:[#allocation14 + $0x18] sm:$0xf]
        %v7398 = vld [vmem:[#allocation14 + $0x1c] sm:$0xf]
        %v7399 = vld [vmem:[#allocation14 + $0x20] sm:$0xf]
        %v7400 = vld [vmem:[#allocation14 + $0x24] sm:$0xf]
        %v7401 = vld [vmem:[#allocation14 + $0x28] sm:$0xf]
        %v7402 = vld [vmem:[#allocation14 + $0x2c] sm:$0xf]
        %v7403 = vld [vmem:[#allocation14 + $0x30] sm:$0xf]
        %v7404 = vld [vmem:[#allocation14 + $0x34] sm:$0xf]
        %v7405 = vld [vmem:[#allocation14 + $0x38] sm:$0xf]
        %v7406 = vld [vmem:[#allocation14 + $0x3c] sm:$0xf]
        %v7407 = vld [vmem:[#allocation16] sm:$0x1]
        %v7409 = vlaneseq
        %v7410 = vshrl.u32 %v7409, 7
        %v7411 = vsub.s32 0, %v7410
        %v7412 = vrot.slane %v7407, %v7411
        %v7430 = vunpack.c.l.b16 %v7391
        %v7431 = vunpack.c.l.b16 %v7392
        %v7432 = vunpack.c.l.b16 %v7393
        %v7433 = vunpack.c.l.b16 %v7394
        %v7434 = vunpack.c.l.b16 %v7395
        %v7435 = vunpack.c.l.b16 %v7396
        %v7436 = vunpack.c.l.b16 %v7397
        %v7437 = vunpack.c.l.b16 %v7398
        %v7438 = vunpack.c.l.b16 %v7399
        %v7439 = vunpack.c.l.b16 %v7400
        %v7440 = vunpack.c.l.b16 %v7401
        %v7441 = vunpack.c.l.b16 %v7402
        %v7442 = vunpack.c.l.b16 %v7403
        %v7443 = vunpack.c.l.b16 %v7404
        %v7444 = vunpack.c.l.b16 %v7405
        %v7445 = vunpack.c.l.b16 %v7406
        %v7446 = vpack.c.b16 %v7431, %v7430
        %v7447 = vpack.c.b16 %v7433, %v7432
        %v7448 = vpack.c.b16 %v7435, %v7434
        %v7449 = vpack.c.b16 %v7437, %v7436
        %v7450 = vpack.c.b16 %v7439, %v7438
        %v7451 = vpack.c.b16 %v7441, %v7440
        %v7452 = vpack.c.b16 %v7443, %v7442
        %v7453 = vpack.c.b16 %v7445, %v7444
        %7462 = vmatprep.subr.bf16.mxu0 0
        %7463 = vmatpush1.bf16.msra.mxu0 %v7453
        %7464 = vmatprep.subr.bf16.mxu0 0
        %7465 = vmatpush1.bf16.msra.mxu0 %v7452
        %7466 = vmatprep.subr.bf16.mxu0 0
        %7467 = vmatpush1.bf16.msra.mxu0 %v7451
        %7468 = vmatprep.subr.bf16.mxu0 0
        %7469 = vmatpush1.bf16.msra.mxu0 %v7450
        %7470 = vmatprep.subr.bf16.mxu0 0
        %7471 = vmatpush1.bf16.msra.mxu0 %v7449
        %7472 = vmatprep.subr.bf16.mxu0 0
        %7473 = vmatpush1.bf16.msra.mxu0 %v7448
        %7474 = vmatprep.subr.bf16.mxu0 0
        %7475 = vmatpush1.bf16.msra.mxu0 %v7447
        %7476 = vmatprep.subr.bf16.mxu0 0
        %7477 = vmatpush1.bf16.msra.mxu0 %v7446
        %7478 = vmatprep.subr.bf16.mxu0 0
        %7479 = vmatpush2.bf16.msra.mxu0 0
        %7480 = vmatprep.subr.bf16.mxu0 0
        %7481 = vmatpush2.bf16.msra.mxu0 0
        %7482 = vmatprep.subr.bf16.mxu0 0
        %7483 = vmatpush2.bf16.msra.mxu0 0
        %7484 = vmatprep.subr.bf16.mxu0 0
        %7485 = vmatpush2.bf16.msra.mxu0 0
        %7486 = vmatprep.subr.bf16.mxu0 0
        %7487 = vmatpush2.bf16.msra.mxu0 0
        %7488 = vmatprep.subr.bf16.mxu0 0
        %7489 = vmatpush2.bf16.msra.mxu0 0
        %7490 = vmatprep.subr.bf16.mxu0 0
        %7491 = vmatpush2.bf16.msra.mxu0 0
        %7492 = vmatprep.subr.bf16.mxu0 0
        %7493 = vmatpush2.bf16.msra.mxu0 0
        %7494 = vmatprep.mubr.bf16.mxu0 0
        %7495 = vmatmul.mubr.bf16.gmra.mxu0 %v7367
        %v7496 = vpop.f32.mrf.mxu0
        %v7497 = vadd.f32 %v7412, %v7496
        %v7498 = vpop.f32.mrf.mxu0
        %v7499 = vpop.f32.mrf.mxu0
        %v7500 = vadd.f32 %v7412, %v7499
        %v7501 = vpop.f32.mrf.mxu0
        %7502 = vmatprep.mubr.bf16.mxu0 0
        %7503 = vmatmul.mubr.bf16.gmra.mxu0 %v7368
        %v7504 = vpop.f32.mrf.mxu0
        %v7505 = vadd.f32 %v7412, %v7504
        %v7506 = vpop.f32.mrf.mxu0
        %v7507 = vpop.f32.mrf.mxu0
        %v7508 = vadd.f32 %v7412, %v7507
        %v7509 = vpop.f32.mrf.mxu0
        %7510 = vmatprep.mubr.bf16.mxu0 0
        %7511 = vmatmul.mubr.bf16.gmra.mxu0 %v7369
        %v7512 = vpop.f32.mrf.mxu0
        %v7513 = vadd.f32 %v7412, %v7512
        %v7514 = vpop.f32.mrf.mxu0
        %v7515 = vpop.f32.mrf.mxu0
        %v7516 = vadd.f32 %v7412, %v7515
        %v7517 = vpop.f32.mrf.mxu0
        %7518 = vmatprep.mubr.bf16.mxu0 0
        %7519 = vmatmul.mubr.bf16.gmra.mxu0 %v7370
        %v7520 = vpop.f32.mrf.mxu0
        %v7521 = vadd.f32 %v7412, %v7520
        %v7522 = vpop.f32.mrf.mxu0
        %v7523 = vpop.f32.mrf.mxu0
        %v7524 = vadd.f32 %v7412, %v7523
        %v7525 = vpop.f32.mrf.mxu0
        %7526 = vmatprep.mubr.bf16.mxu0 0
        %7527 = vmatmul.mubr.bf16.gmra.mxu0 %v7371
        %v7528 = vpop.f32.mrf.mxu0
        %v7529 = vadd.f32 %v7412, %v7528
        %v7530 = vpop.f32.mrf.mxu0
        %v7531 = vpop.f32.mrf.mxu0
        %v7532 = vadd.f32 %v7412, %v7531
        %v7533 = vpop.f32.mrf.mxu0
        %7534 = vmatprep.mubr.bf16.mxu0 0
        %7535 = vmatmul.mubr.bf16.gmra.mxu0 %v7372
        %v7536 = vpop.f32.mrf.mxu0
        %v7537 = vadd.f32 %v7412, %v7536
        %v7538 = vpop.f32.mrf.mxu0
        %v7539 = vpop.f32.mrf.mxu0
        %v7540 = vadd.f32 %v7412, %v7539
        %v7541 = vpop.f32.mrf.mxu0
        %7542 = vmatprep.mubr.bf16.mxu0 0
        %7543 = vmatmul.mubr.bf16.gmra.mxu0 %v7373
        %v7544 = vpop.f32.mrf.mxu0
        %v7545 = vadd.f32 %v7412, %v7544
        %v7546 = vpop.f32.mrf.mxu0
        %v7547 = vpop.f32.mrf.mxu0
        %v7548 = vadd.f32 %v7412, %v7547
        %v7549 = vpop.f32.mrf.mxu0
        %7550 = vmatprep.mubr.bf16.mxu0 0
        %7551 = vmatmul.mubr.bf16.gmra.mxu0 %v7374
        %v7552 = vpop.f32.mrf.mxu0
        %v7553 = vadd.f32 %v7412, %v7552
        %v7554 = vpop.f32.mrf.mxu0
        %v7555 = vpop.f32.mrf.mxu0
        %v7556 = vadd.f32 %v7412, %v7555
        %v7557 = vpop.f32.mrf.mxu0
        %7558 = vmatprep.mubr.bf16.mxu0 0
        %7559 = vmatmul.mubr.bf16.gmra.mxu0 %v7375
        %v7560 = vpop.f32.mrf.mxu0
        %v7561 = vadd.f32 %v7412, %v7560
        %v7562 = vpop.f32.mrf.mxu0
        %v7563 = vpop.f32.mrf.mxu0
        %v7564 = vadd.f32 %v7412, %v7563
        %v7565 = vpop.f32.mrf.mxu0
        %7566 = vmatprep.mubr.bf16.mxu0 0
        %7567 = vmatmul.mubr.bf16.gmra.mxu0 %v7376
        %v7568 = vpop.f32.mrf.mxu0
        %v7569 = vadd.f32 %v7412, %v7568
        %v7570 = vpop.f32.mrf.mxu0
        %v7571 = vpop.f32.mrf.mxu0
        %v7572 = vadd.f32 %v7412, %v7571
        %v7573 = vpop.f32.mrf.mxu0
        %7574 = vmatprep.mubr.bf16.mxu0 0
        %7575 = vmatmul.mubr.bf16.gmra.mxu0 %v7377
        %v7576 = vpop.f32.mrf.mxu0
        %v7577 = vadd.f32 %v7412, %v7576
        %v7578 = vpop.f32.mrf.mxu0
        %v7579 = vpop.f32.mrf.mxu0
        %v7580 = vadd.f32 %v7412, %v7579
        %v7581 = vpop.f32.mrf.mxu0
        %7582 = vmatprep.mubr.bf16.mxu0 0
        %7583 = vmatmul.mubr.bf16.gmra.mxu0 %v7378
        %v7584 = vpop.f32.mrf.mxu0
        %v7585 = vadd.f32 %v7412, %v7584
        %v7586 = vpop.f32.mrf.mxu0
        %v7587 = vpop.f32.mrf.mxu0
        %v7588 = vadd.f32 %v7412, %v7587
        %v7589 = vpop.f32.mrf.mxu0
        %7590 = vmatprep.mubr.bf16.mxu0 0
        %7591 = vmatmul.mubr.bf16.gmra.mxu0 %v7379
        %v7592 = vpop.f32.mrf.mxu0
        %v7593 = vadd.f32 %v7412, %v7592
        %v7594 = vpop.f32.mrf.mxu0
        %v7595 = vpop.f32.mrf.mxu0
        %v7596 = vadd.f32 %v7412, %v7595
        %v7597 = vpop.f32.mrf.mxu0
        %7598 = vmatprep.mubr.bf16.mxu0 0
        %7599 = vmatmul.mubr.bf16.gmra.mxu0 %v7380
        %v7600 = vpop.f32.mrf.mxu0
        %v7601 = vadd.f32 %v7412, %v7600
        %v7602 = vpop.f32.mrf.mxu0
        %v7603 = vpop.f32.mrf.mxu0
        %v7604 = vadd.f32 %v7412, %v7603
        %v7605 = vpop.f32.mrf.mxu0
        %7606 = vmatprep.mubr.bf16.mxu0 0
        %7607 = vmatmul.mubr.bf16.gmra.mxu0 %v7381
        %v7608 = vpop.f32.mrf.mxu0
        %v7609 = vadd.f32 %v7412, %v7608
        %v7610 = vpop.f32.mrf.mxu0
        %v7611 = vpop.f32.mrf.mxu0
        %v7612 = vadd.f32 %v7412, %v7611
        %v7613 = vpop.f32.mrf.mxu0
        %7614 = vmatprep.mubr.bf16.mxu0 0
        %7615 = vmatmul.mubr.bf16.gmra.mxu0 %v7382
        %v7616 = vpop.f32.mrf.mxu0
        %v7617 = vadd.f32 %v7412, %v7616
        %v7618 = vpop.f32.mrf.mxu0
        %v7619 = vpop.f32.mrf.mxu0
        %v7620 = vadd.f32 %v7412, %v7619
        %v7621 = vpop.f32.mrf.mxu0
        %7622 = vmatprep.mubr.bf16.mxu0 0
        %7623 = vmatmul.mubr.bf16.gmra.mxu0 %v7383
        %v7624 = vpop.f32.mrf.mxu0
        %v7625 = vadd.f32 %v7412, %v7624
        %v7626 = vpop.f32.mrf.mxu0
        %v7627 = vpop.f32.mrf.mxu0
        %v7628 = vadd.f32 %v7412, %v7627
        %v7629 = vpop.f32.mrf.mxu0
        %7630 = vmatprep.mubr.bf16.mxu0 0
        %7631 = vmatmul.mubr.bf16.gmra.mxu0 %v7384
        %v7632 = vpop.f32.mrf.mxu0
        %v7633 = vadd.f32 %v7412, %v7632
        %v7634 = vpop.f32.mrf.mxu0
        %v7635 = vpop.f32.mrf.mxu0
        %v7636 = vadd.f32 %v7412, %v7635
        %v7637 = vpop.f32.mrf.mxu0
        %7638 = vmatprep.mubr.bf16.mxu0 0
        %7639 = vmatmul.mubr.bf16.gmra.mxu0 %v7385
        %v7640 = vpop.f32.mrf.mxu0
        %v7641 = vadd.f32 %v7412, %v7640
        %v7642 = vpop.f32.mrf.mxu0
        %v7643 = vpop.f32.mrf.mxu0
        %v7644 = vadd.f32 %v7412, %v7643
        %v7645 = vpop.f32.mrf.mxu0
        %7646 = vmatprep.mubr.bf16.mxu0 0
        %7647 = vmatmul.mubr.bf16.gmra.mxu0 %v7386
        %v7648 = vpop.f32.mrf.mxu0
        %v7649 = vadd.f32 %v7412, %v7648
        %v7650 = vpop.f32.mrf.mxu0
        %v7651 = vpop.f32.mrf.mxu0
        %v7652 = vadd.f32 %v7412, %v7651
        %v7653 = vpop.f32.mrf.mxu0
        %7654 = vmatprep.mubr.bf16.mxu0 0
        %7655 = vmatmul.mubr.bf16.gmra.mxu0 %v7387
        %v7656 = vpop.f32.mrf.mxu0
        %v7657 = vadd.f32 %v7412, %v7656
        %v7658 = vpop.f32.mrf.mxu0
        %v7659 = vpop.f32.mrf.mxu0
        %v7660 = vadd.f32 %v7412, %v7659
        %v7661 = vpop.f32.mrf.mxu0
        %7662 = vmatprep.mubr.bf16.mxu0 0
        %7663 = vmatmul.mubr.bf16.gmra.mxu0 %v7388
        %v7664 = vpop.f32.mrf.mxu0
        %v7665 = vadd.f32 %v7412, %v7664
        %v7666 = vpop.f32.mrf.mxu0
        %v7667 = vpop.f32.mrf.mxu0
        %v7668 = vadd.f32 %v7412, %v7667
        %v7669 = vpop.f32.mrf.mxu0
        %7670 = vmatprep.mubr.bf16.mxu0 0
        %7671 = vmatmul.mubr.bf16.gmra.mxu0 %v7389
        %v7672 = vpop.f32.mrf.mxu0
        %v7673 = vadd.f32 %v7412, %v7672
        %v7674 = vpop.f32.mrf.mxu0
        %v7675 = vpop.f32.mrf.mxu0
        %v7676 = vadd.f32 %v7412, %v7675
        %v7677 = vpop.f32.mrf.mxu0
        %7678 = vmatprep.mubr.bf16.mxu0 0
        %7679 = vmatmul.mubr.bf16.gmra.mxu0 %v7390
        %v7680 = vpop.f32.mrf.mxu0
        %v7681 = vadd.f32 %v7412, %v7680
        %v7682 = vpop.f32.mrf.mxu0
        %v7683 = vpop.f32.mrf.mxu0
        %v7684 = vadd.f32 %v7412, %v7683
        %v7685 = vpop.f32.mrf.mxu0
        %7686 = vdwg.mxu0
        %v7687 = vmul.f32 %v7497, 1.442695
        %v7688 = vpow.pop %v7687
        %v7689 = vmul.f32 %v7500, 1.442695
        %v7690 = vpow.pop %v7689
        %v7691 = vmul.f32 %v7505, 1.442695
        %v7692 = vpow.pop %v7691
        %v7693 = vmul.f32 %v7508, 1.442695
        %v7694 = vpow.pop %v7693
        %v7695 = vmul.f32 %v7513, 1.442695
        %v7696 = vpow.pop %v7695
        %v7697 = vmul.f32 %v7516, 1.442695
        %v7698 = vpow.pop %v7697
        %v7699 = vmul.f32 %v7521, 1.442695
        %v7700 = vpow.pop %v7699
        %v7701 = vmul.f32 %v7524, 1.442695
        %v7702 = vpow.pop %v7701
        %v7703 = vmul.f32 %v7529, 1.442695
        %v7704 = vpow.pop %v7703
        %v7705 = vmul.f32 %v7532, 1.442695
        %v7706 = vpow.pop %v7705
        %v7707 = vmul.f32 %v7537, 1.442695
        %v7708 = vpow.pop %v7707
        %v7709 = vmul.f32 %v7540, 1.442695
        %v7710 = vpow.pop %v7709
        %v7711 = vmul.f32 %v7545, 1.442695
        %v7712 = vpow.pop %v7711
        %v7713 = vmul.f32 %v7548, 1.442695
        %v7714 = vpow.pop %v7713
        %v7715 = vmul.f32 %v7553, 1.442695
        %v7716 = vpow.pop %v7715
        %v7717 = vmul.f32 %v7556, 1.442695
        %v7718 = vpow.pop %v7717
        %v7719 = vmul.f32 %v7561, 1.442695
        %v7720 = vpow.pop %v7719
        %v7721 = vmul.f32 %v7564, 1.442695
        %v7722 = vpow.pop %v7721
        %v7723 = vmul.f32 %v7569, 1.442695
        %v7724 = vpow.pop %v7723
        %v7725 = vmul.f32 %v7572, 1.442695
        %v7726 = vpow.pop %v7725
        %v7727 = vmul.f32 %v7577, 1.442695
        %v7728 = vpow.pop %v7727
        %v7729 = vmul.f32 %v7580, 1.442695
        %v7730 = vpow.pop %v7729
        %v7731 = vmul.f32 %v7585, 1.442695
        %v7732 = vpow.pop %v7731
        %v7733 = vmul.f32 %v7588, 1.442695
        %v7734 = vpow.pop %v7733
        %v7735 = vmul.f32 %v7593, 1.442695
        %v7736 = vpow.pop %v7735
        %v7737 = vmul.f32 %v7596, 1.442695
        %v7738 = vpow.pop %v7737
        %v7739 = vmul.f32 %v7601, 1.442695
        %v7740 = vpow.pop %v7739
        %v7741 = vmul.f32 %v7604, 1.442695
        %v7742 = vpow.pop %v7741
        %v7743 = vmul.f32 %v7609, 1.442695
        %v7744 = vpow.pop %v7743
        %v7745 = vmul.f32 %v7612, 1.442695
        %v7746 = vpow.pop %v7745
        %v7747 = vmul.f32 %v7617, 1.442695
        %v7748 = vpow.pop %v7747
        %v7749 = vmul.f32 %v7620, 1.442695
        %v7750 = vpow.pop %v7749
        %v7751 = vmul.f32 %v7625, 1.442695
        %v7752 = vpow.pop %v7751
        %v7753 = vmul.f32 %v7628, 1.442695
        %v7754 = vpow.pop %v7753
        %v7755 = vmul.f32 %v7633, 1.442695
        %v7756 = vpow.pop %v7755
        %v7757 = vmul.f32 %v7636, 1.442695
        %v7758 = vpow.pop %v7757
        %v7759 = vmul.f32 %v7641, 1.442695
        %v7760 = vpow.pop %v7759
        %v7761 = vmul.f32 %v7644, 1.442695
        %v7762 = vpow.pop %v7761
        %v7763 = vmul.f32 %v7649, 1.442695
        %v7764 = vpow.pop %v7763
        %v7765 = vmul.f32 %v7652, 1.442695
        %v7766 = vpow.pop %v7765
        %v7767 = vmul.f32 %v7657, 1.442695
        %v7768 = vpow.pop %v7767
        %v7769 = vmul.f32 %v7660, 1.442695
        %v7770 = vpow.pop %v7769
        %v7771 = vmul.f32 %v7665, 1.442695
        %v7772 = vpow.pop %v7771
        %v7773 = vmul.f32 %v7668, 1.442695
        %v7774 = vpow.pop %v7773
        %v7775 = vmul.f32 %v7673, 1.442695
        %v7776 = vpow.pop %v7775
        %v7777 = vmul.f32 %v7676, 1.442695
        %v7778 = vpow.pop %v7777
        %v7779 = vmul.f32 %v7681, 1.442695
        %v7780 = vpow.pop %v7779
        %v7781 = vmul.f32 %v7684, 1.442695
        %v7782 = vpow.pop %v7781
        %v7783 = vpack.c.bf16 %v7690, %v7688
        %v7784 = vpack.c.bf16 %v7694, %v7692
        %v7785 = vpack.c.bf16 %v7698, %v7696
        %v7786 = vpack.c.bf16 %v7702, %v7700
        %v7787 = vpack.c.bf16 %v7706, %v7704
        %v7788 = vpack.c.bf16 %v7710, %v7708
        %v7789 = vpack.c.bf16 %v7714, %v7712
        %v7790 = vpack.c.bf16 %v7718, %v7716
        %v7791 = vpack.c.bf16 %v7722, %v7720
        %v7792 = vpack.c.bf16 %v7726, %v7724
        %v7793 = vpack.c.bf16 %v7730, %v7728
        %v7794 = vpack.c.bf16 %v7734, %v7732
        %v7795 = vpack.c.bf16 %v7738, %v7736
        %v7796 = vpack.c.bf16 %v7742, %v7740
        %v7797 = vpack.c.bf16 %v7746, %v7744
        %v7798 = vpack.c.bf16 %v7750, %v7748
        %v7799 = vpack.c.bf16 %v7754, %v7752
        %v7800 = vpack.c.bf16 %v7758, %v7756
        %v7801 = vpack.c.bf16 %v7762, %v7760
        %v7802 = vpack.c.bf16 %v7766, %v7764
        %v7803 = vpack.c.bf16 %v7770, %v7768
        %v7804 = vpack.c.bf16 %v7774, %v7772
        %v7805 = vpack.c.bf16 %v7778, %v7776
        %v7806 = vpack.c.bf16 %v7782, %v7780
        %v7831 = vunpack.c.l.b16 %v7783
        %v7832 = vunpack.c.h.b16 %v7783
        %v7833 = vunpack.c.l.b16 %v7784
        %v7834 = vunpack.c.h.b16 %v7784
        %v7835 = vunpack.c.l.b16 %v7785
        %v7836 = vunpack.c.h.b16 %v7785
        %v7837 = vunpack.c.l.b16 %v7786
        %v7838 = vunpack.c.h.b16 %v7786
        %v7839 = vunpack.c.l.b16 %v7787
        %v7840 = vunpack.c.h.b16 %v7787
        %v7841 = vunpack.c.l.b16 %v7788
        %v7842 = vunpack.c.h.b16 %v7788
        %v7843 = vunpack.c.l.b16 %v7789
        %v7844 = vunpack.c.h.b16 %v7789
        %v7845 = vunpack.c.l.b16 %v7790
        %v7846 = vunpack.c.h.b16 %v7790
        %v7847 = vunpack.c.l.b16 %v7791
        %v7848 = vunpack.c.h.b16 %v7791
        %v7849 = vunpack.c.l.b16 %v7792
        %v7850 = vunpack.c.h.b16 %v7792
        %v7851 = vunpack.c.l.b16 %v7793
        %v7852 = vunpack.c.h.b16 %v7793
        %v7853 = vunpack.c.l.b16 %v7794
        %v7854 = vunpack.c.h.b16 %v7794
        %v7855 = vunpack.c.l.b16 %v7795
        %v7856 = vunpack.c.h.b16 %v7795
        %v7857 = vunpack.c.l.b16 %v7796
        %v7858 = vunpack.c.h.b16 %v7796
        %v7859 = vunpack.c.l.b16 %v7797
        %v7860 = vunpack.c.h.b16 %v7797
        %v7861 = vunpack.c.l.b16 %v7798
        %v7862 = vunpack.c.h.b16 %v7798
        %v7863 = vunpack.c.l.b16 %v7799
        %v7864 = vunpack.c.h.b16 %v7799
        %v7865 = vunpack.c.l.b16 %v7800
        %v7866 = vunpack.c.h.b16 %v7800
        %v7867 = vunpack.c.l.b16 %v7801
        %v7868 = vunpack.c.h.b16 %v7801
        %v7869 = vunpack.c.l.b16 %v7802
        %v7870 = vunpack.c.h.b16 %v7802
        %v7871 = vunpack.c.l.b16 %v7803
        %v7872 = vunpack.c.h.b16 %v7803
        %v7873 = vunpack.c.l.b16 %v7804
        %v7874 = vunpack.c.h.b16 %v7804
        %v7875 = vunpack.c.l.b16 %v7805
        %v7876 = vunpack.c.h.b16 %v7805
        %v7877 = vunpack.c.l.b16 %v7806
        %v7878 = vunpack.c.h.b16 %v7806
        %v7879 = vpack.c.b16 %v7831, %v7831
        %v7880 = vpack.c.b16 %v7832, %v7832
        %v7881 = vpack.c.b16 %v7833, %v7833
        %v7882 = vpack.c.b16 %v7834, %v7834
        %v7883 = vpack.c.b16 %v7835, %v7835
        %v7884 = vpack.c.b16 %v7836, %v7836
        %v7885 = vpack.c.b16 %v7837, %v7837
        %v7886 = vpack.c.b16 %v7838, %v7838
        %v7887 = vpack.c.b16 %v7839, %v7839
        %v7888 = vpack.c.b16 %v7840, %v7840
        %v7889 = vpack.c.b16 %v7841, %v7841
        %v7890 = vpack.c.b16 %v7842, %v7842
        %v7891 = vpack.c.b16 %v7843, %v7843
        %v7892 = vpack.c.b16 %v7844, %v7844
        %v7893 = vpack.c.b16 %v7845, %v7845
        %v7894 = vpack.c.b16 %v7846, %v7846
        %v7895 = vpack.c.b16 %v7847, %v7847
        %v7896 = vpack.c.b16 %v7848, %v7848
        %v7897 = vpack.c.b16 %v7849, %v7849
        %v7898 = vpack.c.b16 %v7850, %v7850
        %v7899 = vpack.c.b16 %v7851, %v7851
        %v7900 = vpack.c.b16 %v7852, %v7852
        %v7901 = vpack.c.b16 %v7853, %v7853
        %v7902 = vpack.c.b16 %v7854, %v7854
        %v7903 = vpack.c.b16 %v7855, %v7855
        %v7904 = vpack.c.b16 %v7856, %v7856
        %v7905 = vpack.c.b16 %v7857, %v7857
        %v7906 = vpack.c.b16 %v7858, %v7858
        %v7907 = vpack.c.b16 %v7859, %v7859
        %v7908 = vpack.c.b16 %v7860, %v7860
        %v7909 = vpack.c.b16 %v7861, %v7861
        %v7910 = vpack.c.b16 %v7862, %v7862
        %v7911 = vpack.c.b16 %v7863, %v7863
        %v7912 = vpack.c.b16 %v7864, %v7864
        %v7913 = vpack.c.b16 %v7865, %v7865
        %v7914 = vpack.c.b16 %v7866, %v7866
        %v7915 = vpack.c.b16 %v7867, %v7867
        %v7916 = vpack.c.b16 %v7868, %v7868
        %v7917 = vpack.c.b16 %v7869, %v7869
        %v7918 = vpack.c.b16 %v7870, %v7870
        %v7919 = vpack.c.b16 %v7871, %v7871
        %v7920 = vpack.c.b16 %v7872, %v7872
        %v7921 = vpack.c.b16 %v7873, %v7873
        %v7922 = vpack.c.b16 %v7874, %v7874
        %v7923 = vpack.c.b16 %v7875, %v7875
        %v7924 = vpack.c.b16 %v7876, %v7876
        %v7925 = vpack.c.b16 %v7877, %v7877
        %v7926 = vpack.c.b16 %v7878, %v7878
        %7975 = vst [vmem:[%s466] sm:$0xf] %v7879
        %7976 = vst [vmem:[%s466 + $0x4] sm:$0xf] %v7880
        %7977 = vst [vmem:[%s466 + $0x8] sm:$0xf] %v7881
        %7978 = vst [vmem:[%s466 + $0xc] sm:$0xf] %v7882
        %7979 = vst [vmem:[%s466 + $0x10] sm:$0xf] %v7883
        %7980 = vst [vmem:[%s466 + $0x14] sm:$0xf] %v7884
        %7981 = vst [vmem:[%s466 + $0x18] sm:$0xf] %v7885
        %7982 = vst [vmem:[%s466 + $0x1c] sm:$0xf] %v7886
        %7983 = vst [vmem:[%s466 + $0x20] sm:$0xf] %v7887
        %7984 = vst [vmem:[%s466 + $0x24] sm:$0xf] %v7888
        %7985 = vst [vmem:[%s466 + $0x28] sm:$0xf] %v7889
        %7986 = vst [vmem:[%s466 + $0x2c] sm:$0xf] %v7890
        %7987 = vst [vmem:[%s466 + $0x30] sm:$0xf] %v7891
        %7988 = vst [vmem:[%s466 + $0x34] sm:$0xf] %v7892
        %7989 = vst [vmem:[%s466 + $0x38] sm:$0xf] %v7893
        %7990 = vst [vmem:[%s466 + $0x3c] sm:$0xf] %v7894
        %7991 = vst [vmem:[%s466 + $0x40] sm:$0xf] %v7895
        %7992 = vst [vmem:[%s466 + $0x44] sm:$0xf] %v7896
        %7993 = vst [vmem:[%s466 + $0x48] sm:$0xf] %v7897
        %7994 = vst [vmem:[%s466 + $0x4c] sm:$0xf] %v7898
        %7995 = vst [vmem:[%s466 + $0x50] sm:$0xf] %v7899
        %7996 = vst [vmem:[%s466 + $0x54] sm:$0xf] %v7900
        %7997 = vst [vmem:[%s466 + $0x58] sm:$0xf] %v7901
        %7998 = vst [vmem:[%s466 + $0x5c] sm:$0xf] %v7902
        %7999 = vst [vmem:[%s466 + $0x60] sm:$0xf] %v7903
        %8000 = vst [vmem:[%s466 + $0x64] sm:$0xf] %v7904
        %8001 = vst [vmem:[%s466 + $0x68] sm:$0xf] %v7905
        %8002 = vst [vmem:[%s466 + $0x6c] sm:$0xf] %v7906
        %8003 = vst [vmem:[%s466 + $0x70] sm:$0xf] %v7907
        %8004 = vst [vmem:[%s466 + $0x74] sm:$0xf] %v7908
        %8005 = vst [vmem:[%s466 + $0x78] sm:$0xf] %v7909
        %8006 = vst [vmem:[%s466 + $0x7c] sm:$0xf] %v7910
        %8007 = vst [vmem:[%s466 + $0x80] sm:$0xf] %v7911
        %8008 = vst [vmem:[%s466 + $0x84] sm:$0xf] %v7912
        %8009 = vst [vmem:[%s466 + $0x88] sm:$0xf] %v7913
        %8010 = vst [vmem:[%s466 + $0x8c] sm:$0xf] %v7914
        %8011 = vst [vmem:[%s466 + $0x90] sm:$0xf] %v7915
        %8012 = vst [vmem:[%s466 + $0x94] sm:$0xf] %v7916
        %8013 = vst [vmem:[%s466 + $0x98] sm:$0xf] %v7917
        %8014 = vst [vmem:[%s466 + $0x9c] sm:$0xf] %v7918
        %8015 = vst [vmem:[%s466 + $0xa0] sm:$0xf] %v7919
        %8016 = vst [vmem:[%s466 + $0xa4] sm:$0xf] %v7920
        %8017 = vst [vmem:[%s466 + $0xa8] sm:$0xf] %v7921
        %8018 = vst [vmem:[%s466 + $0xac] sm:$0xf] %v7922
        %8019 = vst [vmem:[%s466 + $0xb0] sm:$0xf] %v7923
        %8020 = vst [vmem:[%s466 + $0xb4] sm:$0xf] %v7924
        %8021 = vst [vmem:[%s466 + $0xb8] sm:$0xf] %v7925
        %8022 = vst [vmem:[%s466 + $0xbc] sm:$0xf] %v7926
        %s8023 = sand.u32 %s232, 1
        %s8024 = scalar_lea.sflag [#allocation4], %s8023
        %s8025 = sand.u32 %s232, 1
        %s8026 = smul.addr %s8025, 192
        %s8027 = scalar_lea.vmem [#allocation17], %s8026
        // Predicated region
        $region93: #{tpu_custom_call.1} parent=55 // pred_check
          %p8028 = pneg %p242
        $region94: #{tpu_custom_call.1} parent=55 // pred_check_branch
          %8030 = sbr.rel (%p8028) target = $region96
        $region95: #{tpu_custom_call.1} parent=55 // pred_region
          %s8031 = smul.u32 48, %s30
          %s8032 = ssub.s32 75, %s8031
          %p8033 = scmp.lt.s32.totalorder %s8032, 48
          %s8034 = scalar_select %p8033, %s8032, 48
          %s8035 = smul.u32 64, %s8034
          %s8037 = ssub.s32 3072, %s8035
          %8038 = vsyncadd %s8024, %s8037
          %p8039 = scmp.ne.s32.totalorder 0, %s8035
          %s8040 = smul.addr %s8031, 64
          %s8041 = scalar_lea.hbm %s9, %s8040
          %s8042 = smul.u32 4, %s8034
          %s8043 = sshll.u32 %s8027, 4
          %s8044 = int_to_ptr.vmem [resolvable:$true] %s8043
          %s8045 = sshll.u32 %s8042, 4
          %8049 = dma.vmem_to_hbm [thread:$0]  (%p8039), %s8044, %s8045, %s8041, %s8024, 64, 64, 4
        $region96: #{tpu_custom_call.1} parent=55 // pred_fallthru
          _
      $region56: #{tpu_custom_call.1} parent=5 // pred_fallthru
        _
      %p8050 = scmp.le.s32.totalorder 2, %s25
      // Predicated region
      $region97: #{tpu_custom_call.1} parent=5 // pred_check
        %p8051 = pneg %p8050
      $region98: #{tpu_custom_call.1} parent=5 // pred_check_branch
        %8053 = sbr.rel (%p8051) target = $region100
      $region99: #{tpu_custom_call.1} parent=5 // pred_region
        %s8054 = ssub.s32 %s25, 2
        // Predicated region
        $region101: #{tpu_custom_call.1} parent=99 // pred_check
          %p8055 = pneg %p248
        $region102: #{tpu_custom_call.1} parent=99 // pred_check_branch
          %8057 = sbr.rel (%p8055) target = $region104
        $region103: #{tpu_custom_call.1} parent=99 // pred_region
          %s8058 = sand.u32 %s233, 1
          %s8059 = scalar_lea.sflag [#allocation4], %s8058
          %s8060 = sand.u32 %s233, 1
          %s8061 = smul.addr %s8060, 192
          %s8062 = scalar_lea.vmem [#allocation17], %s8061
          %8063 = dma.done %s8059, 3072
        $region104: #{tpu_custom_call.1} parent=99 // pred_fallthru
          _
      $region100: #{tpu_custom_call.1} parent=5 // pred_fallthru
        _
    $region6: #{tpu_custom_call.1} parent=1 // loop_footer
      %s29 = sadd.s32 1, %s25
    $region7: #{tpu_custom_call.1} parent=1 // loop_footer_branch
      %24 = sbr.rel target = $region3
    $region8: #{tpu_custom_call.1} parent=1 // loop_exit
      _
    %8064 = vsyncpa [#allocation3], 1
    %s8065 = scalar_lea.sflag [#allocation3], 1
    %8066 = vsyncpa %s8065, 1
    %8067 = vsyncpa [#allocation6], 1
    %8068 = vsyncpa [#allocation9], 1
    %8069 = vsyncpa [#allocation12], 1
    %8070 = vsyncpa [#allocation15], 1
    %8071 = vsyncpa [#allocation4], 1
    %s8072 = scalar_lea.sflag [#allocation4], 1
    %8073 = vsyncpa %s8072, 1

</llo_original>
